<compile_context>
chip_gen: v7x
topology: tpu7x:2x2x1
jax: 0.10.0
libtpu: 0.0.40
codegen_flags: <defaults>
</compile_context>

<pallas_src>
import functools

import jax
import jax.numpy as jnp
from jax import lax
from jax.experimental import pallas as pl
from jax.experimental.pallas import tpu as pltpu


def _round_up(n, m):
    return ((n + m - 1) // m) * m


def _layer_norm(x, g, b, eps=1e-5):
    """x: (M, D) f32; g, b: (1, D) f32. Two-pass statistics (stable)."""
    mu = jnp.mean(x, axis=-1, keepdims=True)
    xc = x - mu
    var = jnp.mean(xc * xc, axis=-1, keepdims=True)
    return xc * lax.rsqrt(var + eps) * g + b


# --------------------------------------------------------------------------
# capability probe: can this jax build single-buffer a grid-invariant input?
# --------------------------------------------------------------------------
_BUFFERED_SINGLE = None


def _probe_kernel(w_ref, x_ref, o_ref):
    o_ref[...] = x_ref[...] + w_ref[...]


def _single_buffer_supported():
    global _BUFFERED_SINGLE
    if _BUFFERED_SINGLE is not None:
        return _BUFFERED_SINGLE
    try:
        w_spec = pl.BlockSpec((8, 128), lambda i: (0, 0),
                              pipeline_mode=pl.Buffered(1))
        fn = pl.pallas_call(
            _probe_kernel,
            grid=(2,),
            in_specs=[w_spec, pl.BlockSpec((8, 128), lambda i: (i, 0))],
            out_specs=pl.BlockSpec((8, 128), lambda i: (i, 0)),
            out_shape=jax.ShapeDtypeStruct((16, 128), jnp.float32),
        )
        jax.block_until_ready(fn(jnp.zeros((8, 128), jnp.float32),
                                 jnp.zeros((16, 128), jnp.float32)))
        _BUFFERED_SINGLE = True
    except Exception:
        _BUFFERED_SINGLE = False
    return _BUFFERED_SINGLE


# --------------------------------------------------------------------------
# kernel
# --------------------------------------------------------------------------
def aggregator_kernel(lens_ref, x_ref,
                      wqkv_ref, bqkv_ref, wo_ref, bo_ref,
                      ln1g_ref, ln1b_ref, w1_ref, b1_ref, w2_ref, b2_ref,
                      ln2g_ref, ln2b_ref,
                      out_ref, *, num_heads, num_layers):
    f32 = jnp.float32
    bf16 = jnp.bfloat16

    Bb, L, D = x_ref.shape                      # batch block, padded length, model dim
    H = num_heads
    Dh = D // H
    M = Bb * L
    scale = f32(1.0 / (Dh ** 0.5))

    # -- key-padding bias from scalar-prefetched lengths (no HBM mask stream) --
    base = pl.program_id(0) * Bb
    lens_col = jnp.concatenate(
        [jnp.full((1, 1), lens_ref[base + b], jnp.int32) for b in range(Bb)],
        axis=0)                                                 # (Bb, 1) i32
    kpos = lax.broadcasted_iota(jnp.int32, (Bb, L), 1)
    bias = jnp.where(kpos >= lens_col, f32(-1e30), f32(0.0))    # (Bb, L)
    bias = bias[:, None, None, :]                               # (Bb, 1, 1, L)

    # Fold the batch block into the matmul M dimension (Lp is a multiple of 16,
    # so this is a free shape-cast).
    x = x_ref[...].reshape(M, D)

    def layer_body(l, x):
        # ---- fused QKV projection (bf16 MXU operands, f32 accumulation) -----
        qkv = jnp.dot(x.astype(bf16), wqkv_ref[l],
                      preferred_element_type=f32) + bqkv_ref[pl.ds(l, 1)]
        q = qkv[:, 0:D] * scale                 # scale q (M*D), not (Bb*H*L*L) scores
        k = qkv[:, D:2 * D]
        v = qkv[:, 2 * D:3 * D]

        # (M, D) -> (Bb*H, L, Dh) with one reshape + one axis swap
        # (no per-head slice / stack / concatenate).
        def to_heads(t):
            return (t.reshape(Bb, L, H, Dh).swapaxes(1, 2)
                    .reshape(Bb * H, L, Dh).astype(bf16))

        qh, kh, vh = to_heads(q), to_heads(k), to_heads(v)

        # ---- batched multi-head attention -----------------------------------
        s = jnp.einsum('ald,amd->alm', qh, kh,
                       preferred_element_type=f32)              # (Bb*H, L, L)
        s = s.reshape(Bb, H, L, L) + bias
        s = s - jnp.max(s, axis=-1, keepdims=True)
        p = jnp.exp(s)
        p = p * pl.reciprocal(jnp.sum(p, axis=-1, keepdims=True), approx=True)
        ctx = jnp.einsum('alm,amd->ald',
                         p.reshape(Bb * H, L, L).astype(bf16), vh,
                         preferred_element_type=f32)            # (Bb*H, L, Dh)
        ctx = ctx.reshape(Bb, H, L, Dh).swapaxes(1, 2).reshape(M, D)

        attn = jnp.dot(ctx.astype(bf16), wo_ref[l],
                       preferred_element_type=f32) + bo_ref[pl.ds(l, 1)]
        # TODO(synk): dropout layers are identity here (eval-mode semantics).
        x = _layer_norm(x + attn, ln1g_ref[pl.ds(l, 1)], ln1b_ref[pl.ds(l, 1)])

        # ---- feed-forward (relu) ---------------------------------------------
        ff = jnp.dot(x.astype(bf16), w1_ref[l],
                     preferred_element_type=f32) + b1_ref[pl.ds(l, 1)]
        ff = jnp.maximum(ff, f32(0.0))
        ff = jnp.dot(ff.astype(bf16), w2_ref[l],
                     preferred_element_type=f32) + b2_ref[pl.ds(l, 1)]
        return _layer_norm(x + ff, ln2g_ref[pl.ds(l, 1)], ln2b_ref[pl.ds(l, 1)])

    if num_layers <= 2:
        for l in range(num_layers):             # shallow stack: static unroll
            x = layer_body(l, x)
    else:
        # deeper stacks: bound vreg live ranges / keep the instruction stream small
        x = lax.fori_loop(0, num_layers, layer_body, x)
    # TODO(synk): for num_layers > ~4 on v7x, stream per-layer weights (layer grid
    # axis or emit_pipeline) instead of keeping the full stack VMEM-resident.

    out_ref[...] = x.reshape(Bb, L, D)[:, 0:1, :]   # only the [CLS] rows


# --------------------------------------------------------------------------
# host-side sizing helpers
# --------------------------------------------------------------------------
def _weights_bytes(D, F, NL, weight_buffers):
    mm = NL * (D * 3 * D + D * D + 2 * D * F) * 2           # bf16 matmul weights
    vec = NL * (3 * D + 6 * D + F) * 4                      # biases + LN params (f32)
    return weight_buffers * (mm + vec)


def _step_bytes(block_b, Lp, D, F, H):
    rows = block_b * Lp
    return (2 * rows * D * 4            # x block (f32, double-buffered)
            + rows * 3 * D * 4          # qkv
            + 3 * rows * D * 2          # qh/kh/vh (bf16)
            + 2 * block_b * H * Lp * Lp * 4   # scores + probs (f32)
            + rows * F * 4              # ffn hidden
            + rows * D * 4              # ctx / residual
            + 2 * block_b * D * 4)      # out block


def _choose_block_b(B, Lp, D, F, H, NL, weight_buffers):
    """Fill the MXU M dim (>=256 rows) while keeping the per-step VMEM footprint
    within budget (v7x: 64 MiB/TC) and leaving >= 2 grid steps (megacore)."""
    bblk = max(1, min(B, pl.cdiv(256, Lp)))
    budget = max(40 * 1024 * 1024 - _weights_bytes(D, F, NL, weight_buffers),
                 8 * 1024 * 1024)
    while bblk > 1 and _step_bytes(bblk, Lp, D, F, H) > budget:
        bblk -= 1
    while bblk > 1 and pl.cdiv(B, bblk) < 2:    # both v7x TensorCores get work
        bblk -= 1
    return bblk


def _vmem_cap_bytes():
    try:
        info = pltpu.get_tpu_info()
        return min(int(info.vmem_capacity_bytes) * 7 // 8, 100 * 1024 * 1024)
    except Exception:
        return 56 * 1024 * 1024     # safe on every generation (v7x: 64 MiB/TC)


def _vmem_limit_bytes(block_b, Lp, D, F, H, NL, weight_buffers):
    est = _weights_bytes(D, F, NL, weight_buffers) + _step_bytes(block_b, Lp, D, F, H)
    est = int(est * 1.25) + (4 << 20)           # headroom + compiler scratch
    return max(32 * 1024 * 1024, min(est, _vmem_cap_bytes()))


# --------------------------------------------------------------------------
# pallas_call wrapper
# --------------------------------------------------------------------------
@functools.partial(jax.jit,
                   static_argnames=("num_heads", "num_layers", "block_b",
                                    "single_buffer"))
def aggregator_forward(x, lens, params, *, num_heads, num_layers, block_b,
                       single_buffer):
    """x: (Bp, Lp, D) f32, lens: (Bp,) i32 (valid rows incl. CLS) -> (Bp, D) f32."""
    Bp, Lp, D = x.shape
    NL = num_layers
    F = params['w1'].shape[-1]
    n_steps = Bp // block_b

    def const_spec(shape):
        idx = lambda i, lens_ref, n=len(shape): (0,) * n
        if single_buffer:
            # grid-invariant weights: single-buffered => half the VMEM footprint
            return pl.BlockSpec(shape, idx, pipeline_mode=pl.Buffered(1))
        return pl.BlockSpec(shape, idx)

    kernel = functools.partial(aggregator_kernel,
                               num_heads=num_heads, num_layers=num_layers)

    grid_spec = pltpu.PrefetchScalarGridSpec(
        num_scalar_prefetch=1,                  # lens -> SMEM
        grid=(n_steps,),
        in_specs=[
            pl.BlockSpec((block_b, Lp, D), lambda i, lens_ref: (i, 0, 0)),  # x
            const_spec((NL, D, 3 * D)), const_spec((NL, 3 * D)),   # wqkv, bqkv
            const_spec((NL, D, D)),     const_spec((NL, D)),       # wo, bo
            const_spec((NL, D)),        const_spec((NL, D)),       # ln1 g, b
            const_spec((NL, D, F)),     const_spec((NL, F)),       # w1, b1
            const_spec((NL, F, D)),     const_spec((NL, D)),       # w2, b2
            const_spec((NL, D)),        const_spec((NL, D)),       # ln2 g, b
        ],
        out_specs=pl.BlockSpec((block_b, 1, D), lambda i, lens_ref: (i, 0, 0)),
    )

    out = pl.pallas_call(
        kernel,
        grid_spec=grid_spec,
        out_shape=jax.ShapeDtypeStruct((Bp, 1, D), jnp.float32),
        compiler_params=pltpu.CompilerParams(
            dimension_semantics=("parallel",),
            vmem_limit_bytes=_vmem_limit_bytes(
                block_b, Lp, D, F, num_heads, NL,
                1 if single_buffer else 2)),
    )(lens, x,
      params['wqkv'], params['bqkv'], params['wo'], params['bo'],
      params['ln1_g'], params['ln1_b'], params['w1'], params['b1'],
      params['w2'], params['b2'], params['ln2_g'], params['ln2_b'])
    return out[:, 0, :]


# --------------------------------------------------------------------------
# pure-JAX reference (f32) for tolerance validation
# --------------------------------------------------------------------------
def _reference_forward(xpad, lens, params, num_heads, num_layers):
    B, L, D = xpad.shape
    H = num_heads
    Dh = D // H
    bias = jnp.where(jnp.arange(L)[None, :] >= lens[:, None], -1e30, 0.0)
    x = xpad.astype(jnp.float32)

    def heads(t):
        return t.reshape(B, L, H, Dh).transpose(0, 2, 1, 3)

    for l in range(num_layers):
        qkv = x @ params['wqkv'][l].astype(jnp.float32) + params['bqkv'][l]
        q, k, v = jnp.split(qkv, 3, axis=-1)
        q = q / (Dh ** 0.5)
        s = jnp.einsum('bhld,bhmd->bhlm', heads(q), heads(k)) + bias[:, None, None, :]
        p = jax.nn.softmax(s, axis=-1)
        ctx = jnp.einsum('bhlm,bhmd->bhld', p, heads(v)).transpose(0, 2, 1, 3)
        ctx = ctx.reshape(B, L, D)
        attn = ctx @ params['wo'][l].astype(jnp.float32) + params['bo'][l]
        x = _layer_norm(x + attn, params['ln1_g'][l][None], params['ln1_b'][l][None])
        ff = jnp.maximum(x @ params['w1'][l].astype(jnp.float32) + params['b1'][l], 0.0)
        ff = ff @ params['w2'][l].astype(jnp.float32) + params['b2'][l]
        x = _layer_norm(x + ff, params['ln2_g'][l][None], params['ln2_b'][l][None])
    return x[:, 0, :]


# --------------------------------------------------------------------------
# model
# --------------------------------------------------------------------------
class BaseAggregatorModelPallas:
    """JAX/Pallas reimplementation of BaseAggregatorModel.forward."""

    def __init__(self, hparams=None):
        hparams = hparams or {}
        self.d_model = hparams.get('aggregator_input_size', 512)
        self.nhead = hparams.get('aggregator_number_of_attention_heads', 4)
        self.num_layers = hparams.get('aggregator_layers', 2)
        extra = hparams.get('aggregator_additional_parameters', {})
        self.dim_ff = extra.get('dim_feedforward', 2048)
        assert self.d_model % self.nhead == 0

        def xavier(k, shape):
            fan_in, fan_out = shape[-2], shape[-1]
            std = (2.0 / (fan_in + fan_out)) ** 0.5
            return std * jax.random.normal(k, shape, dtype=jnp.float32)

        D, F, NL = self.d_model, self.dim_ff, self.num_layers
        key = jax.random.PRNGKey(0)
        key, kc = jax.random.split(key)
        # nn.Parameter(zeros(1, D)) followed by xavier_normal_
        self.cls_vector = xavier(kc, (1, D))

        wqkv, wo, w1, w2 = [], [], [], []
        for _ in range(NL):
            keys = jax.random.split(key, 8)
            key = keys[0]
            wq = xavier(keys[1], (D, D))
            wk = xavier(keys[2], (D, D))
            wv = xavier(keys[3], (D, D))
            wqkv.append(jnp.concatenate([wq, wk, wv], axis=1))   # fused (D, 3D)
            wo.append(xavier(keys[4], (D, D)))
            w1.append(xavier(keys[5], (D, F)))
            w2.append(xavier(keys[6], (F, D)))

        # Matmul weights bf16 (MXU-native); biases / LN params 2-D f32 (no (1,X)
        # sublane padding).
        self.params = dict(
            wqkv=jnp.stack(wqkv).astype(jnp.bfloat16),
            bqkv=jnp.zeros((NL, 3 * D), jnp.float32),
            wo=jnp.stack(wo).astype(jnp.bfloat16),
            bo=jnp.zeros((NL, D), jnp.float32),
            ln1_g=jnp.ones((NL, D), jnp.float32),
            ln1_b=jnp.zeros((NL, D), jnp.float32),
            w1=jnp.stack(w1).astype(jnp.bfloat16),
            b1=jnp.zeros((NL, F), jnp.float32),
            w2=jnp.stack(w2).astype(jnp.bfloat16),
            b2=jnp.zeros((NL, D), jnp.float32),
            ln2_g=jnp.ones((NL, D), jnp.float32),
            ln2_b=jnp.zeros((NL, D), jnp.float32),
        )

    def _pad_batch(self, batch):
        lengths = [int(x.shape[0]) + 1 for x in batch]           # +1 for [CLS]
        B = len(batch)
        # Bucket the padded length to a multiple of 16 (bf16 sublane pack).
        # TODO(synk): bucket to 128 for long sequences (lane-dense score tile).
        Lp = max(16, _round_up(max(lengths), 16))
        rows = []
        for x in batch:
            seq = jnp.concatenate([self.cls_vector,
                                   jnp.asarray(x, jnp.float32)], axis=0)
            rows.append(jnp.pad(seq, ((0, Lp - seq.shape[0]), (0, 0))))
        return rows, lengths, B, Lp

    def forward(self, batch):
        """batch: list of (n_i, D) float32 arrays (variable lengths) -> (B, D)."""
        rows, lengths, B, Lp = self._pad_batch(batch)
        single_buffer = _single_buffer_supported()
        weight_buffers = 1 if single_buffer else 2
        block_b = _choose_block_b(B, Lp, self.d_model, self.dim_ff, self.nhead,
                                  self.num_layers, weight_buffers)
        B_pad = _round_up(B, block_b)
        # Pad the batch: zero rows, length 1 so the CLS key keeps softmax finite.
        rows += [jnp.zeros((Lp, self.d_model), jnp.float32)] * (B_pad - B)
        xpad = jnp.stack(rows, axis=0)                           # (B_pad, Lp, D)
        lens = jnp.asarray(lengths + [1] * (B_pad - B), jnp.int32)
        out = aggregator_forward(xpad, lens, self.params,
                                 num_heads=self.nhead,
                                 num_layers=self.num_layers,
                                 block_b=block_b,
                                 single_buffer=single_buffer)
        return out[:B]

    def reference_forward(self, batch):
        rows, lengths, B, Lp = self._pad_batch(batch)
        xpad = jnp.stack(rows, axis=0)
        lens = jnp.asarray(lengths, jnp.int32)
        return _reference_forward(xpad, lens, self.params,
                                  self.nhead, self.num_layers)


if __name__ == "__main__":
    hparams = {
        'aggregator_input_size': 32,
        'aggregator_number_of_attention_heads': 4,
        'aggregator_layers': 2,
        'aggregator_additional_parameters': {'dim_feedforward': 64},
    }
    model = BaseAggregatorModelPallas(hparams)

    key = jax.random.PRNGKey(0)
    k1, k2, k3 = jax.random.split(key, 3)
    # "batch" is a list of variable-length sequences of hidden vectors.
    batch = [jax.random.normal(k1, (5, 32), dtype=jnp.float32),
             jax.random.normal(k2, (3, 32), dtype=jnp.float32),
             jax.random.normal(k3, (7, 32), dtype=jnp.float32)]

    out = model.forward(batch)
    jax.block_until_ready(out)
    assert out.shape == (3, 32) and out.dtype == jnp.float32
    assert bool(jnp.all(jnp.isfinite(out)))

    # Loose-tolerance check vs pure-JAX f32 reference (bf16 matmul operands +
    # approximate softmax reciprocal make bit-exact impossible).
    ref = model.reference_forward(batch)
    max_err = float(jnp.max(jnp.abs(out - ref)))
    assert max_err < 0.5, f"kernel deviates from reference: max_err={max_err}"
    print("KERNEL_OK")
</pallas_src>

<mosaic_0001>
module attributes {stable_mosaic.version = 11 : i64} {
  func.func @_probe_kernel(%arg0: i32, %arg1: memref<8x128xf32, #tpu.memory_space<vmem>>, %arg2: memref<8x128xf32, #tpu.memory_space<vmem>>, %arg3: memref<8x128xf32, #tpu.memory_space<vmem>>) attributes {dimension_semantics = [#tpu.dimension_semantics<arbitrary>], iteration_bounds = array<i64: 2>, scalar_prefetch = 0 : i64, scratch_operands = 0 : i64, tpu.core_type = #tpu.core_type<tc>, window_params = [{pipeline_mode = #tpu.pipeline_mode<synchronous>, transform_indices = @transform_0, window_bounds = array<i64: 8, 128>}, {transform_indices = @transform_1, window_bounds = array<i64: 8, 128>}, {transform_indices = @transform_2, window_bounds = array<i64: 8, 128>}]} {
    %c0 = arith.constant 0 : index
    %c0_0 = arith.constant 0 : index
    %0 = vector.load %arg2[%c0, %c0_0] : memref<8x128xf32, #tpu.memory_space<vmem>>, vector<8x128xf32>
    %c0_1 = arith.constant 0 : index
    %c0_2 = arith.constant 0 : index
    %1 = vector.load %arg1[%c0_1, %c0_2] : memref<8x128xf32, #tpu.memory_space<vmem>>, vector<8x128xf32>
    %2 = arith.addf %0, %1 : vector<8x128xf32>
    %c0_3 = arith.constant 0 : index
    %c0_4 = arith.constant 0 : index
    %3 = vector.load %arg3[%c0_3, %c0_4] : memref<8x128xf32, #tpu.memory_space<vmem>>, vector<8x128xf32>
    tpu.vector_store %arg3[%c0_3, %c0_4], %2 {strides = array<i32>} : memref<8x128xf32, #tpu.memory_space<vmem>>, vector<8x128xf32>,
    return
  }
  func.func @transform_0(%arg0: i32) -> (i32, i32) {
    %c0_i32 = arith.constant 0 : i32
    %c0_i32_0 = arith.constant 0 : i32
    %c0_i32_1 = arith.constant 0 : i32
    return %c0_i32, %c0_i32_0 : i32, i32
  }
  func.func @transform_1(%arg0: i32) -> (i32, i32) {
    %c0_i32 = arith.constant 0 : i32
    %c0_i32_0 = arith.constant 0 : i32
    return %arg0, %c0_i32 : i32, i32
  }
  func.func @transform_2(%arg0: i32) -> (i32, i32) {
    %c0_i32 = arith.constant 0 : i32
    %c0_i32_0 = arith.constant 0 : i32
    return %arg0, %c0_i32 : i32, i32
  }
}

module attributes {stable_mosaic.version = 11 : i64} {
  func.func @aggregator_kernel(%arg0: i32, %arg1: memref<4xi32, #tpu.memory_space<smem>>, %arg2: memref<2x16x32xf32, #tpu.memory_space<vmem>>, %arg3: memref<2x32x96xbf16, #tpu.memory_space<vmem>>, %arg4: memref<2x96xf32, #tpu.memory_space<vmem>>, %arg5: memref<2x32x32xbf16, #tpu.memory_space<vmem>>, %arg6: memref<2x32xf32, #tpu.memory_space<vmem>>, %arg7: memref<2x32xf32, #tpu.memory_space<vmem>>, %arg8: memref<2x32xf32, #tpu.memory_space<vmem>>, %arg9: memref<2x32x64xbf16, #tpu.memory_space<vmem>>, %arg10: memref<2x64xf32, #tpu.memory_space<vmem>>, %arg11: memref<2x64x32xbf16, #tpu.memory_space<vmem>>, %arg12: memref<2x32xf32, #tpu.memory_space<vmem>>, %arg13: memref<2x32xf32, #tpu.memory_space<vmem>>, %arg14: memref<2x32xf32, #tpu.memory_space<vmem>>, %arg15: memref<2x1x32xf32, #tpu.memory_space<vmem>>) attributes {dimension_semantics = [#tpu.dimension_semantics<parallel>], iteration_bounds = array<i64: 2>, scalar_prefetch = 1 : i64, scratch_operands = 0 : i64, tpu.core_type = #tpu.core_type<tc>, window_params = [{transform_indices = @transform_0, window_bounds = array<i64: 2, 16, 32>}, {pipeline_mode = #tpu.pipeline_mode<synchronous>, transform_indices = @transform_1, window_bounds = array<i64: 2, 32, 96>}, {pipeline_mode = #tpu.pipeline_mode<synchronous>, transform_indices = @transform_2, window_bounds = array<i64: 2, 96>}, {pipeline_mode = #tpu.pipeline_mode<synchronous>, transform_indices = @transform_3, window_bounds = array<i64: 2, 32, 32>}, {pipeline_mode = #tpu.pipeline_mode<synchronous>, transform_indices = @transform_4, window_bounds = array<i64: 2, 32>}, {pipeline_mode = #tpu.pipeline_mode<synchronous>, transform_indices = @transform_5, window_bounds = array<i64: 2, 32>}, {pipeline_mode = #tpu.pipeline_mode<synchronous>, transform_indices = @transform_6, window_bounds = array<i64: 2, 32>}, {pipeline_mode = #tpu.pipeline_mode<synchronous>, transform_indices = @transform_7, window_bounds = array<i64: 2, 32, 64>}, {pipeline_mode = #tpu.pipeline_mode<synchronous>, transform_indices = @transform_8, window_bounds = array<i64: 2, 64>}, {pipeline_mode = #tpu.pipeline_mode<synchronous>, transform_indices = @transform_9, window_bounds = array<i64: 2, 64, 32>}, {pipeline_mode = #tpu.pipeline_mode<synchronous>, transform_indices = @transform_10, window_bounds = array<i64: 2, 32>}, {pipeline_mode = #tpu.pipeline_mode<synchronous>, transform_indices = @transform_11, window_bounds = array<i64: 2, 32>}, {pipeline_mode = #tpu.pipeline_mode<synchronous>, transform_indices = @transform_12, window_bounds = array<i64: 2, 32>}, {transform_indices = @transform_13, window_bounds = array<i64: 2, 1, 32>}]} {
    %c2_i32 = arith.constant 2 : i32
    %0 = arith.muli %arg0, %c2_i32 : i32
    %c0_i32 = arith.constant 0 : i32
    %1 = arith.addi %0, %c0_i32 : i32
    %2 = arith.index_cast %1 : i32 to index
    %3 = memref.load %arg1[%2] : memref<4xi32, #tpu.memory_space<smem>>
    %4 = vector.broadcast %3 : i32 to vector<1x1xi32>
    %c1_i32 = arith.constant 1 : i32
    %5 = arith.addi %0, %c1_i32 : i32
    %6 = arith.index_cast %5 : i32 to index
    %7 = memref.load %arg1[%6] : memref<4xi32, #tpu.memory_space<smem>>
    %8 = vector.broadcast %7 : i32 to vector<1x1xi32>
    %9 = tpu.concatenate %4, %8 in 0 : vector<1x1xi32>, vector<1x1xi32> -> vector<2x1xi32>
    %10 = tpu.iota {dimensions = array<i32: 1>} : vector<2x16xi32>
    %11 = vector.broadcast %9 : vector<2x1xi32> to vector<2x16xi32>
    %12 = arith.cmpi sge, %10, %11 : vector<2x16xi32>
    %cst = arith.constant -1.000000e+30 : f32
    %cst_0 = arith.constant 0.000000e+00 : f32
    %13 = vector.broadcast %cst : f32 to vector<2x16xf32>
    %14 = vector.broadcast %cst_0 : f32 to vector<2x16xf32>
    %15 = arith.select %12, %13, %14 : vector<2x16xi1>, vector<2x16xf32>
    %16 = vector.shape_cast %15 : vector<2x16xf32> to vector<2x1x1x16xf32>
    %c0 = arith.constant 0 : index
    %c0_1 = arith.constant 0 : index
    %c0_2 = arith.constant 0 : index
    %17 = vector.load %arg2[%c0, %c0_1, %c0_2] : memref<2x16x32xf32, #tpu.memory_space<vmem>>, vector<2x16x32xf32>
    %18 = vector.shape_cast %17 : vector<2x16x32xf32> to vector<32x32xf32>
    %19 = arith.truncf %18 : vector<32x32xf32> to vector<32x32xbf16>
    %c0_3 = arith.constant 0 : index
    %c0_4 = arith.constant 0 : index
    %c0_5 = arith.constant 0 : index
    %20 = vector.load %arg3[%c0_3, %c0_4, %c0_5] : memref<2x32x96xbf16, #tpu.memory_space<vmem>>, vector<1x32x96xbf16>
    %21 = vector.shape_cast %20 : vector<1x32x96xbf16> to vector<32x96xbf16>
    %cst_6 = arith.constant dense<0.000000e+00> : vector<32x96xf32>
    %22 = tpu.matmul %19, %21, %cst_6 {dimension_numbers = #tpu.dot_dimension_numbers<[1], [0], [0], [1], [0, 0, 1, 1], [], []>} : vector<32x32xbf16>, vector<32x96xbf16>, vector<32x96xf32> -> vector<32x96xf32>
    %c0_7 = arith.constant 0 : index
    %c0_8 = arith.constant 0 : index
    %23 = vector.load %arg4[%c0_7, %c0_8] : memref<2x96xf32, #tpu.memory_space<vmem>>, vector<1x96xf32>
    %24 = vector.broadcast %23 : vector<1x96xf32> to vector<32x96xf32>
    %25 = arith.addf %22, %24 : vector<32x96xf32>
    %26 = vector.extract_strided_slice %25 {offsets = [0, 0], sizes = [32, 32], strides = [1, 1]} : vector<32x96xf32> to vector<32x32xf32>
    %cst_9 = arith.constant 0.353553385 : f32
    %27 = vector.broadcast %cst_9 : f32 to vector<32x32xf32>
    %28 = arith.mulf %26, %27 : vector<32x32xf32>
    %29 = vector.extract_strided_slice %25 {offsets = [0, 32], sizes = [32, 32], strides = [1, 1]} : vector<32x96xf32> to vector<32x32xf32>
    %30 = vector.extract_strided_slice %25 {offsets = [0, 64], sizes = [32, 32], strides = [1, 1]} : vector<32x96xf32> to vector<32x32xf32>
    %31 = vector.shape_cast %28 : vector<32x32xf32> to vector<2x16x4x8xf32>
    %32 = tpu.transpose %31, [0, 2, 1, 3] : vector<2x16x4x8xf32> -> vector<2x4x16x8xf32>
    %33 = vector.shape_cast %32 : vector<2x4x16x8xf32> to vector<8x16x8xf32>
    %34 = arith.truncf %33 : vector<8x16x8xf32> to vector<8x16x8xbf16>
    %35 = vector.shape_cast %29 : vector<32x32xf32> to vector<2x16x4x8xf32>
    %36 = tpu.transpose %35, [0, 2, 1, 3] : vector<2x16x4x8xf32> -> vector<2x4x16x8xf32>
    %37 = vector.shape_cast %36 : vector<2x4x16x8xf32> to vector<8x16x8xf32>
    %38 = arith.truncf %37 : vector<8x16x8xf32> to vector<8x16x8xbf16>
    %39 = vector.shape_cast %30 : vector<32x32xf32> to vector<2x16x4x8xf32>
    %40 = tpu.transpose %39, [0, 2, 1, 3] : vector<2x16x4x8xf32> -> vector<2x4x16x8xf32>
    %41 = vector.shape_cast %40 : vector<2x4x16x8xf32> to vector<8x16x8xf32>
    %42 = arith.truncf %41 : vector<8x16x8xf32> to vector<8x16x8xbf16>
    "tpu.trace_start"() <{level = 10 : i32, message = "ald,amd->alm"}> : () -> ()
    %cst_10 = arith.constant dense<0.000000e+00> : vector<8x16x16xf32>
    %43 = tpu.matmul %34, %38, %cst_10 {dimension_numbers = #tpu.dot_dimension_numbers<[2], [2], [1], [1], [0, 0, 0, 1, 1, 1], [0], [0]>} : vector<8x16x8xbf16>, vector<8x16x8xbf16>, vector<8x16x16xf32> -> vector<8x16x16xf32>
    "tpu.trace_stop"() : () -> ()
    %44 = vector.shape_cast %43 : vector<8x16x16xf32> to vector<2x4x16x16xf32>
    %45 = vector.broadcast %16 : vector<2x1x1x16xf32> to vector<2x4x16x16xf32>
    %46 = arith.addf %44, %45 : vector<2x4x16x16xf32>
    %cst_11 = arith.constant dense<0xFF800000> : vector<2x4x16xf32>
    %47 = vector.multi_reduction <maximumf>, %46, %cst_11 [3] : vector<2x4x16x16xf32> to vector<2x4x16xf32>
    %48 = vector.shape_cast %47 : vector<2x4x16xf32> to vector<2x4x16x1xf32>
    %49 = vector.broadcast %48 : vector<2x4x16x1xf32> to vector<2x4x16x16xf32>
    %50 = arith.subf %46, %49 : vector<2x4x16x16xf32>
    %51 = math.exp %50 : vector<2x4x16x16xf32>
    %cst_12 = arith.constant dense<0.000000e+00> : vector<2x4x16xf32>
    %52 = vector.multi_reduction <add>, %51, %cst_12 [3] : vector<2x4x16x16xf32> to vector<2x4x16xf32>
    %53 = vector.shape_cast %52 : vector<2x4x16xf32> to vector<2x4x16x1xf32>
    %54 = tpu.reciprocal %53 {approx = true} : vector<2x4x16x1xf32> -> vector<2x4x16x1xf32>
    %55 = vector.broadcast %54 : vector<2x4x16x1xf32> to vector<2x4x16x16xf32>
    %56 = arith.mulf %51, %55 : vector<2x4x16x16xf32>
    %57 = vector.shape_cast %56 : vector<2x4x16x16xf32> to vector<8x16x16xf32>
    %58 = arith.truncf %57 : vector<8x16x16xf32> to vector<8x16x16xbf16>
    "tpu.trace_start"() <{level = 10 : i32, message = "alm,amd->ald"}> : () -> ()
    %cst_13 = arith.constant dense<0.000000e+00> : vector<8x16x8xf32>
    %59 = tpu.matmul %58, %42, %cst_13 {dimension_numbers = #tpu.dot_dimension_numbers<[2], [1], [1], [2], [0, 0, 0, 1, 1, 2], [0], [0]>} : vector<8x16x16xbf16>, vector<8x16x8xbf16>, vector<8x16x8xf32> -> vector<8x16x8xf32>
    "tpu.trace_stop"() : () -> ()
    %60 = vector.shape_cast %59 : vector<8x16x8xf32> to vector<2x4x16x8xf32>
    %61 = tpu.transpose %60, [0, 2, 1, 3] : vector<2x4x16x8xf32> -> vector<2x16x4x8xf32>
    %62 = vector.shape_cast %61 : vector<2x16x4x8xf32> to vector<32x32xf32>
    %63 = arith.truncf %62 : vector<32x32xf32> to vector<32x32xbf16>
    %c0_14 = arith.constant 0 : index
    %c0_15 = arith.constant 0 : index
    %c0_16 = arith.constant 0 : index
    %64 = vector.load %arg5[%c0_14, %c0_15, %c0_16] : memref<2x32x32xbf16, #tpu.memory_space<vmem>>, vector<1x32x32xbf16>
    %65 = vector.shape_cast %64 : vector<1x32x32xbf16> to vector<32x32xbf16>
    %cst_17 = arith.constant dense<0.000000e+00> : vector<32x32xf32>
    %66 = tpu.matmul %63, %65, %cst_17 {dimension_numbers = #tpu.dot_dimension_numbers<[1], [0], [0], [1], [0, 0, 1, 1], [], []>} : vector<32x32xbf16>, vector<32x32xbf16>, vector<32x32xf32> -> vector<32x32xf32>
    %c0_18 = arith.constant 0 : index
    %c0_19 = arith.constant 0 : index
    %67 = vector.load %arg6[%c0_18, %c0_19] : memref<2x32xf32, #tpu.memory_space<vmem>>, vector<1x32xf32>
    %68 = vector.broadcast %67 : vector<1x32xf32> to vector<32x32xf32>
    %69 = arith.addf %66, %68 : vector<32x32xf32>
    %70 = arith.addf %18, %69 : vector<32x32xf32>
    %c0_20 = arith.constant 0 : index
    %c0_21 = arith.constant 0 : index
    %71 = vector.load %arg7[%c0_20, %c0_21] : memref<2x32xf32, #tpu.memory_space<vmem>>, vector<1x32xf32>
    %c0_22 = arith.constant 0 : index
    %c0_23 = arith.constant 0 : index
    %72 = vector.load %arg8[%c0_22, %c0_23] : memref<2x32xf32, #tpu.memory_space<vmem>>, vector<1x32xf32>
    %cst_24 = arith.constant dense<0.000000e+00> : vector<32xf32>
    %73 = vector.multi_reduction <add>, %70, %cst_24 [1] : vector<32x32xf32> to vector<32xf32>
    %74 = vector.shape_cast %73 : vector<32xf32> to vector<32x1xf32>
    %cst_25 = arith.constant 3.200000e+01 : f32
    %75 = vector.broadcast %cst_25 : f32 to vector<32x1xf32>
    %76 = arith.divf %74, %75 : vector<32x1xf32>
    %77 = vector.broadcast %76 : vector<32x1xf32> to vector<32x32xf32>
    %78 = arith.subf %70, %77 : vector<32x32xf32>
    %79 = arith.mulf %78, %78 : vector<32x32xf32>
    %cst_26 = arith.constant dense<0.000000e+00> : vector<32xf32>
    %80 = vector.multi_reduction <add>, %79, %cst_26 [1] : vector<32x32xf32> to vector<32xf32>
    %81 = vector.shape_cast %80 : vector<32xf32> to vector<32x1xf32>
    %cst_27 = arith.constant 3.200000e+01 : f32
    %82 = vector.broadcast %cst_27 : f32 to vector<32x1xf32>
    %83 = arith.divf %81, %82 : vector<32x1xf32>
    %cst_28 = arith.constant 9.99999974E-6 : f32
    %84 = vector.broadcast %cst_28 : f32 to vector<32x1xf32>
    %85 = arith.addf %83, %84 : vector<32x1xf32>
    %86 = math.rsqrt %85 : vector<32x1xf32>
    %87 = vector.broadcast %86 : vector<32x1xf32> to vector<32x32xf32>
    %88 = arith.mulf %78, %87 : vector<32x32xf32>
    %89 = vector.broadcast %71 : vector<1x32xf32> to vector<32x32xf32>
    %90 = arith.mulf %88, %89 : vector<32x32xf32>
    %91 = vector.broadcast %72 : vector<1x32xf32> to vector<32x32xf32>
    %92 = arith.addf %90, %91 : vector<32x32xf32>
    %93 = arith.truncf %92 : vector<32x32xf32> to vector<32x32xbf16>
    %c0_29 = arith.constant 0 : index
    %c0_30 = arith.constant 0 : index
    %c0_31 = arith.constant 0 : index
    %94 = vector.load %arg9[%c0_29, %c0_30, %c0_31] : memref<2x32x64xbf16, #tpu.memory_space<vmem>>, vector<1x32x64xbf16>
    %95 = vector.shape_cast %94 : vector<1x32x64xbf16> to vector<32x64xbf16>
    %cst_32 = arith.constant dense<0.000000e+00> : vector<32x64xf32>
    %96 = tpu.matmul %93, %95, %cst_32 {dimension_numbers = #tpu.dot_dimension_numbers<[1], [0], [0], [1], [0, 0, 1, 1], [], []>} : vector<32x32xbf16>, vector<32x64xbf16>, vector<32x64xf32> -> vector<32x64xf32>
    %c0_33 = arith.constant 0 : index
    %c0_34 = arith.constant 0 : index
    %97 = vector.load %arg10[%c0_33, %c0_34] : memref<2x64xf32, #tpu.memory_space<vmem>>, vector<1x64xf32>
    %98 = vector.broadcast %97 : vector<1x64xf32> to vector<32x64xf32>
    %99 = arith.addf %96, %98 : vector<32x64xf32>
    %cst_35 = arith.constant 0.000000e+00 : f32
    %100 = vector.broadcast %cst_35 : f32 to vector<32x64xf32>
    %101 = arith.maximumf %99, %100 : vector<32x64xf32>
    %102 = arith.truncf %101 : vector<32x64xf32> to vector<32x64xbf16>
    %c0_36 = arith.constant 0 : index
    %c0_37 = arith.constant 0 : index
    %c0_38 = arith.constant 0 : index
    %103 = vector.load %arg11[%c0_36, %c0_37, %c0_38] : memref<2x64x32xbf16, #tpu.memory_space<vmem>>, vector<1x64x32xbf16>
    %104 = vector.shape_cast %103 : vector<1x64x32xbf16> to vector<64x32xbf16>
    %cst_39 = arith.constant dense<0.000000e+00> : vector<32x32xf32>
    %105 = tpu.matmul %102, %104, %cst_39 {dimension_numbers = #tpu.dot_dimension_numbers<[1], [0], [0], [1], [0, 0, 1, 1], [], []>} : vector<32x64xbf16>, vector<64x32xbf16>, vector<32x32xf32> -> vector<32x32xf32>
    %c0_40 = arith.constant 0 : index
    %c0_41 = arith.constant 0 : index
    %106 = vector.load %arg12[%c0_40, %c0_41] : memref<2x32xf32, #tpu.memory_space<vmem>>, vector<1x32xf32>
    %107 = vector.broadcast %106 : vector<1x32xf32> to vector<32x32xf32>
    %108 = arith.addf %105, %107 : vector<32x32xf32>
    %109 = arith.addf %92, %108 : vector<32x32xf32>
    %c0_42 = arith.constant 0 : index
    %c0_43 = arith.constant 0 : index
    %110 = vector.load %arg13[%c0_42, %c0_43] : memref<2x32xf32, #tpu.memory_space<vmem>>, vector<1x32xf32>
    %c0_44 = arith.constant 0 : index
    %c0_45 = arith.constant 0 : index
    %111 = vector.load %arg14[%c0_44, %c0_45] : memref<2x32xf32, #tpu.memory_space<vmem>>, vector<1x32xf32>
    %cst_46 = arith.constant dense<0.000000e+00> : vector<32xf32>
    %112 = vector.multi_reduction <add>, %109, %cst_46 [1] : vector<32x32xf32> to vector<32xf32>
    %113 = vector.shape_cast %112 : vector<32xf32> to vector<32x1xf32>
    %cst_47 = arith.constant 3.200000e+01 : f32
    %114 = vector.broadcast %cst_47 : f32 to vector<32x1xf32>
    %115 = arith.divf %113, %114 : vector<32x1xf32>
    %116 = vector.broadcast %115 : vector<32x1xf32> to vector<32x32xf32>
    %117 = arith.subf %109, %116 : vector<32x32xf32>
    %118 = arith.mulf %117, %117 : vector<32x32xf32>
    %cst_48 = arith.constant dense<0.000000e+00> : vector<32xf32>
    %119 = vector.multi_reduction <add>, %118, %cst_48 [1] : vector<32x32xf32> to vector<32xf32>
    %120 = vector.shape_cast %119 : vector<32xf32> to vector<32x1xf32>
    %cst_49 = arith.constant 3.200000e+01 : f32
    %121 = vector.broadcast %cst_49 : f32 to vector<32x1xf32>
    %122 = arith.divf %120, %121 : vector<32x1xf32>
    %cst_50 = arith.constant 9.99999974E-6 : f32
    %123 = vector.broadcast %cst_50 : f32 to vector<32x1xf32>
    %124 = arith.addf %122, %123 : vector<32x1xf32>
    %125 = math.rsqrt %124 : vector<32x1xf32>
    %126 = vector.broadcast %125 : vector<32x1xf32> to vector<32x32xf32>
    %127 = arith.mulf %117, %126 : vector<32x32xf32>
    %128 = vector.broadcast %110 : vector<1x32xf32> to vector<32x32xf32>
    %129 = arith.mulf %127, %128 : vector<32x32xf32>
    %130 = vector.broadcast %111 : vector<1x32xf32> to vector<32x32xf32>
    %131 = arith.addf %129, %130 : vector<32x32xf32>
    %132 = arith.truncf %131 : vector<32x32xf32> to vector<32x32xbf16>
    %c1 = arith.constant 1 : index
    %c0_51 = arith.constant 0 : index
    %c0_52 = arith.constant 0 : index
    %133 = vector.load %arg3[%c1, %c0_51, %c0_52] : memref<2x32x96xbf16, #tpu.memory_space<vmem>>, vector<1x32x96xbf16>
    %134 = vector.shape_cast %133 : vector<1x32x96xbf16> to vector<32x96xbf16>
    %cst_53 = arith.constant dense<0.000000e+00> : vector<32x96xf32>
    %135 = tpu.matmul %132, %134, %cst_53 {dimension_numbers = #tpu.dot_dimension_numbers<[1], [0], [0], [1], [0, 0, 1, 1], [], []>} : vector<32x32xbf16>, vector<32x96xbf16>, vector<32x96xf32> -> vector<32x96xf32>
    %c1_54 = arith.constant 1 : index
    %c0_55 = arith.constant 0 : index
    %136 = vector.load %arg4[%c1_54, %c0_55] : memref<2x96xf32, #tpu.memory_space<vmem>>, vector<1x96xf32>
    %137 = vector.broadcast %136 : vector<1x96xf32> to vector<32x96xf32>
    %138 = arith.addf %135, %137 : vector<32x96xf32>
    %139 = vector.extract_strided_slice %138 {offsets = [0, 0], sizes = [32, 32], strides = [1, 1]} : vector<32x96xf32> to vector<32x32xf32>
    %cst_56 = arith.constant 0.353553385 : f32
    %140 = vector.broadcast %cst_56 : f32 to vector<32x32xf32>
    %141 = arith.mulf %139, %140 : vector<32x32xf32>
    %142 = vector.extract_strided_slice %138 {offsets = [0, 32], sizes = [32, 32], strides = [1, 1]} : vector<32x96xf32> to vector<32x32xf32>
    %143 = vector.extract_strided_slice %138 {offsets = [0, 64], sizes = [32, 32], strides = [1, 1]} : vector<32x96xf32> to vector<32x32xf32>
    %144 = vector.shape_cast %141 : vector<32x32xf32> to vector<2x16x4x8xf32>
    %145 = tpu.transpose %144, [0, 2, 1, 3] : vector<2x16x4x8xf32> -> vector<2x4x16x8xf32>
    %146 = vector.shape_cast %145 : vector<2x4x16x8xf32> to vector<8x16x8xf32>
    %147 = arith.truncf %146 : vector<8x16x8xf32> to vector<8x16x8xbf16>
    %148 = vector.shape_cast %142 : vector<32x32xf32> to vector<2x16x4x8xf32>
    %149 = tpu.transpose %148, [0, 2, 1, 3] : vector<2x16x4x8xf32> -> vector<2x4x16x8xf32>
    %150 = vector.shape_cast %149 : vector<2x4x16x8xf32> to vector<8x16x8xf32>
    %151 = arith.truncf %150 : vector<8x16x8xf32> to vector<8x16x8xbf16>
    %152 = vector.shape_cast %143 : vector<32x32xf32> to vector<2x16x4x8xf32>
    %153 = tpu.transpose %152, [0, 2, 1, 3] : vector<2x16x4x8xf32> -> vector<2x4x16x8xf32>
    %154 = vector.shape_cast %153 : vector<2x4x16x8xf32> to vector<8x16x8xf32>
    %155 = arith.truncf %154 : vector<8x16x8xf32> to vector<8x16x8xbf16>
    "tpu.trace_start"() <{level = 10 : i32, message = "ald,amd->alm"}> : () -> ()
    %cst_57 = arith.constant dense<0.000000e+00> : vector<8x16x16xf32>
    %156 = tpu.matmul %147, %151, %cst_57 {dimension_numbers = #tpu.dot_dimension_numbers<[2], [2], [1], [1], [0, 0, 0, 1, 1, 1], [0], [0]>} : vector<8x16x8xbf16>, vector<8x16x8xbf16>, vector<8x16x16xf32> -> vector<8x16x16xf32>
    "tpu.trace_stop"() : () -> ()
    %157 = vector.shape_cast %156 : vector<8x16x16xf32> to vector<2x4x16x16xf32>
    %158 = vector.broadcast %16 : vector<2x1x1x16xf32> to vector<2x4x16x16xf32>
    %159 = arith.addf %157, %158 : vector<2x4x16x16xf32>
    %cst_58 = arith.constant dense<0xFF800000> : vector<2x4x16xf32>
    %160 = vector.multi_reduction <maximumf>, %159, %cst_58 [3] : vector<2x4x16x16xf32> to vector<2x4x16xf32>
    %161 = vector.shape_cast %160 : vector<2x4x16xf32> to vector<2x4x16x1xf32>
    %162 = vector.broadcast %161 : vector<2x4x16x1xf32> to vector<2x4x16x16xf32>
    %163 = arith.subf %159, %162 : vector<2x4x16x16xf32>
    %164 = math.exp %163 : vector<2x4x16x16xf32>
    %cst_59 = arith.constant dense<0.000000e+00> : vector<2x4x16xf32>
    %165 = vector.multi_reduction <add>, %164, %cst_59 [3] : vector<2x4x16x16xf32> to vector<2x4x16xf32>
    %166 = vector.shape_cast %165 : vector<2x4x16xf32> to vector<2x4x16x1xf32>
    %167 = tpu.reciprocal %166 {approx = true} : vector<2x4x16x1xf32> -> vector<2x4x16x1xf32>
    %168 = vector.broadcast %167 : vector<2x4x16x1xf32> to vector<2x4x16x16xf32>
    %169 = arith.mulf %164, %168 : vector<2x4x16x16xf32>
    %170 = vector.shape_cast %169 : vector<2x4x16x16xf32> to vector<8x16x16xf32>
    %171 = arith.truncf %170 : vector<8x16x16xf32> to vector<8x16x16xbf16>
    "tpu.trace_start"() <{level = 10 : i32, message = "alm,amd->ald"}> : () -> ()
    %cst_60 = arith.constant dense<0.000000e+00> : vector<8x16x8xf32>
    %172 = tpu.matmul %171, %155, %cst_60 {dimension_numbers = #tpu.dot_dimension_numbers<[2], [1], [1], [2], [0, 0, 0, 1, 1, 2], [0], [0]>} : vector<8x16x16xbf16>, vector<8x16x8xbf16>, vector<8x16x8xf32> -> vector<8x16x8xf32>
    "tpu.trace_stop"() : () -> ()
    %173 = vector.shape_cast %172 : vector<8x16x8xf32> to vector<2x4x16x8xf32>
    %174 = tpu.transpose %173, [0, 2, 1, 3] : vector<2x4x16x8xf32> -> vector<2x16x4x8xf32>
    %175 = vector.shape_cast %174 : vector<2x16x4x8xf32> to vector<32x32xf32>
    %176 = arith.truncf %175 : vector<32x32xf32> to vector<32x32xbf16>
    %c1_61 = arith.constant 1 : index
    %c0_62 = arith.constant 0 : index
    %c0_63 = arith.constant 0 : index
    %177 = vector.load %arg5[%c1_61, %c0_62, %c0_63] : memref<2x32x32xbf16, #tpu.memory_space<vmem>>, vector<1x32x32xbf16>
    %178 = vector.shape_cast %177 : vector<1x32x32xbf16> to vector<32x32xbf16>
    %cst_64 = arith.constant dense<0.000000e+00> : vector<32x32xf32>
    %179 = tpu.matmul %176, %178, %cst_64 {dimension_numbers = #tpu.dot_dimension_numbers<[1], [0], [0], [1], [0, 0, 1, 1], [], []>} : vector<32x32xbf16>, vector<32x32xbf16>, vector<32x32xf32> -> vector<32x32xf32>
    %c1_65 = arith.constant 1 : index
    %c0_66 = arith.constant 0 : index
    %180 = vector.load %arg6[%c1_65, %c0_66] : memref<2x32xf32, #tpu.memory_space<vmem>>, vector<1x32xf32>
    %181 = vector.broadcast %180 : vector<1x32xf32> to vector<32x32xf32>
    %182 = arith.addf %179, %181 : vector<32x32xf32>
    %183 = arith.addf %131, %182 : vector<32x32xf32>
    %c1_67 = arith.constant 1 : index
    %c0_68 = arith.constant 0 : index
    %184 = vector.load %arg7[%c1_67, %c0_68] : memref<2x32xf32, #tpu.memory_space<vmem>>, vector<1x32xf32>
    %c1_69 = arith.constant 1 : index
    %c0_70 = arith.constant 0 : index
    %185 = vector.load %arg8[%c1_69, %c0_70] : memref<2x32xf32, #tpu.memory_space<vmem>>, vector<1x32xf32>
    %cst_71 = arith.constant dense<0.000000e+00> : vector<32xf32>
    %186 = vector.multi_reduction <add>, %183, %cst_71 [1] : vector<32x32xf32> to vector<32xf32>
    %187 = vector.shape_cast %186 : vector<32xf32> to vector<32x1xf32>
    %cst_72 = arith.constant 3.200000e+01 : f32
    %188 = vector.broadcast %cst_72 : f32 to vector<32x1xf32>
    %189 = arith.divf %187, %188 : vector<32x1xf32>
    %190 = vector.broadcast %189 : vector<32x1xf32> to vector<32x32xf32>
    %191 = arith.subf %183, %190 : vector<32x32xf32>
    %192 = arith.mulf %191, %191 : vector<32x32xf32>
    %cst_73 = arith.constant dense<0.000000e+00> : vector<32xf32>
    %193 = vector.multi_reduction <add>, %192, %cst_73 [1] : vector<32x32xf32> to vector<32xf32>
    %194 = vector.shape_cast %193 : vector<32xf32> to vector<32x1xf32>
    %cst_74 = arith.constant 3.200000e+01 : f32
    %195 = vector.broadcast %cst_74 : f32 to vector<32x1xf32>
    %196 = arith.divf %194, %195 : vector<32x1xf32>
    %cst_75 = arith.constant 9.99999974E-6 : f32
    %197 = vector.broadcast %cst_75 : f32 to vector<32x1xf32>
    %198 = arith.addf %196, %197 : vector<32x1xf32>
    %199 = math.rsqrt %198 : vector<32x1xf32>
    %200 = vector.broadcast %199 : vector<32x1xf32> to vector<32x32xf32>
    %201 = arith.mulf %191, %200 : vector<32x32xf32>
    %202 = vector.broadcast %184 : vector<1x32xf32> to vector<32x32xf32>
    %203 = arith.mulf %201, %202 : vector<32x32xf32>
    %204 = vector.broadcast %185 : vector<1x32xf32> to vector<32x32xf32>
    %205 = arith.addf %203, %204 : vector<32x32xf32>
    %206 = arith.truncf %205 : vector<32x32xf32> to vector<32x32xbf16>
    %c1_76 = arith.constant 1 : index
    %c0_77 = arith.constant 0 : index
    %c0_78 = arith.constant 0 : index
    %207 = vector.load %arg9[%c1_76, %c0_77, %c0_78] : memref<2x32x64xbf16, #tpu.memory_space<vmem>>, vector<1x32x64xbf16>
    %208 = vector.shape_cast %207 : vector<1x32x64xbf16> to vector<32x64xbf16>
    %cst_79 = arith.constant dense<0.000000e+00> : vector<32x64xf32>
    %209 = tpu.matmul %206, %208, %cst_79 {dimension_numbers = #tpu.dot_dimension_numbers<[1], [0], [0], [1], [0, 0, 1, 1], [], []>} : vector<32x32xbf16>, vector<32x64xbf16>, vector<32x64xf32> -> vector<32x64xf32>
    %c1_80 = arith.constant 1 : index
    %c0_81 = arith.constant 0 : index
    %210 = vector.load %arg10[%c1_80, %c0_81] : memref<2x64xf32, #tpu.memory_space<vmem>>, vector<1x64xf32>
    %211 = vector.broadcast %210 : vector<1x64xf32> to vector<32x64xf32>
    %212 = arith.addf %209, %211 : vector<32x64xf32>
    %cst_82 = arith.constant 0.000000e+00 : f32
    %213 = vector.broadcast %cst_82 : f32 to vector<32x64xf32>
    %214 = arith.maximumf %212, %213 : vector<32x64xf32>
    %215 = arith.truncf %214 : vector<32x64xf32> to vector<32x64xbf16>
    %c1_83 = arith.constant 1 : index
    %c0_84 = arith.constant 0 : index
    %c0_85 = arith.constant 0 : index
    %216 = vector.load %arg11[%c1_83, %c0_84, %c0_85] : memref<2x64x32xbf16, #tpu.memory_space<vmem>>, vector<1x64x32xbf16>
    %217 = vector.shape_cast %216 : vector<1x64x32xbf16> to vector<64x32xbf16>
    %cst_86 = arith.constant dense<0.000000e+00> : vector<32x32xf32>
    %218 = tpu.matmul %215, %217, %cst_86 {dimension_numbers = #tpu.dot_dimension_numbers<[1], [0], [0], [1], [0, 0, 1, 1], [], []>} : vector<32x64xbf16>, vector<64x32xbf16>, vector<32x32xf32> -> vector<32x32xf32>
    %c1_87 = arith.constant 1 : index
    %c0_88 = arith.constant 0 : index
    %219 = vector.load %arg12[%c1_87, %c0_88] : memref<2x32xf32, #tpu.memory_space<vmem>>, vector<1x32xf32>
    %220 = vector.broadcast %219 : vector<1x32xf32> to vector<32x32xf32>
    %221 = arith.addf %218, %220 : vector<32x32xf32>
    %222 = arith.addf %205, %221 : vector<32x32xf32>
    %c1_89 = arith.constant 1 : index
    %c0_90 = arith.constant 0 : index
    %223 = vector.load %arg13[%c1_89, %c0_90] : memref<2x32xf32, #tpu.memory_space<vmem>>, vector<1x32xf32>
    %c1_91 = arith.constant 1 : index
    %c0_92 = arith.constant 0 : index
    %224 = vector.load %arg14[%c1_91, %c0_92] : memref<2x32xf32, #tpu.memory_space<vmem>>, vector<1x32xf32>
    %cst_93 = arith.constant dense<0.000000e+00> : vector<32xf32>
    %225 = vector.multi_reduction <add>, %222, %cst_93 [1] : vector<32x32xf32> to vector<32xf32>
    %226 = vector.shape_cast %225 : vector<32xf32> to vector<32x1xf32>
    %cst_94 = arith.constant 3.200000e+01 : f32
    %227 = vector.broadcast %cst_94 : f32 to vector<32x1xf32>
    %228 = arith.divf %226, %227 : vector<32x1xf32>
    %229 = vector.broadcast %228 : vector<32x1xf32> to vector<32x32xf32>
    %230 = arith.subf %222, %229 : vector<32x32xf32>
    %231 = arith.mulf %230, %230 : vector<32x32xf32>
    %cst_95 = arith.constant dense<0.000000e+00> : vector<32xf32>
    %232 = vector.multi_reduction <add>, %231, %cst_95 [1] : vector<32x32xf32> to vector<32xf32>
    %233 = vector.shape_cast %232 : vector<32xf32> to vector<32x1xf32>
    %cst_96 = arith.constant 3.200000e+01 : f32
    %234 = vector.broadcast %cst_96 : f32 to vector<32x1xf32>
    %235 = arith.divf %233, %234 : vector<32x1xf32>
    %cst_97 = arith.constant 9.99999974E-6 : f32
    %236 = vector.broadcast %cst_97 : f32 to vector<32x1xf32>
    %237 = arith.addf %235, %236 : vector<32x1xf32>
    %238 = math.rsqrt %237 : vector<32x1xf32>
    %239 = vector.broadcast %238 : vector<32x1xf32> to vector<32x32xf32>
    %240 = arith.mulf %230, %239 : vector<32x32xf32>
    %241 = vector.broadcast %223 : vector<1x32xf32> to vector<32x32xf32>
    %242 = arith.mulf %240, %241 : vector<32x32xf32>
    %243 = vector.broadcast %224 : vector<1x32xf32> to vector<32x32xf32>
    %244 = arith.addf %242, %243 : vector<32x32xf32>
    %245 = vector.shape_cast %244 : vector<32x32xf32> to vector<2x16x32xf32>
    %246 = vector.extract_strided_slice %245 {offsets = [0, 0, 0], sizes = [2, 1, 32], strides = [1, 1, 1]} : vector<2x16x32xf32> to vector<2x1x32xf32>
    %c0_98 = arith.constant 0 : index
    %c0_99 = arith.constant 0 : index
    %c0_100 = arith.constant 0 : index
    %247 = vector.load %arg15[%c0_98, %c0_99, %c0_100] : memref<2x1x32xf32, #tpu.memory_space<vmem>>, vector<2x1x32xf32>
    tpu.vector_store %arg15[%c0_98, %c0_99, %c0_100], %246 {strides = array<i32>} : memref<2x1x32xf32, #tpu.memory_space<vmem>>, vector<2x1x32xf32>,
    return
  }
  func.func @transform_0(%arg0: i32, %arg1: memref<4xi32, #tpu.memory_space<smem>>) -> (i32, i32, i32) {
    %c0_i32 = arith.constant 0 : i32
    %c0_i32_0 = arith.constant 0 : i32
    %c0_i32_1 = arith.constant 0 : i32
    return %arg0, %c0_i32, %c0_i32_0 : i32, i32, i32
  }
  func.func @transform_1(%arg0: i32, %arg1: memref<4xi32, #tpu.memory_space<smem>>) -> (i32, i32, i32) {
    %c0_i32 = arith.constant 0 : i32
    %c0_i32_0 = arith.constant 0 : i32
    %c0_i32_1 = arith.constant 0 : i32
    %c0_i32_2 = arith.constant 0 : i32
    return %c0_i32, %c0_i32_0, %c0_i32_1 : i32, i32, i32
  }
  func.func @transform_2(%arg0: i32, %arg1: memref<4xi32, #tpu.memory_space<smem>>) -> (i32, i32) {
    %c0_i32 = arith.constant 0 : i32
    %c0_i32_0 = arith.constant 0 : i32
    %c0_i32_1 = arith.constant 0 : i32
    return %c0_i32, %c0_i32_0 : i32, i32
  }
  func.func @transform_3(%arg0: i32, %arg1: memref<4xi32, #tpu.memory_space<smem>>) -> (i32, i32, i32) {
    %c0_i32 = arith.constant 0 : i32
    %c0_i32_0 = arith.constant 0 : i32
    %c0_i32_1 = arith.constant 0 : i32
    %c0_i32_2 = arith.constant 0 : i32
    return %c0_i32, %c0_i32_0, %c0_i32_1 : i32, i32, i32
  }
  func.func @transform_4(%arg0: i32, %arg1: memref<4xi32, #tpu.memory_space<smem>>) -> (i32, i32) {
    %c0_i32 = arith.constant 0 : i32
    %c0_i32_0 = arith.constant 0 : i32
    %c0_i32_1 = arith.constant 0 : i32
    return %c0_i32, %c0_i32_0 : i32, i32
  }
  func.func @transform_5(%arg0: i32, %arg1: memref<4xi32, #tpu.memory_space<smem>>) -> (i32, i32) {
    %c0_i32 = arith.constant 0 : i32
    %c0_i32_0 = arith.constant 0 : i32
    %c0_i32_1 = arith.constant 0 : i32
    return %c0_i32, %c0_i32_0 : i32, i32
  }
  func.func @transform_6(%arg0: i32, %arg1: memref<4xi32, #tpu.memory_space<smem>>) -> (i32, i32) {
    %c0_i32 = arith.constant 0 : i32
    %c0_i32_0 = arith.constant 0 : i32
    %c0_i32_1 = arith.constant 0 : i32
    return %c0_i32, %c0_i32_0 : i32, i32
  }
  func.func @transform_7(%arg0: i32, %arg1: memref<4xi32, #tpu.memory_space<smem>>) -> (i32, i32, i32) {
    %c0_i32 = arith.constant 0 : i32
    %c0_i32_0 = arith.constant 0 : i32
    %c0_i32_1 = arith.constant 0 : i32
    %c0_i32_2 = arith.constant 0 : i32
    return %c0_i32, %c0_i32_0, %c0_i32_1 : i32, i32, i32
  }
  func.func @transform_8(%arg0: i32, %arg1: memref<4xi32, #tpu.memory_space<smem>>) -> (i32, i32) {
    %c0_i32 = arith.constant 0 : i32
    %c0_i32_0 = arith.constant 0 : i32
    %c0_i32_1 = arith.constant 0 : i32
    return %c0_i32, %c0_i32_0 : i32, i32
  }
  func.func @transform_9(%arg0: i32, %arg1: memref<4xi32, #tpu.memory_space<smem>>) -> (i32, i32, i32) {
    %c0_i32 = arith.constant 0 : i32
    %c0_i32_0 = arith.constant 0 : i32
    %c0_i32_1 = arith.constant 0 : i32
    %c0_i32_2 = arith.constant 0 : i32
    return %c0_i32, %c0_i32_0, %c0_i32_1 : i32, i32, i32
  }
  func.func @transform_10(%arg0: i32, %arg1: memref<4xi32, #tpu.memory_space<smem>>) -> (i32, i32) {
    %c0_i32 = arith.constant 0 : i32
    %c0_i32_0 = arith.constant 0 : i32
    %c0_i32_1 = arith.constant 0 : i32
    return %c0_i32, %c0_i32_0 : i32, i32
  }
  func.func @transform_11(%arg0: i32, %arg1: memref<4xi32, #tpu.memory_space<smem>>) -> (i32, i32) {
    %c0_i32 = arith.constant 0 : i32
    %c0_i32_0 = arith.constant 0 : i32
    %c0_i32_1 = arith.constant 0 : i32
    return %c0_i32, %c0_i32_0 : i32, i32
  }
  func.func @transform_12(%arg0: i32, %arg1: memref<4xi32, #tpu.memory_space<smem>>) -> (i32, i32) {
    %c0_i32 = arith.constant 0 : i32
    %c0_i32_0 = arith.constant 0 : i32
    %c0_i32_1 = arith.constant 0 : i32
    return %c0_i32, %c0_i32_0 : i32, i32
  }
  func.func @transform_13(%arg0: i32, %arg1: memref<4xi32, #tpu.memory_space<smem>>) -> (i32, i32, i32) {
    %c0_i32 = arith.constant 0 : i32
    %c0_i32_0 = arith.constant 0 : i32
    %c0_i32_1 = arith.constant 0 : i32
    return %arg0, %c0_i32, %c0_i32_0 : i32, i32, i32
  }
}

</mosaic_0001>

<llo_original>
// kernel: tpu_custom_call.1
$region0: #{tpu_custom_call.1}
  #allocation0 [shape = 'u32[]', space=smem, size = 0x4, offset = 0x4, fixed_abs, tag = 'smem constant byte address 0x4 - core index']
  #allocation1 [shape = 'u32[144,128]{1,0:T(1,128)}', space=vmem, size = 0x12000, scoped, tag = 'internal scratch']
  %s0 = inlined_call_operand.hbm [shape: f32[8,128], index: 0, kind: input, shape index: {}]
  %s1 = inlined_call_operand.hbm [shape: f32[16,128], index: 1, kind: input, shape index: {}]
  %s2 = inlined_call_operand.hbm [shape: f32[16,128], index: 2, kind: output, shape index: {}]
  %s3 = sld [smem:[#allocation0]]
  $region49: #{tpu_custom_call.1} parent=0
    _
  %s5 = ssub.s32 1, %s3
  %s6 = scalar_select 0, %s5, %s3
  $region1: #{tpu_custom_call.1} parent=0
    #allocation2 [shape = 'u8[4096]{0}', space=vmem, size = 0x1000, scoped, tag = 'input window, operand 0, single buffered']
    #allocation3 [shape = 's32[2]{0}', space=sflag, size = 0x8, scoped, tag = 'scoped memory for tpu_custom_call.1']
    #allocation4 [shape = 's32[2]{0}', space=sflag, size = 0x8, scoped, tag = 'scoped memory for tpu_custom_call.1']
    #allocation5 [shape = 'u8[8192]{0}', space=vmem, size = 0x2000, scoped, tag = 'input window, operand 1']
    #allocation6 [shape = 's32[2]{0}', space=sflag, size = 0x8, scoped, tag = 'scoped memory for tpu_custom_call.1']
    #allocation7 [shape = 'u8[8192]{0}', space=vmem, size = 0x2000, scoped, tag = 'output window, operand 0']
    %7 = vsyncpa [#allocation3], 0
    %8 = vsyncpa [#allocation6], 0
    %s9 = scalar_lea.sflag [#allocation6], 1
    %10 = vsyncpa %s9, 0
    %11 = vsyncpa [#allocation4], 0
    %s12 = scalar_lea.sflag [#allocation4], 1
    %13 = vsyncpa %s12, 0
    loop: start=0, step=1, limit=4
    $region2: #{tpu_custom_call.1} parent=1 // loop_pre_header
      _
    $region3: #{tpu_custom_call.1} parent=1 // loop_header
      %s15 = sphi 0, %s19
      %p16 = scmp.ge.s32.totalorder %s15, 4
      %s23 = sphi 0, %s23
      %s25 = sphi 0, %s23
      %s26 = sphi 0, %s25
      %s40 = sphi 0, %s26
      %s46 = sphi 0, %s48
      %s49 = sphi 0, %s46
      %s50 = sphi 0, %s49
      %s66 = sphi 0, %s50
      %s72 = sphi 0, %s74
      %s75 = sphi 0, %s72
      %s76 = sphi 0, %s75
      %s92 = sphi 0, %s76
    $region4: #{tpu_custom_call.1} parent=1 // loop_header_branch
      %18 = sbr.rel (%p16) target = $region8
    $region5: #{tpu_custom_call.1} parent=1 // loop_body
      %s20 = ssub.s32 %s15, 1
      %s21 = ssub.s32 %s15, 2
      %s22 = sadd.s32 %s15, 1
      %s24 = sadd.s32 %s23, 1
      %p27 = scmp.eq.s32.totalorder %s15, 1
      %p28 = scmp.ne.s32.totalorder %s23, %s25
      %p29 = scmp.eq.s32.totalorder %s15, 0
      %p30 = por %p28, %p29
      %p31 = scmp.ne.s32.totalorder %s23, %s25
      %p32 = scmp.eq.s32.totalorder %s20, 1
      %p33 = por %p31, %p32
      %p34 = scmp.ne.s32.totalorder %s25, %s26
      %p35 = scmp.eq.s32.totalorder %s20, 0
      %p36 = por %p34, %p35
      %p37 = scmp.ne.s32.totalorder %s25, %s26
      %p38 = scmp.eq.s32.totalorder %s21, 1
      %p39 = por %p37, %p38
      %p41 = scmp.ne.s32.totalorder %s26, %s40
      %p42 = scmp.eq.s32.totalorder %s21, 0
      %p43 = por %p41, %p42
      %s44 = ssub.s32 %s15, %s22
      %p45 = scmp.eq.s32.totalorder %s44, 0
      %s47 = sadd.s32 %s46, 1
      %s48 = scalar_select %p45, %s46, %s47
      %p51 = pneg %p45
      %p52 = scmp.eq.s32.totalorder %s15, 1
      %p53 = por %p51, %p52
      %p54 = scmp.ne.s32.totalorder %s46, %s49
      %p55 = scmp.eq.s32.totalorder %s15, 0
      %p56 = por %p54, %p55
      %p57 = scmp.ne.s32.totalorder %s46, %s49
      %p58 = scmp.eq.s32.totalorder %s20, 1
      %p59 = por %p57, %p58
      %p60 = scmp.ne.s32.totalorder %s49, %s50
      %p61 = scmp.eq.s32.totalorder %s20, 0
      %p62 = por %p60, %p61
      %p63 = scmp.ne.s32.totalorder %s49, %s50
      %p64 = scmp.eq.s32.totalorder %s21, 1
      %p65 = por %p63, %p64
      %p67 = scmp.ne.s32.totalorder %s50, %s66
      %p68 = scmp.eq.s32.totalorder %s21, 0
      %p69 = por %p67, %p68
      %s70 = ssub.s32 %s15, %s22
      %p71 = scmp.eq.s32.totalorder %s70, 0
      %s73 = sadd.s32 %s72, 1
      %s74 = scalar_select %p71, %s72, %s73
      %p77 = pneg %p71
      %p78 = scmp.eq.s32.totalorder %s15, 1
      %p79 = por %p77, %p78
      %p80 = scmp.ne.s32.totalorder %s72, %s75
      %p81 = scmp.eq.s32.totalorder %s15, 0
      %p82 = por %p80, %p81
      %p83 = scmp.ne.s32.totalorder %s72, %s75
      %p84 = scmp.eq.s32.totalorder %s20, 1
      %p85 = por %p83, %p84
      %p86 = scmp.ne.s32.totalorder %s75, %s76
      %p87 = scmp.eq.s32.totalorder %s20, 0
      %p88 = por %p86, %p87
      %p89 = scmp.ne.s32.totalorder %s75, %s76
      %p90 = scmp.eq.s32.totalorder %s21, 1
      %p91 = por %p89, %p90
      %p93 = scmp.ne.s32.totalorder %s76, %s92
      %p94 = scmp.eq.s32.totalorder %s21, 0
      %p95 = por %p93, %p94
      %p96 = scmp.le.s32.totalorder 1, %s15
      %p97 = scmp.lt.s32.totalorder %s15, 3
      %p98 = pnand %p96, %p97
      %p99 = pneg %p98
      // Predicated region
      $region9: #{tpu_custom_call.1} parent=5 // pred_check
        _
      $region10: #{tpu_custom_call.1} parent=5 // pred_check_branch
        %101 = sbr.rel (%p98) target = $region12
      $region11: #{tpu_custom_call.1} parent=5 // pred_region
        %s102 = ssub.s32 %s15, 1
        // Predicated region
        $region13: #{tpu_custom_call.1} parent=11 // pred_check
          %p103 = pneg %p36
        $region14: #{tpu_custom_call.1} parent=11 // pred_check_branch
          %105 = sbr.rel (%p103) target = $region16
        $region15: #{tpu_custom_call.1} parent=11 // pred_region
          %s107 = ssub.s32 128, 128
          %108 = vsyncadd [#allocation3], %s107
          %s110 = sshll.u32 [#allocation2], 4
          %s111 = int_to_ptr.vmem [resolvable:$true] %s110
          %113 = dma.hbm_to_vmem [thread:$0]  %s0, 128, %s111, [#allocation3]
        $region16: #{tpu_custom_call.1} parent=11 // pred_fallthru
          _
      $region12: #{tpu_custom_call.1} parent=5 // pred_fallthru
        _
      %p114 = scmp.lt.s32.totalorder %s15, 2
      // Predicated region
      $region17: #{tpu_custom_call.1} parent=5 // pred_check
        %p115 = pneg %p114
      $region18: #{tpu_custom_call.1} parent=5 // pred_check_branch
        %117 = sbr.rel (%p115) target = $region20
      $region19: #{tpu_custom_call.1} parent=5 // pred_region
        // Predicated region
        $region21: #{tpu_custom_call.1} parent=19 // pred_check
          %p118 = pneg %p56
        $region22: #{tpu_custom_call.1} parent=19 // pred_check_branch
          %120 = sbr.rel (%p118) target = $region24
        $region23: #{tpu_custom_call.1} parent=19 // pred_region
          %s121 = sand.u32 %s46, 1
          %s122 = scalar_lea.sflag [#allocation6], %s121
          %s123 = sand.u32 %s46, 1
          %s124 = smul.addr %s123, 8
          %s125 = scalar_lea.vmem [#allocation5], %s124
          %s127 = ssub.s32 128, 128
          %128 = vsyncadd %s122, %s127
          %s129 = smul.addr %s15, 128
          %s130 = scalar_lea.hbm %s1, %s129
          %s132 = sshll.u32 %s125, 4
          %s133 = int_to_ptr.vmem [resolvable:$true] %s132
          %135 = dma.hbm_to_vmem [thread:$0]  %s130, 128, %s133, %s122
        $region24: #{tpu_custom_call.1} parent=19 // pred_fallthru
          _
      $region20: #{tpu_custom_call.1} parent=5 // pred_fallthru
        _
      %p136 = scmp.le.s32.totalorder 1, %s15
      %p137 = scmp.lt.s32.totalorder %s15, 3
      %p138 = pnand %p136, %p137
      %p139 = pneg %p138
      // Predicated region
      $region25: #{tpu_custom_call.1} parent=5 // pred_check
        _
      $region26: #{tpu_custom_call.1} parent=5 // pred_check_branch
        %141 = sbr.rel (%p138) target = $region28
      $region27: #{tpu_custom_call.1} parent=5 // pred_region
        %s142 = ssub.s32 %s15, 1
        // Predicated region
        $region29: #{tpu_custom_call.1} parent=27 // pred_check
          %p143 = pneg %p36
        $region30: #{tpu_custom_call.1} parent=27 // pred_check_branch
          %145 = sbr.rel (%p143) target = $region32
        $region31: #{tpu_custom_call.1} parent=27 // pred_region
          %146 = dma.done [#allocation3], 128
        $region32: #{tpu_custom_call.1} parent=27 // pred_fallthru
          _
        %s147 = sand.u32 %s49, 1
        %s148 = scalar_lea.sflag [#allocation6], %s147
        %s149 = sand.u32 %s49, 1
        %s150 = smul.addr %s149, 8
        %s151 = scalar_lea.vmem [#allocation5], %s150
        // Predicated region
        $region33: #{tpu_custom_call.1} parent=27 // pred_check
          %p152 = pneg %p62
        $region34: #{tpu_custom_call.1} parent=27 // pred_check_branch
          %154 = sbr.rel (%p152) target = $region36
        $region35: #{tpu_custom_call.1} parent=27 // pred_region
          %155 = dma.done %s148, 128
        $region36: #{tpu_custom_call.1} parent=27 // pred_fallthru
          _
        %p156 = pneg %p36
        %p157 = pneg %p33
        %s158 = sand.u32 %s49, 1
        %s159 = scalar_lea.sflag [#allocation6], %s158
        %s160 = sand.u32 %s49, 1
        %s161 = smul.addr %s160, 8
        %s162 = scalar_lea.vmem [#allocation5], %s161
        %p163 = pneg %p62
        %p164 = pneg %p59
        %p165 = pneg %p88
        %p166 = pneg %p85
        %s167 = sand.u32 %s75, 1
        %s168 = scalar_lea.sflag [#allocation4], %s167
        %s169 = sand.u32 %s75, 1
        %s170 = smul.addr %s169, 8
        %s171 = scalar_lea.vmem [#allocation7], %s170
        %v172 = vld [vmem:[%s151] sm:$0xff]
        %v173 = vld [vmem:[#allocation2] sm:$0xff]
        %v174 = vadd.f32 %v172, %v173
        %175 = vst [vmem:[%s171] sm:$0xff] %v174
        %s176 = sand.u32 %s75, 1
        %s177 = scalar_lea.sflag [#allocation4], %s176
        %s178 = sand.u32 %s75, 1
        %s179 = smul.addr %s178, 8
        %s180 = scalar_lea.vmem [#allocation7], %s179
        // Predicated region
        $region37: #{tpu_custom_call.1} parent=27 // pred_check
          %p181 = pneg %p85
        $region38: #{tpu_custom_call.1} parent=27 // pred_check_branch
          %183 = sbr.rel (%p181) target = $region40
        $region39: #{tpu_custom_call.1} parent=27 // pred_region
          %s185 = ssub.s32 128, 128
          %186 = vsyncadd %s177, %s185
          %s187 = smul.addr %s20, 128
          %s188 = scalar_lea.hbm %s2, %s187
          %s190 = sshll.u32 %s180, 4
          %s191 = int_to_ptr.vmem [resolvable:$true] %s190
          %193 = dma.vmem_to_hbm [thread:$0]  %s191, 128, %s188, %s177
        $region40: #{tpu_custom_call.1} parent=27 // pred_fallthru
          _
      $region28: #{tpu_custom_call.1} parent=5 // pred_fallthru
        _
      %p194 = scmp.le.s32.totalorder 2, %s15
      // Predicated region
      $region41: #{tpu_custom_call.1} parent=5 // pred_check
        %p195 = pneg %p194
      $region42: #{tpu_custom_call.1} parent=5 // pred_check_branch
        %197 = sbr.rel (%p195) target = $region44
      $region43: #{tpu_custom_call.1} parent=5 // pred_region
        %s198 = ssub.s32 %s15, 2
        // Predicated region
        $region45: #{tpu_custom_call.1} parent=43 // pred_check
          %p199 = pneg %p91
        $region46: #{tpu_custom_call.1} parent=43 // pred_check_branch
          %201 = sbr.rel (%p199) target = $region48
        $region47: #{tpu_custom_call.1} parent=43 // pred_region
          %s202 = sand.u32 %s76, 1
          %s203 = scalar_lea.sflag [#allocation4], %s202
          %s204 = sand.u32 %s76, 1
          %s205 = smul.addr %s204, 8
          %s206 = scalar_lea.vmem [#allocation7], %s205
          %207 = dma.done %s203, 128
        $region48: #{tpu_custom_call.1} parent=43 // pred_fallthru
          _
      $region44: #{tpu_custom_call.1} parent=5 // pred_fallthru
        _
    $region6: #{tpu_custom_call.1} parent=1 // loop_footer
      %s19 = sadd.s32 1, %s15
    $region7: #{tpu_custom_call.1} parent=1 // loop_footer_branch
      %14 = sbr.rel target = $region3
    $region8: #{tpu_custom_call.1} parent=1 // loop_exit
      _
    %208 = vsyncpa [#allocation3], 1
    %s209 = scalar_lea.sflag [#allocation3], 1
    %210 = vsyncpa %s209, 1
    %211 = vsyncpa [#allocation6], 1
    %s212 = scalar_lea.sflag [#allocation6], 1
    %213 = vsyncpa %s212, 1
    %214 = vsyncpa [#allocation4], 1
    %s215 = scalar_lea.sflag [#allocation4], 1
    %216 = vsyncpa %s215, 1

// kernel: aggregator_forward.1
$region0: #{aggregator_forward.1}
  #allocation0 [shape = 'u32[]', space=smem, size = 0x4, offset = 0x4, fixed_abs, tag = 'smem constant byte address 0x4 - core index']
  #allocation1 [shape = 'u32[144,128]{1,0:T(1,128)}', space=vmem, size = 0x12000, scoped, tag = 'internal scratch']
  #allocation2 [shape = 's32[1]{0}', space=sflag, size = 0x4, scoped, tag = 'scoped memory for aggregator_forward.1']
  #allocation3 [shape = 'u8[512]{0}', space=smem, size = 0x200, scoped, tag = 'prefetched SMEM operand 0']
  %s0 = inlined_call_operand.vmem [shape: s32[4], index: 0, kind: input, shape index: {}]
  %s1 = inlined_call_operand.vmem [shape: f32[4,16,32], index: 1, kind: input, shape index: {}]
  %s2 = inlined_call_operand.vmem [shape: bf16[2,32,96], index: 2, kind: input, shape index: {}]
  %s3 = inlined_call_operand.vmem [shape: f32[2,96], index: 3, kind: input, shape index: {}]
  %s4 = inlined_call_operand.hbm [shape: bf16[2,32,32], index: 4, kind: input, shape index: {}]
  %s5 = inlined_call_operand.vmem [shape: f32[2,32], index: 5, kind: input, shape index: {}]
  %s6 = inlined_call_operand.vmem [shape: f32[2,32], index: 6, kind: input, shape index: {}]
  %s7 = inlined_call_operand.vmem [shape: f32[2,32], index: 7, kind: input, shape index: {}]
  %s8 = inlined_call_operand.hbm [shape: bf16[2,32,64], index: 8, kind: input, shape index: {}]
  %s9 = inlined_call_operand.hbm [shape: f32[2,64], index: 9, kind: input, shape index: {}]
  %s10 = inlined_call_operand.vmem [shape: bf16[2,64,32], index: 10, kind: input, shape index: {}]
  %s11 = inlined_call_operand.hbm [shape: f32[2,32], index: 11, kind: input, shape index: {}]
  %s12 = inlined_call_operand.hbm [shape: f32[2,32], index: 12, kind: input, shape index: {}]
  %s13 = inlined_call_operand.hbm [shape: f32[2,32], index: 13, kind: input, shape index: {}]
  %s14 = inlined_call_operand.hbm [shape: f32[4,1,32], index: 14, kind: output, shape index: {}]
  %s15 = sld [smem:[#allocation0]]
  $region109: #{aggregator_forward.1} parent=0
    _
  %s17 = ssub.s32 1, %s15
  %s18 = scalar_select 0, %s17, %s15
  %s19 = sshll.u32 %s0, 4
  %s20 = int_to_ptr.vmem [resolvable:$true] %s19
  %22 = dma.vmem_to_smem %s20, 16, [#allocation3], [#allocation2]
  %23 = dma.done [#allocation2], 16
  %24 = sfence
  $region1: #{aggregator_forward.1} parent=0
    #allocation4 [shape = 'u8[16384]{0}', space=vmem, size = 0x4000, scoped, tag = 'input window, operand 4, single buffered']
    #allocation5 [shape = 's32[2]{0}', space=sflag, size = 0x8, scoped, tag = 'scoped memory for aggregator_forward.1']
    #allocation6 [shape = 's32[2]{0}', space=sflag, size = 0x8, scoped, tag = 'scoped memory for aggregator_forward.1']
    #allocation7 [shape = 'u8[16384]{0}', space=vmem, size = 0x4000, scoped, tag = 'input window, operand 8, single buffered']
    #allocation8 [shape = 's32[1]{0}', space=sflag, size = 0x4, scoped, tag = 'scoped memory for aggregator_forward.1']
    #allocation9 [shape = 'u8[1024]{0}', space=vmem, size = 0x400, scoped, tag = 'input window, operand 9, single buffered']
    #allocation10 [shape = 'u8[1024]{0}', space=vmem, size = 0x400, scoped, tag = 'input window, operand 11, single buffered']
    #allocation11 [shape = 's32[1]{0}', space=sflag, size = 0x4, scoped, tag = 'scoped memory for aggregator_forward.1']
    #allocation12 [shape = 'u8[1024]{0}', space=vmem, size = 0x400, scoped, tag = 'input window, operand 12, single buffered']
    #allocation13 [shape = 'u8[1024]{0}', space=vmem, size = 0x400, scoped, tag = 'input window, operand 13, single buffered']
    #allocation14 [shape = 's32[1]{0}', space=sflag, size = 0x4, scoped, tag = 'scoped memory for aggregator_forward.1']
    #allocation15 [shape = 'u8[2048]{0}', space=vmem, size = 0x800, scoped, tag = 'output window, operand 0']
    %25 = vsyncpa [#allocation5], 0
    %26 = vsyncpa [#allocation8], 0
    %27 = vsyncpa [#allocation11], 0
    %28 = vsyncpa [#allocation14], 0
    %29 = vsyncpa [#allocation6], 0
    %s30 = scalar_lea.sflag [#allocation6], 1
    %31 = vsyncpa %s30, 0
    loop: start=0, step=1, limit=4
    $region2: #{aggregator_forward.1} parent=1 // loop_pre_header
      _
    $region3: #{aggregator_forward.1} parent=1 // loop_header
      %s33 = sphi 0, %s37
      %p34 = scmp.ge.s32.totalorder %s33, 4
      %s43 = sphi 0, %s45
      %s46 = sphi 0, %s43
      %s47 = sphi 0, %s46
      %s63 = sphi 0, %s47
      %s67 = sphi 0, %s67
      %s69 = sphi 0, %s67
      %s70 = sphi 0, %s69
      %s84 = sphi 0, %s70
      %s88 = sphi 0, %s88
      %s90 = sphi 0, %s88
      %s91 = sphi 0, %s90
      %s105 = sphi 0, %s91
      %s109 = sphi 0, %s109
      %s111 = sphi 0, %s109
      %s112 = sphi 0, %s111
      %s126 = sphi 0, %s112
      %s130 = sphi 0, %s130
      %s132 = sphi 0, %s130
      %s133 = sphi 0, %s132
      %s147 = sphi 0, %s133
      %s151 = sphi 0, %s151
      %s153 = sphi 0, %s151
      %s154 = sphi 0, %s153
      %s168 = sphi 0, %s154
      %s172 = sphi 0, %s172
      %s174 = sphi 0, %s172
      %s175 = sphi 0, %s174
      %s189 = sphi 0, %s175
      %s193 = sphi 0, %s193
      %s195 = sphi 0, %s193
      %s196 = sphi 0, %s195
      %s210 = sphi 0, %s196
      %s214 = sphi 0, %s214
      %s216 = sphi 0, %s214
      %s217 = sphi 0, %s216
      %s231 = sphi 0, %s217
      %s235 = sphi 0, %s235
      %s237 = sphi 0, %s235
      %s238 = sphi 0, %s237
      %s252 = sphi 0, %s238
      %s256 = sphi 0, %s256
      %s258 = sphi 0, %s256
      %s259 = sphi 0, %s258
      %s273 = sphi 0, %s259
      %s277 = sphi 0, %s277
      %s279 = sphi 0, %s277
      %s280 = sphi 0, %s279
      %s294 = sphi 0, %s280
      %s298 = sphi 0, %s298
      %s300 = sphi 0, %s298
      %s301 = sphi 0, %s300
      %s315 = sphi 0, %s301
      %s321 = sphi 0, %s323
      %s324 = sphi 0, %s321
      %s325 = sphi 0, %s324
      %s341 = sphi 0, %s325
    $region4: #{aggregator_forward.1} parent=1 // loop_header_branch
      %36 = sbr.rel (%p34) target = $region8
    $region5: #{aggregator_forward.1} parent=1 // loop_body
      %s38 = ssub.s32 %s33, 1
      %s39 = ssub.s32 %s33, 2
      %s40 = sadd.s32 %s33, 1
      %s41 = ssub.s32 %s33, %s40
      %p42 = scmp.eq.s32.totalorder %s41, 0
      %s44 = sadd.s32 %s43, 1
      %s45 = scalar_select %p42, %s43, %s44
      %p48 = pneg %p42
      %p49 = scmp.eq.s32.totalorder %s33, 1
      %p50 = por %p48, %p49
      %p51 = scmp.ne.s32.totalorder %s43, %s46
      %p52 = scmp.eq.s32.totalorder %s33, 0
      %p53 = por %p51, %p52
      %p54 = scmp.ne.s32.totalorder %s43, %s46
      %p55 = scmp.eq.s32.totalorder %s38, 1
      %p56 = por %p54, %p55
      %p57 = scmp.ne.s32.totalorder %s46, %s47
      %p58 = scmp.eq.s32.totalorder %s38, 0
      %p59 = por %p57, %p58
      %p60 = scmp.ne.s32.totalorder %s46, %s47
      %p61 = scmp.eq.s32.totalorder %s39, 1
      %p62 = por %p60, %p61
      %p64 = scmp.ne.s32.totalorder %s47, %s63
      %p65 = scmp.eq.s32.totalorder %s39, 0
      %p66 = por %p64, %p65
      %s68 = sadd.s32 %s67, 1
      %p71 = scmp.eq.s32.totalorder %s33, 1
      %p72 = scmp.ne.s32.totalorder %s67, %s69
      %p73 = scmp.eq.s32.totalorder %s33, 0
      %p74 = por %p72, %p73
      %p75 = scmp.ne.s32.totalorder %s67, %s69
      %p76 = scmp.eq.s32.totalorder %s38, 1
      %p77 = por %p75, %p76
      %p78 = scmp.ne.s32.totalorder %s69, %s70
      %p79 = scmp.eq.s32.totalorder %s38, 0
      %p80 = por %p78, %p79
      %p81 = scmp.ne.s32.totalorder %s69, %s70
      %p82 = scmp.eq.s32.totalorder %s39, 1
      %p83 = por %p81, %p82
      %p85 = scmp.ne.s32.totalorder %s70, %s84
      %p86 = scmp.eq.s32.totalorder %s39, 0
      %p87 = por %p85, %p86
      %s89 = sadd.s32 %s88, 1
      %p92 = scmp.eq.s32.totalorder %s33, 1
      %p93 = scmp.ne.s32.totalorder %s88, %s90
      %p94 = scmp.eq.s32.totalorder %s33, 0
      %p95 = por %p93, %p94
      %p96 = scmp.ne.s32.totalorder %s88, %s90
      %p97 = scmp.eq.s32.totalorder %s38, 1
      %p98 = por %p96, %p97
      %p99 = scmp.ne.s32.totalorder %s90, %s91
      %p100 = scmp.eq.s32.totalorder %s38, 0
      %p101 = por %p99, %p100
      %p102 = scmp.ne.s32.totalorder %s90, %s91
      %p103 = scmp.eq.s32.totalorder %s39, 1
      %p104 = por %p102, %p103
      %p106 = scmp.ne.s32.totalorder %s91, %s105
      %p107 = scmp.eq.s32.totalorder %s39, 0
      %p108 = por %p106, %p107
      %s110 = sadd.s32 %s109, 1
      %p113 = scmp.eq.s32.totalorder %s33, 1
      %p114 = scmp.ne.s32.totalorder %s109, %s111
      %p115 = scmp.eq.s32.totalorder %s33, 0
      %p116 = por %p114, %p115
      %p117 = scmp.ne.s32.totalorder %s109, %s111
      %p118 = scmp.eq.s32.totalorder %s38, 1
      %p119 = por %p117, %p118
      %p120 = scmp.ne.s32.totalorder %s111, %s112
      %p121 = scmp.eq.s32.totalorder %s38, 0
      %p122 = por %p120, %p121
      %p123 = scmp.ne.s32.totalorder %s111, %s112
      %p124 = scmp.eq.s32.totalorder %s39, 1
      %p125 = por %p123, %p124
      %p127 = scmp.ne.s32.totalorder %s112, %s126
      %p128 = scmp.eq.s32.totalorder %s39, 0
      %p129 = por %p127, %p128
      %s131 = sadd.s32 %s130, 1
      %p134 = scmp.eq.s32.totalorder %s33, 1
      %p135 = scmp.ne.s32.totalorder %s130, %s132
      %p136 = scmp.eq.s32.totalorder %s33, 0
      %p137 = por %p135, %p136
      %p138 = scmp.ne.s32.totalorder %s130, %s132
      %p139 = scmp.eq.s32.totalorder %s38, 1
      %p140 = por %p138, %p139
      %p141 = scmp.ne.s32.totalorder %s132, %s133
      %p142 = scmp.eq.s32.totalorder %s38, 0
      %p143 = por %p141, %p142
      %p144 = scmp.ne.s32.totalorder %s132, %s133
      %p145 = scmp.eq.s32.totalorder %s39, 1
      %p146 = por %p144, %p145
      %p148 = scmp.ne.s32.totalorder %s133, %s147
      %p149 = scmp.eq.s32.totalorder %s39, 0
      %p150 = por %p148, %p149
      %s152 = sadd.s32 %s151, 1
      %p155 = scmp.eq.s32.totalorder %s33, 1
      %p156 = scmp.ne.s32.totalorder %s151, %s153
      %p157 = scmp.eq.s32.totalorder %s33, 0
      %p158 = por %p156, %p157
      %p159 = scmp.ne.s32.totalorder %s151, %s153
      %p160 = scmp.eq.s32.totalorder %s38, 1
      %p161 = por %p159, %p160
      %p162 = scmp.ne.s32.totalorder %s153, %s154
      %p163 = scmp.eq.s32.totalorder %s38, 0
      %p164 = por %p162, %p163
      %p165 = scmp.ne.s32.totalorder %s153, %s154
      %p166 = scmp.eq.s32.totalorder %s39, 1
      %p167 = por %p165, %p166
      %p169 = scmp.ne.s32.totalorder %s154, %s168
      %p170 = scmp.eq.s32.totalorder %s39, 0
      %p171 = por %p169, %p170
      %s173 = sadd.s32 %s172, 1
      %p176 = scmp.eq.s32.totalorder %s33, 1
      %p177 = scmp.ne.s32.totalorder %s172, %s174
      %p178 = scmp.eq.s32.totalorder %s33, 0
      %p179 = por %p177, %p178
      %p180 = scmp.ne.s32.totalorder %s172, %s174
      %p181 = scmp.eq.s32.totalorder %s38, 1
      %p182 = por %p180, %p181
      %p183 = scmp.ne.s32.totalorder %s174, %s175
      %p184 = scmp.eq.s32.totalorder %s38, 0
      %p185 = por %p183, %p184
      %p186 = scmp.ne.s32.totalorder %s174, %s175
      %p187 = scmp.eq.s32.totalorder %s39, 1
      %p188 = por %p186, %p187
      %p190 = scmp.ne.s32.totalorder %s175, %s189
      %p191 = scmp.eq.s32.totalorder %s39, 0
      %p192 = por %p190, %p191
      %s194 = sadd.s32 %s193, 1
      %p197 = scmp.eq.s32.totalorder %s33, 1
      %p198 = scmp.ne.s32.totalorder %s193, %s195
      %p199 = scmp.eq.s32.totalorder %s33, 0
      %p200 = por %p198, %p199
      %p201 = scmp.ne.s32.totalorder %s193, %s195
      %p202 = scmp.eq.s32.totalorder %s38, 1
      %p203 = por %p201, %p202
      %p204 = scmp.ne.s32.totalorder %s195, %s196
      %p205 = scmp.eq.s32.totalorder %s38, 0
      %p206 = por %p204, %p205
      %p207 = scmp.ne.s32.totalorder %s195, %s196
      %p208 = scmp.eq.s32.totalorder %s39, 1
      %p209 = por %p207, %p208
      %p211 = scmp.ne.s32.totalorder %s196, %s210
      %p212 = scmp.eq.s32.totalorder %s39, 0
      %p213 = por %p211, %p212
      %s215 = sadd.s32 %s214, 1
      %p218 = scmp.eq.s32.totalorder %s33, 1
      %p219 = scmp.ne.s32.totalorder %s214, %s216
      %p220 = scmp.eq.s32.totalorder %s33, 0
      %p221 = por %p219, %p220
      %p222 = scmp.ne.s32.totalorder %s214, %s216
      %p223 = scmp.eq.s32.totalorder %s38, 1
      %p224 = por %p222, %p223
      %p225 = scmp.ne.s32.totalorder %s216, %s217
      %p226 = scmp.eq.s32.totalorder %s38, 0
      %p227 = por %p225, %p226
      %p228 = scmp.ne.s32.totalorder %s216, %s217
      %p229 = scmp.eq.s32.totalorder %s39, 1
      %p230 = por %p228, %p229
      %p232 = scmp.ne.s32.totalorder %s217, %s231
      %p233 = scmp.eq.s32.totalorder %s39, 0
      %p234 = por %p232, %p233
      %s236 = sadd.s32 %s235, 1
      %p239 = scmp.eq.s32.totalorder %s33, 1
      %p240 = scmp.ne.s32.totalorder %s235, %s237
      %p241 = scmp.eq.s32.totalorder %s33, 0
      %p242 = por %p240, %p241
      %p243 = scmp.ne.s32.totalorder %s235, %s237
      %p244 = scmp.eq.s32.totalorder %s38, 1
      %p245 = por %p243, %p244
      %p246 = scmp.ne.s32.totalorder %s237, %s238
      %p247 = scmp.eq.s32.totalorder %s38, 0
      %p248 = por %p246, %p247
      %p249 = scmp.ne.s32.totalorder %s237, %s238
      %p250 = scmp.eq.s32.totalorder %s39, 1
      %p251 = por %p249, %p250
      %p253 = scmp.ne.s32.totalorder %s238, %s252
      %p254 = scmp.eq.s32.totalorder %s39, 0
      %p255 = por %p253, %p254
      %s257 = sadd.s32 %s256, 1
      %p260 = scmp.eq.s32.totalorder %s33, 1
      %p261 = scmp.ne.s32.totalorder %s256, %s258
      %p262 = scmp.eq.s32.totalorder %s33, 0
      %p263 = por %p261, %p262
      %p264 = scmp.ne.s32.totalorder %s256, %s258
      %p265 = scmp.eq.s32.totalorder %s38, 1
      %p266 = por %p264, %p265
      %p267 = scmp.ne.s32.totalorder %s258, %s259
      %p268 = scmp.eq.s32.totalorder %s38, 0
      %p269 = por %p267, %p268
      %p270 = scmp.ne.s32.totalorder %s258, %s259
      %p271 = scmp.eq.s32.totalorder %s39, 1
      %p272 = por %p270, %p271
      %p274 = scmp.ne.s32.totalorder %s259, %s273
      %p275 = scmp.eq.s32.totalorder %s39, 0
      %p276 = por %p274, %p275
      %s278 = sadd.s32 %s277, 1
      %p281 = scmp.eq.s32.totalorder %s33, 1
      %p282 = scmp.ne.s32.totalorder %s277, %s279
      %p283 = scmp.eq.s32.totalorder %s33, 0
      %p284 = por %p282, %p283
      %p285 = scmp.ne.s32.totalorder %s277, %s279
      %p286 = scmp.eq.s32.totalorder %s38, 1
      %p287 = por %p285, %p286
      %p288 = scmp.ne.s32.totalorder %s279, %s280
      %p289 = scmp.eq.s32.totalorder %s38, 0
      %p290 = por %p288, %p289
      %p291 = scmp.ne.s32.totalorder %s279, %s280
      %p292 = scmp.eq.s32.totalorder %s39, 1
      %p293 = por %p291, %p292
      %p295 = scmp.ne.s32.totalorder %s280, %s294
      %p296 = scmp.eq.s32.totalorder %s39, 0
      %p297 = por %p295, %p296
      %s299 = sadd.s32 %s298, 1
      %p302 = scmp.eq.s32.totalorder %s33, 1
      %p303 = scmp.ne.s32.totalorder %s298, %s300
      %p304 = scmp.eq.s32.totalorder %s33, 0
      %p305 = por %p303, %p304
      %p306 = scmp.ne.s32.totalorder %s298, %s300
      %p307 = scmp.eq.s32.totalorder %s38, 1
      %p308 = por %p306, %p307
      %p309 = scmp.ne.s32.totalorder %s300, %s301
      %p310 = scmp.eq.s32.totalorder %s38, 0
      %p311 = por %p309, %p310
      %p312 = scmp.ne.s32.totalorder %s300, %s301
      %p313 = scmp.eq.s32.totalorder %s39, 1
      %p314 = por %p312, %p313
      %p316 = scmp.ne.s32.totalorder %s301, %s315
      %p317 = scmp.eq.s32.totalorder %s39, 0
      %p318 = por %p316, %p317
      %s319 = ssub.s32 %s33, %s40
      %p320 = scmp.eq.s32.totalorder %s319, 0
      %s322 = sadd.s32 %s321, 1
      %s323 = scalar_select %p320, %s321, %s322
      %p326 = pneg %p320
      %p327 = scmp.eq.s32.totalorder %s33, 1
      %p328 = por %p326, %p327
      %p329 = scmp.ne.s32.totalorder %s321, %s324
      %p330 = scmp.eq.s32.totalorder %s33, 0
      %p331 = por %p329, %p330
      %p332 = scmp.ne.s32.totalorder %s321, %s324
      %p333 = scmp.eq.s32.totalorder %s38, 1
      %p334 = por %p332, %p333
      %p335 = scmp.ne.s32.totalorder %s324, %s325
      %p336 = scmp.eq.s32.totalorder %s38, 0
      %p337 = por %p335, %p336
      %p338 = scmp.ne.s32.totalorder %s324, %s325
      %p339 = scmp.eq.s32.totalorder %s39, 1
      %p340 = por %p338, %p339
      %p342 = scmp.ne.s32.totalorder %s325, %s341
      %p343 = scmp.eq.s32.totalorder %s39, 0
      %p344 = por %p342, %p343
      %p345 = scmp.le.s32.totalorder 1, %s33
      %p346 = scmp.lt.s32.totalorder %s33, 3
      %p347 = pnand %p345, %p346
      %p348 = pneg %p347
      // Predicated region
      $region9: #{aggregator_forward.1} parent=5 // pred_check
        _
      $region10: #{aggregator_forward.1} parent=5 // pred_check_branch
        %350 = sbr.rel (%p347) target = $region12
      $region11: #{aggregator_forward.1} parent=5 // pred_region
        %s351 = ssub.s32 %s33, 1
        // Predicated region
        $region13: #{aggregator_forward.1} parent=11 // pred_check
          %p352 = pneg %p80
        $region14: #{aggregator_forward.1} parent=11 // pred_check_branch
          %354 = sbr.rel (%p352) target = $region16
        $region15: #{aggregator_forward.1} parent=11 // pred_region
          _
        $region16: #{aggregator_forward.1} parent=11 // pred_fallthru
          _
        // Predicated region
        $region17: #{aggregator_forward.1} parent=11 // pred_check
          %p355 = pneg %p101
        $region18: #{aggregator_forward.1} parent=11 // pred_check_branch
          %357 = sbr.rel (%p355) target = $region20
        $region19: #{aggregator_forward.1} parent=11 // pred_region
          _
        $region20: #{aggregator_forward.1} parent=11 // pred_fallthru
          _
        // Predicated region
        $region21: #{aggregator_forward.1} parent=11 // pred_check
          %p358 = pneg %p122
        $region22: #{aggregator_forward.1} parent=11 // pred_check_branch
          %360 = sbr.rel (%p358) target = $region24
        $region23: #{aggregator_forward.1} parent=11 // pred_region
          %s362 = ssub.s32 512, 512
          %363 = vsyncadd [#allocation5], %s362
          %s364 = sshll.u32 [#allocation4], 4
          %s365 = int_to_ptr.vmem [resolvable:$true] %s364
          %370 = dma.hbm_to_vmem [thread:$0]  %s4, 512, %s365, [#allocation5], 64, 64, 4
        $region24: #{aggregator_forward.1} parent=11 // pred_fallthru
          _
        // Predicated region
        $region25: #{aggregator_forward.1} parent=11 // pred_check
          %p371 = pneg %p143
        $region26: #{aggregator_forward.1} parent=11 // pred_check_branch
          %373 = sbr.rel (%p371) target = $region28
        $region27: #{aggregator_forward.1} parent=11 // pred_region
          _
        $region28: #{aggregator_forward.1} parent=11 // pred_fallthru
          _
        // Predicated region
        $region29: #{aggregator_forward.1} parent=11 // pred_check
          %p374 = pneg %p164
        $region30: #{aggregator_forward.1} parent=11 // pred_check_branch
          %376 = sbr.rel (%p374) target = $region32
        $region31: #{aggregator_forward.1} parent=11 // pred_region
          _
        $region32: #{aggregator_forward.1} parent=11 // pred_fallthru
          _
        // Predicated region
        $region33: #{aggregator_forward.1} parent=11 // pred_check
          %p377 = pneg %p185
        $region34: #{aggregator_forward.1} parent=11 // pred_check_branch
          %379 = sbr.rel (%p377) target = $region36
        $region35: #{aggregator_forward.1} parent=11 // pred_region
          _
        $region36: #{aggregator_forward.1} parent=11 // pred_fallthru
          _
        // Predicated region
        $region37: #{aggregator_forward.1} parent=11 // pred_check
          %p380 = pneg %p206
        $region38: #{aggregator_forward.1} parent=11 // pred_check_branch
          %382 = sbr.rel (%p380) target = $region40
        $region39: #{aggregator_forward.1} parent=11 // pred_region
          %s384 = ssub.s32 512, 512
          %385 = vsyncadd [#allocation8], %s384
          %s386 = sshll.u32 [#allocation7], 4
          %s387 = int_to_ptr.vmem [resolvable:$true] %s386
          %392 = dma.hbm_to_vmem [thread:$0]  %s8, 512, %s387, [#allocation8], 64, 64, 4
        $region40: #{aggregator_forward.1} parent=11 // pred_fallthru
          _
        // Predicated region
        $region41: #{aggregator_forward.1} parent=11 // pred_check
          %p393 = pneg %p227
        $region42: #{aggregator_forward.1} parent=11 // pred_check_branch
          %395 = sbr.rel (%p393) target = $region44
        $region43: #{aggregator_forward.1} parent=11 // pred_region
          %s397 = ssub.s32 32, 32
          %398 = vsyncadd [#allocation8], %s397
          %s400 = sshll.u32 [#allocation9], 4
          %s401 = int_to_ptr.vmem [resolvable:$true] %s400
          %403 = dma.hbm_to_vmem [thread:$0]  %s9, 32, %s401, [#allocation8]
        $region44: #{aggregator_forward.1} parent=11 // pred_fallthru
          _
        // Predicated region
        $region45: #{aggregator_forward.1} parent=11 // pred_check
          %p404 = pneg %p248
        $region46: #{aggregator_forward.1} parent=11 // pred_check_branch
          %406 = sbr.rel (%p404) target = $region48
        $region47: #{aggregator_forward.1} parent=11 // pred_region
          _
        $region48: #{aggregator_forward.1} parent=11 // pred_fallthru
          _
        // Predicated region
        $region49: #{aggregator_forward.1} parent=11 // pred_check
          %p407 = pneg %p269
        $region50: #{aggregator_forward.1} parent=11 // pred_check_branch
          %409 = sbr.rel (%p407) target = $region52
        $region51: #{aggregator_forward.1} parent=11 // pred_region
          %s411 = ssub.s32 32, 32
          %412 = vsyncadd [#allocation11], %s411
          %s414 = sshll.u32 [#allocation10], 4
          %s415 = int_to_ptr.vmem [resolvable:$true] %s414
          %417 = dma.hbm_to_vmem [thread:$0]  %s11, 32, %s415, [#allocation11]
        $region52: #{aggregator_forward.1} parent=11 // pred_fallthru
          _
        // Predicated region
        $region53: #{aggregator_forward.1} parent=11 // pred_check
          %p418 = pneg %p290
        $region54: #{aggregator_forward.1} parent=11 // pred_check_branch
          %420 = sbr.rel (%p418) target = $region56
        $region55: #{aggregator_forward.1} parent=11 // pred_region
          %s422 = ssub.s32 32, 32
          %423 = vsyncadd [#allocation11], %s422
          %s425 = sshll.u32 [#allocation12], 4
          %s426 = int_to_ptr.vmem [resolvable:$true] %s425
          %428 = dma.hbm_to_vmem [thread:$0]  %s12, 32, %s426, [#allocation11]
        $region56: #{aggregator_forward.1} parent=11 // pred_fallthru
          _
        // Predicated region
        $region57: #{aggregator_forward.1} parent=11 // pred_check
          %p429 = pneg %p311
        $region58: #{aggregator_forward.1} parent=11 // pred_check_branch
          %431 = sbr.rel (%p429) target = $region60
        $region59: #{aggregator_forward.1} parent=11 // pred_region
          %s433 = ssub.s32 32, 32
          %434 = vsyncadd [#allocation14], %s433
          %s436 = sshll.u32 [#allocation13], 4
          %s437 = int_to_ptr.vmem [resolvable:$true] %s436
          %439 = dma.hbm_to_vmem [thread:$0]  %s13, 32, %s437, [#allocation14]
        $region60: #{aggregator_forward.1} parent=11 // pred_fallthru
          _
      $region12: #{aggregator_forward.1} parent=5 // pred_fallthru
        _
      %p440 = scmp.lt.s32.totalorder %s33, 2
      // Predicated region
      $region61: #{aggregator_forward.1} parent=5 // pred_check
        %p441 = pneg %p440
      $region62: #{aggregator_forward.1} parent=5 // pred_check_branch
        %443 = sbr.rel (%p441) target = $region64
      $region63: #{aggregator_forward.1} parent=5 // pred_region
        // Predicated region
        $region65: #{aggregator_forward.1} parent=63 // pred_check
          %p444 = pneg %p53
        $region66: #{aggregator_forward.1} parent=63 // pred_check_branch
          %446 = sbr.rel (%p444) target = $region68
        $region67: #{aggregator_forward.1} parent=63 // pred_region
          %s447 = smul.u32 2, %s33
          %p448 = scmp.lt.s32.totalorder %s447, 3
          %s449 = scalar_select %p448, %s447, 3
          %s450 = smul.addr %s449, 2
          %s451 = smul.addr %s450, 8
          %s452 = scalar_lea.vmem %s1, %s451
          %s453 = smul.u32 2, %s33
        $region68: #{aggregator_forward.1} parent=63 // pred_fallthru
          _
      $region64: #{aggregator_forward.1} parent=5 // pred_fallthru
        _
      %p454 = scmp.le.s32.totalorder 1, %s33
      %p455 = scmp.lt.s32.totalorder %s33, 3
      %p456 = pnand %p454, %p455
      %p457 = pneg %p456
      // Predicated region
      $region69: #{aggregator_forward.1} parent=5 // pred_check
        _
      $region70: #{aggregator_forward.1} parent=5 // pred_check_branch
        %459 = sbr.rel (%p456) target = $region72
      $region71: #{aggregator_forward.1} parent=5 // pred_region
        %s460 = ssub.s32 %s33, 1
        // Predicated region
        $region73: #{aggregator_forward.1} parent=71 // pred_check
          %p461 = pneg %p122
        $region74: #{aggregator_forward.1} parent=71 // pred_check_branch
          %463 = sbr.rel (%p461) target = $region76
        $region75: #{aggregator_forward.1} parent=71 // pred_region
          %464 = dma.done [#allocation5], 512
        $region76: #{aggregator_forward.1} parent=71 // pred_fallthru
          _
        // Predicated region
        $region77: #{aggregator_forward.1} parent=71 // pred_check
          %p465 = pneg %p206
        $region78: #{aggregator_forward.1} parent=71 // pred_check_branch
          %467 = sbr.rel (%p465) target = $region80
        $region79: #{aggregator_forward.1} parent=71 // pred_region
          %468 = dma.done [#allocation8], 512
        $region80: #{aggregator_forward.1} parent=71 // pred_fallthru
          _
        // Predicated region
        $region81: #{aggregator_forward.1} parent=71 // pred_check
          %p469 = pneg %p227
        $region82: #{aggregator_forward.1} parent=71 // pred_check_branch
          %471 = sbr.rel (%p469) target = $region84
        $region83: #{aggregator_forward.1} parent=71 // pred_region
          %472 = dma.done [#allocation8], 32
        $region84: #{aggregator_forward.1} parent=71 // pred_fallthru
          _
        // Predicated region
        $region85: #{aggregator_forward.1} parent=71 // pred_check
          %p473 = pneg %p269
        $region86: #{aggregator_forward.1} parent=71 // pred_check_branch
          %475 = sbr.rel (%p473) target = $region88
        $region87: #{aggregator_forward.1} parent=71 // pred_region
          %476 = dma.done [#allocation11], 32
        $region88: #{aggregator_forward.1} parent=71 // pred_fallthru
          _
        // Predicated region
        $region89: #{aggregator_forward.1} parent=71 // pred_check
          %p477 = pneg %p290
        $region90: #{aggregator_forward.1} parent=71 // pred_check_branch
          %479 = sbr.rel (%p477) target = $region92
        $region91: #{aggregator_forward.1} parent=71 // pred_region
          %480 = dma.done [#allocation11], 32
        $region92: #{aggregator_forward.1} parent=71 // pred_fallthru
          _
        // Predicated region
        $region93: #{aggregator_forward.1} parent=71 // pred_check
          %p481 = pneg %p311
        $region94: #{aggregator_forward.1} parent=71 // pred_check_branch
          %483 = sbr.rel (%p481) target = $region96
        $region95: #{aggregator_forward.1} parent=71 // pred_region
          %484 = dma.done [#allocation14], 32
        $region96: #{aggregator_forward.1} parent=71 // pred_fallthru
          _
        %s485 = smul.u32 2, %s38
        %p486 = scmp.lt.s32.totalorder %s485, 3
        %s487 = scalar_select %p486, %s485, 3
        %s488 = smul.addr %s487, 2
        %s489 = smul.addr %s488, 8
        %s490 = scalar_lea.vmem %s1, %s489
        %p491 = pneg %p59
        %p492 = pneg %p56
        %p493 = pneg %p80
        %p494 = pneg %p77
        %p495 = pneg %p101
        %p496 = pneg %p98
        %p497 = pneg %p122
        %p498 = pneg %p119
        %p499 = pneg %p143
        %p500 = pneg %p140
        %p501 = pneg %p164
        %p502 = pneg %p161
        %p503 = pneg %p185
        %p504 = pneg %p182
        %p505 = pneg %p206
        %p506 = pneg %p203
        %p507 = pneg %p227
        %p508 = pneg %p224
        %p509 = pneg %p248
        %p510 = pneg %p245
        %p511 = pneg %p269
        %p512 = pneg %p266
        %p513 = pneg %p290
        %p514 = pneg %p287
        %p515 = pneg %p311
        %p516 = pneg %p308
        %p517 = pneg %p337
        %p518 = pneg %p334
        %s519 = sand.u32 %s324, 1
        %s520 = scalar_lea.sflag [#allocation6], %s519
        %s521 = sand.u32 %s324, 1
        %s522 = smul.addr %s521, 2
        %s523 = scalar_lea.vmem [#allocation15], %s522
        %s524 = smul.u32 2, %s38
        %p525 = scmp.lt.s32.totalorder %s524, 3
        %s526 = scalar_select %p525, %s524, 3
        %s527 = smul.addr %s526, 2
        %s528 = smul.addr %s527, 8
        %s529 = scalar_lea.vmem %s1, %s528
        %s530 = smul.u32 2, %s38
        %s531 = smul.u32 2, %s38
        %s533 = smul.u32 %s38, 2
        %s534 = sld [smem:[#allocation3 + %s533]]
        %v535 = vstv %s534
        %s536 = sadd.s32 %s533, 1
        %s537 = sld [smem:[#allocation3 + %s536]]
        %v538 = vstv %s537
        %vm539 = vcmask 1040384
        %v540 = vsel %vm539, %v535, %v538
        %v541 = vlaneseq
        %v542 = vand.u32 %v541, 127
        %543 = vset.pattern.permute.xlu0 0
        %544 = vperm.xlu0 %543, %v540
        %v545 = vpop.permute.xlu0 %544
        %vm546 = vcmp.ge.s32.totalorder %v542, %v545
        %v547 = vsel %vm546, -1e+30, 0.0
        %v550 = vunpack.c.l.s4 1966171168
        %v551 = vunpack.c.0.s8 %v550
        %v552 = vlaneseq
        %v553 = vshrl.u32 %v552, 7
        %v554 = vsub.s32 %v551, %v553
        %v555 = vrot.slane %v547, %v554
        %v556 = vcombine.high %v555, %v555
        %v558 = vunpack.c.l.s4 1966171168
        %v559 = vunpack.c.0.s8 %v558
        %v560 = vlaneseq
        %v561 = vshrl.u32 %v560, 7
        %v562 = vsub.s32 %v559, %v561
        %v563 = vrot.slane %v555, %v562
        %v565 = vunpack.c.l.s4 1966171168
        %v566 = vunpack.c.0.s8 %v565
        %v567 = vlaneseq
        %v568 = vshrl.u32 %v567, 7
        %v569 = vsub.s32 %v566, %v568
        %v570 = vrot.slane %v556, %v569
        %v571 = vld [vmem:[%s529] sm:$0xff]
        %v572 = vld [vmem:[%s529 + $0x8] sm:$0xff]
        %v573 = vld [vmem:[%s529 + $0x10] sm:$0xff]
        %v574 = vld [vmem:[%s529 + $0x18] sm:$0xff]
        %v575 = vpack.c.bf16 %v572, %v571
        %v576 = vpack.c.bf16 %v574, %v573
        %v577 = vld [vmem:[%s2] sm:$0xf]
        %v578 = vld [vmem:[%s2 + $0x4] sm:$0xf]
        %v579 = vld [vmem:[%s2 + $0x8] sm:$0xf]
        %v580 = vld [vmem:[%s2 + $0xc] sm:$0xf]
        %v581 = vld [vmem:[%s3] sm:$0x1]
        %v582 = vlaneseq
        %v583 = vshrl.u32 %v582, 7
        %v584 = vsub.s32 0, %v583
        %v585 = vrot.slane %v581, %v584
        %v590 = vunpack.c.l.b16 %v577
        %v591 = vunpack.c.l.b16 %v578
        %v592 = vunpack.c.l.b16 %v579
        %v593 = vunpack.c.l.b16 %v580
        %v594 = vpack.c.b16 %v591, %v590
        %v595 = vpack.c.b16 %v593, %v592
        %vm598 = vcmask 261120
        %v600 = vsel %vm598, %v575, 0
        %v603 = vsel %vm598, %v576, 0
        %605 = vmatprep.subr.bf16.mxu0 0
        %606 = vmatpush1.bf16.msra.mxu0 %v594
        %607 = vmatprep.subr.bf16.mxu0 0
        %608 = vmatpush1.bf16.msra.mxu0 %v595
        %609 = vmatprep.subr.bf16.mxu0 0
        %610 = vmatpush1.bf16.msra.mxu0 0
        %611 = vmatprep.subr.bf16.mxu0 0
        %612 = vmatpush1.bf16.msra.mxu0 0
        %613 = vmatprep.subr.bf16.mxu0 0
        %614 = vmatpush1.bf16.msra.mxu0 0
        %615 = vmatprep.subr.bf16.mxu0 0
        %616 = vmatpush1.bf16.msra.mxu0 0
        %617 = vmatprep.subr.bf16.mxu0 0
        %618 = vmatpush1.bf16.msra.mxu0 0
        %619 = vmatprep.subr.bf16.mxu0 0
        %620 = vmatpush1.bf16.msra.mxu0 0
        %621 = vmatprep.subr.bf16.mxu0 0
        %622 = vmatpush1.bf16.msra.mxu0 0
        %623 = vmatprep.subr.bf16.mxu0 0
        %624 = vmatpush1.bf16.msra.mxu0 0
        %625 = vmatprep.subr.bf16.mxu0 0
        %626 = vmatpush1.bf16.msra.mxu0 0
        %627 = vmatprep.subr.bf16.mxu0 0
        %628 = vmatpush1.bf16.msra.mxu0 0
        %629 = vmatprep.subr.bf16.mxu0 0
        %630 = vmatpush1.bf16.msra.mxu0 0
        %631 = vmatprep.subr.bf16.mxu0 0
        %632 = vmatpush1.bf16.msra.mxu0 0
        %633 = vmatprep.subr.bf16.mxu0 0
        %634 = vmatpush1.bf16.msra.mxu0 0
        %635 = vmatprep.subr.bf16.mxu0 0
        %636 = vmatpush1.bf16.msra.mxu0 0
        %637 = vmatprep.mubr.bf16.mxu0 0
        %638 = vmatmul.mubr.bf16.gmra.mrb[0].mxu0 %v600
        %v639 = vpop.f32.mrb[0].mxu0
        %v640 = vadd.f32 %v585, %v639
        %v641 = vpop.f32.mrb[0].mxu0
        %v642 = vpop.f32.mrb[0].mxu0
        %v643 = vadd.f32 %v585, %v642
        %v644 = vpop.f32.mrb[0].mxu0
        %645 = vmatprep.mubr.bf16.mxu0 0
        %646 = vmatmul.mubr.bf16.gmra.mrb[0].mxu0 %v603
        %v647 = vpop.f32.mrb[0].mxu0
        %v648 = vadd.f32 %v585, %v647
        %v649 = vpop.f32.mrb[0].mxu0
        %v650 = vpop.f32.mrb[0].mxu0
        %v651 = vadd.f32 %v585, %v650
        %v652 = vpop.f32.mrb[0].mxu0
        %653 = vdwg.mxu0
        %v654 = vmul.f32 %v640, 0.35355338
        %v655 = vmul.f32 %v643, 0.35355338
        %v656 = vmul.f32 %v648, 0.35355338
        %v657 = vmul.f32 %v651, 0.35355338
        %662 = vrot.lane.b32.xlu0 %v654, 120
        %v663 = vpop.permute.xlu0 %662
        %664 = vrot.lane.b32.xlu0 %v655, 120
        %v665 = vpop.permute.xlu0 %664
        %666 = vrot.lane.b32.xlu0 %v656, 120
        %v667 = vpop.permute.xlu0 %666
        %668 = vrot.lane.b32.xlu0 %v657, 120
        %v669 = vpop.permute.xlu0 %668
        %674 = vrot.lane.b32.xlu0 %v654, 112
        %v675 = vpop.permute.xlu0 %674
        %676 = vrot.lane.b32.xlu0 %v655, 112
        %v677 = vpop.permute.xlu0 %676
        %678 = vrot.lane.b32.xlu0 %v656, 112
        %v679 = vpop.permute.xlu0 %678
        %680 = vrot.lane.b32.xlu0 %v657, 112
        %v681 = vpop.permute.xlu0 %680
        %686 = vrot.lane.b32.xlu0 %v654, 104
        %v687 = vpop.permute.xlu0 %686
        %688 = vrot.lane.b32.xlu0 %v655, 104
        %v689 = vpop.permute.xlu0 %688
        %690 = vrot.lane.b32.xlu0 %v656, 104
        %v691 = vpop.permute.xlu0 %690
        %692 = vrot.lane.b32.xlu0 %v657, 104
        %v693 = vpop.permute.xlu0 %692
        %v698 = vcombine.low %v654, %v675
        %v699 = vcombine.high %v654, %v675
        %v701 = vunpack.c.l.s4 1983009808
        %v702 = vunpack.c.0.s8 %v701
        %v703 = vlaneseq
        %v704 = vshrl.u32 %v703, 7
        %v705 = vsub.s32 %v702, %v704
        %v706 = vrot.slane %v698, %v705
        %v708 = vunpack.c.l.s4 1983009808
        %v709 = vunpack.c.0.s8 %v708
        %v710 = vlaneseq
        %v711 = vshrl.u32 %v710, 7
        %v712 = vsub.s32 %v709, %v711
        %v713 = vrot.slane %v699, %v712
        %v714 = vcombine.low %v663, %v687
        %v715 = vcombine.high %v663, %v687
        %v717 = vunpack.c.l.s4 1983009808
        %v718 = vunpack.c.0.s8 %v717
        %v719 = vlaneseq
        %v720 = vshrl.u32 %v719, 7
        %v721 = vsub.s32 %v718, %v720
        %v722 = vrot.slane %v714, %v721
        %v724 = vunpack.c.l.s4 1983009808
        %v725 = vunpack.c.0.s8 %v724
        %v726 = vlaneseq
        %v727 = vshrl.u32 %v726, 7
        %v728 = vsub.s32 %v725, %v727
        %v729 = vrot.slane %v715, %v728
        %v730 = vcombine.low %v706, %v722
        %v731 = vcombine.high %v706, %v722
        %v733 = vunpack.c.l.s4 1934713408
        %v734 = vunpack.c.0.s8 %v733
        %v735 = vlaneseq
        %v736 = vshrl.u32 %v735, 7
        %v737 = vsub.s32 %v734, %v736
        %v738 = vrot.slane %v730, %v737
        %v740 = vunpack.c.l.s4 1934713408
        %v741 = vunpack.c.0.s8 %v740
        %v742 = vlaneseq
        %v743 = vshrl.u32 %v742, 7
        %v744 = vsub.s32 %v741, %v743
        %v745 = vrot.slane %v731, %v744
        %v746 = vcombine.low %v713, %v729
        %v747 = vcombine.high %v713, %v729
        %v749 = vunpack.c.l.s4 1934713408
        %v750 = vunpack.c.0.s8 %v749
        %v751 = vlaneseq
        %v752 = vshrl.u32 %v751, 7
        %v753 = vsub.s32 %v750, %v752
        %v754 = vrot.slane %v746, %v753
        %v756 = vunpack.c.l.s4 1934713408
        %v757 = vunpack.c.0.s8 %v756
        %v758 = vlaneseq
        %v759 = vshrl.u32 %v758, 7
        %v760 = vsub.s32 %v757, %v759
        %v761 = vrot.slane %v747, %v760
        %v762 = vcombine.high %v738, 0.0
        %v763 = vcombine.high %v745, 0.0
        %v764 = vcombine.high %v754, 0.0
        %v765 = vcombine.high %v761, 0.0
        %v766 = vcombine.low %v655, %v677
        %v767 = vcombine.high %v655, %v677
        %v769 = vunpack.c.l.s4 1983009808
        %v770 = vunpack.c.0.s8 %v769
        %v771 = vlaneseq
        %v772 = vshrl.u32 %v771, 7
        %v773 = vsub.s32 %v770, %v772
        %v774 = vrot.slane %v766, %v773
        %v776 = vunpack.c.l.s4 1983009808
        %v777 = vunpack.c.0.s8 %v776
        %v778 = vlaneseq
        %v779 = vshrl.u32 %v778, 7
        %v780 = vsub.s32 %v777, %v779
        %v781 = vrot.slane %v767, %v780
        %v782 = vcombine.low %v665, %v689
        %v783 = vcombine.high %v665, %v689
        %v785 = vunpack.c.l.s4 1983009808
        %v786 = vunpack.c.0.s8 %v785
        %v787 = vlaneseq
        %v788 = vshrl.u32 %v787, 7
        %v789 = vsub.s32 %v786, %v788
        %v790 = vrot.slane %v782, %v789
        %v792 = vunpack.c.l.s4 1983009808
        %v793 = vunpack.c.0.s8 %v792
        %v794 = vlaneseq
        %v795 = vshrl.u32 %v794, 7
        %v796 = vsub.s32 %v793, %v795
        %v797 = vrot.slane %v783, %v796
        %v798 = vcombine.low %v774, %v790
        %v799 = vcombine.high %v774, %v790
        %v801 = vunpack.c.l.s4 1934713408
        %v802 = vunpack.c.0.s8 %v801
        %v803 = vlaneseq
        %v804 = vshrl.u32 %v803, 7
        %v805 = vsub.s32 %v802, %v804
        %v806 = vrot.slane %v798, %v805
        %v808 = vunpack.c.l.s4 1934713408
        %v809 = vunpack.c.0.s8 %v808
        %v810 = vlaneseq
        %v811 = vshrl.u32 %v810, 7
        %v812 = vsub.s32 %v809, %v811
        %v813 = vrot.slane %v799, %v812
        %v814 = vcombine.low %v781, %v797
        %v815 = vcombine.high %v781, %v797
        %v817 = vunpack.c.l.s4 1934713408
        %v818 = vunpack.c.0.s8 %v817
        %v819 = vlaneseq
        %v820 = vshrl.u32 %v819, 7
        %v821 = vsub.s32 %v818, %v820
        %v822 = vrot.slane %v814, %v821
        %v824 = vunpack.c.l.s4 1934713408
        %v825 = vunpack.c.0.s8 %v824
        %v826 = vlaneseq
        %v827 = vshrl.u32 %v826, 7
        %v828 = vsub.s32 %v825, %v827
        %v829 = vrot.slane %v815, %v828
        %v830 = vcombine.high %v806, 0.0
        %v831 = vcombine.high %v813, 0.0
        %v832 = vcombine.high %v822, 0.0
        %v833 = vcombine.high %v829, 0.0
        %v834 = vcombine.low %v656, %v679
        %v835 = vcombine.high %v656, %v679
        %v837 = vunpack.c.l.s4 1983009808
        %v838 = vunpack.c.0.s8 %v837
        %v839 = vlaneseq
        %v840 = vshrl.u32 %v839, 7
        %v841 = vsub.s32 %v838, %v840
        %v842 = vrot.slane %v834, %v841
        %v844 = vunpack.c.l.s4 1983009808
        %v845 = vunpack.c.0.s8 %v844
        %v846 = vlaneseq
        %v847 = vshrl.u32 %v846, 7
        %v848 = vsub.s32 %v845, %v847
        %v849 = vrot.slane %v835, %v848
        %v850 = vcombine.low %v667, %v691
        %v851 = vcombine.high %v667, %v691
        %v853 = vunpack.c.l.s4 1983009808
        %v854 = vunpack.c.0.s8 %v853
        %v855 = vlaneseq
        %v856 = vshrl.u32 %v855, 7
        %v857 = vsub.s32 %v854, %v856
        %v858 = vrot.slane %v850, %v857
        %v860 = vunpack.c.l.s4 1983009808
        %v861 = vunpack.c.0.s8 %v860
        %v862 = vlaneseq
        %v863 = vshrl.u32 %v862, 7
        %v864 = vsub.s32 %v861, %v863
        %v865 = vrot.slane %v851, %v864
        %v866 = vcombine.low %v842, %v858
        %v867 = vcombine.high %v842, %v858
        %v869 = vunpack.c.l.s4 1934713408
        %v870 = vunpack.c.0.s8 %v869
        %v871 = vlaneseq
        %v872 = vshrl.u32 %v871, 7
        %v873 = vsub.s32 %v870, %v872
        %v874 = vrot.slane %v866, %v873
        %v876 = vunpack.c.l.s4 1934713408
        %v877 = vunpack.c.0.s8 %v876
        %v878 = vlaneseq
        %v879 = vshrl.u32 %v878, 7
        %v880 = vsub.s32 %v877, %v879
        %v881 = vrot.slane %v867, %v880
        %v882 = vcombine.low %v849, %v865
        %v883 = vcombine.high %v849, %v865
        %v885 = vunpack.c.l.s4 1934713408
        %v886 = vunpack.c.0.s8 %v885
        %v887 = vlaneseq
        %v888 = vshrl.u32 %v887, 7
        %v889 = vsub.s32 %v886, %v888
        %v890 = vrot.slane %v882, %v889
        %v892 = vunpack.c.l.s4 1934713408
        %v893 = vunpack.c.0.s8 %v892
        %v894 = vlaneseq
        %v895 = vshrl.u32 %v894, 7
        %v896 = vsub.s32 %v893, %v895
        %v897 = vrot.slane %v883, %v896
        %v898 = vcombine.high %v874, 0.0
        %v899 = vcombine.high %v881, 0.0
        %v900 = vcombine.high %v890, 0.0
        %v901 = vcombine.high %v897, 0.0
        %v902 = vcombine.low %v657, %v681
        %v903 = vcombine.high %v657, %v681
        %v905 = vunpack.c.l.s4 1983009808
        %v906 = vunpack.c.0.s8 %v905
        %v907 = vlaneseq
        %v908 = vshrl.u32 %v907, 7
        %v909 = vsub.s32 %v906, %v908
        %v910 = vrot.slane %v902, %v909
        %v912 = vunpack.c.l.s4 1983009808
        %v913 = vunpack.c.0.s8 %v912
        %v914 = vlaneseq
        %v915 = vshrl.u32 %v914, 7
        %v916 = vsub.s32 %v913, %v915
        %v917 = vrot.slane %v903, %v916
        %v918 = vcombine.low %v669, %v693
        %v919 = vcombine.high %v669, %v693
        %v921 = vunpack.c.l.s4 1983009808
        %v922 = vunpack.c.0.s8 %v921
        %v923 = vlaneseq
        %v924 = vshrl.u32 %v923, 7
        %v925 = vsub.s32 %v922, %v924
        %v926 = vrot.slane %v918, %v925
        %v928 = vunpack.c.l.s4 1983009808
        %v929 = vunpack.c.0.s8 %v928
        %v930 = vlaneseq
        %v931 = vshrl.u32 %v930, 7
        %v932 = vsub.s32 %v929, %v931
        %v933 = vrot.slane %v919, %v932
        %v934 = vcombine.low %v910, %v926
        %v935 = vcombine.high %v910, %v926
        %v937 = vunpack.c.l.s4 1934713408
        %v938 = vunpack.c.0.s8 %v937
        %v939 = vlaneseq
        %v940 = vshrl.u32 %v939, 7
        %v941 = vsub.s32 %v938, %v940
        %v942 = vrot.slane %v934, %v941
        %v944 = vunpack.c.l.s4 1934713408
        %v945 = vunpack.c.0.s8 %v944
        %v946 = vlaneseq
        %v947 = vshrl.u32 %v946, 7
        %v948 = vsub.s32 %v945, %v947
        %v949 = vrot.slane %v935, %v948
        %v950 = vcombine.low %v917, %v933
        %v951 = vcombine.high %v917, %v933
        %v953 = vunpack.c.l.s4 1934713408
        %v954 = vunpack.c.0.s8 %v953
        %v955 = vlaneseq
        %v956 = vshrl.u32 %v955, 7
        %v957 = vsub.s32 %v954, %v956
        %v958 = vrot.slane %v950, %v957
        %v960 = vunpack.c.l.s4 1934713408
        %v961 = vunpack.c.0.s8 %v960
        %v962 = vlaneseq
        %v963 = vshrl.u32 %v962, 7
        %v964 = vsub.s32 %v961, %v963
        %v965 = vrot.slane %v951, %v964
        %v966 = vcombine.high %v942, 0.0
        %v967 = vcombine.high %v949, 0.0
        %v968 = vcombine.high %v958, 0.0
        %v969 = vcombine.high %v965, 0.0
        %v970 = vcombine.low %v738, %v745
        %v972 = vunpack.c.l.s4 1983009808
        %v973 = vunpack.c.0.s8 %v972
        %v974 = vlaneseq
        %v975 = vshrl.u32 %v974, 7
        %v976 = vsub.s32 %v973, %v975
        %v977 = vrot.slane %v970, %v976
        %v978 = vcombine.low %v762, %v763
        %v980 = vunpack.c.l.s4 1983009808
        %v981 = vunpack.c.0.s8 %v980
        %v982 = vlaneseq
        %v983 = vshrl.u32 %v982, 7
        %v984 = vsub.s32 %v981, %v983
        %v985 = vrot.slane %v978, %v984
        %v986 = vcombine.low %v754, %v761
        %v988 = vunpack.c.l.s4 1983009808
        %v989 = vunpack.c.0.s8 %v988
        %v990 = vlaneseq
        %v991 = vshrl.u32 %v990, 7
        %v992 = vsub.s32 %v989, %v991
        %v993 = vrot.slane %v986, %v992
        %v994 = vcombine.low %v764, %v765
        %v996 = vunpack.c.l.s4 1983009808
        %v997 = vunpack.c.0.s8 %v996
        %v998 = vlaneseq
        %v999 = vshrl.u32 %v998, 7
        %v1000 = vsub.s32 %v997, %v999
        %v1001 = vrot.slane %v994, %v1000
        %v1002 = vcombine.low %v977, %v985
        %v1003 = vcombine.high %v977, %v985
        %v1005 = vunpack.c.l.s4 1934713408
        %v1006 = vunpack.c.0.s8 %v1005
        %v1007 = vlaneseq
        %v1008 = vshrl.u32 %v1007, 7
        %v1009 = vsub.s32 %v1006, %v1008
        %v1010 = vrot.slane %v1002, %v1009
        %v1012 = vunpack.c.l.s4 1934713408
        %v1013 = vunpack.c.0.s8 %v1012
        %v1014 = vlaneseq
        %v1015 = vshrl.u32 %v1014, 7
        %v1016 = vsub.s32 %v1013, %v1015
        %v1017 = vrot.slane %v1003, %v1016
        %v1018 = vcombine.low %v993, %v1001
        %v1019 = vcombine.high %v993, %v1001
        %v1021 = vunpack.c.l.s4 1934713408
        %v1022 = vunpack.c.0.s8 %v1021
        %v1023 = vlaneseq
        %v1024 = vshrl.u32 %v1023, 7
        %v1025 = vsub.s32 %v1022, %v1024
        %v1026 = vrot.slane %v1018, %v1025
        %v1028 = vunpack.c.l.s4 1934713408
        %v1029 = vunpack.c.0.s8 %v1028
        %v1030 = vlaneseq
        %v1031 = vshrl.u32 %v1030, 7
        %v1032 = vsub.s32 %v1029, %v1031
        %v1033 = vrot.slane %v1019, %v1032
        %v1034 = vcombine.low %v1010, %v1026
        %v1035 = vcombine.high %v1010, %v1026
        %v1036 = vcombine.low %v1017, %v1033
        %v1037 = vcombine.high %v1017, %v1033
        %v1038 = vcombine.low %v806, %v813
        %v1040 = vunpack.c.l.s4 1983009808
        %v1041 = vunpack.c.0.s8 %v1040
        %v1042 = vlaneseq
        %v1043 = vshrl.u32 %v1042, 7
        %v1044 = vsub.s32 %v1041, %v1043
        %v1045 = vrot.slane %v1038, %v1044
        %v1046 = vcombine.low %v830, %v831
        %v1048 = vunpack.c.l.s4 1983009808
        %v1049 = vunpack.c.0.s8 %v1048
        %v1050 = vlaneseq
        %v1051 = vshrl.u32 %v1050, 7
        %v1052 = vsub.s32 %v1049, %v1051
        %v1053 = vrot.slane %v1046, %v1052
        %v1054 = vcombine.low %v822, %v829
        %v1056 = vunpack.c.l.s4 1983009808
        %v1057 = vunpack.c.0.s8 %v1056
        %v1058 = vlaneseq
        %v1059 = vshrl.u32 %v1058, 7
        %v1060 = vsub.s32 %v1057, %v1059
        %v1061 = vrot.slane %v1054, %v1060
        %v1062 = vcombine.low %v832, %v833
        %v1064 = vunpack.c.l.s4 1983009808
        %v1065 = vunpack.c.0.s8 %v1064
        %v1066 = vlaneseq
        %v1067 = vshrl.u32 %v1066, 7
        %v1068 = vsub.s32 %v1065, %v1067
        %v1069 = vrot.slane %v1062, %v1068
        %v1070 = vcombine.low %v1045, %v1053
        %v1071 = vcombine.high %v1045, %v1053
        %v1073 = vunpack.c.l.s4 1934713408
        %v1074 = vunpack.c.0.s8 %v1073
        %v1075 = vlaneseq
        %v1076 = vshrl.u32 %v1075, 7
        %v1077 = vsub.s32 %v1074, %v1076
        %v1078 = vrot.slane %v1070, %v1077
        %v1080 = vunpack.c.l.s4 1934713408
        %v1081 = vunpack.c.0.s8 %v1080
        %v1082 = vlaneseq
        %v1083 = vshrl.u32 %v1082, 7
        %v1084 = vsub.s32 %v1081, %v1083
        %v1085 = vrot.slane %v1071, %v1084
        %v1086 = vcombine.low %v1061, %v1069
        %v1087 = vcombine.high %v1061, %v1069
        %v1089 = vunpack.c.l.s4 1934713408
        %v1090 = vunpack.c.0.s8 %v1089
        %v1091 = vlaneseq
        %v1092 = vshrl.u32 %v1091, 7
        %v1093 = vsub.s32 %v1090, %v1092
        %v1094 = vrot.slane %v1086, %v1093
        %v1096 = vunpack.c.l.s4 1934713408
        %v1097 = vunpack.c.0.s8 %v1096
        %v1098 = vlaneseq
        %v1099 = vshrl.u32 %v1098, 7
        %v1100 = vsub.s32 %v1097, %v1099
        %v1101 = vrot.slane %v1087, %v1100
        %v1102 = vcombine.low %v1078, %v1094
        %v1103 = vcombine.high %v1078, %v1094
        %v1104 = vcombine.low %v1085, %v1101
        %v1105 = vcombine.high %v1085, %v1101
        %v1106 = vcombine.low %v874, %v881
        %v1108 = vunpack.c.l.s4 1983009808
        %v1109 = vunpack.c.0.s8 %v1108
        %v1110 = vlaneseq
        %v1111 = vshrl.u32 %v1110, 7
        %v1112 = vsub.s32 %v1109, %v1111
        %v1113 = vrot.slane %v1106, %v1112
        %v1114 = vcombine.low %v898, %v899
        %v1116 = vunpack.c.l.s4 1983009808
        %v1117 = vunpack.c.0.s8 %v1116
        %v1118 = vlaneseq
        %v1119 = vshrl.u32 %v1118, 7
        %v1120 = vsub.s32 %v1117, %v1119
        %v1121 = vrot.slane %v1114, %v1120
        %v1122 = vcombine.low %v890, %v897
        %v1124 = vunpack.c.l.s4 1983009808
        %v1125 = vunpack.c.0.s8 %v1124
        %v1126 = vlaneseq
        %v1127 = vshrl.u32 %v1126, 7
        %v1128 = vsub.s32 %v1125, %v1127
        %v1129 = vrot.slane %v1122, %v1128
        %v1130 = vcombine.low %v900, %v901
        %v1132 = vunpack.c.l.s4 1983009808
        %v1133 = vunpack.c.0.s8 %v1132
        %v1134 = vlaneseq
        %v1135 = vshrl.u32 %v1134, 7
        %v1136 = vsub.s32 %v1133, %v1135
        %v1137 = vrot.slane %v1130, %v1136
        %v1138 = vcombine.low %v1113, %v1121
        %v1139 = vcombine.high %v1113, %v1121
        %v1141 = vunpack.c.l.s4 1934713408
        %v1142 = vunpack.c.0.s8 %v1141
        %v1143 = vlaneseq
        %v1144 = vshrl.u32 %v1143, 7
        %v1145 = vsub.s32 %v1142, %v1144
        %v1146 = vrot.slane %v1138, %v1145
        %v1148 = vunpack.c.l.s4 1934713408
        %v1149 = vunpack.c.0.s8 %v1148
        %v1150 = vlaneseq
        %v1151 = vshrl.u32 %v1150, 7
        %v1152 = vsub.s32 %v1149, %v1151
        %v1153 = vrot.slane %v1139, %v1152
        %v1154 = vcombine.low %v1129, %v1137
        %v1155 = vcombine.high %v1129, %v1137
        %v1157 = vunpack.c.l.s4 1934713408
        %v1158 = vunpack.c.0.s8 %v1157
        %v1159 = vlaneseq
        %v1160 = vshrl.u32 %v1159, 7
        %v1161 = vsub.s32 %v1158, %v1160
        %v1162 = vrot.slane %v1154, %v1161
        %v1164 = vunpack.c.l.s4 1934713408
        %v1165 = vunpack.c.0.s8 %v1164
        %v1166 = vlaneseq
        %v1167 = vshrl.u32 %v1166, 7
        %v1168 = vsub.s32 %v1165, %v1167
        %v1169 = vrot.slane %v1155, %v1168
        %v1170 = vcombine.low %v1146, %v1162
        %v1171 = vcombine.high %v1146, %v1162
        %v1172 = vcombine.low %v1153, %v1169
        %v1173 = vcombine.high %v1153, %v1169
        %v1174 = vcombine.low %v942, %v949
        %v1176 = vunpack.c.l.s4 1983009808
        %v1177 = vunpack.c.0.s8 %v1176
        %v1178 = vlaneseq
        %v1179 = vshrl.u32 %v1178, 7
        %v1180 = vsub.s32 %v1177, %v1179
        %v1181 = vrot.slane %v1174, %v1180
        %v1182 = vcombine.low %v966, %v967
        %v1184 = vunpack.c.l.s4 1983009808
        %v1185 = vunpack.c.0.s8 %v1184
        %v1186 = vlaneseq
        %v1187 = vshrl.u32 %v1186, 7
        %v1188 = vsub.s32 %v1185, %v1187
        %v1189 = vrot.slane %v1182, %v1188
        %v1190 = vcombine.low %v958, %v965
        %v1192 = vunpack.c.l.s4 1983009808
        %v1193 = vunpack.c.0.s8 %v1192
        %v1194 = vlaneseq
        %v1195 = vshrl.u32 %v1194, 7
        %v1196 = vsub.s32 %v1193, %v1195
        %v1197 = vrot.slane %v1190, %v1196
        %v1198 = vcombine.low %v968, %v969
        %v1200 = vunpack.c.l.s4 1983009808
        %v1201 = vunpack.c.0.s8 %v1200
        %v1202 = vlaneseq
        %v1203 = vshrl.u32 %v1202, 7
        %v1204 = vsub.s32 %v1201, %v1203
        %v1205 = vrot.slane %v1198, %v1204
        %v1206 = vcombine.low %v1181, %v1189
        %v1207 = vcombine.high %v1181, %v1189
        %v1209 = vunpack.c.l.s4 1934713408
        %v1210 = vunpack.c.0.s8 %v1209
        %v1211 = vlaneseq
        %v1212 = vshrl.u32 %v1211, 7
        %v1213 = vsub.s32 %v1210, %v1212
        %v1214 = vrot.slane %v1206, %v1213
        %v1216 = vunpack.c.l.s4 1934713408
        %v1217 = vunpack.c.0.s8 %v1216
        %v1218 = vlaneseq
        %v1219 = vshrl.u32 %v1218, 7
        %v1220 = vsub.s32 %v1217, %v1219
        %v1221 = vrot.slane %v1207, %v1220
        %v1222 = vcombine.low %v1197, %v1205
        %v1223 = vcombine.high %v1197, %v1205
        %v1225 = vunpack.c.l.s4 1934713408
        %v1226 = vunpack.c.0.s8 %v1225
        %v1227 = vlaneseq
        %v1228 = vshrl.u32 %v1227, 7
        %v1229 = vsub.s32 %v1226, %v1228
        %v1230 = vrot.slane %v1222, %v1229
        %v1232 = vunpack.c.l.s4 1934713408
        %v1233 = vunpack.c.0.s8 %v1232
        %v1234 = vlaneseq
        %v1235 = vshrl.u32 %v1234, 7
        %v1236 = vsub.s32 %v1233, %v1235
        %v1237 = vrot.slane %v1223, %v1236
        %v1238 = vcombine.low %v1214, %v1230
        %v1239 = vcombine.high %v1214, %v1230
        %v1240 = vcombine.low %v1221, %v1237
        %v1241 = vcombine.high %v1221, %v1237
        %v1242 = vpack.c.bf16 %v1102, %v1034
        %v1243 = vpack.c.bf16 %v1103, %v1035
        %v1244 = vpack.c.bf16 %v1104, %v1036
        %v1245 = vpack.c.bf16 %v1105, %v1037
        %v1246 = vpack.c.bf16 %v1238, %v1170
        %v1247 = vpack.c.bf16 %v1239, %v1171
        %v1248 = vpack.c.bf16 %v1240, %v1172
        %v1249 = vpack.c.bf16 %v1241, %v1173
        %1254 = vrot.lane.b32.xlu0 %v640, 120
        %v1255 = vpop.permute.xlu0 %1254
        %1256 = vrot.lane.b32.xlu0 %v643, 120
        %v1257 = vpop.permute.xlu0 %1256
        %1258 = vrot.lane.b32.xlu0 %v648, 120
        %v1259 = vpop.permute.xlu0 %1258
        %1260 = vrot.lane.b32.xlu0 %v651, 120
        %v1261 = vpop.permute.xlu0 %1260
        %1262 = vrot.lane.b32.xlu0 %v640, 112
        %v1263 = vpop.permute.xlu0 %1262
        %1264 = vrot.lane.b32.xlu0 %v643, 112
        %v1265 = vpop.permute.xlu0 %1264
        %1266 = vrot.lane.b32.xlu0 %v648, 112
        %v1267 = vpop.permute.xlu0 %1266
        %1268 = vrot.lane.b32.xlu0 %v651, 112
        %v1269 = vpop.permute.xlu0 %1268
        %1270 = vrot.lane.b32.xlu0 %v640, 104
        %v1271 = vpop.permute.xlu0 %1270
        %1272 = vrot.lane.b32.xlu0 %v643, 104
        %v1273 = vpop.permute.xlu0 %1272
        %1274 = vrot.lane.b32.xlu0 %v648, 104
        %v1275 = vpop.permute.xlu0 %1274
        %1276 = vrot.lane.b32.xlu0 %v651, 104
        %v1277 = vpop.permute.xlu0 %1276
        %1278 = vrot.lane.b32.xlu0 %v640, 96
        %v1279 = vpop.permute.xlu0 %1278
        %1280 = vrot.lane.b32.xlu0 %v643, 96
        %v1281 = vpop.permute.xlu0 %1280
        %1282 = vrot.lane.b32.xlu0 %v648, 96
        %v1283 = vpop.permute.xlu0 %1282
        %1284 = vrot.lane.b32.xlu0 %v651, 96
        %v1285 = vpop.permute.xlu0 %1284
        %1286 = vrot.lane.b32.xlu0 %v1255, 96
        %v1287 = vpop.permute.xlu0 %1286
        %1288 = vrot.lane.b32.xlu0 %v1257, 96
        %v1289 = vpop.permute.xlu0 %1288
        %1290 = vrot.lane.b32.xlu0 %v1259, 96
        %v1291 = vpop.permute.xlu0 %1290
        %1292 = vrot.lane.b32.xlu0 %v1261, 96
        %v1293 = vpop.permute.xlu0 %1292
        %1294 = vrot.lane.b32.xlu0 %v1263, 96
        %v1295 = vpop.permute.xlu0 %1294
        %1296 = vrot.lane.b32.xlu0 %v1265, 96
        %v1297 = vpop.permute.xlu0 %1296
        %1298 = vrot.lane.b32.xlu0 %v1267, 96
        %v1299 = vpop.permute.xlu0 %1298
        %1300 = vrot.lane.b32.xlu0 %v1269, 96
        %v1301 = vpop.permute.xlu0 %1300
        %1302 = vrot.lane.b32.xlu0 %v1271, 96
        %v1303 = vpop.permute.xlu0 %1302
        %1304 = vrot.lane.b32.xlu0 %v1273, 96
        %v1305 = vpop.permute.xlu0 %1304
        %1306 = vrot.lane.b32.xlu0 %v1275, 96
        %v1307 = vpop.permute.xlu0 %1306
        %1308 = vrot.lane.b32.xlu0 %v1277, 96
        %v1309 = vpop.permute.xlu0 %1308
        %v1326 = vcombine.low %v1279, %v1295
        %v1327 = vcombine.high %v1279, %v1295
        %v1329 = vunpack.c.l.s4 1983009808
        %v1330 = vunpack.c.0.s8 %v1329
        %v1331 = vlaneseq
        %v1332 = vshrl.u32 %v1331, 7
        %v1333 = vsub.s32 %v1330, %v1332
        %v1334 = vrot.slane %v1326, %v1333
        %v1336 = vunpack.c.l.s4 1983009808
        %v1337 = vunpack.c.0.s8 %v1336
        %v1338 = vlaneseq
        %v1339 = vshrl.u32 %v1338, 7
        %v1340 = vsub.s32 %v1337, %v1339
        %v1341 = vrot.slane %v1327, %v1340
        %v1342 = vcombine.low %v1287, %v1303
        %v1343 = vcombine.high %v1287, %v1303
        %v1345 = vunpack.c.l.s4 1983009808
        %v1346 = vunpack.c.0.s8 %v1345
        %v1347 = vlaneseq
        %v1348 = vshrl.u32 %v1347, 7
        %v1349 = vsub.s32 %v1346, %v1348
        %v1350 = vrot.slane %v1342, %v1349
        %v1352 = vunpack.c.l.s4 1983009808
        %v1353 = vunpack.c.0.s8 %v1352
        %v1354 = vlaneseq
        %v1355 = vshrl.u32 %v1354, 7
        %v1356 = vsub.s32 %v1353, %v1355
        %v1357 = vrot.slane %v1343, %v1356
        %v1358 = vcombine.low %v1334, %v1350
        %v1359 = vcombine.high %v1334, %v1350
        %v1361 = vunpack.c.l.s4 1934713408
        %v1362 = vunpack.c.0.s8 %v1361
        %v1363 = vlaneseq
        %v1364 = vshrl.u32 %v1363, 7
        %v1365 = vsub.s32 %v1362, %v1364
        %v1366 = vrot.slane %v1358, %v1365
        %v1368 = vunpack.c.l.s4 1934713408
        %v1369 = vunpack.c.0.s8 %v1368
        %v1370 = vlaneseq
        %v1371 = vshrl.u32 %v1370, 7
        %v1372 = vsub.s32 %v1369, %v1371
        %v1373 = vrot.slane %v1359, %v1372
        %v1374 = vcombine.low %v1341, %v1357
        %v1375 = vcombine.high %v1341, %v1357
        %v1377 = vunpack.c.l.s4 1934713408
        %v1378 = vunpack.c.0.s8 %v1377
        %v1379 = vlaneseq
        %v1380 = vshrl.u32 %v1379, 7
        %v1381 = vsub.s32 %v1378, %v1380
        %v1382 = vrot.slane %v1374, %v1381
        %v1384 = vunpack.c.l.s4 1934713408
        %v1385 = vunpack.c.0.s8 %v1384
        %v1386 = vlaneseq
        %v1387 = vshrl.u32 %v1386, 7
        %v1388 = vsub.s32 %v1385, %v1387
        %v1389 = vrot.slane %v1375, %v1388
        %v1390 = vcombine.high %v1366, 0.0
        %v1391 = vcombine.high %v1373, 0.0
        %v1392 = vcombine.high %v1382, 0.0
        %v1393 = vcombine.high %v1389, 0.0
        %v1394 = vcombine.low %v1281, %v1297
        %v1395 = vcombine.high %v1281, %v1297
        %v1397 = vunpack.c.l.s4 1983009808
        %v1398 = vunpack.c.0.s8 %v1397
        %v1399 = vlaneseq
        %v1400 = vshrl.u32 %v1399, 7
        %v1401 = vsub.s32 %v1398, %v1400
        %v1402 = vrot.slane %v1394, %v1401
        %v1404 = vunpack.c.l.s4 1983009808
        %v1405 = vunpack.c.0.s8 %v1404
        %v1406 = vlaneseq
        %v1407 = vshrl.u32 %v1406, 7
        %v1408 = vsub.s32 %v1405, %v1407
        %v1409 = vrot.slane %v1395, %v1408
        %v1410 = vcombine.low %v1289, %v1305
        %v1411 = vcombine.high %v1289, %v1305
        %v1413 = vunpack.c.l.s4 1983009808
        %v1414 = vunpack.c.0.s8 %v1413
        %v1415 = vlaneseq
        %v1416 = vshrl.u32 %v1415, 7
        %v1417 = vsub.s32 %v1414, %v1416
        %v1418 = vrot.slane %v1410, %v1417
        %v1420 = vunpack.c.l.s4 1983009808
        %v1421 = vunpack.c.0.s8 %v1420
        %v1422 = vlaneseq
        %v1423 = vshrl.u32 %v1422, 7
        %v1424 = vsub.s32 %v1421, %v1423
        %v1425 = vrot.slane %v1411, %v1424
        %v1426 = vcombine.low %v1402, %v1418
        %v1427 = vcombine.high %v1402, %v1418
        %v1429 = vunpack.c.l.s4 1934713408
        %v1430 = vunpack.c.0.s8 %v1429
        %v1431 = vlaneseq
        %v1432 = vshrl.u32 %v1431, 7
        %v1433 = vsub.s32 %v1430, %v1432
        %v1434 = vrot.slane %v1426, %v1433
        %v1436 = vunpack.c.l.s4 1934713408
        %v1437 = vunpack.c.0.s8 %v1436
        %v1438 = vlaneseq
        %v1439 = vshrl.u32 %v1438, 7
        %v1440 = vsub.s32 %v1437, %v1439
        %v1441 = vrot.slane %v1427, %v1440
        %v1442 = vcombine.low %v1409, %v1425
        %v1443 = vcombine.high %v1409, %v1425
        %v1445 = vunpack.c.l.s4 1934713408
        %v1446 = vunpack.c.0.s8 %v1445
        %v1447 = vlaneseq
        %v1448 = vshrl.u32 %v1447, 7
        %v1449 = vsub.s32 %v1446, %v1448
        %v1450 = vrot.slane %v1442, %v1449
        %v1452 = vunpack.c.l.s4 1934713408
        %v1453 = vunpack.c.0.s8 %v1452
        %v1454 = vlaneseq
        %v1455 = vshrl.u32 %v1454, 7
        %v1456 = vsub.s32 %v1453, %v1455
        %v1457 = vrot.slane %v1443, %v1456
        %v1458 = vcombine.high %v1434, 0.0
        %v1459 = vcombine.high %v1441, 0.0
        %v1460 = vcombine.high %v1450, 0.0
        %v1461 = vcombine.high %v1457, 0.0
        %v1462 = vcombine.low %v1283, %v1299
        %v1463 = vcombine.high %v1283, %v1299
        %v1465 = vunpack.c.l.s4 1983009808
        %v1466 = vunpack.c.0.s8 %v1465
        %v1467 = vlaneseq
        %v1468 = vshrl.u32 %v1467, 7
        %v1469 = vsub.s32 %v1466, %v1468
        %v1470 = vrot.slane %v1462, %v1469
        %v1472 = vunpack.c.l.s4 1983009808
        %v1473 = vunpack.c.0.s8 %v1472
        %v1474 = vlaneseq
        %v1475 = vshrl.u32 %v1474, 7
        %v1476 = vsub.s32 %v1473, %v1475
        %v1477 = vrot.slane %v1463, %v1476
        %v1478 = vcombine.low %v1291, %v1307
        %v1479 = vcombine.high %v1291, %v1307
        %v1481 = vunpack.c.l.s4 1983009808
        %v1482 = vunpack.c.0.s8 %v1481
        %v1483 = vlaneseq
        %v1484 = vshrl.u32 %v1483, 7
        %v1485 = vsub.s32 %v1482, %v1484
        %v1486 = vrot.slane %v1478, %v1485
        %v1488 = vunpack.c.l.s4 1983009808
        %v1489 = vunpack.c.0.s8 %v1488
        %v1490 = vlaneseq
        %v1491 = vshrl.u32 %v1490, 7
        %v1492 = vsub.s32 %v1489, %v1491
        %v1493 = vrot.slane %v1479, %v1492
        %v1494 = vcombine.low %v1470, %v1486
        %v1495 = vcombine.high %v1470, %v1486
        %v1497 = vunpack.c.l.s4 1934713408
        %v1498 = vunpack.c.0.s8 %v1497
        %v1499 = vlaneseq
        %v1500 = vshrl.u32 %v1499, 7
        %v1501 = vsub.s32 %v1498, %v1500
        %v1502 = vrot.slane %v1494, %v1501
        %v1504 = vunpack.c.l.s4 1934713408
        %v1505 = vunpack.c.0.s8 %v1504
        %v1506 = vlaneseq
        %v1507 = vshrl.u32 %v1506, 7
        %v1508 = vsub.s32 %v1505, %v1507
        %v1509 = vrot.slane %v1495, %v1508
        %v1510 = vcombine.low %v1477, %v1493
        %v1511 = vcombine.high %v1477, %v1493
        %v1513 = vunpack.c.l.s4 1934713408
        %v1514 = vunpack.c.0.s8 %v1513
        %v1515 = vlaneseq
        %v1516 = vshrl.u32 %v1515, 7
        %v1517 = vsub.s32 %v1514, %v1516
        %v1518 = vrot.slane %v1510, %v1517
        %v1520 = vunpack.c.l.s4 1934713408
        %v1521 = vunpack.c.0.s8 %v1520
        %v1522 = vlaneseq
        %v1523 = vshrl.u32 %v1522, 7
        %v1524 = vsub.s32 %v1521, %v1523
        %v1525 = vrot.slane %v1511, %v1524
        %v1526 = vcombine.high %v1502, 0.0
        %v1527 = vcombine.high %v1509, 0.0
        %v1528 = vcombine.high %v1518, 0.0
        %v1529 = vcombine.high %v1525, 0.0
        %v1530 = vcombine.low %v1285, %v1301
        %v1531 = vcombine.high %v1285, %v1301
        %v1533 = vunpack.c.l.s4 1983009808
        %v1534 = vunpack.c.0.s8 %v1533
        %v1535 = vlaneseq
        %v1536 = vshrl.u32 %v1535, 7
        %v1537 = vsub.s32 %v1534, %v1536
        %v1538 = vrot.slane %v1530, %v1537
        %v1540 = vunpack.c.l.s4 1983009808
        %v1541 = vunpack.c.0.s8 %v1540
        %v1542 = vlaneseq
        %v1543 = vshrl.u32 %v1542, 7
        %v1544 = vsub.s32 %v1541, %v1543
        %v1545 = vrot.slane %v1531, %v1544
        %v1546 = vcombine.low %v1293, %v1309
        %v1547 = vcombine.high %v1293, %v1309
        %v1549 = vunpack.c.l.s4 1983009808
        %v1550 = vunpack.c.0.s8 %v1549
        %v1551 = vlaneseq
        %v1552 = vshrl.u32 %v1551, 7
        %v1553 = vsub.s32 %v1550, %v1552
        %v1554 = vrot.slane %v1546, %v1553
        %v1556 = vunpack.c.l.s4 1983009808
        %v1557 = vunpack.c.0.s8 %v1556
        %v1558 = vlaneseq
        %v1559 = vshrl.u32 %v1558, 7
        %v1560 = vsub.s32 %v1557, %v1559
        %v1561 = vrot.slane %v1547, %v1560
        %v1562 = vcombine.low %v1538, %v1554
        %v1563 = vcombine.high %v1538, %v1554
        %v1565 = vunpack.c.l.s4 1934713408
        %v1566 = vunpack.c.0.s8 %v1565
        %v1567 = vlaneseq
        %v1568 = vshrl.u32 %v1567, 7
        %v1569 = vsub.s32 %v1566, %v1568
        %v1570 = vrot.slane %v1562, %v1569
        %v1572 = vunpack.c.l.s4 1934713408
        %v1573 = vunpack.c.0.s8 %v1572
        %v1574 = vlaneseq
        %v1575 = vshrl.u32 %v1574, 7
        %v1576 = vsub.s32 %v1573, %v1575
        %v1577 = vrot.slane %v1563, %v1576
        %v1578 = vcombine.low %v1545, %v1561
        %v1579 = vcombine.high %v1545, %v1561
        %v1581 = vunpack.c.l.s4 1934713408
        %v1582 = vunpack.c.0.s8 %v1581
        %v1583 = vlaneseq
        %v1584 = vshrl.u32 %v1583, 7
        %v1585 = vsub.s32 %v1582, %v1584
        %v1586 = vrot.slane %v1578, %v1585
        %v1588 = vunpack.c.l.s4 1934713408
        %v1589 = vunpack.c.0.s8 %v1588
        %v1590 = vlaneseq
        %v1591 = vshrl.u32 %v1590, 7
        %v1592 = vsub.s32 %v1589, %v1591
        %v1593 = vrot.slane %v1579, %v1592
        %v1594 = vcombine.high %v1570, 0.0
        %v1595 = vcombine.high %v1577, 0.0
        %v1596 = vcombine.high %v1586, 0.0
        %v1597 = vcombine.high %v1593, 0.0
        %v1598 = vcombine.low %v1366, %v1373
        %v1600 = vunpack.c.l.s4 1983009808
        %v1601 = vunpack.c.0.s8 %v1600
        %v1602 = vlaneseq
        %v1603 = vshrl.u32 %v1602, 7
        %v1604 = vsub.s32 %v1601, %v1603
        %v1605 = vrot.slane %v1598, %v1604
        %v1606 = vcombine.low %v1390, %v1391
        %v1608 = vunpack.c.l.s4 1983009808
        %v1609 = vunpack.c.0.s8 %v1608
        %v1610 = vlaneseq
        %v1611 = vshrl.u32 %v1610, 7
        %v1612 = vsub.s32 %v1609, %v1611
        %v1613 = vrot.slane %v1606, %v1612
        %v1614 = vcombine.low %v1382, %v1389
        %v1616 = vunpack.c.l.s4 1983009808
        %v1617 = vunpack.c.0.s8 %v1616
        %v1618 = vlaneseq
        %v1619 = vshrl.u32 %v1618, 7
        %v1620 = vsub.s32 %v1617, %v1619
        %v1621 = vrot.slane %v1614, %v1620
        %v1622 = vcombine.low %v1392, %v1393
        %v1624 = vunpack.c.l.s4 1983009808
        %v1625 = vunpack.c.0.s8 %v1624
        %v1626 = vlaneseq
        %v1627 = vshrl.u32 %v1626, 7
        %v1628 = vsub.s32 %v1625, %v1627
        %v1629 = vrot.slane %v1622, %v1628
        %v1630 = vcombine.low %v1605, %v1613
        %v1631 = vcombine.high %v1605, %v1613
        %v1633 = vunpack.c.l.s4 1934713408
        %v1634 = vunpack.c.0.s8 %v1633
        %v1635 = vlaneseq
        %v1636 = vshrl.u32 %v1635, 7
        %v1637 = vsub.s32 %v1634, %v1636
        %v1638 = vrot.slane %v1630, %v1637
        %v1640 = vunpack.c.l.s4 1934713408
        %v1641 = vunpack.c.0.s8 %v1640
        %v1642 = vlaneseq
        %v1643 = vshrl.u32 %v1642, 7
        %v1644 = vsub.s32 %v1641, %v1643
        %v1645 = vrot.slane %v1631, %v1644
        %v1646 = vcombine.low %v1621, %v1629
        %v1647 = vcombine.high %v1621, %v1629
        %v1649 = vunpack.c.l.s4 1934713408
        %v1650 = vunpack.c.0.s8 %v1649
        %v1651 = vlaneseq
        %v1652 = vshrl.u32 %v1651, 7
        %v1653 = vsub.s32 %v1650, %v1652
        %v1654 = vrot.slane %v1646, %v1653
        %v1656 = vunpack.c.l.s4 1934713408
        %v1657 = vunpack.c.0.s8 %v1656
        %v1658 = vlaneseq
        %v1659 = vshrl.u32 %v1658, 7
        %v1660 = vsub.s32 %v1657, %v1659
        %v1661 = vrot.slane %v1647, %v1660
        %v1662 = vcombine.low %v1638, %v1654
        %v1663 = vcombine.high %v1638, %v1654
        %v1664 = vcombine.low %v1645, %v1661
        %v1665 = vcombine.high %v1645, %v1661
        %v1666 = vcombine.low %v1434, %v1441
        %v1668 = vunpack.c.l.s4 1983009808
        %v1669 = vunpack.c.0.s8 %v1668
        %v1670 = vlaneseq
        %v1671 = vshrl.u32 %v1670, 7
        %v1672 = vsub.s32 %v1669, %v1671
        %v1673 = vrot.slane %v1666, %v1672
        %v1674 = vcombine.low %v1458, %v1459
        %v1676 = vunpack.c.l.s4 1983009808
        %v1677 = vunpack.c.0.s8 %v1676
        %v1678 = vlaneseq
        %v1679 = vshrl.u32 %v1678, 7
        %v1680 = vsub.s32 %v1677, %v1679
        %v1681 = vrot.slane %v1674, %v1680
        %v1682 = vcombine.low %v1450, %v1457
        %v1684 = vunpack.c.l.s4 1983009808
        %v1685 = vunpack.c.0.s8 %v1684
        %v1686 = vlaneseq
        %v1687 = vshrl.u32 %v1686, 7
        %v1688 = vsub.s32 %v1685, %v1687
        %v1689 = vrot.slane %v1682, %v1688
        %v1690 = vcombine.low %v1460, %v1461
        %v1692 = vunpack.c.l.s4 1983009808
        %v1693 = vunpack.c.0.s8 %v1692
        %v1694 = vlaneseq
        %v1695 = vshrl.u32 %v1694, 7
        %v1696 = vsub.s32 %v1693, %v1695
        %v1697 = vrot.slane %v1690, %v1696
        %v1698 = vcombine.low %v1673, %v1681
        %v1699 = vcombine.high %v1673, %v1681
        %v1701 = vunpack.c.l.s4 1934713408
        %v1702 = vunpack.c.0.s8 %v1701
        %v1703 = vlaneseq
        %v1704 = vshrl.u32 %v1703, 7
        %v1705 = vsub.s32 %v1702, %v1704
        %v1706 = vrot.slane %v1698, %v1705
        %v1708 = vunpack.c.l.s4 1934713408
        %v1709 = vunpack.c.0.s8 %v1708
        %v1710 = vlaneseq
        %v1711 = vshrl.u32 %v1710, 7
        %v1712 = vsub.s32 %v1709, %v1711
        %v1713 = vrot.slane %v1699, %v1712
        %v1714 = vcombine.low %v1689, %v1697
        %v1715 = vcombine.high %v1689, %v1697
        %v1717 = vunpack.c.l.s4 1934713408
        %v1718 = vunpack.c.0.s8 %v1717
        %v1719 = vlaneseq
        %v1720 = vshrl.u32 %v1719, 7
        %v1721 = vsub.s32 %v1718, %v1720
        %v1722 = vrot.slane %v1714, %v1721
        %v1724 = vunpack.c.l.s4 1934713408
        %v1725 = vunpack.c.0.s8 %v1724
        %v1726 = vlaneseq
        %v1727 = vshrl.u32 %v1726, 7
        %v1728 = vsub.s32 %v1725, %v1727
        %v1729 = vrot.slane %v1715, %v1728
        %v1730 = vcombine.low %v1706, %v1722
        %v1731 = vcombine.high %v1706, %v1722
        %v1732 = vcombine.low %v1713, %v1729
        %v1733 = vcombine.high %v1713, %v1729
        %v1734 = vcombine.low %v1502, %v1509
        %v1736 = vunpack.c.l.s4 1983009808
        %v1737 = vunpack.c.0.s8 %v1736
        %v1738 = vlaneseq
        %v1739 = vshrl.u32 %v1738, 7
        %v1740 = vsub.s32 %v1737, %v1739
        %v1741 = vrot.slane %v1734, %v1740
        %v1742 = vcombine.low %v1526, %v1527
        %v1744 = vunpack.c.l.s4 1983009808
        %v1745 = vunpack.c.0.s8 %v1744
        %v1746 = vlaneseq
        %v1747 = vshrl.u32 %v1746, 7
        %v1748 = vsub.s32 %v1745, %v1747
        %v1749 = vrot.slane %v1742, %v1748
        %v1750 = vcombine.low %v1518, %v1525
        %v1752 = vunpack.c.l.s4 1983009808
        %v1753 = vunpack.c.0.s8 %v1752
        %v1754 = vlaneseq
        %v1755 = vshrl.u32 %v1754, 7
        %v1756 = vsub.s32 %v1753, %v1755
        %v1757 = vrot.slane %v1750, %v1756
        %v1758 = vcombine.low %v1528, %v1529
        %v1760 = vunpack.c.l.s4 1983009808
        %v1761 = vunpack.c.0.s8 %v1760
        %v1762 = vlaneseq
        %v1763 = vshrl.u32 %v1762, 7
        %v1764 = vsub.s32 %v1761, %v1763
        %v1765 = vrot.slane %v1758, %v1764
        %v1766 = vcombine.low %v1741, %v1749
        %v1767 = vcombine.high %v1741, %v1749
        %v1769 = vunpack.c.l.s4 1934713408
        %v1770 = vunpack.c.0.s8 %v1769
        %v1771 = vlaneseq
        %v1772 = vshrl.u32 %v1771, 7
        %v1773 = vsub.s32 %v1770, %v1772
        %v1774 = vrot.slane %v1766, %v1773
        %v1776 = vunpack.c.l.s4 1934713408
        %v1777 = vunpack.c.0.s8 %v1776
        %v1778 = vlaneseq
        %v1779 = vshrl.u32 %v1778, 7
        %v1780 = vsub.s32 %v1777, %v1779
        %v1781 = vrot.slane %v1767, %v1780
        %v1782 = vcombine.low %v1757, %v1765
        %v1783 = vcombine.high %v1757, %v1765
        %v1785 = vunpack.c.l.s4 1934713408
        %v1786 = vunpack.c.0.s8 %v1785
        %v1787 = vlaneseq
        %v1788 = vshrl.u32 %v1787, 7
        %v1789 = vsub.s32 %v1786, %v1788
        %v1790 = vrot.slane %v1782, %v1789
        %v1792 = vunpack.c.l.s4 1934713408
        %v1793 = vunpack.c.0.s8 %v1792
        %v1794 = vlaneseq
        %v1795 = vshrl.u32 %v1794, 7
        %v1796 = vsub.s32 %v1793, %v1795
        %v1797 = vrot.slane %v1783, %v1796
        %v1798 = vcombine.low %v1774, %v1790
        %v1799 = vcombine.high %v1774, %v1790
        %v1800 = vcombine.low %v1781, %v1797
        %v1801 = vcombine.high %v1781, %v1797
        %v1802 = vcombine.low %v1570, %v1577
        %v1804 = vunpack.c.l.s4 1983009808
        %v1805 = vunpack.c.0.s8 %v1804
        %v1806 = vlaneseq
        %v1807 = vshrl.u32 %v1806, 7
        %v1808 = vsub.s32 %v1805, %v1807
        %v1809 = vrot.slane %v1802, %v1808
        %v1810 = vcombine.low %v1594, %v1595
        %v1812 = vunpack.c.l.s4 1983009808
        %v1813 = vunpack.c.0.s8 %v1812
        %v1814 = vlaneseq
        %v1815 = vshrl.u32 %v1814, 7
        %v1816 = vsub.s32 %v1813, %v1815
        %v1817 = vrot.slane %v1810, %v1816
        %v1818 = vcombine.low %v1586, %v1593
        %v1820 = vunpack.c.l.s4 1983009808
        %v1821 = vunpack.c.0.s8 %v1820
        %v1822 = vlaneseq
        %v1823 = vshrl.u32 %v1822, 7
        %v1824 = vsub.s32 %v1821, %v1823
        %v1825 = vrot.slane %v1818, %v1824
        %v1826 = vcombine.low %v1596, %v1597
        %v1828 = vunpack.c.l.s4 1983009808
        %v1829 = vunpack.c.0.s8 %v1828
        %v1830 = vlaneseq
        %v1831 = vshrl.u32 %v1830, 7
        %v1832 = vsub.s32 %v1829, %v1831
        %v1833 = vrot.slane %v1826, %v1832
        %v1834 = vcombine.low %v1809, %v1817
        %v1835 = vcombine.high %v1809, %v1817
        %v1837 = vunpack.c.l.s4 1934713408
        %v1838 = vunpack.c.0.s8 %v1837
        %v1839 = vlaneseq
        %v1840 = vshrl.u32 %v1839, 7
        %v1841 = vsub.s32 %v1838, %v1840
        %v1842 = vrot.slane %v1834, %v1841
        %v1844 = vunpack.c.l.s4 1934713408
        %v1845 = vunpack.c.0.s8 %v1844
        %v1846 = vlaneseq
        %v1847 = vshrl.u32 %v1846, 7
        %v1848 = vsub.s32 %v1845, %v1847
        %v1849 = vrot.slane %v1835, %v1848
        %v1850 = vcombine.low %v1825, %v1833
        %v1851 = vcombine.high %v1825, %v1833
        %v1853 = vunpack.c.l.s4 1934713408
        %v1854 = vunpack.c.0.s8 %v1853
        %v1855 = vlaneseq
        %v1856 = vshrl.u32 %v1855, 7
        %v1857 = vsub.s32 %v1854, %v1856
        %v1858 = vrot.slane %v1850, %v1857
        %v1860 = vunpack.c.l.s4 1934713408
        %v1861 = vunpack.c.0.s8 %v1860
        %v1862 = vlaneseq
        %v1863 = vshrl.u32 %v1862, 7
        %v1864 = vsub.s32 %v1861, %v1863
        %v1865 = vrot.slane %v1851, %v1864
        %v1866 = vcombine.low %v1842, %v1858
        %v1867 = vcombine.high %v1842, %v1858
        %v1868 = vcombine.low %v1849, %v1865
        %v1869 = vcombine.high %v1849, %v1865
        %v1870 = vpack.c.bf16 %v1730, %v1662
        %v1871 = vpack.c.bf16 %v1731, %v1663
        %v1872 = vpack.c.bf16 %v1732, %v1664
        %v1873 = vpack.c.bf16 %v1733, %v1665
        %v1874 = vpack.c.bf16 %v1866, %v1798
        %v1875 = vpack.c.bf16 %v1867, %v1799
        %v1876 = vpack.c.bf16 %v1868, %v1800
        %v1877 = vpack.c.bf16 %v1869, %v1801
        %1878 = vrot.lane.b32.xlu0 %v640, 64
        %v1879 = vpop.permute.xlu0 %1878
        %1880 = vrot.lane.b32.xlu0 %v643, 64
        %v1881 = vpop.permute.xlu0 %1880
        %1882 = vrot.lane.b32.xlu0 %v648, 64
        %v1883 = vpop.permute.xlu0 %1882
        %1884 = vrot.lane.b32.xlu0 %v651, 64
        %v1885 = vpop.permute.xlu0 %1884
        %1886 = vrot.lane.b32.xlu0 %v1255, 64
        %v1887 = vpop.permute.xlu0 %1886
        %1888 = vrot.lane.b32.xlu0 %v1257, 64
        %v1889 = vpop.permute.xlu0 %1888
        %1890 = vrot.lane.b32.xlu0 %v1259, 64
        %v1891 = vpop.permute.xlu0 %1890
        %1892 = vrot.lane.b32.xlu0 %v1261, 64
        %v1893 = vpop.permute.xlu0 %1892
        %1894 = vrot.lane.b32.xlu0 %v1263, 64
        %v1895 = vpop.permute.xlu0 %1894
        %1896 = vrot.lane.b32.xlu0 %v1265, 64
        %v1897 = vpop.permute.xlu0 %1896
        %1898 = vrot.lane.b32.xlu0 %v1267, 64
        %v1899 = vpop.permute.xlu0 %1898
        %1900 = vrot.lane.b32.xlu0 %v1269, 64
        %v1901 = vpop.permute.xlu0 %1900
        %1902 = vrot.lane.b32.xlu0 %v1271, 64
        %v1903 = vpop.permute.xlu0 %1902
        %1904 = vrot.lane.b32.xlu0 %v1273, 64
        %v1905 = vpop.permute.xlu0 %1904
        %1906 = vrot.lane.b32.xlu0 %v1275, 64
        %v1907 = vpop.permute.xlu0 %1906
        %1908 = vrot.lane.b32.xlu0 %v1277, 64
        %v1909 = vpop.permute.xlu0 %1908
        %v1926 = vcombine.low %v1879, %v1895
        %v1927 = vcombine.high %v1879, %v1895
        %v1929 = vunpack.c.l.s4 1983009808
        %v1930 = vunpack.c.0.s8 %v1929
        %v1931 = vlaneseq
        %v1932 = vshrl.u32 %v1931, 7
        %v1933 = vsub.s32 %v1930, %v1932
        %v1934 = vrot.slane %v1926, %v1933
        %v1936 = vunpack.c.l.s4 1983009808
        %v1937 = vunpack.c.0.s8 %v1936
        %v1938 = vlaneseq
        %v1939 = vshrl.u32 %v1938, 7
        %v1940 = vsub.s32 %v1937, %v1939
        %v1941 = vrot.slane %v1927, %v1940
        %v1942 = vcombine.low %v1887, %v1903
        %v1943 = vcombine.high %v1887, %v1903
        %v1945 = vunpack.c.l.s4 1983009808
        %v1946 = vunpack.c.0.s8 %v1945
        %v1947 = vlaneseq
        %v1948 = vshrl.u32 %v1947, 7
        %v1949 = vsub.s32 %v1946, %v1948
        %v1950 = vrot.slane %v1942, %v1949
        %v1952 = vunpack.c.l.s4 1983009808
        %v1953 = vunpack.c.0.s8 %v1952
        %v1954 = vlaneseq
        %v1955 = vshrl.u32 %v1954, 7
        %v1956 = vsub.s32 %v1953, %v1955
        %v1957 = vrot.slane %v1943, %v1956
        %v1958 = vcombine.low %v1934, %v1950
        %v1959 = vcombine.high %v1934, %v1950
        %v1961 = vunpack.c.l.s4 1934713408
        %v1962 = vunpack.c.0.s8 %v1961
        %v1963 = vlaneseq
        %v1964 = vshrl.u32 %v1963, 7
        %v1965 = vsub.s32 %v1962, %v1964
        %v1966 = vrot.slane %v1958, %v1965
        %v1968 = vunpack.c.l.s4 1934713408
        %v1969 = vunpack.c.0.s8 %v1968
        %v1970 = vlaneseq
        %v1971 = vshrl.u32 %v1970, 7
        %v1972 = vsub.s32 %v1969, %v1971
        %v1973 = vrot.slane %v1959, %v1972
        %v1974 = vcombine.low %v1941, %v1957
        %v1975 = vcombine.high %v1941, %v1957
        %v1977 = vunpack.c.l.s4 1934713408
        %v1978 = vunpack.c.0.s8 %v1977
        %v1979 = vlaneseq
        %v1980 = vshrl.u32 %v1979, 7
        %v1981 = vsub.s32 %v1978, %v1980
        %v1982 = vrot.slane %v1974, %v1981
        %v1984 = vunpack.c.l.s4 1934713408
        %v1985 = vunpack.c.0.s8 %v1984
        %v1986 = vlaneseq
        %v1987 = vshrl.u32 %v1986, 7
        %v1988 = vsub.s32 %v1985, %v1987
        %v1989 = vrot.slane %v1975, %v1988
        %v1990 = vcombine.high %v1966, 0.0
        %v1991 = vcombine.high %v1973, 0.0
        %v1992 = vcombine.high %v1982, 0.0
        %v1993 = vcombine.high %v1989, 0.0
        %v1994 = vcombine.low %v1881, %v1897
        %v1995 = vcombine.high %v1881, %v1897
        %v1997 = vunpack.c.l.s4 1983009808
        %v1998 = vunpack.c.0.s8 %v1997
        %v1999 = vlaneseq
        %v2000 = vshrl.u32 %v1999, 7
        %v2001 = vsub.s32 %v1998, %v2000
        %v2002 = vrot.slane %v1994, %v2001
        %v2004 = vunpack.c.l.s4 1983009808
        %v2005 = vunpack.c.0.s8 %v2004
        %v2006 = vlaneseq
        %v2007 = vshrl.u32 %v2006, 7
        %v2008 = vsub.s32 %v2005, %v2007
        %v2009 = vrot.slane %v1995, %v2008
        %v2010 = vcombine.low %v1889, %v1905
        %v2011 = vcombine.high %v1889, %v1905
        %v2013 = vunpack.c.l.s4 1983009808
        %v2014 = vunpack.c.0.s8 %v2013
        %v2015 = vlaneseq
        %v2016 = vshrl.u32 %v2015, 7
        %v2017 = vsub.s32 %v2014, %v2016
        %v2018 = vrot.slane %v2010, %v2017
        %v2020 = vunpack.c.l.s4 1983009808
        %v2021 = vunpack.c.0.s8 %v2020
        %v2022 = vlaneseq
        %v2023 = vshrl.u32 %v2022, 7
        %v2024 = vsub.s32 %v2021, %v2023
        %v2025 = vrot.slane %v2011, %v2024
        %v2026 = vcombine.low %v2002, %v2018
        %v2027 = vcombine.high %v2002, %v2018
        %v2029 = vunpack.c.l.s4 1934713408
        %v2030 = vunpack.c.0.s8 %v2029
        %v2031 = vlaneseq
        %v2032 = vshrl.u32 %v2031, 7
        %v2033 = vsub.s32 %v2030, %v2032
        %v2034 = vrot.slane %v2026, %v2033
        %v2036 = vunpack.c.l.s4 1934713408
        %v2037 = vunpack.c.0.s8 %v2036
        %v2038 = vlaneseq
        %v2039 = vshrl.u32 %v2038, 7
        %v2040 = vsub.s32 %v2037, %v2039
        %v2041 = vrot.slane %v2027, %v2040
        %v2042 = vcombine.low %v2009, %v2025
        %v2043 = vcombine.high %v2009, %v2025
        %v2045 = vunpack.c.l.s4 1934713408
        %v2046 = vunpack.c.0.s8 %v2045
        %v2047 = vlaneseq
        %v2048 = vshrl.u32 %v2047, 7
        %v2049 = vsub.s32 %v2046, %v2048
        %v2050 = vrot.slane %v2042, %v2049
        %v2052 = vunpack.c.l.s4 1934713408
        %v2053 = vunpack.c.0.s8 %v2052
        %v2054 = vlaneseq
        %v2055 = vshrl.u32 %v2054, 7
        %v2056 = vsub.s32 %v2053, %v2055
        %v2057 = vrot.slane %v2043, %v2056
        %v2058 = vcombine.high %v2034, 0.0
        %v2059 = vcombine.high %v2041, 0.0
        %v2060 = vcombine.high %v2050, 0.0
        %v2061 = vcombine.high %v2057, 0.0
        %v2062 = vcombine.low %v1883, %v1899
        %v2063 = vcombine.high %v1883, %v1899
        %v2065 = vunpack.c.l.s4 1983009808
        %v2066 = vunpack.c.0.s8 %v2065
        %v2067 = vlaneseq
        %v2068 = vshrl.u32 %v2067, 7
        %v2069 = vsub.s32 %v2066, %v2068
        %v2070 = vrot.slane %v2062, %v2069
        %v2072 = vunpack.c.l.s4 1983009808
        %v2073 = vunpack.c.0.s8 %v2072
        %v2074 = vlaneseq
        %v2075 = vshrl.u32 %v2074, 7
        %v2076 = vsub.s32 %v2073, %v2075
        %v2077 = vrot.slane %v2063, %v2076
        %v2078 = vcombine.low %v1891, %v1907
        %v2079 = vcombine.high %v1891, %v1907
        %v2081 = vunpack.c.l.s4 1983009808
        %v2082 = vunpack.c.0.s8 %v2081
        %v2083 = vlaneseq
        %v2084 = vshrl.u32 %v2083, 7
        %v2085 = vsub.s32 %v2082, %v2084
        %v2086 = vrot.slane %v2078, %v2085
        %v2088 = vunpack.c.l.s4 1983009808
        %v2089 = vunpack.c.0.s8 %v2088
        %v2090 = vlaneseq
        %v2091 = vshrl.u32 %v2090, 7
        %v2092 = vsub.s32 %v2089, %v2091
        %v2093 = vrot.slane %v2079, %v2092
        %v2094 = vcombine.low %v2070, %v2086
        %v2095 = vcombine.high %v2070, %v2086
        %v2097 = vunpack.c.l.s4 1934713408
        %v2098 = vunpack.c.0.s8 %v2097
        %v2099 = vlaneseq
        %v2100 = vshrl.u32 %v2099, 7
        %v2101 = vsub.s32 %v2098, %v2100
        %v2102 = vrot.slane %v2094, %v2101
        %v2104 = vunpack.c.l.s4 1934713408
        %v2105 = vunpack.c.0.s8 %v2104
        %v2106 = vlaneseq
        %v2107 = vshrl.u32 %v2106, 7
        %v2108 = vsub.s32 %v2105, %v2107
        %v2109 = vrot.slane %v2095, %v2108
        %v2110 = vcombine.low %v2077, %v2093
        %v2111 = vcombine.high %v2077, %v2093
        %v2113 = vunpack.c.l.s4 1934713408
        %v2114 = vunpack.c.0.s8 %v2113
        %v2115 = vlaneseq
        %v2116 = vshrl.u32 %v2115, 7
        %v2117 = vsub.s32 %v2114, %v2116
        %v2118 = vrot.slane %v2110, %v2117
        %v2120 = vunpack.c.l.s4 1934713408
        %v2121 = vunpack.c.0.s8 %v2120
        %v2122 = vlaneseq
        %v2123 = vshrl.u32 %v2122, 7
        %v2124 = vsub.s32 %v2121, %v2123
        %v2125 = vrot.slane %v2111, %v2124
        %v2126 = vcombine.high %v2102, 0.0
        %v2127 = vcombine.high %v2109, 0.0
        %v2128 = vcombine.high %v2118, 0.0
        %v2129 = vcombine.high %v2125, 0.0
        %v2130 = vcombine.low %v1885, %v1901
        %v2131 = vcombine.high %v1885, %v1901
        %v2133 = vunpack.c.l.s4 1983009808
        %v2134 = vunpack.c.0.s8 %v2133
        %v2135 = vlaneseq
        %v2136 = vshrl.u32 %v2135, 7
        %v2137 = vsub.s32 %v2134, %v2136
        %v2138 = vrot.slane %v2130, %v2137
        %v2140 = vunpack.c.l.s4 1983009808
        %v2141 = vunpack.c.0.s8 %v2140
        %v2142 = vlaneseq
        %v2143 = vshrl.u32 %v2142, 7
        %v2144 = vsub.s32 %v2141, %v2143
        %v2145 = vrot.slane %v2131, %v2144
        %v2146 = vcombine.low %v1893, %v1909
        %v2147 = vcombine.high %v1893, %v1909
        %v2149 = vunpack.c.l.s4 1983009808
        %v2150 = vunpack.c.0.s8 %v2149
        %v2151 = vlaneseq
        %v2152 = vshrl.u32 %v2151, 7
        %v2153 = vsub.s32 %v2150, %v2152
        %v2154 = vrot.slane %v2146, %v2153
        %v2156 = vunpack.c.l.s4 1983009808
        %v2157 = vunpack.c.0.s8 %v2156
        %v2158 = vlaneseq
        %v2159 = vshrl.u32 %v2158, 7
        %v2160 = vsub.s32 %v2157, %v2159
        %v2161 = vrot.slane %v2147, %v2160
        %v2162 = vcombine.low %v2138, %v2154
        %v2163 = vcombine.high %v2138, %v2154
        %v2165 = vunpack.c.l.s4 1934713408
        %v2166 = vunpack.c.0.s8 %v2165
        %v2167 = vlaneseq
        %v2168 = vshrl.u32 %v2167, 7
        %v2169 = vsub.s32 %v2166, %v2168
        %v2170 = vrot.slane %v2162, %v2169
        %v2172 = vunpack.c.l.s4 1934713408
        %v2173 = vunpack.c.0.s8 %v2172
        %v2174 = vlaneseq
        %v2175 = vshrl.u32 %v2174, 7
        %v2176 = vsub.s32 %v2173, %v2175
        %v2177 = vrot.slane %v2163, %v2176
        %v2178 = vcombine.low %v2145, %v2161
        %v2179 = vcombine.high %v2145, %v2161
        %v2181 = vunpack.c.l.s4 1934713408
        %v2182 = vunpack.c.0.s8 %v2181
        %v2183 = vlaneseq
        %v2184 = vshrl.u32 %v2183, 7
        %v2185 = vsub.s32 %v2182, %v2184
        %v2186 = vrot.slane %v2178, %v2185
        %v2188 = vunpack.c.l.s4 1934713408
        %v2189 = vunpack.c.0.s8 %v2188
        %v2190 = vlaneseq
        %v2191 = vshrl.u32 %v2190, 7
        %v2192 = vsub.s32 %v2189, %v2191
        %v2193 = vrot.slane %v2179, %v2192
        %v2194 = vcombine.high %v2170, 0.0
        %v2195 = vcombine.high %v2177, 0.0
        %v2196 = vcombine.high %v2186, 0.0
        %v2197 = vcombine.high %v2193, 0.0
        %v2198 = vcombine.low %v1966, %v1973
        %v2200 = vunpack.c.l.s4 1983009808
        %v2201 = vunpack.c.0.s8 %v2200
        %v2202 = vlaneseq
        %v2203 = vshrl.u32 %v2202, 7
        %v2204 = vsub.s32 %v2201, %v2203
        %v2205 = vrot.slane %v2198, %v2204
        %v2206 = vcombine.low %v1990, %v1991
        %v2208 = vunpack.c.l.s4 1983009808
        %v2209 = vunpack.c.0.s8 %v2208
        %v2210 = vlaneseq
        %v2211 = vshrl.u32 %v2210, 7
        %v2212 = vsub.s32 %v2209, %v2211
        %v2213 = vrot.slane %v2206, %v2212
        %v2214 = vcombine.low %v1982, %v1989
        %v2216 = vunpack.c.l.s4 1983009808
        %v2217 = vunpack.c.0.s8 %v2216
        %v2218 = vlaneseq
        %v2219 = vshrl.u32 %v2218, 7
        %v2220 = vsub.s32 %v2217, %v2219
        %v2221 = vrot.slane %v2214, %v2220
        %v2222 = vcombine.low %v1992, %v1993
        %v2224 = vunpack.c.l.s4 1983009808
        %v2225 = vunpack.c.0.s8 %v2224
        %v2226 = vlaneseq
        %v2227 = vshrl.u32 %v2226, 7
        %v2228 = vsub.s32 %v2225, %v2227
        %v2229 = vrot.slane %v2222, %v2228
        %v2230 = vcombine.low %v2205, %v2213
        %v2231 = vcombine.high %v2205, %v2213
        %v2233 = vunpack.c.l.s4 1934713408
        %v2234 = vunpack.c.0.s8 %v2233
        %v2235 = vlaneseq
        %v2236 = vshrl.u32 %v2235, 7
        %v2237 = vsub.s32 %v2234, %v2236
        %v2238 = vrot.slane %v2230, %v2237
        %v2240 = vunpack.c.l.s4 1934713408
        %v2241 = vunpack.c.0.s8 %v2240
        %v2242 = vlaneseq
        %v2243 = vshrl.u32 %v2242, 7
        %v2244 = vsub.s32 %v2241, %v2243
        %v2245 = vrot.slane %v2231, %v2244
        %v2246 = vcombine.low %v2221, %v2229
        %v2247 = vcombine.high %v2221, %v2229
        %v2249 = vunpack.c.l.s4 1934713408
        %v2250 = vunpack.c.0.s8 %v2249
        %v2251 = vlaneseq
        %v2252 = vshrl.u32 %v2251, 7
        %v2253 = vsub.s32 %v2250, %v2252
        %v2254 = vrot.slane %v2246, %v2253
        %v2256 = vunpack.c.l.s4 1934713408
        %v2257 = vunpack.c.0.s8 %v2256
        %v2258 = vlaneseq
        %v2259 = vshrl.u32 %v2258, 7
        %v2260 = vsub.s32 %v2257, %v2259
        %v2261 = vrot.slane %v2247, %v2260
        %v2262 = vcombine.low %v2238, %v2254
        %v2263 = vcombine.high %v2238, %v2254
        %v2264 = vcombine.low %v2245, %v2261
        %v2265 = vcombine.high %v2245, %v2261
        %v2266 = vcombine.low %v2034, %v2041
        %v2268 = vunpack.c.l.s4 1983009808
        %v2269 = vunpack.c.0.s8 %v2268
        %v2270 = vlaneseq
        %v2271 = vshrl.u32 %v2270, 7
        %v2272 = vsub.s32 %v2269, %v2271
        %v2273 = vrot.slane %v2266, %v2272
        %v2274 = vcombine.low %v2058, %v2059
        %v2276 = vunpack.c.l.s4 1983009808
        %v2277 = vunpack.c.0.s8 %v2276
        %v2278 = vlaneseq
        %v2279 = vshrl.u32 %v2278, 7
        %v2280 = vsub.s32 %v2277, %v2279
        %v2281 = vrot.slane %v2274, %v2280
        %v2282 = vcombine.low %v2050, %v2057
        %v2284 = vunpack.c.l.s4 1983009808
        %v2285 = vunpack.c.0.s8 %v2284
        %v2286 = vlaneseq
        %v2287 = vshrl.u32 %v2286, 7
        %v2288 = vsub.s32 %v2285, %v2287
        %v2289 = vrot.slane %v2282, %v2288
        %v2290 = vcombine.low %v2060, %v2061
        %v2292 = vunpack.c.l.s4 1983009808
        %v2293 = vunpack.c.0.s8 %v2292
        %v2294 = vlaneseq
        %v2295 = vshrl.u32 %v2294, 7
        %v2296 = vsub.s32 %v2293, %v2295
        %v2297 = vrot.slane %v2290, %v2296
        %v2298 = vcombine.low %v2273, %v2281
        %v2299 = vcombine.high %v2273, %v2281
        %v2301 = vunpack.c.l.s4 1934713408
        %v2302 = vunpack.c.0.s8 %v2301
        %v2303 = vlaneseq
        %v2304 = vshrl.u32 %v2303, 7
        %v2305 = vsub.s32 %v2302, %v2304
        %v2306 = vrot.slane %v2298, %v2305
        %v2308 = vunpack.c.l.s4 1934713408
        %v2309 = vunpack.c.0.s8 %v2308
        %v2310 = vlaneseq
        %v2311 = vshrl.u32 %v2310, 7
        %v2312 = vsub.s32 %v2309, %v2311
        %v2313 = vrot.slane %v2299, %v2312
        %v2314 = vcombine.low %v2289, %v2297
        %v2315 = vcombine.high %v2289, %v2297
        %v2317 = vunpack.c.l.s4 1934713408
        %v2318 = vunpack.c.0.s8 %v2317
        %v2319 = vlaneseq
        %v2320 = vshrl.u32 %v2319, 7
        %v2321 = vsub.s32 %v2318, %v2320
        %v2322 = vrot.slane %v2314, %v2321
        %v2324 = vunpack.c.l.s4 1934713408
        %v2325 = vunpack.c.0.s8 %v2324
        %v2326 = vlaneseq
        %v2327 = vshrl.u32 %v2326, 7
        %v2328 = vsub.s32 %v2325, %v2327
        %v2329 = vrot.slane %v2315, %v2328
        %v2330 = vcombine.low %v2306, %v2322
        %v2331 = vcombine.high %v2306, %v2322
        %v2332 = vcombine.low %v2313, %v2329
        %v2333 = vcombine.high %v2313, %v2329
        %v2334 = vcombine.low %v2102, %v2109
        %v2336 = vunpack.c.l.s4 1983009808
        %v2337 = vunpack.c.0.s8 %v2336
        %v2338 = vlaneseq
        %v2339 = vshrl.u32 %v2338, 7
        %v2340 = vsub.s32 %v2337, %v2339
        %v2341 = vrot.slane %v2334, %v2340
        %v2342 = vcombine.low %v2126, %v2127
        %v2344 = vunpack.c.l.s4 1983009808
        %v2345 = vunpack.c.0.s8 %v2344
        %v2346 = vlaneseq
        %v2347 = vshrl.u32 %v2346, 7
        %v2348 = vsub.s32 %v2345, %v2347
        %v2349 = vrot.slane %v2342, %v2348
        %v2350 = vcombine.low %v2118, %v2125
        %v2352 = vunpack.c.l.s4 1983009808
        %v2353 = vunpack.c.0.s8 %v2352
        %v2354 = vlaneseq
        %v2355 = vshrl.u32 %v2354, 7
        %v2356 = vsub.s32 %v2353, %v2355
        %v2357 = vrot.slane %v2350, %v2356
        %v2358 = vcombine.low %v2128, %v2129
        %v2360 = vunpack.c.l.s4 1983009808
        %v2361 = vunpack.c.0.s8 %v2360
        %v2362 = vlaneseq
        %v2363 = vshrl.u32 %v2362, 7
        %v2364 = vsub.s32 %v2361, %v2363
        %v2365 = vrot.slane %v2358, %v2364
        %v2366 = vcombine.low %v2341, %v2349
        %v2367 = vcombine.high %v2341, %v2349
        %v2369 = vunpack.c.l.s4 1934713408
        %v2370 = vunpack.c.0.s8 %v2369
        %v2371 = vlaneseq
        %v2372 = vshrl.u32 %v2371, 7
        %v2373 = vsub.s32 %v2370, %v2372
        %v2374 = vrot.slane %v2366, %v2373
        %v2376 = vunpack.c.l.s4 1934713408
        %v2377 = vunpack.c.0.s8 %v2376
        %v2378 = vlaneseq
        %v2379 = vshrl.u32 %v2378, 7
        %v2380 = vsub.s32 %v2377, %v2379
        %v2381 = vrot.slane %v2367, %v2380
        %v2382 = vcombine.low %v2357, %v2365
        %v2383 = vcombine.high %v2357, %v2365
        %v2385 = vunpack.c.l.s4 1934713408
        %v2386 = vunpack.c.0.s8 %v2385
        %v2387 = vlaneseq
        %v2388 = vshrl.u32 %v2387, 7
        %v2389 = vsub.s32 %v2386, %v2388
        %v2390 = vrot.slane %v2382, %v2389
        %v2392 = vunpack.c.l.s4 1934713408
        %v2393 = vunpack.c.0.s8 %v2392
        %v2394 = vlaneseq
        %v2395 = vshrl.u32 %v2394, 7
        %v2396 = vsub.s32 %v2393, %v2395
        %v2397 = vrot.slane %v2383, %v2396
        %v2398 = vcombine.low %v2374, %v2390
        %v2399 = vcombine.high %v2374, %v2390
        %v2400 = vcombine.low %v2381, %v2397
        %v2401 = vcombine.high %v2381, %v2397
        %v2402 = vcombine.low %v2170, %v2177
        %v2404 = vunpack.c.l.s4 1983009808
        %v2405 = vunpack.c.0.s8 %v2404
        %v2406 = vlaneseq
        %v2407 = vshrl.u32 %v2406, 7
        %v2408 = vsub.s32 %v2405, %v2407
        %v2409 = vrot.slane %v2402, %v2408
        %v2410 = vcombine.low %v2194, %v2195
        %v2412 = vunpack.c.l.s4 1983009808
        %v2413 = vunpack.c.0.s8 %v2412
        %v2414 = vlaneseq
        %v2415 = vshrl.u32 %v2414, 7
        %v2416 = vsub.s32 %v2413, %v2415
        %v2417 = vrot.slane %v2410, %v2416
        %v2418 = vcombine.low %v2186, %v2193
        %v2420 = vunpack.c.l.s4 1983009808
        %v2421 = vunpack.c.0.s8 %v2420
        %v2422 = vlaneseq
        %v2423 = vshrl.u32 %v2422, 7
        %v2424 = vsub.s32 %v2421, %v2423
        %v2425 = vrot.slane %v2418, %v2424
        %v2426 = vcombine.low %v2196, %v2197
        %v2428 = vunpack.c.l.s4 1983009808
        %v2429 = vunpack.c.0.s8 %v2428
        %v2430 = vlaneseq
        %v2431 = vshrl.u32 %v2430, 7
        %v2432 = vsub.s32 %v2429, %v2431
        %v2433 = vrot.slane %v2426, %v2432
        %v2434 = vcombine.low %v2409, %v2417
        %v2435 = vcombine.high %v2409, %v2417
        %v2437 = vunpack.c.l.s4 1934713408
        %v2438 = vunpack.c.0.s8 %v2437
        %v2439 = vlaneseq
        %v2440 = vshrl.u32 %v2439, 7
        %v2441 = vsub.s32 %v2438, %v2440
        %v2442 = vrot.slane %v2434, %v2441
        %v2444 = vunpack.c.l.s4 1934713408
        %v2445 = vunpack.c.0.s8 %v2444
        %v2446 = vlaneseq
        %v2447 = vshrl.u32 %v2446, 7
        %v2448 = vsub.s32 %v2445, %v2447
        %v2449 = vrot.slane %v2435, %v2448
        %v2450 = vcombine.low %v2425, %v2433
        %v2451 = vcombine.high %v2425, %v2433
        %v2453 = vunpack.c.l.s4 1934713408
        %v2454 = vunpack.c.0.s8 %v2453
        %v2455 = vlaneseq
        %v2456 = vshrl.u32 %v2455, 7
        %v2457 = vsub.s32 %v2454, %v2456
        %v2458 = vrot.slane %v2450, %v2457
        %v2460 = vunpack.c.l.s4 1934713408
        %v2461 = vunpack.c.0.s8 %v2460
        %v2462 = vlaneseq
        %v2463 = vshrl.u32 %v2462, 7
        %v2464 = vsub.s32 %v2461, %v2463
        %v2465 = vrot.slane %v2451, %v2464
        %v2466 = vcombine.low %v2442, %v2458
        %v2467 = vcombine.high %v2442, %v2458
        %v2468 = vcombine.low %v2449, %v2465
        %v2469 = vcombine.high %v2449, %v2465
        %v2470 = vpack.c.bf16 %v2330, %v2262
        %v2471 = vpack.c.bf16 %v2331, %v2263
        %v2472 = vpack.c.bf16 %v2332, %v2264
        %v2473 = vpack.c.bf16 %v2333, %v2265
        %v2474 = vpack.c.bf16 %v2466, %v2398
        %v2475 = vpack.c.bf16 %v2467, %v2399
        %v2476 = vpack.c.bf16 %v2468, %v2400
        %v2477 = vpack.c.bf16 %v2469, %v2401
        %vm2478 = vcmask 64512
        %v2480 = vsel %vm2478, %v1242, 0
        %v2483 = vsel %vm2478, %v1870, 0
        %2485 = vmatprep.subr.bf16.mxu0 0
        %2486 = vmatpush1.bf16.xpose.msra.mxu0 %v2483
        %2487 = vmatprep.subr.bf16.mxu0 0
        %2488 = vmatpush1.bf16.xpose.msra.mxu0 0
        %2489 = vmatprep.subr.bf16.mxu0 0
        %2490 = vmatpush1.bf16.xpose.msra.mxu0 0
        %2491 = vmatprep.subr.bf16.mxu0 0
        %2492 = vmatpush1.bf16.xpose.msra.mxu0 0
        %2493 = vmatprep.subr.bf16.mxu0 0
        %2494 = vmatpush1.bf16.xpose.msra.mxu0 0
        %2495 = vmatprep.subr.bf16.mxu0 0
        %2496 = vmatpush1.bf16.xpose.msra.mxu0 0
        %2497 = vmatprep.subr.bf16.mxu0 0
        %2498 = vmatpush1.bf16.xpose.msra.mxu0 0
        %2499 = vmatprep.subr.bf16.mxu0 0
        %2500 = vmatpush1.bf16.xpose.msra.mxu0 0
        %2501 = vmatprep.subr.bf16.mxu0 0
        %2502 = vmatpush1.bf16.xpose.msra.mxu0 0
        %2503 = vmatprep.subr.bf16.mxu0 0
        %2504 = vmatpush1.bf16.xpose.msra.mxu0 0
        %2505 = vmatprep.subr.bf16.mxu0 0
        %2506 = vmatpush1.bf16.xpose.msra.mxu0 0
        %2507 = vmatprep.subr.bf16.mxu0 0
        %2508 = vmatpush1.bf16.xpose.msra.mxu0 0
        %2509 = vmatprep.subr.bf16.mxu0 0
        %2510 = vmatpush1.bf16.xpose.msra.mxu0 0
        %2511 = vmatprep.subr.bf16.mxu0 0
        %2512 = vmatpush1.bf16.xpose.msra.mxu0 0
        %2513 = vmatprep.subr.bf16.mxu0 0
        %2514 = vmatpush1.bf16.xpose.msra.mxu0 0
        %2515 = vmatprep.subr.bf16.mxu0 0
        %2516 = vmatpush1.bf16.xpose.msra.mxu0 0
        %2517 = vmatprep.mubr.bf16.mxu0 0
        %2518 = vmatmul.mubr.bf16.gmra.mrb[0].mxu0 %v2480
        %v2519 = vpop.f32.mrb[0].mxu0
        %v2520 = vadd.f32 0.0, %v2519
        %v2521 = vpop.f32.mrb[0].mxu0
        %v2522 = vpop.f32.mrb[0].mxu0
        %v2523 = vadd.f32 0.0, %v2522
        %v2524 = vpop.f32.mrb[0].mxu0
        %2525 = vdwg.mxu0
        %v2527 = vsel %vm2478, %v1243, 0
        %v2530 = vsel %vm2478, %v1871, 0
        %2532 = vmatprep.subr.bf16.mxu0 0
        %2533 = vmatpush1.bf16.xpose.msra.mxu0 %v2530
        %2534 = vmatprep.subr.bf16.mxu0 0
        %2535 = vmatpush1.bf16.xpose.msra.mxu0 0
        %2536 = vmatprep.subr.bf16.mxu0 0
        %2537 = vmatpush1.bf16.xpose.msra.mxu0 0
        %2538 = vmatprep.subr.bf16.mxu0 0
        %2539 = vmatpush1.bf16.xpose.msra.mxu0 0
        %2540 = vmatprep.subr.bf16.mxu0 0
        %2541 = vmatpush1.bf16.xpose.msra.mxu0 0
        %2542 = vmatprep.subr.bf16.mxu0 0
        %2543 = vmatpush1.bf16.xpose.msra.mxu0 0
        %2544 = vmatprep.subr.bf16.mxu0 0
        %2545 = vmatpush1.bf16.xpose.msra.mxu0 0
        %2546 = vmatprep.subr.bf16.mxu0 0
        %2547 = vmatpush1.bf16.xpose.msra.mxu0 0
        %2548 = vmatprep.subr.bf16.mxu0 0
        %2549 = vmatpush1.bf16.xpose.msra.mxu0 0
        %2550 = vmatprep.subr.bf16.mxu0 0
        %2551 = vmatpush1.bf16.xpose.msra.mxu0 0
        %2552 = vmatprep.subr.bf16.mxu0 0
        %2553 = vmatpush1.bf16.xpose.msra.mxu0 0
        %2554 = vmatprep.subr.bf16.mxu0 0
        %2555 = vmatpush1.bf16.xpose.msra.mxu0 0
        %2556 = vmatprep.subr.bf16.mxu0 0
        %2557 = vmatpush1.bf16.xpose.msra.mxu0 0
        %2558 = vmatprep.subr.bf16.mxu0 0
        %2559 = vmatpush1.bf16.xpose.msra.mxu0 0
        %2560 = vmatprep.subr.bf16.mxu0 0
        %2561 = vmatpush1.bf16.xpose.msra.mxu0 0
        %2562 = vmatprep.subr.bf16.mxu0 0
        %2563 = vmatpush1.bf16.xpose.msra.mxu0 0
        %2564 = vmatprep.mubr.bf16.mxu0 0
        %2565 = vmatmul.mubr.bf16.gmra.mrb[0].mxu0 %v2527
        %v2566 = vpop.f32.mrb[0].mxu0
        %v2567 = vadd.f32 0.0, %v2566
        %v2568 = vpop.f32.mrb[0].mxu0
        %v2569 = vpop.f32.mrb[0].mxu0
        %v2570 = vadd.f32 0.0, %v2569
        %v2571 = vpop.f32.mrb[0].mxu0
        %2572 = vdwg.mxu0
        %v2574 = vsel %vm2478, %v1244, 0
        %v2577 = vsel %vm2478, %v1872, 0
        %2579 = vmatprep.subr.bf16.mxu0 0
        %2580 = vmatpush1.bf16.xpose.msra.mxu0 %v2577
        %2581 = vmatprep.subr.bf16.mxu0 0
        %2582 = vmatpush1.bf16.xpose.msra.mxu0 0
        %2583 = vmatprep.subr.bf16.mxu0 0
        %2584 = vmatpush1.bf16.xpose.msra.mxu0 0
        %2585 = vmatprep.subr.bf16.mxu0 0
        %2586 = vmatpush1.bf16.xpose.msra.mxu0 0
        %2587 = vmatprep.subr.bf16.mxu0 0
        %2588 = vmatpush1.bf16.xpose.msra.mxu0 0
        %2589 = vmatprep.subr.bf16.mxu0 0
        %2590 = vmatpush1.bf16.xpose.msra.mxu0 0
        %2591 = vmatprep.subr.bf16.mxu0 0
        %2592 = vmatpush1.bf16.xpose.msra.mxu0 0
        %2593 = vmatprep.subr.bf16.mxu0 0
        %2594 = vmatpush1.bf16.xpose.msra.mxu0 0
        %2595 = vmatprep.subr.bf16.mxu0 0
        %2596 = vmatpush1.bf16.xpose.msra.mxu0 0
        %2597 = vmatprep.subr.bf16.mxu0 0
        %2598 = vmatpush1.bf16.xpose.msra.mxu0 0
        %2599 = vmatprep.subr.bf16.mxu0 0
        %2600 = vmatpush1.bf16.xpose.msra.mxu0 0
        %2601 = vmatprep.subr.bf16.mxu0 0
        %2602 = vmatpush1.bf16.xpose.msra.mxu0 0
        %2603 = vmatprep.subr.bf16.mxu0 0
        %2604 = vmatpush1.bf16.xpose.msra.mxu0 0
        %2605 = vmatprep.subr.bf16.mxu0 0
        %2606 = vmatpush1.bf16.xpose.msra.mxu0 0
        %2607 = vmatprep.subr.bf16.mxu0 0
        %2608 = vmatpush1.bf16.xpose.msra.mxu0 0
        %2609 = vmatprep.subr.bf16.mxu0 0
        %2610 = vmatpush1.bf16.xpose.msra.mxu0 0
        %2611 = vmatprep.mubr.bf16.mxu0 0
        %2612 = vmatmul.mubr.bf16.gmra.mrb[0].mxu0 %v2574
        %v2613 = vpop.f32.mrb[0].mxu0
        %v2614 = vadd.f32 0.0, %v2613
        %v2615 = vpop.f32.mrb[0].mxu0
        %v2616 = vpop.f32.mrb[0].mxu0
        %v2617 = vadd.f32 0.0, %v2616
        %v2618 = vpop.f32.mrb[0].mxu0
        %2619 = vdwg.mxu0
        %v2621 = vsel %vm2478, %v1245, 0
        %v2624 = vsel %vm2478, %v1873, 0
        %2626 = vmatprep.subr.bf16.mxu0 0
        %2627 = vmatpush1.bf16.xpose.msra.mxu0 %v2624
        %2628 = vmatprep.subr.bf16.mxu0 0
        %2629 = vmatpush1.bf16.xpose.msra.mxu0 0
        %2630 = vmatprep.subr.bf16.mxu0 0
        %2631 = vmatpush1.bf16.xpose.msra.mxu0 0
        %2632 = vmatprep.subr.bf16.mxu0 0
        %2633 = vmatpush1.bf16.xpose.msra.mxu0 0
        %2634 = vmatprep.subr.bf16.mxu0 0
        %2635 = vmatpush1.bf16.xpose.msra.mxu0 0
        %2636 = vmatprep.subr.bf16.mxu0 0
        %2637 = vmatpush1.bf16.xpose.msra.mxu0 0
        %2638 = vmatprep.subr.bf16.mxu0 0
        %2639 = vmatpush1.bf16.xpose.msra.mxu0 0
        %2640 = vmatprep.subr.bf16.mxu0 0
        %2641 = vmatpush1.bf16.xpose.msra.mxu0 0
        %2642 = vmatprep.subr.bf16.mxu0 0
        %2643 = vmatpush1.bf16.xpose.msra.mxu0 0
        %2644 = vmatprep.subr.bf16.mxu0 0
        %2645 = vmatpush1.bf16.xpose.msra.mxu0 0
        %2646 = vmatprep.subr.bf16.mxu0 0
        %2647 = vmatpush1.bf16.xpose.msra.mxu0 0
        %2648 = vmatprep.subr.bf16.mxu0 0
        %2649 = vmatpush1.bf16.xpose.msra.mxu0 0
        %2650 = vmatprep.subr.bf16.mxu0 0
        %2651 = vmatpush1.bf16.xpose.msra.mxu0 0
        %2652 = vmatprep.subr.bf16.mxu0 0
        %2653 = vmatpush1.bf16.xpose.msra.mxu0 0
        %2654 = vmatprep.subr.bf16.mxu0 0
        %2655 = vmatpush1.bf16.xpose.msra.mxu0 0
        %2656 = vmatprep.subr.bf16.mxu0 0
        %2657 = vmatpush1.bf16.xpose.msra.mxu0 0
        %2658 = vmatprep.mubr.bf16.mxu0 0
        %2659 = vmatmul.mubr.bf16.gmra.mrb[0].mxu0 %v2621
        %v2660 = vpop.f32.mrb[0].mxu0
        %v2661 = vadd.f32 0.0, %v2660
        %v2662 = vpop.f32.mrb[0].mxu0
        %v2663 = vpop.f32.mrb[0].mxu0
        %v2664 = vadd.f32 0.0, %v2663
        %v2665 = vpop.f32.mrb[0].mxu0
        %2666 = vdwg.mxu0
        %v2668 = vsel %vm2478, %v1246, 0
        %v2671 = vsel %vm2478, %v1874, 0
        %2673 = vmatprep.subr.bf16.mxu0 0
        %2674 = vmatpush1.bf16.xpose.msra.mxu0 %v2671
        %2675 = vmatprep.subr.bf16.mxu0 0
        %2676 = vmatpush1.bf16.xpose.msra.mxu0 0
        %2677 = vmatprep.subr.bf16.mxu0 0
        %2678 = vmatpush1.bf16.xpose.msra.mxu0 0
        %2679 = vmatprep.subr.bf16.mxu0 0
        %2680 = vmatpush1.bf16.xpose.msra.mxu0 0
        %2681 = vmatprep.subr.bf16.mxu0 0
        %2682 = vmatpush1.bf16.xpose.msra.mxu0 0
        %2683 = vmatprep.subr.bf16.mxu0 0
        %2684 = vmatpush1.bf16.xpose.msra.mxu0 0
        %2685 = vmatprep.subr.bf16.mxu0 0
        %2686 = vmatpush1.bf16.xpose.msra.mxu0 0
        %2687 = vmatprep.subr.bf16.mxu0 0
        %2688 = vmatpush1.bf16.xpose.msra.mxu0 0
        %2689 = vmatprep.subr.bf16.mxu0 0
        %2690 = vmatpush1.bf16.xpose.msra.mxu0 0
        %2691 = vmatprep.subr.bf16.mxu0 0
        %2692 = vmatpush1.bf16.xpose.msra.mxu0 0
        %2693 = vmatprep.subr.bf16.mxu0 0
        %2694 = vmatpush1.bf16.xpose.msra.mxu0 0
        %2695 = vmatprep.subr.bf16.mxu0 0
        %2696 = vmatpush1.bf16.xpose.msra.mxu0 0
        %2697 = vmatprep.subr.bf16.mxu0 0
        %2698 = vmatpush1.bf16.xpose.msra.mxu0 0
        %2699 = vmatprep.subr.bf16.mxu0 0
        %2700 = vmatpush1.bf16.xpose.msra.mxu0 0
        %2701 = vmatprep.subr.bf16.mxu0 0
        %2702 = vmatpush1.bf16.xpose.msra.mxu0 0
        %2703 = vmatprep.subr.bf16.mxu0 0
        %2704 = vmatpush1.bf16.xpose.msra.mxu0 0
        %2705 = vmatprep.mubr.bf16.mxu0 0
        %2706 = vmatmul.mubr.bf16.gmra.mrb[0].mxu0 %v2668
        %v2707 = vpop.f32.mrb[0].mxu0
        %v2708 = vadd.f32 0.0, %v2707
        %v2709 = vpop.f32.mrb[0].mxu0
        %v2710 = vpop.f32.mrb[0].mxu0
        %v2711 = vadd.f32 0.0, %v2710
        %v2712 = vpop.f32.mrb[0].mxu0
        %2713 = vdwg.mxu0
        %v2715 = vsel %vm2478, %v1247, 0
        %v2718 = vsel %vm2478, %v1875, 0
        %2720 = vmatprep.subr.bf16.mxu0 0
        %2721 = vmatpush1.bf16.xpose.msra.mxu0 %v2718
        %2722 = vmatprep.subr.bf16.mxu0 0
        %2723 = vmatpush1.bf16.xpose.msra.mxu0 0
        %2724 = vmatprep.subr.bf16.mxu0 0
        %2725 = vmatpush1.bf16.xpose.msra.mxu0 0
        %2726 = vmatprep.subr.bf16.mxu0 0
        %2727 = vmatpush1.bf16.xpose.msra.mxu0 0
        %2728 = vmatprep.subr.bf16.mxu0 0
        %2729 = vmatpush1.bf16.xpose.msra.mxu0 0
        %2730 = vmatprep.subr.bf16.mxu0 0
        %2731 = vmatpush1.bf16.xpose.msra.mxu0 0
        %2732 = vmatprep.subr.bf16.mxu0 0
        %2733 = vmatpush1.bf16.xpose.msra.mxu0 0
        %2734 = vmatprep.subr.bf16.mxu0 0
        %2735 = vmatpush1.bf16.xpose.msra.mxu0 0
        %2736 = vmatprep.subr.bf16.mxu0 0
        %2737 = vmatpush1.bf16.xpose.msra.mxu0 0
        %2738 = vmatprep.subr.bf16.mxu0 0
        %2739 = vmatpush1.bf16.xpose.msra.mxu0 0
        %2740 = vmatprep.subr.bf16.mxu0 0
        %2741 = vmatpush1.bf16.xpose.msra.mxu0 0
        %2742 = vmatprep.subr.bf16.mxu0 0
        %2743 = vmatpush1.bf16.xpose.msra.mxu0 0
        %2744 = vmatprep.subr.bf16.mxu0 0
        %2745 = vmatpush1.bf16.xpose.msra.mxu0 0
        %2746 = vmatprep.subr.bf16.mxu0 0
        %2747 = vmatpush1.bf16.xpose.msra.mxu0 0
        %2748 = vmatprep.subr.bf16.mxu0 0
        %2749 = vmatpush1.bf16.xpose.msra.mxu0 0
        %2750 = vmatprep.subr.bf16.mxu0 0
        %2751 = vmatpush1.bf16.xpose.msra.mxu0 0
        %2752 = vmatprep.mubr.bf16.mxu0 0
        %2753 = vmatmul.mubr.bf16.gmra.mrb[0].mxu0 %v2715
        %v2754 = vpop.f32.mrb[0].mxu0
        %v2755 = vadd.f32 0.0, %v2754
        %v2756 = vpop.f32.mrb[0].mxu0
        %v2757 = vpop.f32.mrb[0].mxu0
        %v2758 = vadd.f32 0.0, %v2757
        %v2759 = vpop.f32.mrb[0].mxu0
        %2760 = vdwg.mxu0
        %v2762 = vsel %vm2478, %v1248, 0
        %v2765 = vsel %vm2478, %v1876, 0
        %2767 = vmatprep.subr.bf16.mxu0 0
        %2768 = vmatpush1.bf16.xpose.msra.mxu0 %v2765
        %2769 = vmatprep.subr.bf16.mxu0 0
        %2770 = vmatpush1.bf16.xpose.msra.mxu0 0
        %2771 = vmatprep.subr.bf16.mxu0 0
        %2772 = vmatpush1.bf16.xpose.msra.mxu0 0
        %2773 = vmatprep.subr.bf16.mxu0 0
        %2774 = vmatpush1.bf16.xpose.msra.mxu0 0
        %2775 = vmatprep.subr.bf16.mxu0 0
        %2776 = vmatpush1.bf16.xpose.msra.mxu0 0
        %2777 = vmatprep.subr.bf16.mxu0 0
        %2778 = vmatpush1.bf16.xpose.msra.mxu0 0
        %2779 = vmatprep.subr.bf16.mxu0 0
        %2780 = vmatpush1.bf16.xpose.msra.mxu0 0
        %2781 = vmatprep.subr.bf16.mxu0 0
        %2782 = vmatpush1.bf16.xpose.msra.mxu0 0
        %2783 = vmatprep.subr.bf16.mxu0 0
        %2784 = vmatpush1.bf16.xpose.msra.mxu0 0
        %2785 = vmatprep.subr.bf16.mxu0 0
        %2786 = vmatpush1.bf16.xpose.msra.mxu0 0
        %2787 = vmatprep.subr.bf16.mxu0 0
        %2788 = vmatpush1.bf16.xpose.msra.mxu0 0
        %2789 = vmatprep.subr.bf16.mxu0 0
        %2790 = vmatpush1.bf16.xpose.msra.mxu0 0
        %2791 = vmatprep.subr.bf16.mxu0 0
        %2792 = vmatpush1.bf16.xpose.msra.mxu0 0
        %2793 = vmatprep.subr.bf16.mxu0 0
        %2794 = vmatpush1.bf16.xpose.msra.mxu0 0
        %2795 = vmatprep.subr.bf16.mxu0 0
        %2796 = vmatpush1.bf16.xpose.msra.mxu0 0
        %2797 = vmatprep.subr.bf16.mxu0 0
        %2798 = vmatpush1.bf16.xpose.msra.mxu0 0
        %2799 = vmatprep.mubr.bf16.mxu0 0
        %2800 = vmatmul.mubr.bf16.gmra.mrb[0].mxu0 %v2762
        %v2801 = vpop.f32.mrb[0].mxu0
        %v2802 = vadd.f32 0.0, %v2801
        %v2803 = vpop.f32.mrb[0].mxu0
        %v2804 = vpop.f32.mrb[0].mxu0
        %v2805 = vadd.f32 0.0, %v2804
        %v2806 = vpop.f32.mrb[0].mxu0
        %2807 = vdwg.mxu0
        %v2809 = vsel %vm2478, %v1249, 0
        %v2812 = vsel %vm2478, %v1877, 0
        %2814 = vmatprep.subr.bf16.mxu0 0
        %2815 = vmatpush1.bf16.xpose.msra.mxu0 %v2812
        %2816 = vmatprep.subr.bf16.mxu0 0
        %2817 = vmatpush1.bf16.xpose.msra.mxu0 0
        %2818 = vmatprep.subr.bf16.mxu0 0
        %2819 = vmatpush1.bf16.xpose.msra.mxu0 0
        %2820 = vmatprep.subr.bf16.mxu0 0
        %2821 = vmatpush1.bf16.xpose.msra.mxu0 0
        %2822 = vmatprep.subr.bf16.mxu0 0
        %2823 = vmatpush1.bf16.xpose.msra.mxu0 0
        %2824 = vmatprep.subr.bf16.mxu0 0
        %2825 = vmatpush1.bf16.xpose.msra.mxu0 0
        %2826 = vmatprep.subr.bf16.mxu0 0
        %2827 = vmatpush1.bf16.xpose.msra.mxu0 0
        %2828 = vmatprep.subr.bf16.mxu0 0
        %2829 = vmatpush1.bf16.xpose.msra.mxu0 0
        %2830 = vmatprep.subr.bf16.mxu0 0
        %2831 = vmatpush1.bf16.xpose.msra.mxu0 0
        %2832 = vmatprep.subr.bf16.mxu0 0
        %2833 = vmatpush1.bf16.xpose.msra.mxu0 0
        %2834 = vmatprep.subr.bf16.mxu0 0
        %2835 = vmatpush1.bf16.xpose.msra.mxu0 0
        %2836 = vmatprep.subr.bf16.mxu0 0
        %2837 = vmatpush1.bf16.xpose.msra.mxu0 0
        %2838 = vmatprep.subr.bf16.mxu0 0
        %2839 = vmatpush1.bf16.xpose.msra.mxu0 0
        %2840 = vmatprep.subr.bf16.mxu0 0
        %2841 = vmatpush1.bf16.xpose.msra.mxu0 0
        %2842 = vmatprep.subr.bf16.mxu0 0
        %2843 = vmatpush1.bf16.xpose.msra.mxu0 0
        %2844 = vmatprep.subr.bf16.mxu0 0
        %2845 = vmatpush1.bf16.xpose.msra.mxu0 0
        %2846 = vmatprep.mubr.bf16.mxu0 0
        %2847 = vmatmul.mubr.bf16.gmra.mrb[0].mxu0 %v2809
        %v2848 = vpop.f32.mrb[0].mxu0
        %v2849 = vadd.f32 0.0, %v2848
        %v2850 = vpop.f32.mrb[0].mxu0
        %v2851 = vpop.f32.mrb[0].mxu0
        %v2852 = vadd.f32 0.0, %v2851
        %v2853 = vpop.f32.mrb[0].mxu0
        %2854 = vdwg.mxu0
        %v2855 = vlaneseq
        %v2856 = vshrl.u32 %v2855, 7
        %v2857 = vsub.s32 0, %v2856
        %v2858 = vrot.slane %v563, %v2857
        %v2859 = vlaneseq
        %v2860 = vshrl.u32 %v2859, 7
        %v2861 = vsub.s32 0, %v2860
        %v2862 = vrot.slane %v570, %v2861
        %v2865 = vadd.f32 %v2520, %v2858
        %v2866 = vadd.f32 %v2523, %v2858
        %v2867 = vadd.f32 %v2567, %v2858
        %v2868 = vadd.f32 %v2570, %v2858
        %v2869 = vadd.f32 %v2614, %v2858
        %v2870 = vadd.f32 %v2617, %v2858
        %v2871 = vadd.f32 %v2661, %v2858
        %v2872 = vadd.f32 %v2664, %v2858
        %v2873 = vadd.f32 %v2708, %v2862
        %v2874 = vadd.f32 %v2711, %v2862
        %v2875 = vadd.f32 %v2755, %v2862
        %v2876 = vadd.f32 %v2758, %v2862
        %v2877 = vadd.f32 %v2802, %v2862
        %v2878 = vadd.f32 %v2805, %v2862
        %v2879 = vadd.f32 %v2849, %v2862
        %v2880 = vadd.f32 %v2852, %v2862
        %vm2881 = vcmask 130048
        %v2882 = vsel %vm2881, %v2865, -inf
        %2883 = vmax.xlane.f32.xlu0 %v2882
        %v2884 = vpop.xlane.xlu0 %2883
        %v2885 = vsel %vm2881, %v2866, -inf
        %2886 = vmax.xlane.f32.xlu0 %v2885
        %v2887 = vpop.xlane.xlu0 %2886
        %v2888 = vsel %vm2881, %v2867, -inf
        %2889 = vmax.xlane.f32.xlu0 %v2888
        %v2890 = vpop.xlane.xlu0 %2889
        %v2891 = vsel %vm2881, %v2868, -inf
        %2892 = vmax.xlane.f32.xlu0 %v2891
        %v2893 = vpop.xlane.xlu0 %2892
        %v2894 = vsel %vm2881, %v2869, -inf
        %2895 = vmax.xlane.f32.xlu0 %v2894
        %v2896 = vpop.xlane.xlu0 %2895
        %v2897 = vsel %vm2881, %v2870, -inf
        %2898 = vmax.xlane.f32.xlu0 %v2897
        %v2899 = vpop.xlane.xlu0 %2898
        %v2900 = vsel %vm2881, %v2871, -inf
        %2901 = vmax.xlane.f32.xlu0 %v2900
        %v2902 = vpop.xlane.xlu0 %2901
        %v2903 = vsel %vm2881, %v2872, -inf
        %2904 = vmax.xlane.f32.xlu0 %v2903
        %v2905 = vpop.xlane.xlu0 %2904
        %v2906 = vsel %vm2881, %v2873, -inf
        %2907 = vmax.xlane.f32.xlu0 %v2906
        %v2908 = vpop.xlane.xlu0 %2907
        %v2909 = vsel %vm2881, %v2874, -inf
        %2910 = vmax.xlane.f32.xlu0 %v2909
        %v2911 = vpop.xlane.xlu0 %2910
        %v2912 = vsel %vm2881, %v2875, -inf
        %2913 = vmax.xlane.f32.xlu0 %v2912
        %v2914 = vpop.xlane.xlu0 %2913
        %v2915 = vsel %vm2881, %v2876, -inf
        %2916 = vmax.xlane.f32.xlu0 %v2915
        %v2917 = vpop.xlane.xlu0 %2916
        %v2918 = vsel %vm2881, %v2877, -inf
        %2919 = vmax.xlane.f32.xlu0 %v2918
        %v2920 = vpop.xlane.xlu0 %2919
        %v2921 = vsel %vm2881, %v2878, -inf
        %2922 = vmax.xlane.f32.xlu0 %v2921
        %v2923 = vpop.xlane.xlu0 %2922
        %v2924 = vsel %vm2881, %v2879, -inf
        %2925 = vmax.xlane.f32.xlu0 %v2924
        %v2926 = vpop.xlane.xlu0 %2925
        %v2927 = vsel %vm2881, %v2880, -inf
        %2928 = vmax.xlane.f32.xlu0 %v2927
        %v2929 = vpop.xlane.xlu0 %2928
        %v2930 = vsub.f32 %v2865, %v2884
        %v2931 = vsub.f32 %v2866, %v2887
        %v2932 = vsub.f32 %v2867, %v2890
        %v2933 = vsub.f32 %v2868, %v2893
        %v2934 = vsub.f32 %v2869, %v2896
        %v2935 = vsub.f32 %v2870, %v2899
        %v2936 = vsub.f32 %v2871, %v2902
        %v2937 = vsub.f32 %v2872, %v2905
        %v2938 = vsub.f32 %v2873, %v2908
        %v2939 = vsub.f32 %v2874, %v2911
        %v2940 = vsub.f32 %v2875, %v2914
        %v2941 = vsub.f32 %v2876, %v2917
        %v2942 = vsub.f32 %v2877, %v2920
        %v2943 = vsub.f32 %v2878, %v2923
        %v2944 = vsub.f32 %v2879, %v2926
        %v2945 = vsub.f32 %v2880, %v2929
        %v2946 = vmul.f32 %v2930, 1.442695
        %v2947 = vpow.pop %v2946
        %v2948 = vmul.f32 %v2931, 1.442695
        %v2949 = vpow.pop %v2948
        %v2950 = vmul.f32 %v2932, 1.442695
        %v2951 = vpow.pop %v2950
        %v2952 = vmul.f32 %v2933, 1.442695
        %v2953 = vpow.pop %v2952
        %v2954 = vmul.f32 %v2934, 1.442695
        %v2955 = vpow.pop %v2954
        %v2956 = vmul.f32 %v2935, 1.442695
        %v2957 = vpow.pop %v2956
        %v2958 = vmul.f32 %v2936, 1.442695
        %v2959 = vpow.pop %v2958
        %v2960 = vmul.f32 %v2937, 1.442695
        %v2961 = vpow.pop %v2960
        %v2962 = vmul.f32 %v2938, 1.442695
        %v2963 = vpow.pop %v2962
        %v2964 = vmul.f32 %v2939, 1.442695
        %v2965 = vpow.pop %v2964
        %v2966 = vmul.f32 %v2940, 1.442695
        %v2967 = vpow.pop %v2966
        %v2968 = vmul.f32 %v2941, 1.442695
        %v2969 = vpow.pop %v2968
        %v2970 = vmul.f32 %v2942, 1.442695
        %v2971 = vpow.pop %v2970
        %v2972 = vmul.f32 %v2943, 1.442695
        %v2973 = vpow.pop %v2972
        %v2974 = vmul.f32 %v2944, 1.442695
        %v2975 = vpow.pop %v2974
        %v2976 = vmul.f32 %v2945, 1.442695
        %v2977 = vpow.pop %v2976
        %v2978 = vsel %vm2881, %v2947, 0.0
        %2979 = vadd.xlane.f32.xlu0 %v2978
        %v2980 = vpop.xlane.xlu0 %2979
        %v2981 = vsel %vm2881, %v2949, 0.0
        %2982 = vadd.xlane.f32.xlu0 %v2981
        %v2983 = vpop.xlane.xlu0 %2982
        %v2984 = vsel %vm2881, %v2951, 0.0
        %2985 = vadd.xlane.f32.xlu0 %v2984
        %v2986 = vpop.xlane.xlu0 %2985
        %v2987 = vsel %vm2881, %v2953, 0.0
        %2988 = vadd.xlane.f32.xlu0 %v2987
        %v2989 = vpop.xlane.xlu0 %2988
        %v2990 = vsel %vm2881, %v2955, 0.0
        %2991 = vadd.xlane.f32.xlu0 %v2990
        %v2992 = vpop.xlane.xlu0 %2991
        %v2993 = vsel %vm2881, %v2957, 0.0
        %2994 = vadd.xlane.f32.xlu0 %v2993
        %v2995 = vpop.xlane.xlu0 %2994
        %v2996 = vsel %vm2881, %v2959, 0.0
        %2997 = vadd.xlane.f32.xlu0 %v2996
        %v2998 = vpop.xlane.xlu0 %2997
        %v2999 = vsel %vm2881, %v2961, 0.0
        %3000 = vadd.xlane.f32.xlu0 %v2999
        %v3001 = vpop.xlane.xlu0 %3000
        %v3002 = vsel %vm2881, %v2963, 0.0
        %3003 = vadd.xlane.f32.xlu0 %v3002
        %v3004 = vpop.xlane.xlu0 %3003
        %v3005 = vsel %vm2881, %v2965, 0.0
        %3006 = vadd.xlane.f32.xlu0 %v3005
        %v3007 = vpop.xlane.xlu0 %3006
        %v3008 = vsel %vm2881, %v2967, 0.0
        %3009 = vadd.xlane.f32.xlu0 %v3008
        %v3010 = vpop.xlane.xlu0 %3009
        %v3011 = vsel %vm2881, %v2969, 0.0
        %3012 = vadd.xlane.f32.xlu0 %v3011
        %v3013 = vpop.xlane.xlu0 %3012
        %v3014 = vsel %vm2881, %v2971, 0.0
        %3015 = vadd.xlane.f32.xlu0 %v3014
        %v3016 = vpop.xlane.xlu0 %3015
        %v3017 = vsel %vm2881, %v2973, 0.0
        %3018 = vadd.xlane.f32.xlu0 %v3017
        %v3019 = vpop.xlane.xlu0 %3018
        %v3020 = vsel %vm2881, %v2975, 0.0
        %3021 = vadd.xlane.f32.xlu0 %v3020
        %v3022 = vpop.xlane.xlu0 %3021
        %v3023 = vsel %vm2881, %v2977, 0.0
        %3024 = vadd.xlane.f32.xlu0 %v3023
        %v3025 = vpop.xlane.xlu0 %3024
        %v3026 = vrcp.pop %v2980
        %v3027 = vrcp.pop %v2983
        %v3028 = vrcp.pop %v2986
        %v3029 = vrcp.pop %v2989
        %v3030 = vrcp.pop %v2992
        %v3031 = vrcp.pop %v2995
        %v3032 = vrcp.pop %v2998
        %v3033 = vrcp.pop %v3001
        %v3034 = vrcp.pop %v3004
        %v3035 = vrcp.pop %v3007
        %v3036 = vrcp.pop %v3010
        %v3037 = vrcp.pop %v3013
        %v3038 = vrcp.pop %v3016
        %v3039 = vrcp.pop %v3019
        %v3040 = vrcp.pop %v3022
        %v3041 = vrcp.pop %v3025
        %v3042 = vmul.f32 %v2947, %v3026
        %v3043 = vmul.f32 %v2949, %v3027
        %v3044 = vmul.f32 %v2951, %v3028
        %v3045 = vmul.f32 %v2953, %v3029
        %v3046 = vmul.f32 %v2955, %v3030
        %v3047 = vmul.f32 %v2957, %v3031
        %v3048 = vmul.f32 %v2959, %v3032
        %v3049 = vmul.f32 %v2961, %v3033
        %v3050 = vmul.f32 %v2963, %v3034
        %v3051 = vmul.f32 %v2965, %v3035
        %v3052 = vmul.f32 %v2967, %v3036
        %v3053 = vmul.f32 %v2969, %v3037
        %v3054 = vmul.f32 %v2971, %v3038
        %v3055 = vmul.f32 %v2973, %v3039
        %v3056 = vmul.f32 %v2975, %v3040
        %v3057 = vmul.f32 %v2977, %v3041
        %v3058 = vpack.c.bf16 %v3043, %v3042
        %v3059 = vpack.c.bf16 %v3045, %v3044
        %v3060 = vpack.c.bf16 %v3047, %v3046
        %v3061 = vpack.c.bf16 %v3049, %v3048
        %v3062 = vpack.c.bf16 %v3051, %v3050
        %v3063 = vpack.c.bf16 %v3053, %v3052
        %v3064 = vpack.c.bf16 %v3055, %v3054
        %v3065 = vpack.c.bf16 %v3057, %v3056
        %v3067 = vsel %vm2881, %v3058, 0
        %3069 = vmatprep.subr.bf16.mxu0 0
        %3070 = vmatpush1.bf16.msra.mxu0 %v2470
        %3071 = vmatprep.subr.bf16.mxu0 0
        %3072 = vmatpush1.bf16.msra.mxu0 0
        %3073 = vmatprep.subr.bf16.mxu0 0
        %3074 = vmatpush1.bf16.msra.mxu0 0
        %3075 = vmatprep.subr.bf16.mxu0 0
        %3076 = vmatpush1.bf16.msra.mxu0 0
        %3077 = vmatprep.subr.bf16.mxu0 0
        %3078 = vmatpush1.bf16.msra.mxu0 0
        %3079 = vmatprep.subr.bf16.mxu0 0
        %3080 = vmatpush1.bf16.msra.mxu0 0
        %3081 = vmatprep.subr.bf16.mxu0 0
        %3082 = vmatpush1.bf16.msra.mxu0 0
        %3083 = vmatprep.subr.bf16.mxu0 0
        %3084 = vmatpush1.bf16.msra.mxu0 0
        %3085 = vmatprep.subr.bf16.mxu0 0
        %3086 = vmatpush1.bf16.msra.mxu0 0
        %3087 = vmatprep.subr.bf16.mxu0 0
        %3088 = vmatpush1.bf16.msra.mxu0 0
        %3089 = vmatprep.subr.bf16.mxu0 0
        %3090 = vmatpush1.bf16.msra.mxu0 0
        %3091 = vmatprep.subr.bf16.mxu0 0
        %3092 = vmatpush1.bf16.msra.mxu0 0
        %3093 = vmatprep.subr.bf16.mxu0 0
        %3094 = vmatpush1.bf16.msra.mxu0 0
        %3095 = vmatprep.subr.bf16.mxu0 0
        %3096 = vmatpush1.bf16.msra.mxu0 0
        %3097 = vmatprep.subr.bf16.mxu0 0
        %3098 = vmatpush1.bf16.msra.mxu0 0
        %3099 = vmatprep.subr.bf16.mxu0 0
        %3100 = vmatpush1.bf16.msra.mxu0 0
        %3101 = vmatprep.mubr.bf16.mxu0 0
        %3102 = vmatmul.mubr.bf16.gmra.mrb[0].mxu0 %v3067
        %v3103 = vpop.f32.mrb[0].mxu0
        %v3104 = vadd.f32 0.0, %v3103
        %v3105 = vpop.f32.mrb[0].mxu0
        %v3106 = vpop.f32.mrb[0].mxu0
        %v3107 = vadd.f32 0.0, %v3106
        %v3108 = vpop.f32.mrb[0].mxu0
        %3109 = vdwg.mxu0
        %v3111 = vsel %vm2881, %v3059, 0
        %3113 = vmatprep.subr.bf16.mxu0 0
        %3114 = vmatpush1.bf16.msra.mxu0 %v2471
        %3115 = vmatprep.subr.bf16.mxu0 0
        %3116 = vmatpush1.bf16.msra.mxu0 0
        %3117 = vmatprep.subr.bf16.mxu0 0
        %3118 = vmatpush1.bf16.msra.mxu0 0
        %3119 = vmatprep.subr.bf16.mxu0 0
        %3120 = vmatpush1.bf16.msra.mxu0 0
        %3121 = vmatprep.subr.bf16.mxu0 0
        %3122 = vmatpush1.bf16.msra.mxu0 0
        %3123 = vmatprep.subr.bf16.mxu0 0
        %3124 = vmatpush1.bf16.msra.mxu0 0
        %3125 = vmatprep.subr.bf16.mxu0 0
        %3126 = vmatpush1.bf16.msra.mxu0 0
        %3127 = vmatprep.subr.bf16.mxu0 0
        %3128 = vmatpush1.bf16.msra.mxu0 0
        %3129 = vmatprep.subr.bf16.mxu0 0
        %3130 = vmatpush1.bf16.msra.mxu0 0
        %3131 = vmatprep.subr.bf16.mxu0 0
        %3132 = vmatpush1.bf16.msra.mxu0 0
        %3133 = vmatprep.subr.bf16.mxu0 0
        %3134 = vmatpush1.bf16.msra.mxu0 0
        %3135 = vmatprep.subr.bf16.mxu0 0
        %3136 = vmatpush1.bf16.msra.mxu0 0
        %3137 = vmatprep.subr.bf16.mxu0 0
        %3138 = vmatpush1.bf16.msra.mxu0 0
        %3139 = vmatprep.subr.bf16.mxu0 0
        %3140 = vmatpush1.bf16.msra.mxu0 0
        %3141 = vmatprep.subr.bf16.mxu0 0
        %3142 = vmatpush1.bf16.msra.mxu0 0
        %3143 = vmatprep.subr.bf16.mxu0 0
        %3144 = vmatpush1.bf16.msra.mxu0 0
        %3145 = vmatprep.mubr.bf16.mxu0 0
        %3146 = vmatmul.mubr.bf16.gmra.mrb[0].mxu0 %v3111
        %v3147 = vpop.f32.mrb[0].mxu0
        %v3148 = vadd.f32 0.0, %v3147
        %v3149 = vpop.f32.mrb[0].mxu0
        %v3150 = vpop.f32.mrb[0].mxu0
        %v3151 = vadd.f32 0.0, %v3150
        %v3152 = vpop.f32.mrb[0].mxu0
        %3153 = vdwg.mxu0
        %v3155 = vsel %vm2881, %v3060, 0
        %3157 = vmatprep.subr.bf16.mxu0 0
        %3158 = vmatpush1.bf16.msra.mxu0 %v2472
        %3159 = vmatprep.subr.bf16.mxu0 0
        %3160 = vmatpush1.bf16.msra.mxu0 0
        %3161 = vmatprep.subr.bf16.mxu0 0
        %3162 = vmatpush1.bf16.msra.mxu0 0
        %3163 = vmatprep.subr.bf16.mxu0 0
        %3164 = vmatpush1.bf16.msra.mxu0 0
        %3165 = vmatprep.subr.bf16.mxu0 0
        %3166 = vmatpush1.bf16.msra.mxu0 0
        %3167 = vmatprep.subr.bf16.mxu0 0
        %3168 = vmatpush1.bf16.msra.mxu0 0
        %3169 = vmatprep.subr.bf16.mxu0 0
        %3170 = vmatpush1.bf16.msra.mxu0 0
        %3171 = vmatprep.subr.bf16.mxu0 0
        %3172 = vmatpush1.bf16.msra.mxu0 0
        %3173 = vmatprep.subr.bf16.mxu0 0
        %3174 = vmatpush1.bf16.msra.mxu0 0
        %3175 = vmatprep.subr.bf16.mxu0 0
        %3176 = vmatpush1.bf16.msra.mxu0 0
        %3177 = vmatprep.subr.bf16.mxu0 0
        %3178 = vmatpush1.bf16.msra.mxu0 0
        %3179 = vmatprep.subr.bf16.mxu0 0
        %3180 = vmatpush1.bf16.msra.mxu0 0
        %3181 = vmatprep.subr.bf16.mxu0 0
        %3182 = vmatpush1.bf16.msra.mxu0 0
        %3183 = vmatprep.subr.bf16.mxu0 0
        %3184 = vmatpush1.bf16.msra.mxu0 0
        %3185 = vmatprep.subr.bf16.mxu0 0
        %3186 = vmatpush1.bf16.msra.mxu0 0
        %3187 = vmatprep.subr.bf16.mxu0 0
        %3188 = vmatpush1.bf16.msra.mxu0 0
        %3189 = vmatprep.mubr.bf16.mxu0 0
        %3190 = vmatmul.mubr.bf16.gmra.mrb[0].mxu0 %v3155
        %v3191 = vpop.f32.mrb[0].mxu0
        %v3192 = vadd.f32 0.0, %v3191
        %v3193 = vpop.f32.mrb[0].mxu0
        %v3194 = vpop.f32.mrb[0].mxu0
        %v3195 = vadd.f32 0.0, %v3194
        %v3196 = vpop.f32.mrb[0].mxu0
        %3197 = vdwg.mxu0
        %v3199 = vsel %vm2881, %v3061, 0
        %3201 = vmatprep.subr.bf16.mxu0 0
        %3202 = vmatpush1.bf16.msra.mxu0 %v2473
        %3203 = vmatprep.subr.bf16.mxu0 0
        %3204 = vmatpush1.bf16.msra.mxu0 0
        %3205 = vmatprep.subr.bf16.mxu0 0
        %3206 = vmatpush1.bf16.msra.mxu0 0
        %3207 = vmatprep.subr.bf16.mxu0 0
        %3208 = vmatpush1.bf16.msra.mxu0 0
        %3209 = vmatprep.subr.bf16.mxu0 0
        %3210 = vmatpush1.bf16.msra.mxu0 0
        %3211 = vmatprep.subr.bf16.mxu0 0
        %3212 = vmatpush1.bf16.msra.mxu0 0
        %3213 = vmatprep.subr.bf16.mxu0 0
        %3214 = vmatpush1.bf16.msra.mxu0 0
        %3215 = vmatprep.subr.bf16.mxu0 0
        %3216 = vmatpush1.bf16.msra.mxu0 0
        %3217 = vmatprep.subr.bf16.mxu0 0
        %3218 = vmatpush1.bf16.msra.mxu0 0
        %3219 = vmatprep.subr.bf16.mxu0 0
        %3220 = vmatpush1.bf16.msra.mxu0 0
        %3221 = vmatprep.subr.bf16.mxu0 0
        %3222 = vmatpush1.bf16.msra.mxu0 0
        %3223 = vmatprep.subr.bf16.mxu0 0
        %3224 = vmatpush1.bf16.msra.mxu0 0
        %3225 = vmatprep.subr.bf16.mxu0 0
        %3226 = vmatpush1.bf16.msra.mxu0 0
        %3227 = vmatprep.subr.bf16.mxu0 0
        %3228 = vmatpush1.bf16.msra.mxu0 0
        %3229 = vmatprep.subr.bf16.mxu0 0
        %3230 = vmatpush1.bf16.msra.mxu0 0
        %3231 = vmatprep.subr.bf16.mxu0 0
        %3232 = vmatpush1.bf16.msra.mxu0 0
        %3233 = vmatprep.mubr.bf16.mxu0 0
        %3234 = vmatmul.mubr.bf16.gmra.mrb[0].mxu0 %v3199
        %v3235 = vpop.f32.mrb[0].mxu0
        %v3236 = vadd.f32 0.0, %v3235
        %v3237 = vpop.f32.mrb[0].mxu0
        %v3238 = vpop.f32.mrb[0].mxu0
        %v3239 = vadd.f32 0.0, %v3238
        %v3240 = vpop.f32.mrb[0].mxu0
        %3241 = vdwg.mxu0
        %v3243 = vsel %vm2881, %v3062, 0
        %3245 = vmatprep.subr.bf16.mxu0 0
        %3246 = vmatpush1.bf16.msra.mxu0 %v2474
        %3247 = vmatprep.subr.bf16.mxu0 0
        %3248 = vmatpush1.bf16.msra.mxu0 0
        %3249 = vmatprep.subr.bf16.mxu0 0
        %3250 = vmatpush1.bf16.msra.mxu0 0
        %3251 = vmatprep.subr.bf16.mxu0 0
        %3252 = vmatpush1.bf16.msra.mxu0 0
        %3253 = vmatprep.subr.bf16.mxu0 0
        %3254 = vmatpush1.bf16.msra.mxu0 0
        %3255 = vmatprep.subr.bf16.mxu0 0
        %3256 = vmatpush1.bf16.msra.mxu0 0
        %3257 = vmatprep.subr.bf16.mxu0 0
        %3258 = vmatpush1.bf16.msra.mxu0 0
        %3259 = vmatprep.subr.bf16.mxu0 0
        %3260 = vmatpush1.bf16.msra.mxu0 0
        %3261 = vmatprep.subr.bf16.mxu0 0
        %3262 = vmatpush1.bf16.msra.mxu0 0
        %3263 = vmatprep.subr.bf16.mxu0 0
        %3264 = vmatpush1.bf16.msra.mxu0 0
        %3265 = vmatprep.subr.bf16.mxu0 0
        %3266 = vmatpush1.bf16.msra.mxu0 0
        %3267 = vmatprep.subr.bf16.mxu0 0
        %3268 = vmatpush1.bf16.msra.mxu0 0
        %3269 = vmatprep.subr.bf16.mxu0 0
        %3270 = vmatpush1.bf16.msra.mxu0 0
        %3271 = vmatprep.subr.bf16.mxu0 0
        %3272 = vmatpush1.bf16.msra.mxu0 0
        %3273 = vmatprep.subr.bf16.mxu0 0
        %3274 = vmatpush1.bf16.msra.mxu0 0
        %3275 = vmatprep.subr.bf16.mxu0 0
        %3276 = vmatpush1.bf16.msra.mxu0 0
        %3277 = vmatprep.mubr.bf16.mxu0 0
        %3278 = vmatmul.mubr.bf16.gmra.mrb[0].mxu0 %v3243
        %v3279 = vpop.f32.mrb[0].mxu0
        %v3280 = vadd.f32 0.0, %v3279
        %v3281 = vpop.f32.mrb[0].mxu0
        %v3282 = vpop.f32.mrb[0].mxu0
        %v3283 = vadd.f32 0.0, %v3282
        %v3284 = vpop.f32.mrb[0].mxu0
        %3285 = vdwg.mxu0
        %v3287 = vsel %vm2881, %v3063, 0
        %3289 = vmatprep.subr.bf16.mxu0 0
        %3290 = vmatpush1.bf16.msra.mxu0 %v2475
        %3291 = vmatprep.subr.bf16.mxu0 0
        %3292 = vmatpush1.bf16.msra.mxu0 0
        %3293 = vmatprep.subr.bf16.mxu0 0
        %3294 = vmatpush1.bf16.msra.mxu0 0
        %3295 = vmatprep.subr.bf16.mxu0 0
        %3296 = vmatpush1.bf16.msra.mxu0 0
        %3297 = vmatprep.subr.bf16.mxu0 0
        %3298 = vmatpush1.bf16.msra.mxu0 0
        %3299 = vmatprep.subr.bf16.mxu0 0
        %3300 = vmatpush1.bf16.msra.mxu0 0
        %3301 = vmatprep.subr.bf16.mxu0 0
        %3302 = vmatpush1.bf16.msra.mxu0 0
        %3303 = vmatprep.subr.bf16.mxu0 0
        %3304 = vmatpush1.bf16.msra.mxu0 0
        %3305 = vmatprep.subr.bf16.mxu0 0
        %3306 = vmatpush1.bf16.msra.mxu0 0
        %3307 = vmatprep.subr.bf16.mxu0 0
        %3308 = vmatpush1.bf16.msra.mxu0 0
        %3309 = vmatprep.subr.bf16.mxu0 0
        %3310 = vmatpush1.bf16.msra.mxu0 0
        %3311 = vmatprep.subr.bf16.mxu0 0
        %3312 = vmatpush1.bf16.msra.mxu0 0
        %3313 = vmatprep.subr.bf16.mxu0 0
        %3314 = vmatpush1.bf16.msra.mxu0 0
        %3315 = vmatprep.subr.bf16.mxu0 0
        %3316 = vmatpush1.bf16.msra.mxu0 0
        %3317 = vmatprep.subr.bf16.mxu0 0
        %3318 = vmatpush1.bf16.msra.mxu0 0
        %3319 = vmatprep.subr.bf16.mxu0 0
        %3320 = vmatpush1.bf16.msra.mxu0 0
        %3321 = vmatprep.mubr.bf16.mxu0 0
        %3322 = vmatmul.mubr.bf16.gmra.mrb[0].mxu0 %v3287
        %v3323 = vpop.f32.mrb[0].mxu0
        %v3324 = vadd.f32 0.0, %v3323
        %v3325 = vpop.f32.mrb[0].mxu0
        %v3326 = vpop.f32.mrb[0].mxu0
        %v3327 = vadd.f32 0.0, %v3326
        %v3328 = vpop.f32.mrb[0].mxu0
        %3329 = vdwg.mxu0
        %v3331 = vsel %vm2881, %v3064, 0
        %3333 = vmatprep.subr.bf16.mxu0 0
        %3334 = vmatpush1.bf16.msra.mxu0 %v2476
        %3335 = vmatprep.subr.bf16.mxu0 0
        %3336 = vmatpush1.bf16.msra.mxu0 0
        %3337 = vmatprep.subr.bf16.mxu0 0
        %3338 = vmatpush1.bf16.msra.mxu0 0
        %3339 = vmatprep.subr.bf16.mxu0 0
        %3340 = vmatpush1.bf16.msra.mxu0 0
        %3341 = vmatprep.subr.bf16.mxu0 0
        %3342 = vmatpush1.bf16.msra.mxu0 0
        %3343 = vmatprep.subr.bf16.mxu0 0
        %3344 = vmatpush1.bf16.msra.mxu0 0
        %3345 = vmatprep.subr.bf16.mxu0 0
        %3346 = vmatpush1.bf16.msra.mxu0 0
        %3347 = vmatprep.subr.bf16.mxu0 0
        %3348 = vmatpush1.bf16.msra.mxu0 0
        %3349 = vmatprep.subr.bf16.mxu0 0
        %3350 = vmatpush1.bf16.msra.mxu0 0
        %3351 = vmatprep.subr.bf16.mxu0 0
        %3352 = vmatpush1.bf16.msra.mxu0 0
        %3353 = vmatprep.subr.bf16.mxu0 0
        %3354 = vmatpush1.bf16.msra.mxu0 0
        %3355 = vmatprep.subr.bf16.mxu0 0
        %3356 = vmatpush1.bf16.msra.mxu0 0
        %3357 = vmatprep.subr.bf16.mxu0 0
        %3358 = vmatpush1.bf16.msra.mxu0 0
        %3359 = vmatprep.subr.bf16.mxu0 0
        %3360 = vmatpush1.bf16.msra.mxu0 0
        %3361 = vmatprep.subr.bf16.mxu0 0
        %3362 = vmatpush1.bf16.msra.mxu0 0
        %3363 = vmatprep.subr.bf16.mxu0 0
        %3364 = vmatpush1.bf16.msra.mxu0 0
        %3365 = vmatprep.mubr.bf16.mxu0 0
        %3366 = vmatmul.mubr.bf16.gmra.mrb[0].mxu0 %v3331
        %v3367 = vpop.f32.mrb[0].mxu0
        %v3368 = vadd.f32 0.0, %v3367
        %v3369 = vpop.f32.mrb[0].mxu0
        %v3370 = vpop.f32.mrb[0].mxu0
        %v3371 = vadd.f32 0.0, %v3370
        %v3372 = vpop.f32.mrb[0].mxu0
        %3373 = vdwg.mxu0
        %v3375 = vsel %vm2881, %v3065, 0
        %3377 = vmatprep.subr.bf16.mxu0 0
        %3378 = vmatpush1.bf16.msra.mxu0 %v2477
        %3379 = vmatprep.subr.bf16.mxu0 0
        %3380 = vmatpush1.bf16.msra.mxu0 0
        %3381 = vmatprep.subr.bf16.mxu0 0
        %3382 = vmatpush1.bf16.msra.mxu0 0
        %3383 = vmatprep.subr.bf16.mxu0 0
        %3384 = vmatpush1.bf16.msra.mxu0 0
        %3385 = vmatprep.subr.bf16.mxu0 0
        %3386 = vmatpush1.bf16.msra.mxu0 0
        %3387 = vmatprep.subr.bf16.mxu0 0
        %3388 = vmatpush1.bf16.msra.mxu0 0
        %3389 = vmatprep.subr.bf16.mxu0 0
        %3390 = vmatpush1.bf16.msra.mxu0 0
        %3391 = vmatprep.subr.bf16.mxu0 0
        %3392 = vmatpush1.bf16.msra.mxu0 0
        %3393 = vmatprep.subr.bf16.mxu0 0
        %3394 = vmatpush1.bf16.msra.mxu0 0
        %3395 = vmatprep.subr.bf16.mxu0 0
        %3396 = vmatpush1.bf16.msra.mxu0 0
        %3397 = vmatprep.subr.bf16.mxu0 0
        %3398 = vmatpush1.bf16.msra.mxu0 0
        %3399 = vmatprep.subr.bf16.mxu0 0
        %3400 = vmatpush1.bf16.msra.mxu0 0
        %3401 = vmatprep.subr.bf16.mxu0 0
        %3402 = vmatpush1.bf16.msra.mxu0 0
        %3403 = vmatprep.subr.bf16.mxu0 0
        %3404 = vmatpush1.bf16.msra.mxu0 0
        %3405 = vmatprep.subr.bf16.mxu0 0
        %3406 = vmatpush1.bf16.msra.mxu0 0
        %3407 = vmatprep.subr.bf16.mxu0 0
        %3408 = vmatpush1.bf16.msra.mxu0 0
        %3409 = vmatprep.mubr.bf16.mxu0 0
        %3410 = vmatmul.mubr.bf16.gmra.mrb[0].mxu0 %v3375
        %v3411 = vpop.f32.mrb[0].mxu0
        %v3412 = vadd.f32 0.0, %v3411
        %v3413 = vpop.f32.mrb[0].mxu0
        %v3414 = vpop.f32.mrb[0].mxu0
        %v3415 = vadd.f32 0.0, %v3414
        %v3416 = vpop.f32.mrb[0].mxu0
        %3417 = vdwg.mxu0
        %v3418 = vcombine.low %v3104, %v3192
        %v3419 = vcombine.high %v3104, %v3192
        %v3421 = vunpack.c.l.s4 1983009808
        %v3422 = vunpack.c.0.s8 %v3421
        %v3423 = vlaneseq
        %v3424 = vshrl.u32 %v3423, 7
        %v3425 = vsub.s32 %v3422, %v3424
        %v3426 = vrot.slane %v3418, %v3425
        %v3428 = vunpack.c.l.s4 1983009808
        %v3429 = vunpack.c.0.s8 %v3428
        %v3430 = vlaneseq
        %v3431 = vshrl.u32 %v3430, 7
        %v3432 = vsub.s32 %v3429, %v3431
        %v3433 = vrot.slane %v3419, %v3432
        %v3434 = vcombine.low %v3148, %v3236
        %v3435 = vcombine.high %v3148, %v3236
        %v3437 = vunpack.c.l.s4 1983009808
        %v3438 = vunpack.c.0.s8 %v3437
        %v3439 = vlaneseq
        %v3440 = vshrl.u32 %v3439, 7
        %v3441 = vsub.s32 %v3438, %v3440
        %v3442 = vrot.slane %v3434, %v3441
        %v3444 = vunpack.c.l.s4 1983009808
        %v3445 = vunpack.c.0.s8 %v3444
        %v3446 = vlaneseq
        %v3447 = vshrl.u32 %v3446, 7
        %v3448 = vsub.s32 %v3445, %v3447
        %v3449 = vrot.slane %v3435, %v3448
        %v3450 = vcombine.low %v3426, %v3442
        %v3451 = vcombine.high %v3426, %v3442
        %v3453 = vunpack.c.l.s4 1934713408
        %v3454 = vunpack.c.0.s8 %v3453
        %v3455 = vlaneseq
        %v3456 = vshrl.u32 %v3455, 7
        %v3457 = vsub.s32 %v3454, %v3456
        %v3458 = vrot.slane %v3450, %v3457
        %v3460 = vunpack.c.l.s4 1934713408
        %v3461 = vunpack.c.0.s8 %v3460
        %v3462 = vlaneseq
        %v3463 = vshrl.u32 %v3462, 7
        %v3464 = vsub.s32 %v3461, %v3463
        %v3465 = vrot.slane %v3451, %v3464
        %v3466 = vcombine.low %v3433, %v3449
        %v3467 = vcombine.high %v3433, %v3449
        %v3469 = vunpack.c.l.s4 1934713408
        %v3470 = vunpack.c.0.s8 %v3469
        %v3471 = vlaneseq
        %v3472 = vshrl.u32 %v3471, 7
        %v3473 = vsub.s32 %v3470, %v3472
        %v3474 = vrot.slane %v3466, %v3473
        %v3476 = vunpack.c.l.s4 1934713408
        %v3477 = vunpack.c.0.s8 %v3476
        %v3478 = vlaneseq
        %v3479 = vshrl.u32 %v3478, 7
        %v3480 = vsub.s32 %v3477, %v3479
        %v3481 = vrot.slane %v3467, %v3480
        %v3482 = vcombine.high %v3458, 0.0
        %v3483 = vcombine.high %v3465, 0.0
        %v3484 = vcombine.high %v3474, 0.0
        %v3485 = vcombine.high %v3481, 0.0
        %v3486 = vcombine.low %v3107, %v3195
        %v3487 = vcombine.high %v3107, %v3195
        %v3489 = vunpack.c.l.s4 1983009808
        %v3490 = vunpack.c.0.s8 %v3489
        %v3491 = vlaneseq
        %v3492 = vshrl.u32 %v3491, 7
        %v3493 = vsub.s32 %v3490, %v3492
        %v3494 = vrot.slane %v3486, %v3493
        %v3496 = vunpack.c.l.s4 1983009808
        %v3497 = vunpack.c.0.s8 %v3496
        %v3498 = vlaneseq
        %v3499 = vshrl.u32 %v3498, 7
        %v3500 = vsub.s32 %v3497, %v3499
        %v3501 = vrot.slane %v3487, %v3500
        %v3502 = vcombine.low %v3151, %v3239
        %v3503 = vcombine.high %v3151, %v3239
        %v3505 = vunpack.c.l.s4 1983009808
        %v3506 = vunpack.c.0.s8 %v3505
        %v3507 = vlaneseq
        %v3508 = vshrl.u32 %v3507, 7
        %v3509 = vsub.s32 %v3506, %v3508
        %v3510 = vrot.slane %v3502, %v3509
        %v3512 = vunpack.c.l.s4 1983009808
        %v3513 = vunpack.c.0.s8 %v3512
        %v3514 = vlaneseq
        %v3515 = vshrl.u32 %v3514, 7
        %v3516 = vsub.s32 %v3513, %v3515
        %v3517 = vrot.slane %v3503, %v3516
        %v3518 = vcombine.low %v3494, %v3510
        %v3519 = vcombine.high %v3494, %v3510
        %v3521 = vunpack.c.l.s4 1934713408
        %v3522 = vunpack.c.0.s8 %v3521
        %v3523 = vlaneseq
        %v3524 = vshrl.u32 %v3523, 7
        %v3525 = vsub.s32 %v3522, %v3524
        %v3526 = vrot.slane %v3518, %v3525
        %v3528 = vunpack.c.l.s4 1934713408
        %v3529 = vunpack.c.0.s8 %v3528
        %v3530 = vlaneseq
        %v3531 = vshrl.u32 %v3530, 7
        %v3532 = vsub.s32 %v3529, %v3531
        %v3533 = vrot.slane %v3519, %v3532
        %v3534 = vcombine.low %v3501, %v3517
        %v3535 = vcombine.high %v3501, %v3517
        %v3537 = vunpack.c.l.s4 1934713408
        %v3538 = vunpack.c.0.s8 %v3537
        %v3539 = vlaneseq
        %v3540 = vshrl.u32 %v3539, 7
        %v3541 = vsub.s32 %v3538, %v3540
        %v3542 = vrot.slane %v3534, %v3541
        %v3544 = vunpack.c.l.s4 1934713408
        %v3545 = vunpack.c.0.s8 %v3544
        %v3546 = vlaneseq
        %v3547 = vshrl.u32 %v3546, 7
        %v3548 = vsub.s32 %v3545, %v3547
        %v3549 = vrot.slane %v3535, %v3548
        %v3550 = vcombine.high %v3526, 0.0
        %v3551 = vcombine.high %v3533, 0.0
        %v3552 = vcombine.high %v3542, 0.0
        %v3553 = vcombine.high %v3549, 0.0
        %v3554 = vcombine.low %v3280, %v3368
        %v3555 = vcombine.high %v3280, %v3368
        %v3557 = vunpack.c.l.s4 1983009808
        %v3558 = vunpack.c.0.s8 %v3557
        %v3559 = vlaneseq
        %v3560 = vshrl.u32 %v3559, 7
        %v3561 = vsub.s32 %v3558, %v3560
        %v3562 = vrot.slane %v3554, %v3561
        %v3564 = vunpack.c.l.s4 1983009808
        %v3565 = vunpack.c.0.s8 %v3564
        %v3566 = vlaneseq
        %v3567 = vshrl.u32 %v3566, 7
        %v3568 = vsub.s32 %v3565, %v3567
        %v3569 = vrot.slane %v3555, %v3568
        %v3570 = vcombine.low %v3324, %v3412
        %v3571 = vcombine.high %v3324, %v3412
        %v3573 = vunpack.c.l.s4 1983009808
        %v3574 = vunpack.c.0.s8 %v3573
        %v3575 = vlaneseq
        %v3576 = vshrl.u32 %v3575, 7
        %v3577 = vsub.s32 %v3574, %v3576
        %v3578 = vrot.slane %v3570, %v3577
        %v3580 = vunpack.c.l.s4 1983009808
        %v3581 = vunpack.c.0.s8 %v3580
        %v3582 = vlaneseq
        %v3583 = vshrl.u32 %v3582, 7
        %v3584 = vsub.s32 %v3581, %v3583
        %v3585 = vrot.slane %v3571, %v3584
        %v3586 = vcombine.low %v3562, %v3578
        %v3587 = vcombine.high %v3562, %v3578
        %v3589 = vunpack.c.l.s4 1934713408
        %v3590 = vunpack.c.0.s8 %v3589
        %v3591 = vlaneseq
        %v3592 = vshrl.u32 %v3591, 7
        %v3593 = vsub.s32 %v3590, %v3592
        %v3594 = vrot.slane %v3586, %v3593
        %v3596 = vunpack.c.l.s4 1934713408
        %v3597 = vunpack.c.0.s8 %v3596
        %v3598 = vlaneseq
        %v3599 = vshrl.u32 %v3598, 7
        %v3600 = vsub.s32 %v3597, %v3599
        %v3601 = vrot.slane %v3587, %v3600
        %v3602 = vcombine.low %v3569, %v3585
        %v3603 = vcombine.high %v3569, %v3585
        %v3605 = vunpack.c.l.s4 1934713408
        %v3606 = vunpack.c.0.s8 %v3605
        %v3607 = vlaneseq
        %v3608 = vshrl.u32 %v3607, 7
        %v3609 = vsub.s32 %v3606, %v3608
        %v3610 = vrot.slane %v3602, %v3609
        %v3612 = vunpack.c.l.s4 1934713408
        %v3613 = vunpack.c.0.s8 %v3612
        %v3614 = vlaneseq
        %v3615 = vshrl.u32 %v3614, 7
        %v3616 = vsub.s32 %v3613, %v3615
        %v3617 = vrot.slane %v3603, %v3616
        %v3618 = vcombine.high %v3594, 0.0
        %v3619 = vcombine.high %v3601, 0.0
        %v3620 = vcombine.high %v3610, 0.0
        %v3621 = vcombine.high %v3617, 0.0
        %v3622 = vcombine.low %v3283, %v3371
        %v3623 = vcombine.high %v3283, %v3371
        %v3625 = vunpack.c.l.s4 1983009808
        %v3626 = vunpack.c.0.s8 %v3625
        %v3627 = vlaneseq
        %v3628 = vshrl.u32 %v3627, 7
        %v3629 = vsub.s32 %v3626, %v3628
        %v3630 = vrot.slane %v3622, %v3629
        %v3632 = vunpack.c.l.s4 1983009808
        %v3633 = vunpack.c.0.s8 %v3632
        %v3634 = vlaneseq
        %v3635 = vshrl.u32 %v3634, 7
        %v3636 = vsub.s32 %v3633, %v3635
        %v3637 = vrot.slane %v3623, %v3636
        %v3638 = vcombine.low %v3327, %v3415
        %v3639 = vcombine.high %v3327, %v3415
        %v3641 = vunpack.c.l.s4 1983009808
        %v3642 = vunpack.c.0.s8 %v3641
        %v3643 = vlaneseq
        %v3644 = vshrl.u32 %v3643, 7
        %v3645 = vsub.s32 %v3642, %v3644
        %v3646 = vrot.slane %v3638, %v3645
        %v3648 = vunpack.c.l.s4 1983009808
        %v3649 = vunpack.c.0.s8 %v3648
        %v3650 = vlaneseq
        %v3651 = vshrl.u32 %v3650, 7
        %v3652 = vsub.s32 %v3649, %v3651
        %v3653 = vrot.slane %v3639, %v3652
        %v3654 = vcombine.low %v3630, %v3646
        %v3655 = vcombine.high %v3630, %v3646
        %v3657 = vunpack.c.l.s4 1934713408
        %v3658 = vunpack.c.0.s8 %v3657
        %v3659 = vlaneseq
        %v3660 = vshrl.u32 %v3659, 7
        %v3661 = vsub.s32 %v3658, %v3660
        %v3662 = vrot.slane %v3654, %v3661
        %v3664 = vunpack.c.l.s4 1934713408
        %v3665 = vunpack.c.0.s8 %v3664
        %v3666 = vlaneseq
        %v3667 = vshrl.u32 %v3666, 7
        %v3668 = vsub.s32 %v3665, %v3667
        %v3669 = vrot.slane %v3655, %v3668
        %v3670 = vcombine.low %v3637, %v3653
        %v3671 = vcombine.high %v3637, %v3653
        %v3673 = vunpack.c.l.s4 1934713408
        %v3674 = vunpack.c.0.s8 %v3673
        %v3675 = vlaneseq
        %v3676 = vshrl.u32 %v3675, 7
        %v3677 = vsub.s32 %v3674, %v3676
        %v3678 = vrot.slane %v3670, %v3677
        %v3680 = vunpack.c.l.s4 1934713408
        %v3681 = vunpack.c.0.s8 %v3680
        %v3682 = vlaneseq
        %v3683 = vshrl.u32 %v3682, 7
        %v3684 = vsub.s32 %v3681, %v3683
        %v3685 = vrot.slane %v3671, %v3684
        %v3686 = vcombine.high %v3662, 0.0
        %v3687 = vcombine.high %v3669, 0.0
        %v3688 = vcombine.high %v3678, 0.0
        %v3689 = vcombine.high %v3685, 0.0
        %v3690 = vcombine.low %v3458, %v3465
        %v3692 = vunpack.c.l.s4 1983009808
        %v3693 = vunpack.c.0.s8 %v3692
        %v3694 = vlaneseq
        %v3695 = vshrl.u32 %v3694, 7
        %v3696 = vsub.s32 %v3693, %v3695
        %v3697 = vrot.slane %v3690, %v3696
        %v3698 = vcombine.low %v3482, %v3483
        %v3700 = vunpack.c.l.s4 1983009808
        %v3701 = vunpack.c.0.s8 %v3700
        %v3702 = vlaneseq
        %v3703 = vshrl.u32 %v3702, 7
        %v3704 = vsub.s32 %v3701, %v3703
        %v3705 = vrot.slane %v3698, %v3704
        %v3706 = vcombine.low %v3474, %v3481
        %v3708 = vunpack.c.l.s4 1983009808
        %v3709 = vunpack.c.0.s8 %v3708
        %v3710 = vlaneseq
        %v3711 = vshrl.u32 %v3710, 7
        %v3712 = vsub.s32 %v3709, %v3711
        %v3713 = vrot.slane %v3706, %v3712
        %v3714 = vcombine.low %v3484, %v3485
        %v3716 = vunpack.c.l.s4 1983009808
        %v3717 = vunpack.c.0.s8 %v3716
        %v3718 = vlaneseq
        %v3719 = vshrl.u32 %v3718, 7
        %v3720 = vsub.s32 %v3717, %v3719
        %v3721 = vrot.slane %v3714, %v3720
        %v3722 = vcombine.low %v3697, %v3705
        %v3723 = vcombine.high %v3697, %v3705
        %v3725 = vunpack.c.l.s4 1934713408
        %v3726 = vunpack.c.0.s8 %v3725
        %v3727 = vlaneseq
        %v3728 = vshrl.u32 %v3727, 7
        %v3729 = vsub.s32 %v3726, %v3728
        %v3730 = vrot.slane %v3722, %v3729
        %v3732 = vunpack.c.l.s4 1934713408
        %v3733 = vunpack.c.0.s8 %v3732
        %v3734 = vlaneseq
        %v3735 = vshrl.u32 %v3734, 7
        %v3736 = vsub.s32 %v3733, %v3735
        %v3737 = vrot.slane %v3723, %v3736
        %v3738 = vcombine.low %v3713, %v3721
        %v3739 = vcombine.high %v3713, %v3721
        %v3741 = vunpack.c.l.s4 1934713408
        %v3742 = vunpack.c.0.s8 %v3741
        %v3743 = vlaneseq
        %v3744 = vshrl.u32 %v3743, 7
        %v3745 = vsub.s32 %v3742, %v3744
        %v3746 = vrot.slane %v3738, %v3745
        %v3748 = vunpack.c.l.s4 1934713408
        %v3749 = vunpack.c.0.s8 %v3748
        %v3750 = vlaneseq
        %v3751 = vshrl.u32 %v3750, 7
        %v3752 = vsub.s32 %v3749, %v3751
        %v3753 = vrot.slane %v3739, %v3752
        %v3754 = vcombine.low %v3730, %v3746
        %v3755 = vcombine.high %v3730, %v3746
        %v3756 = vcombine.low %v3737, %v3753
        %v3757 = vcombine.high %v3737, %v3753
        %v3758 = vcombine.low %v3526, %v3533
        %v3760 = vunpack.c.l.s4 1983009808
        %v3761 = vunpack.c.0.s8 %v3760
        %v3762 = vlaneseq
        %v3763 = vshrl.u32 %v3762, 7
        %v3764 = vsub.s32 %v3761, %v3763
        %v3765 = vrot.slane %v3758, %v3764
        %v3766 = vcombine.low %v3550, %v3551
        %v3768 = vunpack.c.l.s4 1983009808
        %v3769 = vunpack.c.0.s8 %v3768
        %v3770 = vlaneseq
        %v3771 = vshrl.u32 %v3770, 7
        %v3772 = vsub.s32 %v3769, %v3771
        %v3773 = vrot.slane %v3766, %v3772
        %v3774 = vcombine.low %v3542, %v3549
        %v3776 = vunpack.c.l.s4 1983009808
        %v3777 = vunpack.c.0.s8 %v3776
        %v3778 = vlaneseq
        %v3779 = vshrl.u32 %v3778, 7
        %v3780 = vsub.s32 %v3777, %v3779
        %v3781 = vrot.slane %v3774, %v3780
        %v3782 = vcombine.low %v3552, %v3553
        %v3784 = vunpack.c.l.s4 1983009808
        %v3785 = vunpack.c.0.s8 %v3784
        %v3786 = vlaneseq
        %v3787 = vshrl.u32 %v3786, 7
        %v3788 = vsub.s32 %v3785, %v3787
        %v3789 = vrot.slane %v3782, %v3788
        %v3790 = vcombine.low %v3765, %v3773
        %v3791 = vcombine.high %v3765, %v3773
        %v3793 = vunpack.c.l.s4 1934713408
        %v3794 = vunpack.c.0.s8 %v3793
        %v3795 = vlaneseq
        %v3796 = vshrl.u32 %v3795, 7
        %v3797 = vsub.s32 %v3794, %v3796
        %v3798 = vrot.slane %v3790, %v3797
        %v3800 = vunpack.c.l.s4 1934713408
        %v3801 = vunpack.c.0.s8 %v3800
        %v3802 = vlaneseq
        %v3803 = vshrl.u32 %v3802, 7
        %v3804 = vsub.s32 %v3801, %v3803
        %v3805 = vrot.slane %v3791, %v3804
        %v3806 = vcombine.low %v3781, %v3789
        %v3807 = vcombine.high %v3781, %v3789
        %v3809 = vunpack.c.l.s4 1934713408
        %v3810 = vunpack.c.0.s8 %v3809
        %v3811 = vlaneseq
        %v3812 = vshrl.u32 %v3811, 7
        %v3813 = vsub.s32 %v3810, %v3812
        %v3814 = vrot.slane %v3806, %v3813
        %v3816 = vunpack.c.l.s4 1934713408
        %v3817 = vunpack.c.0.s8 %v3816
        %v3818 = vlaneseq
        %v3819 = vshrl.u32 %v3818, 7
        %v3820 = vsub.s32 %v3817, %v3819
        %v3821 = vrot.slane %v3807, %v3820
        %v3822 = vcombine.low %v3798, %v3814
        %v3823 = vcombine.high %v3798, %v3814
        %v3824 = vcombine.low %v3805, %v3821
        %v3825 = vcombine.high %v3805, %v3821
        %v3826 = vcombine.low %v3594, %v3601
        %v3828 = vunpack.c.l.s4 1983009808
        %v3829 = vunpack.c.0.s8 %v3828
        %v3830 = vlaneseq
        %v3831 = vshrl.u32 %v3830, 7
        %v3832 = vsub.s32 %v3829, %v3831
        %v3833 = vrot.slane %v3826, %v3832
        %v3834 = vcombine.low %v3618, %v3619
        %v3836 = vunpack.c.l.s4 1983009808
        %v3837 = vunpack.c.0.s8 %v3836
        %v3838 = vlaneseq
        %v3839 = vshrl.u32 %v3838, 7
        %v3840 = vsub.s32 %v3837, %v3839
        %v3841 = vrot.slane %v3834, %v3840
        %v3842 = vcombine.low %v3610, %v3617
        %v3844 = vunpack.c.l.s4 1983009808
        %v3845 = vunpack.c.0.s8 %v3844
        %v3846 = vlaneseq
        %v3847 = vshrl.u32 %v3846, 7
        %v3848 = vsub.s32 %v3845, %v3847
        %v3849 = vrot.slane %v3842, %v3848
        %v3850 = vcombine.low %v3620, %v3621
        %v3852 = vunpack.c.l.s4 1983009808
        %v3853 = vunpack.c.0.s8 %v3852
        %v3854 = vlaneseq
        %v3855 = vshrl.u32 %v3854, 7
        %v3856 = vsub.s32 %v3853, %v3855
        %v3857 = vrot.slane %v3850, %v3856
        %v3858 = vcombine.low %v3833, %v3841
        %v3859 = vcombine.high %v3833, %v3841
        %v3861 = vunpack.c.l.s4 1934713408
        %v3862 = vunpack.c.0.s8 %v3861
        %v3863 = vlaneseq
        %v3864 = vshrl.u32 %v3863, 7
        %v3865 = vsub.s32 %v3862, %v3864
        %v3866 = vrot.slane %v3858, %v3865
        %v3868 = vunpack.c.l.s4 1934713408
        %v3869 = vunpack.c.0.s8 %v3868
        %v3870 = vlaneseq
        %v3871 = vshrl.u32 %v3870, 7
        %v3872 = vsub.s32 %v3869, %v3871
        %v3873 = vrot.slane %v3859, %v3872
        %v3874 = vcombine.low %v3849, %v3857
        %v3875 = vcombine.high %v3849, %v3857
        %v3877 = vunpack.c.l.s4 1934713408
        %v3878 = vunpack.c.0.s8 %v3877
        %v3879 = vlaneseq
        %v3880 = vshrl.u32 %v3879, 7
        %v3881 = vsub.s32 %v3878, %v3880
        %v3882 = vrot.slane %v3874, %v3881
        %v3884 = vunpack.c.l.s4 1934713408
        %v3885 = vunpack.c.0.s8 %v3884
        %v3886 = vlaneseq
        %v3887 = vshrl.u32 %v3886, 7
        %v3888 = vsub.s32 %v3885, %v3887
        %v3889 = vrot.slane %v3875, %v3888
        %v3890 = vcombine.low %v3866, %v3882
        %v3891 = vcombine.high %v3866, %v3882
        %v3892 = vcombine.low %v3873, %v3889
        %v3893 = vcombine.high %v3873, %v3889
        %v3894 = vcombine.low %v3662, %v3669
        %v3896 = vunpack.c.l.s4 1983009808
        %v3897 = vunpack.c.0.s8 %v3896
        %v3898 = vlaneseq
        %v3899 = vshrl.u32 %v3898, 7
        %v3900 = vsub.s32 %v3897, %v3899
        %v3901 = vrot.slane %v3894, %v3900
        %v3902 = vcombine.low %v3686, %v3687
        %v3904 = vunpack.c.l.s4 1983009808
        %v3905 = vunpack.c.0.s8 %v3904
        %v3906 = vlaneseq
        %v3907 = vshrl.u32 %v3906, 7
        %v3908 = vsub.s32 %v3905, %v3907
        %v3909 = vrot.slane %v3902, %v3908
        %v3910 = vcombine.low %v3678, %v3685
        %v3912 = vunpack.c.l.s4 1983009808
        %v3913 = vunpack.c.0.s8 %v3912
        %v3914 = vlaneseq
        %v3915 = vshrl.u32 %v3914, 7
        %v3916 = vsub.s32 %v3913, %v3915
        %v3917 = vrot.slane %v3910, %v3916
        %v3918 = vcombine.low %v3688, %v3689
        %v3920 = vunpack.c.l.s4 1983009808
        %v3921 = vunpack.c.0.s8 %v3920
        %v3922 = vlaneseq
        %v3923 = vshrl.u32 %v3922, 7
        %v3924 = vsub.s32 %v3921, %v3923
        %v3925 = vrot.slane %v3918, %v3924
        %v3926 = vcombine.low %v3901, %v3909
        %v3927 = vcombine.high %v3901, %v3909
        %v3929 = vunpack.c.l.s4 1934713408
        %v3930 = vunpack.c.0.s8 %v3929
        %v3931 = vlaneseq
        %v3932 = vshrl.u32 %v3931, 7
        %v3933 = vsub.s32 %v3930, %v3932
        %v3934 = vrot.slane %v3926, %v3933
        %v3936 = vunpack.c.l.s4 1934713408
        %v3937 = vunpack.c.0.s8 %v3936
        %v3938 = vlaneseq
        %v3939 = vshrl.u32 %v3938, 7
        %v3940 = vsub.s32 %v3937, %v3939
        %v3941 = vrot.slane %v3927, %v3940
        %v3942 = vcombine.low %v3917, %v3925
        %v3943 = vcombine.high %v3917, %v3925
        %v3945 = vunpack.c.l.s4 1934713408
        %v3946 = vunpack.c.0.s8 %v3945
        %v3947 = vlaneseq
        %v3948 = vshrl.u32 %v3947, 7
        %v3949 = vsub.s32 %v3946, %v3948
        %v3950 = vrot.slane %v3942, %v3949
        %v3952 = vunpack.c.l.s4 1934713408
        %v3953 = vunpack.c.0.s8 %v3952
        %v3954 = vlaneseq
        %v3955 = vshrl.u32 %v3954, 7
        %v3956 = vsub.s32 %v3953, %v3955
        %v3957 = vrot.slane %v3943, %v3956
        %v3958 = vcombine.low %v3934, %v3950
        %v3959 = vcombine.high %v3934, %v3950
        %v3960 = vcombine.low %v3941, %v3957
        %v3961 = vcombine.high %v3941, %v3957
        %3966 = vrot.lane.b32.xlu0 %v3755, 8
        %v3967 = vpop.permute.xlu0 %3966
        %3968 = vrot.lane.b32.xlu0 %v3823, 8
        %v3969 = vpop.permute.xlu0 %3968
        %3970 = vrot.lane.b32.xlu0 %v3891, 8
        %v3971 = vpop.permute.xlu0 %3970
        %3972 = vrot.lane.b32.xlu0 %v3959, 8
        %v3973 = vpop.permute.xlu0 %3972
        %3982 = vrot.lane.b32.xlu0 %v3756, 16
        %v3983 = vpop.permute.xlu0 %3982
        %3984 = vrot.lane.b32.xlu0 %v3824, 16
        %v3985 = vpop.permute.xlu0 %3984
        %3986 = vrot.lane.b32.xlu0 %v3892, 16
        %v3987 = vpop.permute.xlu0 %3986
        %3988 = vrot.lane.b32.xlu0 %v3960, 16
        %v3989 = vpop.permute.xlu0 %3988
        %3998 = vrot.lane.b32.xlu0 %v3757, 24
        %v3999 = vpop.permute.xlu0 %3998
        %4000 = vrot.lane.b32.xlu0 %v3825, 24
        %v4001 = vpop.permute.xlu0 %4000
        %4002 = vrot.lane.b32.xlu0 %v3893, 24
        %v4003 = vpop.permute.xlu0 %4002
        %4004 = vrot.lane.b32.xlu0 %v3961, 24
        %v4005 = vpop.permute.xlu0 %4004
        %v4010 = vsel %vm2478, %v3754, %v3967
        %v4011 = vsel %vm2478, %v3822, %v3969
        %v4012 = vsel %vm2478, %v3890, %v3971
        %v4013 = vsel %vm2478, %v3958, %v3973
        %v4014 = vsel %vm2881, %v4010, %v3983
        %v4015 = vsel %vm2881, %v4011, %v3985
        %v4016 = vsel %vm2881, %v4012, %v3987
        %v4017 = vsel %vm2881, %v4013, %v3989
        %vm4018 = vcmask 195584
        %v4019 = vsel %vm4018, %v4014, %v3999
        %v4020 = vsel %vm4018, %v4015, %v4001
        %v4021 = vsel %vm4018, %v4016, %v4003
        %v4022 = vsel %vm4018, %v4017, %v4005
        %v4023 = vpack.c.bf16 %v4020, %v4019
        %v4024 = vpack.c.bf16 %v4022, %v4021
        %v4025 = vld [vmem:[#allocation4] sm:$0xf]
        %v4026 = vld [vmem:[#allocation4 + $0x4] sm:$0xf]
        %v4027 = vld [vmem:[#allocation4 + $0x8] sm:$0xf]
        %v4028 = vld [vmem:[#allocation4 + $0xc] sm:$0xf]
        %v4029 = vld [vmem:[%s5] sm:$0x1]
        %v4030 = vlaneseq
        %v4031 = vshrl.u32 %v4030, 7
        %v4032 = vsub.s32 0, %v4031
        %v4033 = vrot.slane %v4029, %v4032
        %v4038 = vunpack.c.l.b16 %v4025
        %v4039 = vunpack.c.l.b16 %v4026
        %v4040 = vunpack.c.l.b16 %v4027
        %v4041 = vunpack.c.l.b16 %v4028
        %v4042 = vpack.c.b16 %v4039, %v4038
        %v4043 = vpack.c.b16 %v4041, %v4040
        %v4047 = vsel %vm598, %v4023, 0
        %v4050 = vsel %vm598, %v4024, 0
        %4052 = vmatprep.subr.bf16.mxu0 0
        %4053 = vmatpush1.bf16.msra.mxu0 %v4042
        %4054 = vmatprep.subr.bf16.mxu0 0
        %4055 = vmatpush1.bf16.msra.mxu0 %v4043
        %4056 = vmatprep.subr.bf16.mxu0 0
        %4057 = vmatpush1.bf16.msra.mxu0 0
        %4058 = vmatprep.subr.bf16.mxu0 0
        %4059 = vmatpush1.bf16.msra.mxu0 0
        %4060 = vmatprep.subr.bf16.mxu0 0
        %4061 = vmatpush1.bf16.msra.mxu0 0
        %4062 = vmatprep.subr.bf16.mxu0 0
        %4063 = vmatpush1.bf16.msra.mxu0 0
        %4064 = vmatprep.subr.bf16.mxu0 0
        %4065 = vmatpush1.bf16.msra.mxu0 0
        %4066 = vmatprep.subr.bf16.mxu0 0
        %4067 = vmatpush1.bf16.msra.mxu0 0
        %4068 = vmatprep.subr.bf16.mxu0 0
        %4069 = vmatpush1.bf16.msra.mxu0 0
        %4070 = vmatprep.subr.bf16.mxu0 0
        %4071 = vmatpush1.bf16.msra.mxu0 0
        %4072 = vmatprep.subr.bf16.mxu0 0
        %4073 = vmatpush1.bf16.msra.mxu0 0
        %4074 = vmatprep.subr.bf16.mxu0 0
        %4075 = vmatpush1.bf16.msra.mxu0 0
        %4076 = vmatprep.subr.bf16.mxu0 0
        %4077 = vmatpush1.bf16.msra.mxu0 0
        %4078 = vmatprep.subr.bf16.mxu0 0
        %4079 = vmatpush1.bf16.msra.mxu0 0
        %4080 = vmatprep.subr.bf16.mxu0 0
        %4081 = vmatpush1.bf16.msra.mxu0 0
        %4082 = vmatprep.subr.bf16.mxu0 0
        %4083 = vmatpush1.bf16.msra.mxu0 0
        %4084 = vmatprep.mubr.bf16.mxu0 0
        %4085 = vmatmul.mubr.bf16.gmra.mrb[0].mxu0 %v4047
        %v4086 = vpop.f32.mrb[0].mxu0
        %v4087 = vadd.f32 %v4033, %v4086
        %v4088 = vpop.f32.mrb[0].mxu0
        %v4089 = vpop.f32.mrb[0].mxu0
        %v4090 = vadd.f32 %v4033, %v4089
        %v4091 = vpop.f32.mrb[0].mxu0
        %4092 = vmatprep.mubr.bf16.mxu0 0
        %4093 = vmatmul.mubr.bf16.gmra.mrb[0].mxu0 %v4050
        %v4094 = vpop.f32.mrb[0].mxu0
        %v4095 = vadd.f32 %v4033, %v4094
        %v4096 = vpop.f32.mrb[0].mxu0
        %v4097 = vpop.f32.mrb[0].mxu0
        %v4098 = vadd.f32 %v4033, %v4097
        %v4099 = vpop.f32.mrb[0].mxu0
        %4100 = vdwg.mxu0
        %v4101 = vadd.f32 %v571, %v4087
        %v4102 = vadd.f32 %v572, %v4090
        %v4103 = vadd.f32 %v573, %v4095
        %v4104 = vadd.f32 %v574, %v4098
        %v4105 = vld [vmem:[%s6] sm:$0x1]
        %v4106 = vld [vmem:[%s7] sm:$0x1]
        %v4107 = vsel %vm598, %v4101, 0.0
        %4108 = vadd.xlane.f32.xlu0 %v4107
        %v4109 = vpop.xlane.xlu0 %4108
        %v4110 = vsel %vm598, %v4102, 0.0
        %4111 = vadd.xlane.f32.xlu0 %v4110
        %v4112 = vpop.xlane.xlu0 %4111
        %v4113 = vsel %vm598, %v4103, 0.0
        %4114 = vadd.xlane.f32.xlu0 %v4113
        %v4115 = vpop.xlane.xlu0 %4114
        %v4116 = vsel %vm598, %v4104, 0.0
        %4117 = vadd.xlane.f32.xlu0 %v4116
        %v4118 = vpop.xlane.xlu0 %4117
        %v4119 = vrcp.pop 32.0
        %v4120 = vmul.f32 %v4109, %v4119
        %v4121 = vmul.f32 %v4112, %v4119
        %v4122 = vmul.f32 %v4115, %v4119
        %v4123 = vmul.f32 %v4118, %v4119
        %v4124 = vsub.f32 %v4101, %v4120
        %v4125 = vsub.f32 %v4102, %v4121
        %v4126 = vsub.f32 %v4103, %v4122
        %v4127 = vsub.f32 %v4104, %v4123
        %v4128 = vmul.f32 %v4124, %v4124
        %v4129 = vmul.f32 %v4125, %v4125
        %v4130 = vmul.f32 %v4126, %v4126
        %v4131 = vmul.f32 %v4127, %v4127
        %v4132 = vsel %vm598, %v4128, 0.0
        %4133 = vadd.xlane.f32.xlu0 %v4132
        %v4134 = vpop.xlane.xlu0 %4133
        %v4135 = vsel %vm598, %v4129, 0.0
        %4136 = vadd.xlane.f32.xlu0 %v4135
        %v4137 = vpop.xlane.xlu0 %4136
        %v4138 = vsel %vm598, %v4130, 0.0
        %4139 = vadd.xlane.f32.xlu0 %v4138
        %v4140 = vpop.xlane.xlu0 %4139
        %v4141 = vsel %vm598, %v4131, 0.0
        %4142 = vadd.xlane.f32.xlu0 %v4141
        %v4143 = vpop.xlane.xlu0 %4142
        %v4144 = vmul.f32 %v4134, %v4119
        %v4145 = vmul.f32 %v4137, %v4119
        %v4146 = vmul.f32 %v4140, %v4119
        %v4147 = vmul.f32 %v4143, %v4119
        %v4148 = vadd.f32 %v4144, 1e-05
        %v4149 = vadd.f32 %v4145, 1e-05
        %v4150 = vadd.f32 %v4146, 1e-05
        %v4151 = vadd.f32 %v4147, 1e-05
        %v4152 = vrsqrt.pop %v4148
        %v4153 = vrsqrt.pop %v4149
        %v4154 = vrsqrt.pop %v4150
        %v4155 = vrsqrt.pop %v4151
        %v4156 = vmul.f32 %v4124, %v4152
        %v4157 = vmul.f32 %v4125, %v4153
        %v4158 = vmul.f32 %v4126, %v4154
        %v4159 = vmul.f32 %v4127, %v4155
        %v4160 = vlaneseq
        %v4161 = vshrl.u32 %v4160, 7
        %v4162 = vsub.s32 0, %v4161
        %v4163 = vrot.slane %v4105, %v4162
        %v4164 = vmul.f32 %v4156, %v4163
        %v4165 = vmul.f32 %v4157, %v4163
        %v4166 = vmul.f32 %v4158, %v4163
        %v4167 = vmul.f32 %v4159, %v4163
        %v4168 = vlaneseq
        %v4169 = vshrl.u32 %v4168, 7
        %v4170 = vsub.s32 0, %v4169
        %v4171 = vrot.slane %v4106, %v4170
        %v4172 = vadd.f32 %v4164, %v4171
        %v4173 = vadd.f32 %v4165, %v4171
        %v4174 = vadd.f32 %v4166, %v4171
        %v4175 = vadd.f32 %v4167, %v4171
        %v4176 = vpack.c.bf16 %v4173, %v4172
        %v4177 = vpack.c.bf16 %v4175, %v4174
        %v4178 = vld [vmem:[#allocation7] sm:$0xf]
        %v4179 = vld [vmem:[#allocation7 + $0x4] sm:$0xf]
        %v4180 = vld [vmem:[#allocation7 + $0x8] sm:$0xf]
        %v4181 = vld [vmem:[#allocation7 + $0xc] sm:$0xf]
        %v4182 = vld [vmem:[#allocation9] sm:$0x1]
        %v4183 = vlaneseq
        %v4184 = vshrl.u32 %v4183, 7
        %v4185 = vsub.s32 0, %v4184
        %v4186 = vrot.slane %v4182, %v4185
        %v4191 = vunpack.c.l.b16 %v4178
        %v4192 = vunpack.c.l.b16 %v4179
        %v4193 = vunpack.c.l.b16 %v4180
        %v4194 = vunpack.c.l.b16 %v4181
        %v4195 = vpack.c.b16 %v4192, %v4191
        %v4196 = vpack.c.b16 %v4194, %v4193
        %v4200 = vsel %vm598, %v4176, 0
        %v4203 = vsel %vm598, %v4177, 0
        %4205 = vmatprep.subr.bf16.mxu0 0
        %4206 = vmatpush1.bf16.msra.mxu0 %v4195
        %4207 = vmatprep.subr.bf16.mxu0 0
        %4208 = vmatpush1.bf16.msra.mxu0 %v4196
        %4209 = vmatprep.subr.bf16.mxu0 0
        %4210 = vmatpush1.bf16.msra.mxu0 0
        %4211 = vmatprep.subr.bf16.mxu0 0
        %4212 = vmatpush1.bf16.msra.mxu0 0
        %4213 = vmatprep.subr.bf16.mxu0 0
        %4214 = vmatpush1.bf16.msra.mxu0 0
        %4215 = vmatprep.subr.bf16.mxu0 0
        %4216 = vmatpush1.bf16.msra.mxu0 0
        %4217 = vmatprep.subr.bf16.mxu0 0
        %4218 = vmatpush1.bf16.msra.mxu0 0
        %4219 = vmatprep.subr.bf16.mxu0 0
        %4220 = vmatpush1.bf16.msra.mxu0 0
        %4221 = vmatprep.subr.bf16.mxu0 0
        %4222 = vmatpush1.bf16.msra.mxu0 0
        %4223 = vmatprep.subr.bf16.mxu0 0
        %4224 = vmatpush1.bf16.msra.mxu0 0
        %4225 = vmatprep.subr.bf16.mxu0 0
        %4226 = vmatpush1.bf16.msra.mxu0 0
        %4227 = vmatprep.subr.bf16.mxu0 0
        %4228 = vmatpush1.bf16.msra.mxu0 0
        %4229 = vmatprep.subr.bf16.mxu0 0
        %4230 = vmatpush1.bf16.msra.mxu0 0
        %4231 = vmatprep.subr.bf16.mxu0 0
        %4232 = vmatpush1.bf16.msra.mxu0 0
        %4233 = vmatprep.subr.bf16.mxu0 0
        %4234 = vmatpush1.bf16.msra.mxu0 0
        %4235 = vmatprep.subr.bf16.mxu0 0
        %4236 = vmatpush1.bf16.msra.mxu0 0
        %4237 = vmatprep.mubr.bf16.mxu0 0
        %4238 = vmatmul.mubr.bf16.gmra.mrb[0].mxu0 %v4200
        %v4239 = vpop.f32.mrb[0].mxu0
        %v4240 = vadd.f32 %v4186, %v4239
        %v4241 = vpop.f32.mrb[0].mxu0
        %v4242 = vpop.f32.mrb[0].mxu0
        %v4243 = vadd.f32 %v4186, %v4242
        %v4244 = vpop.f32.mrb[0].mxu0
        %4245 = vmatprep.mubr.bf16.mxu0 0
        %4246 = vmatmul.mubr.bf16.gmra.mrb[0].mxu0 %v4203
        %v4247 = vpop.f32.mrb[0].mxu0
        %v4248 = vadd.f32 %v4186, %v4247
        %v4249 = vpop.f32.mrb[0].mxu0
        %v4250 = vpop.f32.mrb[0].mxu0
        %v4251 = vadd.f32 %v4186, %v4250
        %v4252 = vpop.f32.mrb[0].mxu0
        %4253 = vdwg.mxu0
        %v4254 = vmax.f32 %v4240, 0.0
        %v4255 = vmax.f32 %v4243, 0.0
        %v4256 = vmax.f32 %v4248, 0.0
        %v4257 = vmax.f32 %v4251, 0.0
        %v4258 = vpack.c.bf16 %v4255, %v4254
        %v4259 = vpack.c.bf16 %v4257, %v4256
        %v4260 = vld [vmem:[%s10] sm:$0xf]
        %v4261 = vld [vmem:[%s10 + $0x4] sm:$0xf]
        %v4262 = vld [vmem:[%s10 + $0x8] sm:$0xf]
        %v4263 = vld [vmem:[%s10 + $0xc] sm:$0xf]
        %v4264 = vld [vmem:[%s10 + $0x10] sm:$0xf]
        %v4265 = vld [vmem:[%s10 + $0x14] sm:$0xf]
        %v4266 = vld [vmem:[%s10 + $0x18] sm:$0xf]
        %v4267 = vld [vmem:[%s10 + $0x1c] sm:$0xf]
        %v4268 = vld [vmem:[#allocation10] sm:$0x1]
        %v4269 = vlaneseq
        %v4270 = vshrl.u32 %v4269, 7
        %v4271 = vsub.s32 0, %v4270
        %v4272 = vrot.slane %v4268, %v4271
        %v4281 = vunpack.c.l.b16 %v4260
        %v4282 = vunpack.c.l.b16 %v4261
        %v4283 = vunpack.c.l.b16 %v4262
        %v4284 = vunpack.c.l.b16 %v4263
        %v4285 = vunpack.c.l.b16 %v4264
        %v4286 = vunpack.c.l.b16 %v4265
        %v4287 = vunpack.c.l.b16 %v4266
        %v4288 = vunpack.c.l.b16 %v4267
        %v4289 = vpack.c.b16 %v4282, %v4281
        %v4290 = vpack.c.b16 %v4284, %v4283
        %v4291 = vpack.c.b16 %v4286, %v4285
        %v4292 = vpack.c.b16 %v4288, %v4287
        %vm4297 = vcmask 523264
        %v4299 = vsel %vm4297, %v4258, 0
        %v4302 = vsel %vm4297, %v4259, 0
        %4304 = vmatprep.subr.bf16.mxu0 0
        %4305 = vmatpush1.bf16.msra.mxu0 %v4289
        %4306 = vmatprep.subr.bf16.mxu0 0
        %4307 = vmatpush1.bf16.msra.mxu0 %v4290
        %4308 = vmatprep.subr.bf16.mxu0 0
        %4309 = vmatpush1.bf16.msra.mxu0 %v4291
        %4310 = vmatprep.subr.bf16.mxu0 0
        %4311 = vmatpush1.bf16.msra.mxu0 %v4292
        %4312 = vmatprep.subr.bf16.mxu0 0
        %4313 = vmatpush1.bf16.msra.mxu0 0
        %4314 = vmatprep.subr.bf16.mxu0 0
        %4315 = vmatpush1.bf16.msra.mxu0 0
        %4316 = vmatprep.subr.bf16.mxu0 0
        %4317 = vmatpush1.bf16.msra.mxu0 0
        %4318 = vmatprep.subr.bf16.mxu0 0
        %4319 = vmatpush1.bf16.msra.mxu0 0
        %4320 = vmatprep.subr.bf16.mxu0 0
        %4321 = vmatpush1.bf16.msra.mxu0 0
        %4322 = vmatprep.subr.bf16.mxu0 0
        %4323 = vmatpush1.bf16.msra.mxu0 0
        %4324 = vmatprep.subr.bf16.mxu0 0
        %4325 = vmatpush1.bf16.msra.mxu0 0
        %4326 = vmatprep.subr.bf16.mxu0 0
        %4327 = vmatpush1.bf16.msra.mxu0 0
        %4328 = vmatprep.subr.bf16.mxu0 0
        %4329 = vmatpush1.bf16.msra.mxu0 0
        %4330 = vmatprep.subr.bf16.mxu0 0
        %4331 = vmatpush1.bf16.msra.mxu0 0
        %4332 = vmatprep.subr.bf16.mxu0 0
        %4333 = vmatpush1.bf16.msra.mxu0 0
        %4334 = vmatprep.subr.bf16.mxu0 0
        %4335 = vmatpush1.bf16.msra.mxu0 0
        %4336 = vmatprep.mubr.bf16.mxu0 0
        %4337 = vmatmul.mubr.bf16.gmra.mrb[0].mxu0 %v4299
        %v4338 = vpop.f32.mrb[0].mxu0
        %v4339 = vadd.f32 %v4272, %v4338
        %v4340 = vpop.f32.mrb[0].mxu0
        %v4341 = vpop.f32.mrb[0].mxu0
        %v4342 = vadd.f32 %v4272, %v4341
        %v4343 = vpop.f32.mrb[0].mxu0
        %4344 = vmatprep.mubr.bf16.mxu0 0
        %4345 = vmatmul.mubr.bf16.gmra.mrb[0].mxu0 %v4302
        %v4346 = vpop.f32.mrb[0].mxu0
        %v4347 = vadd.f32 %v4272, %v4346
        %v4348 = vpop.f32.mrb[0].mxu0
        %v4349 = vpop.f32.mrb[0].mxu0
        %v4350 = vadd.f32 %v4272, %v4349
        %v4351 = vpop.f32.mrb[0].mxu0
        %4352 = vdwg.mxu0
        %v4353 = vadd.f32 %v4172, %v4339
        %v4354 = vadd.f32 %v4173, %v4342
        %v4355 = vadd.f32 %v4174, %v4347
        %v4356 = vadd.f32 %v4175, %v4350
        %v4357 = vld [vmem:[#allocation12] sm:$0x1]
        %v4358 = vld [vmem:[#allocation13] sm:$0x1]
        %v4359 = vsel %vm598, %v4353, 0.0
        %4360 = vadd.xlane.f32.xlu0 %v4359
        %v4361 = vpop.xlane.xlu0 %4360
        %v4362 = vsel %vm598, %v4354, 0.0
        %4363 = vadd.xlane.f32.xlu0 %v4362
        %v4364 = vpop.xlane.xlu0 %4363
        %v4365 = vsel %vm598, %v4355, 0.0
        %4366 = vadd.xlane.f32.xlu0 %v4365
        %v4367 = vpop.xlane.xlu0 %4366
        %v4368 = vsel %vm598, %v4356, 0.0
        %4369 = vadd.xlane.f32.xlu0 %v4368
        %v4370 = vpop.xlane.xlu0 %4369
        %v4371 = vmul.f32 %v4361, %v4119
        %v4372 = vmul.f32 %v4364, %v4119
        %v4373 = vmul.f32 %v4367, %v4119
        %v4374 = vmul.f32 %v4370, %v4119
        %v4375 = vsub.f32 %v4353, %v4371
        %v4376 = vsub.f32 %v4354, %v4372
        %v4377 = vsub.f32 %v4355, %v4373
        %v4378 = vsub.f32 %v4356, %v4374
        %v4379 = vmul.f32 %v4375, %v4375
        %v4380 = vmul.f32 %v4376, %v4376
        %v4381 = vmul.f32 %v4377, %v4377
        %v4382 = vmul.f32 %v4378, %v4378
        %v4383 = vsel %vm598, %v4379, 0.0
        %4384 = vadd.xlane.f32.xlu0 %v4383
        %v4385 = vpop.xlane.xlu0 %4384
        %v4386 = vsel %vm598, %v4380, 0.0
        %4387 = vadd.xlane.f32.xlu0 %v4386
        %v4388 = vpop.xlane.xlu0 %4387
        %v4389 = vsel %vm598, %v4381, 0.0
        %4390 = vadd.xlane.f32.xlu0 %v4389
        %v4391 = vpop.xlane.xlu0 %4390
        %v4392 = vsel %vm598, %v4382, 0.0
        %4393 = vadd.xlane.f32.xlu0 %v4392
        %v4394 = vpop.xlane.xlu0 %4393
        %v4395 = vmul.f32 %v4385, %v4119
        %v4396 = vmul.f32 %v4388, %v4119
        %v4397 = vmul.f32 %v4391, %v4119
        %v4398 = vmul.f32 %v4394, %v4119
        %v4399 = vadd.f32 %v4395, 1e-05
        %v4400 = vadd.f32 %v4396, 1e-05
        %v4401 = vadd.f32 %v4397, 1e-05
        %v4402 = vadd.f32 %v4398, 1e-05
        %v4403 = vrsqrt.pop %v4399
        %v4404 = vrsqrt.pop %v4400
        %v4405 = vrsqrt.pop %v4401
        %v4406 = vrsqrt.pop %v4402
        %v4407 = vmul.f32 %v4375, %v4403
        %v4408 = vmul.f32 %v4376, %v4404
        %v4409 = vmul.f32 %v4377, %v4405
        %v4410 = vmul.f32 %v4378, %v4406
        %v4411 = vlaneseq
        %v4412 = vshrl.u32 %v4411, 7
        %v4413 = vsub.s32 0, %v4412
        %v4414 = vrot.slane %v4357, %v4413
        %v4415 = vmul.f32 %v4407, %v4414
        %v4416 = vmul.f32 %v4408, %v4414
        %v4417 = vmul.f32 %v4409, %v4414
        %v4418 = vmul.f32 %v4410, %v4414
        %v4419 = vlaneseq
        %v4420 = vshrl.u32 %v4419, 7
        %v4421 = vsub.s32 0, %v4420
        %v4422 = vrot.slane %v4358, %v4421
        %v4423 = vadd.f32 %v4415, %v4422
        %v4424 = vadd.f32 %v4416, %v4422
        %v4425 = vadd.f32 %v4417, %v4422
        %v4426 = vadd.f32 %v4418, %v4422
        %v4427 = vpack.c.bf16 %v4424, %v4423
        %v4428 = vpack.c.bf16 %v4426, %v4425
        %s4429 = scalar_lea.vmem %s2, 16
        %v4430 = vld [vmem:[%s4429] sm:$0xf]
        %v4431 = vld [vmem:[%s4429 + $0x4] sm:$0xf]
        %v4432 = vld [vmem:[%s4429 + $0x8] sm:$0xf]
        %v4433 = vld [vmem:[%s4429 + $0xc] sm:$0xf]
        %v4434 = vld [vmem:[%s3 + $0x1] sm:$0x1]
        %v4435 = vlaneseq
        %v4436 = vshrl.u32 %v4435, 7
        %v4437 = vsub.s32 0, %v4436
        %v4438 = vrot.slane %v4434, %v4437
        %v4443 = vunpack.c.l.b16 %v4430
        %v4444 = vunpack.c.l.b16 %v4431
        %v4445 = vunpack.c.l.b16 %v4432
        %v4446 = vunpack.c.l.b16 %v4433
        %v4447 = vpack.c.b16 %v4444, %v4443
        %v4448 = vpack.c.b16 %v4446, %v4445
        %v4452 = vsel %vm598, %v4427, 0
        %v4455 = vsel %vm598, %v4428, 0
        %4457 = vmatprep.subr.bf16.mxu0 0
        %4458 = vmatpush1.bf16.msra.mxu0 %v4447
        %4459 = vmatprep.subr.bf16.mxu0 0
        %4460 = vmatpush1.bf16.msra.mxu0 %v4448
        %4461 = vmatprep.subr.bf16.mxu0 0
        %4462 = vmatpush1.bf16.msra.mxu0 0
        %4463 = vmatprep.subr.bf16.mxu0 0
        %4464 = vmatpush1.bf16.msra.mxu0 0
        %4465 = vmatprep.subr.bf16.mxu0 0
        %4466 = vmatpush1.bf16.msra.mxu0 0
        %4467 = vmatprep.subr.bf16.mxu0 0
        %4468 = vmatpush1.bf16.msra.mxu0 0
        %4469 = vmatprep.subr.bf16.mxu0 0
        %4470 = vmatpush1.bf16.msra.mxu0 0
        %4471 = vmatprep.subr.bf16.mxu0 0
        %4472 = vmatpush1.bf16.msra.mxu0 0
        %4473 = vmatprep.subr.bf16.mxu0 0
        %4474 = vmatpush1.bf16.msra.mxu0 0
        %4475 = vmatprep.subr.bf16.mxu0 0
        %4476 = vmatpush1.bf16.msra.mxu0 0
        %4477 = vmatprep.subr.bf16.mxu0 0
        %4478 = vmatpush1.bf16.msra.mxu0 0
        %4479 = vmatprep.subr.bf16.mxu0 0
        %4480 = vmatpush1.bf16.msra.mxu0 0
        %4481 = vmatprep.subr.bf16.mxu0 0
        %4482 = vmatpush1.bf16.msra.mxu0 0
        %4483 = vmatprep.subr.bf16.mxu0 0
        %4484 = vmatpush1.bf16.msra.mxu0 0
        %4485 = vmatprep.subr.bf16.mxu0 0
        %4486 = vmatpush1.bf16.msra.mxu0 0
        %4487 = vmatprep.subr.bf16.mxu0 0
        %4488 = vmatpush1.bf16.msra.mxu0 0
        %4489 = vmatprep.mubr.bf16.mxu0 0
        %4490 = vmatmul.mubr.bf16.gmra.mrb[0].mxu0 %v4452
        %v4491 = vpop.f32.mrb[0].mxu0
        %v4492 = vadd.f32 %v4438, %v4491
        %v4493 = vpop.f32.mrb[0].mxu0
        %v4494 = vpop.f32.mrb[0].mxu0
        %v4495 = vadd.f32 %v4438, %v4494
        %v4496 = vpop.f32.mrb[0].mxu0
        %4497 = vmatprep.mubr.bf16.mxu0 0
        %4498 = vmatmul.mubr.bf16.gmra.mrb[0].mxu0 %v4455
        %v4499 = vpop.f32.mrb[0].mxu0
        %v4500 = vadd.f32 %v4438, %v4499
        %v4501 = vpop.f32.mrb[0].mxu0
        %v4502 = vpop.f32.mrb[0].mxu0
        %v4503 = vadd.f32 %v4438, %v4502
        %v4504 = vpop.f32.mrb[0].mxu0
        %4505 = vdwg.mxu0
        %v4506 = vmul.f32 %v4492, 0.35355338
        %v4507 = vmul.f32 %v4495, 0.35355338
        %v4508 = vmul.f32 %v4500, 0.35355338
        %v4509 = vmul.f32 %v4503, 0.35355338
        %4514 = vrot.lane.b32.xlu0 %v4506, 120
        %v4515 = vpop.permute.xlu0 %4514
        %4516 = vrot.lane.b32.xlu0 %v4507, 120
        %v4517 = vpop.permute.xlu0 %4516
        %4518 = vrot.lane.b32.xlu0 %v4508, 120
        %v4519 = vpop.permute.xlu0 %4518
        %4520 = vrot.lane.b32.xlu0 %v4509, 120
        %v4521 = vpop.permute.xlu0 %4520
        %4526 = vrot.lane.b32.xlu0 %v4506, 112
        %v4527 = vpop.permute.xlu0 %4526
        %4528 = vrot.lane.b32.xlu0 %v4507, 112
        %v4529 = vpop.permute.xlu0 %4528
        %4530 = vrot.lane.b32.xlu0 %v4508, 112
        %v4531 = vpop.permute.xlu0 %4530
        %4532 = vrot.lane.b32.xlu0 %v4509, 112
        %v4533 = vpop.permute.xlu0 %4532
        %4538 = vrot.lane.b32.xlu0 %v4506, 104
        %v4539 = vpop.permute.xlu0 %4538
        %4540 = vrot.lane.b32.xlu0 %v4507, 104
        %v4541 = vpop.permute.xlu0 %4540
        %4542 = vrot.lane.b32.xlu0 %v4508, 104
        %v4543 = vpop.permute.xlu0 %4542
        %4544 = vrot.lane.b32.xlu0 %v4509, 104
        %v4545 = vpop.permute.xlu0 %4544
        %v4550 = vcombine.low %v4506, %v4527
        %v4551 = vcombine.high %v4506, %v4527
        %v4553 = vunpack.c.l.s4 1983009808
        %v4554 = vunpack.c.0.s8 %v4553
        %v4555 = vlaneseq
        %v4556 = vshrl.u32 %v4555, 7
        %v4557 = vsub.s32 %v4554, %v4556
        %v4558 = vrot.slane %v4550, %v4557
        %v4560 = vunpack.c.l.s4 1983009808
        %v4561 = vunpack.c.0.s8 %v4560
        %v4562 = vlaneseq
        %v4563 = vshrl.u32 %v4562, 7
        %v4564 = vsub.s32 %v4561, %v4563
        %v4565 = vrot.slane %v4551, %v4564
        %v4566 = vcombine.low %v4515, %v4539
        %v4567 = vcombine.high %v4515, %v4539
        %v4569 = vunpack.c.l.s4 1983009808
        %v4570 = vunpack.c.0.s8 %v4569
        %v4571 = vlaneseq
        %v4572 = vshrl.u32 %v4571, 7
        %v4573 = vsub.s32 %v4570, %v4572
        %v4574 = vrot.slane %v4566, %v4573
        %v4576 = vunpack.c.l.s4 1983009808
        %v4577 = vunpack.c.0.s8 %v4576
        %v4578 = vlaneseq
        %v4579 = vshrl.u32 %v4578, 7
        %v4580 = vsub.s32 %v4577, %v4579
        %v4581 = vrot.slane %v4567, %v4580
        %v4582 = vcombine.low %v4558, %v4574
        %v4583 = vcombine.high %v4558, %v4574
        %v4585 = vunpack.c.l.s4 1934713408
        %v4586 = vunpack.c.0.s8 %v4585
        %v4587 = vlaneseq
        %v4588 = vshrl.u32 %v4587, 7
        %v4589 = vsub.s32 %v4586, %v4588
        %v4590 = vrot.slane %v4582, %v4589
        %v4592 = vunpack.c.l.s4 1934713408
        %v4593 = vunpack.c.0.s8 %v4592
        %v4594 = vlaneseq
        %v4595 = vshrl.u32 %v4594, 7
        %v4596 = vsub.s32 %v4593, %v4595
        %v4597 = vrot.slane %v4583, %v4596
        %v4598 = vcombine.low %v4565, %v4581
        %v4599 = vcombine.high %v4565, %v4581
        %v4601 = vunpack.c.l.s4 1934713408
        %v4602 = vunpack.c.0.s8 %v4601
        %v4603 = vlaneseq
        %v4604 = vshrl.u32 %v4603, 7
        %v4605 = vsub.s32 %v4602, %v4604
        %v4606 = vrot.slane %v4598, %v4605
        %v4608 = vunpack.c.l.s4 1934713408
        %v4609 = vunpack.c.0.s8 %v4608
        %v4610 = vlaneseq
        %v4611 = vshrl.u32 %v4610, 7
        %v4612 = vsub.s32 %v4609, %v4611
        %v4613 = vrot.slane %v4599, %v4612
        %v4614 = vcombine.high %v4590, 0.0
        %v4615 = vcombine.high %v4597, 0.0
        %v4616 = vcombine.high %v4606, 0.0
        %v4617 = vcombine.high %v4613, 0.0
        %v4618 = vcombine.low %v4507, %v4529
        %v4619 = vcombine.high %v4507, %v4529
        %v4621 = vunpack.c.l.s4 1983009808
        %v4622 = vunpack.c.0.s8 %v4621
        %v4623 = vlaneseq
        %v4624 = vshrl.u32 %v4623, 7
        %v4625 = vsub.s32 %v4622, %v4624
        %v4626 = vrot.slane %v4618, %v4625
        %v4628 = vunpack.c.l.s4 1983009808
        %v4629 = vunpack.c.0.s8 %v4628
        %v4630 = vlaneseq
        %v4631 = vshrl.u32 %v4630, 7
        %v4632 = vsub.s32 %v4629, %v4631
        %v4633 = vrot.slane %v4619, %v4632
        %v4634 = vcombine.low %v4517, %v4541
        %v4635 = vcombine.high %v4517, %v4541
        %v4637 = vunpack.c.l.s4 1983009808
        %v4638 = vunpack.c.0.s8 %v4637
        %v4639 = vlaneseq
        %v4640 = vshrl.u32 %v4639, 7
        %v4641 = vsub.s32 %v4638, %v4640
        %v4642 = vrot.slane %v4634, %v4641
        %v4644 = vunpack.c.l.s4 1983009808
        %v4645 = vunpack.c.0.s8 %v4644
        %v4646 = vlaneseq
        %v4647 = vshrl.u32 %v4646, 7
        %v4648 = vsub.s32 %v4645, %v4647
        %v4649 = vrot.slane %v4635, %v4648
        %v4650 = vcombine.low %v4626, %v4642
        %v4651 = vcombine.high %v4626, %v4642
        %v4653 = vunpack.c.l.s4 1934713408
        %v4654 = vunpack.c.0.s8 %v4653
        %v4655 = vlaneseq
        %v4656 = vshrl.u32 %v4655, 7
        %v4657 = vsub.s32 %v4654, %v4656
        %v4658 = vrot.slane %v4650, %v4657
        %v4660 = vunpack.c.l.s4 1934713408
        %v4661 = vunpack.c.0.s8 %v4660
        %v4662 = vlaneseq
        %v4663 = vshrl.u32 %v4662, 7
        %v4664 = vsub.s32 %v4661, %v4663
        %v4665 = vrot.slane %v4651, %v4664
        %v4666 = vcombine.low %v4633, %v4649
        %v4667 = vcombine.high %v4633, %v4649
        %v4669 = vunpack.c.l.s4 1934713408
        %v4670 = vunpack.c.0.s8 %v4669
        %v4671 = vlaneseq
        %v4672 = vshrl.u32 %v4671, 7
        %v4673 = vsub.s32 %v4670, %v4672
        %v4674 = vrot.slane %v4666, %v4673
        %v4676 = vunpack.c.l.s4 1934713408
        %v4677 = vunpack.c.0.s8 %v4676
        %v4678 = vlaneseq
        %v4679 = vshrl.u32 %v4678, 7
        %v4680 = vsub.s32 %v4677, %v4679
        %v4681 = vrot.slane %v4667, %v4680
        %v4682 = vcombine.high %v4658, 0.0
        %v4683 = vcombine.high %v4665, 0.0
        %v4684 = vcombine.high %v4674, 0.0
        %v4685 = vcombine.high %v4681, 0.0
        %v4686 = vcombine.low %v4508, %v4531
        %v4687 = vcombine.high %v4508, %v4531
        %v4689 = vunpack.c.l.s4 1983009808
        %v4690 = vunpack.c.0.s8 %v4689
        %v4691 = vlaneseq
        %v4692 = vshrl.u32 %v4691, 7
        %v4693 = vsub.s32 %v4690, %v4692
        %v4694 = vrot.slane %v4686, %v4693
        %v4696 = vunpack.c.l.s4 1983009808
        %v4697 = vunpack.c.0.s8 %v4696
        %v4698 = vlaneseq
        %v4699 = vshrl.u32 %v4698, 7
        %v4700 = vsub.s32 %v4697, %v4699
        %v4701 = vrot.slane %v4687, %v4700
        %v4702 = vcombine.low %v4519, %v4543
        %v4703 = vcombine.high %v4519, %v4543
        %v4705 = vunpack.c.l.s4 1983009808
        %v4706 = vunpack.c.0.s8 %v4705
        %v4707 = vlaneseq
        %v4708 = vshrl.u32 %v4707, 7
        %v4709 = vsub.s32 %v4706, %v4708
        %v4710 = vrot.slane %v4702, %v4709
        %v4712 = vunpack.c.l.s4 1983009808
        %v4713 = vunpack.c.0.s8 %v4712
        %v4714 = vlaneseq
        %v4715 = vshrl.u32 %v4714, 7
        %v4716 = vsub.s32 %v4713, %v4715
        %v4717 = vrot.slane %v4703, %v4716
        %v4718 = vcombine.low %v4694, %v4710
        %v4719 = vcombine.high %v4694, %v4710
        %v4721 = vunpack.c.l.s4 1934713408
        %v4722 = vunpack.c.0.s8 %v4721
        %v4723 = vlaneseq
        %v4724 = vshrl.u32 %v4723, 7
        %v4725 = vsub.s32 %v4722, %v4724
        %v4726 = vrot.slane %v4718, %v4725
        %v4728 = vunpack.c.l.s4 1934713408
        %v4729 = vunpack.c.0.s8 %v4728
        %v4730 = vlaneseq
        %v4731 = vshrl.u32 %v4730, 7
        %v4732 = vsub.s32 %v4729, %v4731
        %v4733 = vrot.slane %v4719, %v4732
        %v4734 = vcombine.low %v4701, %v4717
        %v4735 = vcombine.high %v4701, %v4717
        %v4737 = vunpack.c.l.s4 1934713408
        %v4738 = vunpack.c.0.s8 %v4737
        %v4739 = vlaneseq
        %v4740 = vshrl.u32 %v4739, 7
        %v4741 = vsub.s32 %v4738, %v4740
        %v4742 = vrot.slane %v4734, %v4741
        %v4744 = vunpack.c.l.s4 1934713408
        %v4745 = vunpack.c.0.s8 %v4744
        %v4746 = vlaneseq
        %v4747 = vshrl.u32 %v4746, 7
        %v4748 = vsub.s32 %v4745, %v4747
        %v4749 = vrot.slane %v4735, %v4748
        %v4750 = vcombine.high %v4726, 0.0
        %v4751 = vcombine.high %v4733, 0.0
        %v4752 = vcombine.high %v4742, 0.0
        %v4753 = vcombine.high %v4749, 0.0
        %v4754 = vcombine.low %v4509, %v4533
        %v4755 = vcombine.high %v4509, %v4533
        %v4757 = vunpack.c.l.s4 1983009808
        %v4758 = vunpack.c.0.s8 %v4757
        %v4759 = vlaneseq
        %v4760 = vshrl.u32 %v4759, 7
        %v4761 = vsub.s32 %v4758, %v4760
        %v4762 = vrot.slane %v4754, %v4761
        %v4764 = vunpack.c.l.s4 1983009808
        %v4765 = vunpack.c.0.s8 %v4764
        %v4766 = vlaneseq
        %v4767 = vshrl.u32 %v4766, 7
        %v4768 = vsub.s32 %v4765, %v4767
        %v4769 = vrot.slane %v4755, %v4768
        %v4770 = vcombine.low %v4521, %v4545
        %v4771 = vcombine.high %v4521, %v4545
        %v4773 = vunpack.c.l.s4 1983009808
        %v4774 = vunpack.c.0.s8 %v4773
        %v4775 = vlaneseq
        %v4776 = vshrl.u32 %v4775, 7
        %v4777 = vsub.s32 %v4774, %v4776
        %v4778 = vrot.slane %v4770, %v4777
        %v4780 = vunpack.c.l.s4 1983009808
        %v4781 = vunpack.c.0.s8 %v4780
        %v4782 = vlaneseq
        %v4783 = vshrl.u32 %v4782, 7
        %v4784 = vsub.s32 %v4781, %v4783
        %v4785 = vrot.slane %v4771, %v4784
        %v4786 = vcombine.low %v4762, %v4778
        %v4787 = vcombine.high %v4762, %v4778
        %v4789 = vunpack.c.l.s4 1934713408
        %v4790 = vunpack.c.0.s8 %v4789
        %v4791 = vlaneseq
        %v4792 = vshrl.u32 %v4791, 7
        %v4793 = vsub.s32 %v4790, %v4792
        %v4794 = vrot.slane %v4786, %v4793
        %v4796 = vunpack.c.l.s4 1934713408
        %v4797 = vunpack.c.0.s8 %v4796
        %v4798 = vlaneseq
        %v4799 = vshrl.u32 %v4798, 7
        %v4800 = vsub.s32 %v4797, %v4799
        %v4801 = vrot.slane %v4787, %v4800
        %v4802 = vcombine.low %v4769, %v4785
        %v4803 = vcombine.high %v4769, %v4785
        %v4805 = vunpack.c.l.s4 1934713408
        %v4806 = vunpack.c.0.s8 %v4805
        %v4807 = vlaneseq
        %v4808 = vshrl.u32 %v4807, 7
        %v4809 = vsub.s32 %v4806, %v4808
        %v4810 = vrot.slane %v4802, %v4809
        %v4812 = vunpack.c.l.s4 1934713408
        %v4813 = vunpack.c.0.s8 %v4812
        %v4814 = vlaneseq
        %v4815 = vshrl.u32 %v4814, 7
        %v4816 = vsub.s32 %v4813, %v4815
        %v4817 = vrot.slane %v4803, %v4816
        %v4818 = vcombine.high %v4794, 0.0
        %v4819 = vcombine.high %v4801, 0.0
        %v4820 = vcombine.high %v4810, 0.0
        %v4821 = vcombine.high %v4817, 0.0
        %v4822 = vcombine.low %v4590, %v4597
        %v4824 = vunpack.c.l.s4 1983009808
        %v4825 = vunpack.c.0.s8 %v4824
        %v4826 = vlaneseq
        %v4827 = vshrl.u32 %v4826, 7
        %v4828 = vsub.s32 %v4825, %v4827
        %v4829 = vrot.slane %v4822, %v4828
        %v4830 = vcombine.low %v4614, %v4615
        %v4832 = vunpack.c.l.s4 1983009808
        %v4833 = vunpack.c.0.s8 %v4832
        %v4834 = vlaneseq
        %v4835 = vshrl.u32 %v4834, 7
        %v4836 = vsub.s32 %v4833, %v4835
        %v4837 = vrot.slane %v4830, %v4836
        %v4838 = vcombine.low %v4606, %v4613
        %v4840 = vunpack.c.l.s4 1983009808
        %v4841 = vunpack.c.0.s8 %v4840
        %v4842 = vlaneseq
        %v4843 = vshrl.u32 %v4842, 7
        %v4844 = vsub.s32 %v4841, %v4843
        %v4845 = vrot.slane %v4838, %v4844
        %v4846 = vcombine.low %v4616, %v4617
        %v4848 = vunpack.c.l.s4 1983009808
        %v4849 = vunpack.c.0.s8 %v4848
        %v4850 = vlaneseq
        %v4851 = vshrl.u32 %v4850, 7
        %v4852 = vsub.s32 %v4849, %v4851
        %v4853 = vrot.slane %v4846, %v4852
        %v4854 = vcombine.low %v4829, %v4837
        %v4855 = vcombine.high %v4829, %v4837
        %v4857 = vunpack.c.l.s4 1934713408
        %v4858 = vunpack.c.0.s8 %v4857
        %v4859 = vlaneseq
        %v4860 = vshrl.u32 %v4859, 7
        %v4861 = vsub.s32 %v4858, %v4860
        %v4862 = vrot.slane %v4854, %v4861
        %v4864 = vunpack.c.l.s4 1934713408
        %v4865 = vunpack.c.0.s8 %v4864
        %v4866 = vlaneseq
        %v4867 = vshrl.u32 %v4866, 7
        %v4868 = vsub.s32 %v4865, %v4867
        %v4869 = vrot.slane %v4855, %v4868
        %v4870 = vcombine.low %v4845, %v4853
        %v4871 = vcombine.high %v4845, %v4853
        %v4873 = vunpack.c.l.s4 1934713408
        %v4874 = vunpack.c.0.s8 %v4873
        %v4875 = vlaneseq
        %v4876 = vshrl.u32 %v4875, 7
        %v4877 = vsub.s32 %v4874, %v4876
        %v4878 = vrot.slane %v4870, %v4877
        %v4880 = vunpack.c.l.s4 1934713408
        %v4881 = vunpack.c.0.s8 %v4880
        %v4882 = vlaneseq
        %v4883 = vshrl.u32 %v4882, 7
        %v4884 = vsub.s32 %v4881, %v4883
        %v4885 = vrot.slane %v4871, %v4884
        %v4886 = vcombine.low %v4862, %v4878
        %v4887 = vcombine.high %v4862, %v4878
        %v4888 = vcombine.low %v4869, %v4885
        %v4889 = vcombine.high %v4869, %v4885
        %v4890 = vcombine.low %v4658, %v4665
        %v4892 = vunpack.c.l.s4 1983009808
        %v4893 = vunpack.c.0.s8 %v4892
        %v4894 = vlaneseq
        %v4895 = vshrl.u32 %v4894, 7
        %v4896 = vsub.s32 %v4893, %v4895
        %v4897 = vrot.slane %v4890, %v4896
        %v4898 = vcombine.low %v4682, %v4683
        %v4900 = vunpack.c.l.s4 1983009808
        %v4901 = vunpack.c.0.s8 %v4900
        %v4902 = vlaneseq
        %v4903 = vshrl.u32 %v4902, 7
        %v4904 = vsub.s32 %v4901, %v4903
        %v4905 = vrot.slane %v4898, %v4904
        %v4906 = vcombine.low %v4674, %v4681
        %v4908 = vunpack.c.l.s4 1983009808
        %v4909 = vunpack.c.0.s8 %v4908
        %v4910 = vlaneseq
        %v4911 = vshrl.u32 %v4910, 7
        %v4912 = vsub.s32 %v4909, %v4911
        %v4913 = vrot.slane %v4906, %v4912
        %v4914 = vcombine.low %v4684, %v4685
        %v4916 = vunpack.c.l.s4 1983009808
        %v4917 = vunpack.c.0.s8 %v4916
        %v4918 = vlaneseq
        %v4919 = vshrl.u32 %v4918, 7
        %v4920 = vsub.s32 %v4917, %v4919
        %v4921 = vrot.slane %v4914, %v4920
        %v4922 = vcombine.low %v4897, %v4905
        %v4923 = vcombine.high %v4897, %v4905
        %v4925 = vunpack.c.l.s4 1934713408
        %v4926 = vunpack.c.0.s8 %v4925
        %v4927 = vlaneseq
        %v4928 = vshrl.u32 %v4927, 7
        %v4929 = vsub.s32 %v4926, %v4928
        %v4930 = vrot.slane %v4922, %v4929
        %v4932 = vunpack.c.l.s4 1934713408
        %v4933 = vunpack.c.0.s8 %v4932
        %v4934 = vlaneseq
        %v4935 = vshrl.u32 %v4934, 7
        %v4936 = vsub.s32 %v4933, %v4935
        %v4937 = vrot.slane %v4923, %v4936
        %v4938 = vcombine.low %v4913, %v4921
        %v4939 = vcombine.high %v4913, %v4921
        %v4941 = vunpack.c.l.s4 1934713408
        %v4942 = vunpack.c.0.s8 %v4941
        %v4943 = vlaneseq
        %v4944 = vshrl.u32 %v4943, 7
        %v4945 = vsub.s32 %v4942, %v4944
        %v4946 = vrot.slane %v4938, %v4945
        %v4948 = vunpack.c.l.s4 1934713408
        %v4949 = vunpack.c.0.s8 %v4948
        %v4950 = vlaneseq
        %v4951 = vshrl.u32 %v4950, 7
        %v4952 = vsub.s32 %v4949, %v4951
        %v4953 = vrot.slane %v4939, %v4952
        %v4954 = vcombine.low %v4930, %v4946
        %v4955 = vcombine.high %v4930, %v4946
        %v4956 = vcombine.low %v4937, %v4953
        %v4957 = vcombine.high %v4937, %v4953
        %v4958 = vcombine.low %v4726, %v4733
        %v4960 = vunpack.c.l.s4 1983009808
        %v4961 = vunpack.c.0.s8 %v4960
        %v4962 = vlaneseq
        %v4963 = vshrl.u32 %v4962, 7
        %v4964 = vsub.s32 %v4961, %v4963
        %v4965 = vrot.slane %v4958, %v4964
        %v4966 = vcombine.low %v4750, %v4751
        %v4968 = vunpack.c.l.s4 1983009808
        %v4969 = vunpack.c.0.s8 %v4968
        %v4970 = vlaneseq
        %v4971 = vshrl.u32 %v4970, 7
        %v4972 = vsub.s32 %v4969, %v4971
        %v4973 = vrot.slane %v4966, %v4972
        %v4974 = vcombine.low %v4742, %v4749
        %v4976 = vunpack.c.l.s4 1983009808
        %v4977 = vunpack.c.0.s8 %v4976
        %v4978 = vlaneseq
        %v4979 = vshrl.u32 %v4978, 7
        %v4980 = vsub.s32 %v4977, %v4979
        %v4981 = vrot.slane %v4974, %v4980
        %v4982 = vcombine.low %v4752, %v4753
        %v4984 = vunpack.c.l.s4 1983009808
        %v4985 = vunpack.c.0.s8 %v4984
        %v4986 = vlaneseq
        %v4987 = vshrl.u32 %v4986, 7
        %v4988 = vsub.s32 %v4985, %v4987
        %v4989 = vrot.slane %v4982, %v4988
        %v4990 = vcombine.low %v4965, %v4973
        %v4991 = vcombine.high %v4965, %v4973
        %v4993 = vunpack.c.l.s4 1934713408
        %v4994 = vunpack.c.0.s8 %v4993
        %v4995 = vlaneseq
        %v4996 = vshrl.u32 %v4995, 7
        %v4997 = vsub.s32 %v4994, %v4996
        %v4998 = vrot.slane %v4990, %v4997
        %v5000 = vunpack.c.l.s4 1934713408
        %v5001 = vunpack.c.0.s8 %v5000
        %v5002 = vlaneseq
        %v5003 = vshrl.u32 %v5002, 7
        %v5004 = vsub.s32 %v5001, %v5003
        %v5005 = vrot.slane %v4991, %v5004
        %v5006 = vcombine.low %v4981, %v4989
        %v5007 = vcombine.high %v4981, %v4989
        %v5009 = vunpack.c.l.s4 1934713408
        %v5010 = vunpack.c.0.s8 %v5009
        %v5011 = vlaneseq
        %v5012 = vshrl.u32 %v5011, 7
        %v5013 = vsub.s32 %v5010, %v5012
        %v5014 = vrot.slane %v5006, %v5013
        %v5016 = vunpack.c.l.s4 1934713408
        %v5017 = vunpack.c.0.s8 %v5016
        %v5018 = vlaneseq
        %v5019 = vshrl.u32 %v5018, 7
        %v5020 = vsub.s32 %v5017, %v5019
        %v5021 = vrot.slane %v5007, %v5020
        %v5022 = vcombine.low %v4998, %v5014
        %v5023 = vcombine.high %v4998, %v5014
        %v5024 = vcombine.low %v5005, %v5021
        %v5025 = vcombine.high %v5005, %v5021
        %v5026 = vcombine.low %v4794, %v4801
        %v5028 = vunpack.c.l.s4 1983009808
        %v5029 = vunpack.c.0.s8 %v5028
        %v5030 = vlaneseq
        %v5031 = vshrl.u32 %v5030, 7
        %v5032 = vsub.s32 %v5029, %v5031
        %v5033 = vrot.slane %v5026, %v5032
        %v5034 = vcombine.low %v4818, %v4819
        %v5036 = vunpack.c.l.s4 1983009808
        %v5037 = vunpack.c.0.s8 %v5036
        %v5038 = vlaneseq
        %v5039 = vshrl.u32 %v5038, 7
        %v5040 = vsub.s32 %v5037, %v5039
        %v5041 = vrot.slane %v5034, %v5040
        %v5042 = vcombine.low %v4810, %v4817
        %v5044 = vunpack.c.l.s4 1983009808
        %v5045 = vunpack.c.0.s8 %v5044
        %v5046 = vlaneseq
        %v5047 = vshrl.u32 %v5046, 7
        %v5048 = vsub.s32 %v5045, %v5047
        %v5049 = vrot.slane %v5042, %v5048
        %v5050 = vcombine.low %v4820, %v4821
        %v5052 = vunpack.c.l.s4 1983009808
        %v5053 = vunpack.c.0.s8 %v5052
        %v5054 = vlaneseq
        %v5055 = vshrl.u32 %v5054, 7
        %v5056 = vsub.s32 %v5053, %v5055
        %v5057 = vrot.slane %v5050, %v5056
        %v5058 = vcombine.low %v5033, %v5041
        %v5059 = vcombine.high %v5033, %v5041
        %v5061 = vunpack.c.l.s4 1934713408
        %v5062 = vunpack.c.0.s8 %v5061
        %v5063 = vlaneseq
        %v5064 = vshrl.u32 %v5063, 7
        %v5065 = vsub.s32 %v5062, %v5064
        %v5066 = vrot.slane %v5058, %v5065
        %v5068 = vunpack.c.l.s4 1934713408
        %v5069 = vunpack.c.0.s8 %v5068
        %v5070 = vlaneseq
        %v5071 = vshrl.u32 %v5070, 7
        %v5072 = vsub.s32 %v5069, %v5071
        %v5073 = vrot.slane %v5059, %v5072
        %v5074 = vcombine.low %v5049, %v5057
        %v5075 = vcombine.high %v5049, %v5057
        %v5077 = vunpack.c.l.s4 1934713408
        %v5078 = vunpack.c.0.s8 %v5077
        %v5079 = vlaneseq
        %v5080 = vshrl.u32 %v5079, 7
        %v5081 = vsub.s32 %v5078, %v5080
        %v5082 = vrot.slane %v5074, %v5081
        %v5084 = vunpack.c.l.s4 1934713408
        %v5085 = vunpack.c.0.s8 %v5084
        %v5086 = vlaneseq
        %v5087 = vshrl.u32 %v5086, 7
        %v5088 = vsub.s32 %v5085, %v5087
        %v5089 = vrot.slane %v5075, %v5088
        %v5090 = vcombine.low %v5066, %v5082
        %v5091 = vcombine.high %v5066, %v5082
        %v5092 = vcombine.low %v5073, %v5089
        %v5093 = vcombine.high %v5073, %v5089
        %v5094 = vpack.c.bf16 %v4954, %v4886
        %v5095 = vpack.c.bf16 %v4955, %v4887
        %v5096 = vpack.c.bf16 %v4956, %v4888
        %v5097 = vpack.c.bf16 %v4957, %v4889
        %v5098 = vpack.c.bf16 %v5090, %v5022
        %v5099 = vpack.c.bf16 %v5091, %v5023
        %v5100 = vpack.c.bf16 %v5092, %v5024
        %v5101 = vpack.c.bf16 %v5093, %v5025
        %5106 = vrot.lane.b32.xlu0 %v4492, 120
        %v5107 = vpop.permute.xlu0 %5106
        %5108 = vrot.lane.b32.xlu0 %v4495, 120
        %v5109 = vpop.permute.xlu0 %5108
        %5110 = vrot.lane.b32.xlu0 %v4500, 120
        %v5111 = vpop.permute.xlu0 %5110
        %5112 = vrot.lane.b32.xlu0 %v4503, 120
        %v5113 = vpop.permute.xlu0 %5112
        %5114 = vrot.lane.b32.xlu0 %v4492, 112
        %v5115 = vpop.permute.xlu0 %5114
        %5116 = vrot.lane.b32.xlu0 %v4495, 112
        %v5117 = vpop.permute.xlu0 %5116
        %5118 = vrot.lane.b32.xlu0 %v4500, 112
        %v5119 = vpop.permute.xlu0 %5118
        %5120 = vrot.lane.b32.xlu0 %v4503, 112
        %v5121 = vpop.permute.xlu0 %5120
        %5122 = vrot.lane.b32.xlu0 %v4492, 104
        %v5123 = vpop.permute.xlu0 %5122
        %5124 = vrot.lane.b32.xlu0 %v4495, 104
        %v5125 = vpop.permute.xlu0 %5124
        %5126 = vrot.lane.b32.xlu0 %v4500, 104
        %v5127 = vpop.permute.xlu0 %5126
        %5128 = vrot.lane.b32.xlu0 %v4503, 104
        %v5129 = vpop.permute.xlu0 %5128
        %5130 = vrot.lane.b32.xlu0 %v4492, 96
        %v5131 = vpop.permute.xlu0 %5130
        %5132 = vrot.lane.b32.xlu0 %v4495, 96
        %v5133 = vpop.permute.xlu0 %5132
        %5134 = vrot.lane.b32.xlu0 %v4500, 96
        %v5135 = vpop.permute.xlu0 %5134
        %5136 = vrot.lane.b32.xlu0 %v4503, 96
        %v5137 = vpop.permute.xlu0 %5136
        %5138 = vrot.lane.b32.xlu0 %v5107, 96
        %v5139 = vpop.permute.xlu0 %5138
        %5140 = vrot.lane.b32.xlu0 %v5109, 96
        %v5141 = vpop.permute.xlu0 %5140
        %5142 = vrot.lane.b32.xlu0 %v5111, 96
        %v5143 = vpop.permute.xlu0 %5142
        %5144 = vrot.lane.b32.xlu0 %v5113, 96
        %v5145 = vpop.permute.xlu0 %5144
        %5146 = vrot.lane.b32.xlu0 %v5115, 96
        %v5147 = vpop.permute.xlu0 %5146
        %5148 = vrot.lane.b32.xlu0 %v5117, 96
        %v5149 = vpop.permute.xlu0 %5148
        %5150 = vrot.lane.b32.xlu0 %v5119, 96
        %v5151 = vpop.permute.xlu0 %5150
        %5152 = vrot.lane.b32.xlu0 %v5121, 96
        %v5153 = vpop.permute.xlu0 %5152
        %5154 = vrot.lane.b32.xlu0 %v5123, 96
        %v5155 = vpop.permute.xlu0 %5154
        %5156 = vrot.lane.b32.xlu0 %v5125, 96
        %v5157 = vpop.permute.xlu0 %5156
        %5158 = vrot.lane.b32.xlu0 %v5127, 96
        %v5159 = vpop.permute.xlu0 %5158
        %5160 = vrot.lane.b32.xlu0 %v5129, 96
        %v5161 = vpop.permute.xlu0 %5160
        %v5178 = vcombine.low %v5131, %v5147
        %v5179 = vcombine.high %v5131, %v5147
        %v5181 = vunpack.c.l.s4 1983009808
        %v5182 = vunpack.c.0.s8 %v5181
        %v5183 = vlaneseq
        %v5184 = vshrl.u32 %v5183, 7
        %v5185 = vsub.s32 %v5182, %v5184
        %v5186 = vrot.slane %v5178, %v5185
        %v5188 = vunpack.c.l.s4 1983009808
        %v5189 = vunpack.c.0.s8 %v5188
        %v5190 = vlaneseq
        %v5191 = vshrl.u32 %v5190, 7
        %v5192 = vsub.s32 %v5189, %v5191
        %v5193 = vrot.slane %v5179, %v5192
        %v5194 = vcombine.low %v5139, %v5155
        %v5195 = vcombine.high %v5139, %v5155
        %v5197 = vunpack.c.l.s4 1983009808
        %v5198 = vunpack.c.0.s8 %v5197
        %v5199 = vlaneseq
        %v5200 = vshrl.u32 %v5199, 7
        %v5201 = vsub.s32 %v5198, %v5200
        %v5202 = vrot.slane %v5194, %v5201
        %v5204 = vunpack.c.l.s4 1983009808
        %v5205 = vunpack.c.0.s8 %v5204
        %v5206 = vlaneseq
        %v5207 = vshrl.u32 %v5206, 7
        %v5208 = vsub.s32 %v5205, %v5207
        %v5209 = vrot.slane %v5195, %v5208
        %v5210 = vcombine.low %v5186, %v5202
        %v5211 = vcombine.high %v5186, %v5202
        %v5213 = vunpack.c.l.s4 1934713408
        %v5214 = vunpack.c.0.s8 %v5213
        %v5215 = vlaneseq
        %v5216 = vshrl.u32 %v5215, 7
        %v5217 = vsub.s32 %v5214, %v5216
        %v5218 = vrot.slane %v5210, %v5217
        %v5220 = vunpack.c.l.s4 1934713408
        %v5221 = vunpack.c.0.s8 %v5220
        %v5222 = vlaneseq
        %v5223 = vshrl.u32 %v5222, 7
        %v5224 = vsub.s32 %v5221, %v5223
        %v5225 = vrot.slane %v5211, %v5224
        %v5226 = vcombine.low %v5193, %v5209
        %v5227 = vcombine.high %v5193, %v5209
        %v5229 = vunpack.c.l.s4 1934713408
        %v5230 = vunpack.c.0.s8 %v5229
        %v5231 = vlaneseq
        %v5232 = vshrl.u32 %v5231, 7
        %v5233 = vsub.s32 %v5230, %v5232
        %v5234 = vrot.slane %v5226, %v5233
        %v5236 = vunpack.c.l.s4 1934713408
        %v5237 = vunpack.c.0.s8 %v5236
        %v5238 = vlaneseq
        %v5239 = vshrl.u32 %v5238, 7
        %v5240 = vsub.s32 %v5237, %v5239
        %v5241 = vrot.slane %v5227, %v5240
        %v5242 = vcombine.high %v5218, 0.0
        %v5243 = vcombine.high %v5225, 0.0
        %v5244 = vcombine.high %v5234, 0.0
        %v5245 = vcombine.high %v5241, 0.0
        %v5246 = vcombine.low %v5133, %v5149
        %v5247 = vcombine.high %v5133, %v5149
        %v5249 = vunpack.c.l.s4 1983009808
        %v5250 = vunpack.c.0.s8 %v5249
        %v5251 = vlaneseq
        %v5252 = vshrl.u32 %v5251, 7
        %v5253 = vsub.s32 %v5250, %v5252
        %v5254 = vrot.slane %v5246, %v5253
        %v5256 = vunpack.c.l.s4 1983009808
        %v5257 = vunpack.c.0.s8 %v5256
        %v5258 = vlaneseq
        %v5259 = vshrl.u32 %v5258, 7
        %v5260 = vsub.s32 %v5257, %v5259
        %v5261 = vrot.slane %v5247, %v5260
        %v5262 = vcombine.low %v5141, %v5157
        %v5263 = vcombine.high %v5141, %v5157
        %v5265 = vunpack.c.l.s4 1983009808
        %v5266 = vunpack.c.0.s8 %v5265
        %v5267 = vlaneseq
        %v5268 = vshrl.u32 %v5267, 7
        %v5269 = vsub.s32 %v5266, %v5268
        %v5270 = vrot.slane %v5262, %v5269
        %v5272 = vunpack.c.l.s4 1983009808
        %v5273 = vunpack.c.0.s8 %v5272
        %v5274 = vlaneseq
        %v5275 = vshrl.u32 %v5274, 7
        %v5276 = vsub.s32 %v5273, %v5275
        %v5277 = vrot.slane %v5263, %v5276
        %v5278 = vcombine.low %v5254, %v5270
        %v5279 = vcombine.high %v5254, %v5270
        %v5281 = vunpack.c.l.s4 1934713408
        %v5282 = vunpack.c.0.s8 %v5281
        %v5283 = vlaneseq
        %v5284 = vshrl.u32 %v5283, 7
        %v5285 = vsub.s32 %v5282, %v5284
        %v5286 = vrot.slane %v5278, %v5285
        %v5288 = vunpack.c.l.s4 1934713408
        %v5289 = vunpack.c.0.s8 %v5288
        %v5290 = vlaneseq
        %v5291 = vshrl.u32 %v5290, 7
        %v5292 = vsub.s32 %v5289, %v5291
        %v5293 = vrot.slane %v5279, %v5292
        %v5294 = vcombine.low %v5261, %v5277
        %v5295 = vcombine.high %v5261, %v5277
        %v5297 = vunpack.c.l.s4 1934713408
        %v5298 = vunpack.c.0.s8 %v5297
        %v5299 = vlaneseq
        %v5300 = vshrl.u32 %v5299, 7
        %v5301 = vsub.s32 %v5298, %v5300
        %v5302 = vrot.slane %v5294, %v5301
        %v5304 = vunpack.c.l.s4 1934713408
        %v5305 = vunpack.c.0.s8 %v5304
        %v5306 = vlaneseq
        %v5307 = vshrl.u32 %v5306, 7
        %v5308 = vsub.s32 %v5305, %v5307
        %v5309 = vrot.slane %v5295, %v5308
        %v5310 = vcombine.high %v5286, 0.0
        %v5311 = vcombine.high %v5293, 0.0
        %v5312 = vcombine.high %v5302, 0.0
        %v5313 = vcombine.high %v5309, 0.0
        %v5314 = vcombine.low %v5135, %v5151
        %v5315 = vcombine.high %v5135, %v5151
        %v5317 = vunpack.c.l.s4 1983009808
        %v5318 = vunpack.c.0.s8 %v5317
        %v5319 = vlaneseq
        %v5320 = vshrl.u32 %v5319, 7
        %v5321 = vsub.s32 %v5318, %v5320
        %v5322 = vrot.slane %v5314, %v5321
        %v5324 = vunpack.c.l.s4 1983009808
        %v5325 = vunpack.c.0.s8 %v5324
        %v5326 = vlaneseq
        %v5327 = vshrl.u32 %v5326, 7
        %v5328 = vsub.s32 %v5325, %v5327
        %v5329 = vrot.slane %v5315, %v5328
        %v5330 = vcombine.low %v5143, %v5159
        %v5331 = vcombine.high %v5143, %v5159
        %v5333 = vunpack.c.l.s4 1983009808
        %v5334 = vunpack.c.0.s8 %v5333
        %v5335 = vlaneseq
        %v5336 = vshrl.u32 %v5335, 7
        %v5337 = vsub.s32 %v5334, %v5336
        %v5338 = vrot.slane %v5330, %v5337
        %v5340 = vunpack.c.l.s4 1983009808
        %v5341 = vunpack.c.0.s8 %v5340
        %v5342 = vlaneseq
        %v5343 = vshrl.u32 %v5342, 7
        %v5344 = vsub.s32 %v5341, %v5343
        %v5345 = vrot.slane %v5331, %v5344
        %v5346 = vcombine.low %v5322, %v5338
        %v5347 = vcombine.high %v5322, %v5338
        %v5349 = vunpack.c.l.s4 1934713408
        %v5350 = vunpack.c.0.s8 %v5349
        %v5351 = vlaneseq
        %v5352 = vshrl.u32 %v5351, 7
        %v5353 = vsub.s32 %v5350, %v5352
        %v5354 = vrot.slane %v5346, %v5353
        %v5356 = vunpack.c.l.s4 1934713408
        %v5357 = vunpack.c.0.s8 %v5356
        %v5358 = vlaneseq
        %v5359 = vshrl.u32 %v5358, 7
        %v5360 = vsub.s32 %v5357, %v5359
        %v5361 = vrot.slane %v5347, %v5360
        %v5362 = vcombine.low %v5329, %v5345
        %v5363 = vcombine.high %v5329, %v5345
        %v5365 = vunpack.c.l.s4 1934713408
        %v5366 = vunpack.c.0.s8 %v5365
        %v5367 = vlaneseq
        %v5368 = vshrl.u32 %v5367, 7
        %v5369 = vsub.s32 %v5366, %v5368
        %v5370 = vrot.slane %v5362, %v5369
        %v5372 = vunpack.c.l.s4 1934713408
        %v5373 = vunpack.c.0.s8 %v5372
        %v5374 = vlaneseq
        %v5375 = vshrl.u32 %v5374, 7
        %v5376 = vsub.s32 %v5373, %v5375
        %v5377 = vrot.slane %v5363, %v5376
        %v5378 = vcombine.high %v5354, 0.0
        %v5379 = vcombine.high %v5361, 0.0
        %v5380 = vcombine.high %v5370, 0.0
        %v5381 = vcombine.high %v5377, 0.0
        %v5382 = vcombine.low %v5137, %v5153
        %v5383 = vcombine.high %v5137, %v5153
        %v5385 = vunpack.c.l.s4 1983009808
        %v5386 = vunpack.c.0.s8 %v5385
        %v5387 = vlaneseq
        %v5388 = vshrl.u32 %v5387, 7
        %v5389 = vsub.s32 %v5386, %v5388
        %v5390 = vrot.slane %v5382, %v5389
        %v5392 = vunpack.c.l.s4 1983009808
        %v5393 = vunpack.c.0.s8 %v5392
        %v5394 = vlaneseq
        %v5395 = vshrl.u32 %v5394, 7
        %v5396 = vsub.s32 %v5393, %v5395
        %v5397 = vrot.slane %v5383, %v5396
        %v5398 = vcombine.low %v5145, %v5161
        %v5399 = vcombine.high %v5145, %v5161
        %v5401 = vunpack.c.l.s4 1983009808
        %v5402 = vunpack.c.0.s8 %v5401
        %v5403 = vlaneseq
        %v5404 = vshrl.u32 %v5403, 7
        %v5405 = vsub.s32 %v5402, %v5404
        %v5406 = vrot.slane %v5398, %v5405
        %v5408 = vunpack.c.l.s4 1983009808
        %v5409 = vunpack.c.0.s8 %v5408
        %v5410 = vlaneseq
        %v5411 = vshrl.u32 %v5410, 7
        %v5412 = vsub.s32 %v5409, %v5411
        %v5413 = vrot.slane %v5399, %v5412
        %v5414 = vcombine.low %v5390, %v5406
        %v5415 = vcombine.high %v5390, %v5406
        %v5417 = vunpack.c.l.s4 1934713408
        %v5418 = vunpack.c.0.s8 %v5417
        %v5419 = vlaneseq
        %v5420 = vshrl.u32 %v5419, 7
        %v5421 = vsub.s32 %v5418, %v5420
        %v5422 = vrot.slane %v5414, %v5421
        %v5424 = vunpack.c.l.s4 1934713408
        %v5425 = vunpack.c.0.s8 %v5424
        %v5426 = vlaneseq
        %v5427 = vshrl.u32 %v5426, 7
        %v5428 = vsub.s32 %v5425, %v5427
        %v5429 = vrot.slane %v5415, %v5428
        %v5430 = vcombine.low %v5397, %v5413
        %v5431 = vcombine.high %v5397, %v5413
        %v5433 = vunpack.c.l.s4 1934713408
        %v5434 = vunpack.c.0.s8 %v5433
        %v5435 = vlaneseq
        %v5436 = vshrl.u32 %v5435, 7
        %v5437 = vsub.s32 %v5434, %v5436
        %v5438 = vrot.slane %v5430, %v5437
        %v5440 = vunpack.c.l.s4 1934713408
        %v5441 = vunpack.c.0.s8 %v5440
        %v5442 = vlaneseq
        %v5443 = vshrl.u32 %v5442, 7
        %v5444 = vsub.s32 %v5441, %v5443
        %v5445 = vrot.slane %v5431, %v5444
        %v5446 = vcombine.high %v5422, 0.0
        %v5447 = vcombine.high %v5429, 0.0
        %v5448 = vcombine.high %v5438, 0.0
        %v5449 = vcombine.high %v5445, 0.0
        %v5450 = vcombine.low %v5218, %v5225
        %v5452 = vunpack.c.l.s4 1983009808
        %v5453 = vunpack.c.0.s8 %v5452
        %v5454 = vlaneseq
        %v5455 = vshrl.u32 %v5454, 7
        %v5456 = vsub.s32 %v5453, %v5455
        %v5457 = vrot.slane %v5450, %v5456
        %v5458 = vcombine.low %v5242, %v5243
        %v5460 = vunpack.c.l.s4 1983009808
        %v5461 = vunpack.c.0.s8 %v5460
        %v5462 = vlaneseq
        %v5463 = vshrl.u32 %v5462, 7
        %v5464 = vsub.s32 %v5461, %v5463
        %v5465 = vrot.slane %v5458, %v5464
        %v5466 = vcombine.low %v5234, %v5241
        %v5468 = vunpack.c.l.s4 1983009808
        %v5469 = vunpack.c.0.s8 %v5468
        %v5470 = vlaneseq
        %v5471 = vshrl.u32 %v5470, 7
        %v5472 = vsub.s32 %v5469, %v5471
        %v5473 = vrot.slane %v5466, %v5472
        %v5474 = vcombine.low %v5244, %v5245
        %v5476 = vunpack.c.l.s4 1983009808
        %v5477 = vunpack.c.0.s8 %v5476
        %v5478 = vlaneseq
        %v5479 = vshrl.u32 %v5478, 7
        %v5480 = vsub.s32 %v5477, %v5479
        %v5481 = vrot.slane %v5474, %v5480
        %v5482 = vcombine.low %v5457, %v5465
        %v5483 = vcombine.high %v5457, %v5465
        %v5485 = vunpack.c.l.s4 1934713408
        %v5486 = vunpack.c.0.s8 %v5485
        %v5487 = vlaneseq
        %v5488 = vshrl.u32 %v5487, 7
        %v5489 = vsub.s32 %v5486, %v5488
        %v5490 = vrot.slane %v5482, %v5489
        %v5492 = vunpack.c.l.s4 1934713408
        %v5493 = vunpack.c.0.s8 %v5492
        %v5494 = vlaneseq
        %v5495 = vshrl.u32 %v5494, 7
        %v5496 = vsub.s32 %v5493, %v5495
        %v5497 = vrot.slane %v5483, %v5496
        %v5498 = vcombine.low %v5473, %v5481
        %v5499 = vcombine.high %v5473, %v5481
        %v5501 = vunpack.c.l.s4 1934713408
        %v5502 = vunpack.c.0.s8 %v5501
        %v5503 = vlaneseq
        %v5504 = vshrl.u32 %v5503, 7
        %v5505 = vsub.s32 %v5502, %v5504
        %v5506 = vrot.slane %v5498, %v5505
        %v5508 = vunpack.c.l.s4 1934713408
        %v5509 = vunpack.c.0.s8 %v5508
        %v5510 = vlaneseq
        %v5511 = vshrl.u32 %v5510, 7
        %v5512 = vsub.s32 %v5509, %v5511
        %v5513 = vrot.slane %v5499, %v5512
        %v5514 = vcombine.low %v5490, %v5506
        %v5515 = vcombine.high %v5490, %v5506
        %v5516 = vcombine.low %v5497, %v5513
        %v5517 = vcombine.high %v5497, %v5513
        %v5518 = vcombine.low %v5286, %v5293
        %v5520 = vunpack.c.l.s4 1983009808
        %v5521 = vunpack.c.0.s8 %v5520
        %v5522 = vlaneseq
        %v5523 = vshrl.u32 %v5522, 7
        %v5524 = vsub.s32 %v5521, %v5523
        %v5525 = vrot.slane %v5518, %v5524
        %v5526 = vcombine.low %v5310, %v5311
        %v5528 = vunpack.c.l.s4 1983009808
        %v5529 = vunpack.c.0.s8 %v5528
        %v5530 = vlaneseq
        %v5531 = vshrl.u32 %v5530, 7
        %v5532 = vsub.s32 %v5529, %v5531
        %v5533 = vrot.slane %v5526, %v5532
        %v5534 = vcombine.low %v5302, %v5309
        %v5536 = vunpack.c.l.s4 1983009808
        %v5537 = vunpack.c.0.s8 %v5536
        %v5538 = vlaneseq
        %v5539 = vshrl.u32 %v5538, 7
        %v5540 = vsub.s32 %v5537, %v5539
        %v5541 = vrot.slane %v5534, %v5540
        %v5542 = vcombine.low %v5312, %v5313
        %v5544 = vunpack.c.l.s4 1983009808
        %v5545 = vunpack.c.0.s8 %v5544
        %v5546 = vlaneseq
        %v5547 = vshrl.u32 %v5546, 7
        %v5548 = vsub.s32 %v5545, %v5547
        %v5549 = vrot.slane %v5542, %v5548
        %v5550 = vcombine.low %v5525, %v5533
        %v5551 = vcombine.high %v5525, %v5533
        %v5553 = vunpack.c.l.s4 1934713408
        %v5554 = vunpack.c.0.s8 %v5553
        %v5555 = vlaneseq
        %v5556 = vshrl.u32 %v5555, 7
        %v5557 = vsub.s32 %v5554, %v5556
        %v5558 = vrot.slane %v5550, %v5557
        %v5560 = vunpack.c.l.s4 1934713408
        %v5561 = vunpack.c.0.s8 %v5560
        %v5562 = vlaneseq
        %v5563 = vshrl.u32 %v5562, 7
        %v5564 = vsub.s32 %v5561, %v5563
        %v5565 = vrot.slane %v5551, %v5564
        %v5566 = vcombine.low %v5541, %v5549
        %v5567 = vcombine.high %v5541, %v5549
        %v5569 = vunpack.c.l.s4 1934713408
        %v5570 = vunpack.c.0.s8 %v5569
        %v5571 = vlaneseq
        %v5572 = vshrl.u32 %v5571, 7
        %v5573 = vsub.s32 %v5570, %v5572
        %v5574 = vrot.slane %v5566, %v5573
        %v5576 = vunpack.c.l.s4 1934713408
        %v5577 = vunpack.c.0.s8 %v5576
        %v5578 = vlaneseq
        %v5579 = vshrl.u32 %v5578, 7
        %v5580 = vsub.s32 %v5577, %v5579
        %v5581 = vrot.slane %v5567, %v5580
        %v5582 = vcombine.low %v5558, %v5574
        %v5583 = vcombine.high %v5558, %v5574
        %v5584 = vcombine.low %v5565, %v5581
        %v5585 = vcombine.high %v5565, %v5581
        %v5586 = vcombine.low %v5354, %v5361
        %v5588 = vunpack.c.l.s4 1983009808
        %v5589 = vunpack.c.0.s8 %v5588
        %v5590 = vlaneseq
        %v5591 = vshrl.u32 %v5590, 7
        %v5592 = vsub.s32 %v5589, %v5591
        %v5593 = vrot.slane %v5586, %v5592
        %v5594 = vcombine.low %v5378, %v5379
        %v5596 = vunpack.c.l.s4 1983009808
        %v5597 = vunpack.c.0.s8 %v5596
        %v5598 = vlaneseq
        %v5599 = vshrl.u32 %v5598, 7
        %v5600 = vsub.s32 %v5597, %v5599
        %v5601 = vrot.slane %v5594, %v5600
        %v5602 = vcombine.low %v5370, %v5377
        %v5604 = vunpack.c.l.s4 1983009808
        %v5605 = vunpack.c.0.s8 %v5604
        %v5606 = vlaneseq
        %v5607 = vshrl.u32 %v5606, 7
        %v5608 = vsub.s32 %v5605, %v5607
        %v5609 = vrot.slane %v5602, %v5608
        %v5610 = vcombine.low %v5380, %v5381
        %v5612 = vunpack.c.l.s4 1983009808
        %v5613 = vunpack.c.0.s8 %v5612
        %v5614 = vlaneseq
        %v5615 = vshrl.u32 %v5614, 7
        %v5616 = vsub.s32 %v5613, %v5615
        %v5617 = vrot.slane %v5610, %v5616
        %v5618 = vcombine.low %v5593, %v5601
        %v5619 = vcombine.high %v5593, %v5601
        %v5621 = vunpack.c.l.s4 1934713408
        %v5622 = vunpack.c.0.s8 %v5621
        %v5623 = vlaneseq
        %v5624 = vshrl.u32 %v5623, 7
        %v5625 = vsub.s32 %v5622, %v5624
        %v5626 = vrot.slane %v5618, %v5625
        %v5628 = vunpack.c.l.s4 1934713408
        %v5629 = vunpack.c.0.s8 %v5628
        %v5630 = vlaneseq
        %v5631 = vshrl.u32 %v5630, 7
        %v5632 = vsub.s32 %v5629, %v5631
        %v5633 = vrot.slane %v5619, %v5632
        %v5634 = vcombine.low %v5609, %v5617
        %v5635 = vcombine.high %v5609, %v5617
        %v5637 = vunpack.c.l.s4 1934713408
        %v5638 = vunpack.c.0.s8 %v5637
        %v5639 = vlaneseq
        %v5640 = vshrl.u32 %v5639, 7
        %v5641 = vsub.s32 %v5638, %v5640
        %v5642 = vrot.slane %v5634, %v5641
        %v5644 = vunpack.c.l.s4 1934713408
        %v5645 = vunpack.c.0.s8 %v5644
        %v5646 = vlaneseq
        %v5647 = vshrl.u32 %v5646, 7
        %v5648 = vsub.s32 %v5645, %v5647
        %v5649 = vrot.slane %v5635, %v5648
        %v5650 = vcombine.low %v5626, %v5642
        %v5651 = vcombine.high %v5626, %v5642
        %v5652 = vcombine.low %v5633, %v5649
        %v5653 = vcombine.high %v5633, %v5649
        %v5654 = vcombine.low %v5422, %v5429
        %v5656 = vunpack.c.l.s4 1983009808
        %v5657 = vunpack.c.0.s8 %v5656
        %v5658 = vlaneseq
        %v5659 = vshrl.u32 %v5658, 7
        %v5660 = vsub.s32 %v5657, %v5659
        %v5661 = vrot.slane %v5654, %v5660
        %v5662 = vcombine.low %v5446, %v5447
        %v5664 = vunpack.c.l.s4 1983009808
        %v5665 = vunpack.c.0.s8 %v5664
        %v5666 = vlaneseq
        %v5667 = vshrl.u32 %v5666, 7
        %v5668 = vsub.s32 %v5665, %v5667
        %v5669 = vrot.slane %v5662, %v5668
        %v5670 = vcombine.low %v5438, %v5445
        %v5672 = vunpack.c.l.s4 1983009808
        %v5673 = vunpack.c.0.s8 %v5672
        %v5674 = vlaneseq
        %v5675 = vshrl.u32 %v5674, 7
        %v5676 = vsub.s32 %v5673, %v5675
        %v5677 = vrot.slane %v5670, %v5676
        %v5678 = vcombine.low %v5448, %v5449
        %v5680 = vunpack.c.l.s4 1983009808
        %v5681 = vunpack.c.0.s8 %v5680
        %v5682 = vlaneseq
        %v5683 = vshrl.u32 %v5682, 7
        %v5684 = vsub.s32 %v5681, %v5683
        %v5685 = vrot.slane %v5678, %v5684
        %v5686 = vcombine.low %v5661, %v5669
        %v5687 = vcombine.high %v5661, %v5669
        %v5689 = vunpack.c.l.s4 1934713408
        %v5690 = vunpack.c.0.s8 %v5689
        %v5691 = vlaneseq
        %v5692 = vshrl.u32 %v5691, 7
        %v5693 = vsub.s32 %v5690, %v5692
        %v5694 = vrot.slane %v5686, %v5693
        %v5696 = vunpack.c.l.s4 1934713408
        %v5697 = vunpack.c.0.s8 %v5696
        %v5698 = vlaneseq
        %v5699 = vshrl.u32 %v5698, 7
        %v5700 = vsub.s32 %v5697, %v5699
        %v5701 = vrot.slane %v5687, %v5700
        %v5702 = vcombine.low %v5677, %v5685
        %v5703 = vcombine.high %v5677, %v5685
        %v5705 = vunpack.c.l.s4 1934713408
        %v5706 = vunpack.c.0.s8 %v5705
        %v5707 = vlaneseq
        %v5708 = vshrl.u32 %v5707, 7
        %v5709 = vsub.s32 %v5706, %v5708
        %v5710 = vrot.slane %v5702, %v5709
        %v5712 = vunpack.c.l.s4 1934713408
        %v5713 = vunpack.c.0.s8 %v5712
        %v5714 = vlaneseq
        %v5715 = vshrl.u32 %v5714, 7
        %v5716 = vsub.s32 %v5713, %v5715
        %v5717 = vrot.slane %v5703, %v5716
        %v5718 = vcombine.low %v5694, %v5710
        %v5719 = vcombine.high %v5694, %v5710
        %v5720 = vcombine.low %v5701, %v5717
        %v5721 = vcombine.high %v5701, %v5717
        %v5722 = vpack.c.bf16 %v5582, %v5514
        %v5723 = vpack.c.bf16 %v5583, %v5515
        %v5724 = vpack.c.bf16 %v5584, %v5516
        %v5725 = vpack.c.bf16 %v5585, %v5517
        %v5726 = vpack.c.bf16 %v5718, %v5650
        %v5727 = vpack.c.bf16 %v5719, %v5651
        %v5728 = vpack.c.bf16 %v5720, %v5652
        %v5729 = vpack.c.bf16 %v5721, %v5653
        %5730 = vrot.lane.b32.xlu0 %v4492, 64
        %v5731 = vpop.permute.xlu0 %5730
        %5732 = vrot.lane.b32.xlu0 %v4495, 64
        %v5733 = vpop.permute.xlu0 %5732
        %5734 = vrot.lane.b32.xlu0 %v4500, 64
        %v5735 = vpop.permute.xlu0 %5734
        %5736 = vrot.lane.b32.xlu0 %v4503, 64
        %v5737 = vpop.permute.xlu0 %5736
        %5738 = vrot.lane.b32.xlu0 %v5107, 64
        %v5739 = vpop.permute.xlu0 %5738
        %5740 = vrot.lane.b32.xlu0 %v5109, 64
        %v5741 = vpop.permute.xlu0 %5740
        %5742 = vrot.lane.b32.xlu0 %v5111, 64
        %v5743 = vpop.permute.xlu0 %5742
        %5744 = vrot.lane.b32.xlu0 %v5113, 64
        %v5745 = vpop.permute.xlu0 %5744
        %5746 = vrot.lane.b32.xlu0 %v5115, 64
        %v5747 = vpop.permute.xlu0 %5746
        %5748 = vrot.lane.b32.xlu0 %v5117, 64
        %v5749 = vpop.permute.xlu0 %5748
        %5750 = vrot.lane.b32.xlu0 %v5119, 64
        %v5751 = vpop.permute.xlu0 %5750
        %5752 = vrot.lane.b32.xlu0 %v5121, 64
        %v5753 = vpop.permute.xlu0 %5752
        %5754 = vrot.lane.b32.xlu0 %v5123, 64
        %v5755 = vpop.permute.xlu0 %5754
        %5756 = vrot.lane.b32.xlu0 %v5125, 64
        %v5757 = vpop.permute.xlu0 %5756
        %5758 = vrot.lane.b32.xlu0 %v5127, 64
        %v5759 = vpop.permute.xlu0 %5758
        %5760 = vrot.lane.b32.xlu0 %v5129, 64
        %v5761 = vpop.permute.xlu0 %5760
        %v5778 = vcombine.low %v5731, %v5747
        %v5779 = vcombine.high %v5731, %v5747
        %v5781 = vunpack.c.l.s4 1983009808
        %v5782 = vunpack.c.0.s8 %v5781
        %v5783 = vlaneseq
        %v5784 = vshrl.u32 %v5783, 7
        %v5785 = vsub.s32 %v5782, %v5784
        %v5786 = vrot.slane %v5778, %v5785
        %v5788 = vunpack.c.l.s4 1983009808
        %v5789 = vunpack.c.0.s8 %v5788
        %v5790 = vlaneseq
        %v5791 = vshrl.u32 %v5790, 7
        %v5792 = vsub.s32 %v5789, %v5791
        %v5793 = vrot.slane %v5779, %v5792
        %v5794 = vcombine.low %v5739, %v5755
        %v5795 = vcombine.high %v5739, %v5755
        %v5797 = vunpack.c.l.s4 1983009808
        %v5798 = vunpack.c.0.s8 %v5797
        %v5799 = vlaneseq
        %v5800 = vshrl.u32 %v5799, 7
        %v5801 = vsub.s32 %v5798, %v5800
        %v5802 = vrot.slane %v5794, %v5801
        %v5804 = vunpack.c.l.s4 1983009808
        %v5805 = vunpack.c.0.s8 %v5804
        %v5806 = vlaneseq
        %v5807 = vshrl.u32 %v5806, 7
        %v5808 = vsub.s32 %v5805, %v5807
        %v5809 = vrot.slane %v5795, %v5808
        %v5810 = vcombine.low %v5786, %v5802
        %v5811 = vcombine.high %v5786, %v5802
        %v5813 = vunpack.c.l.s4 1934713408
        %v5814 = vunpack.c.0.s8 %v5813
        %v5815 = vlaneseq
        %v5816 = vshrl.u32 %v5815, 7
        %v5817 = vsub.s32 %v5814, %v5816
        %v5818 = vrot.slane %v5810, %v5817
        %v5820 = vunpack.c.l.s4 1934713408
        %v5821 = vunpack.c.0.s8 %v5820
        %v5822 = vlaneseq
        %v5823 = vshrl.u32 %v5822, 7
        %v5824 = vsub.s32 %v5821, %v5823
        %v5825 = vrot.slane %v5811, %v5824
        %v5826 = vcombine.low %v5793, %v5809
        %v5827 = vcombine.high %v5793, %v5809
        %v5829 = vunpack.c.l.s4 1934713408
        %v5830 = vunpack.c.0.s8 %v5829
        %v5831 = vlaneseq
        %v5832 = vshrl.u32 %v5831, 7
        %v5833 = vsub.s32 %v5830, %v5832
        %v5834 = vrot.slane %v5826, %v5833
        %v5836 = vunpack.c.l.s4 1934713408
        %v5837 = vunpack.c.0.s8 %v5836
        %v5838 = vlaneseq
        %v5839 = vshrl.u32 %v5838, 7
        %v5840 = vsub.s32 %v5837, %v5839
        %v5841 = vrot.slane %v5827, %v5840
        %v5842 = vcombine.high %v5818, 0.0
        %v5843 = vcombine.high %v5825, 0.0
        %v5844 = vcombine.high %v5834, 0.0
        %v5845 = vcombine.high %v5841, 0.0
        %v5846 = vcombine.low %v5733, %v5749
        %v5847 = vcombine.high %v5733, %v5749
        %v5849 = vunpack.c.l.s4 1983009808
        %v5850 = vunpack.c.0.s8 %v5849
        %v5851 = vlaneseq
        %v5852 = vshrl.u32 %v5851, 7
        %v5853 = vsub.s32 %v5850, %v5852
        %v5854 = vrot.slane %v5846, %v5853
        %v5856 = vunpack.c.l.s4 1983009808
        %v5857 = vunpack.c.0.s8 %v5856
        %v5858 = vlaneseq
        %v5859 = vshrl.u32 %v5858, 7
        %v5860 = vsub.s32 %v5857, %v5859
        %v5861 = vrot.slane %v5847, %v5860
        %v5862 = vcombine.low %v5741, %v5757
        %v5863 = vcombine.high %v5741, %v5757
        %v5865 = vunpack.c.l.s4 1983009808
        %v5866 = vunpack.c.0.s8 %v5865
        %v5867 = vlaneseq
        %v5868 = vshrl.u32 %v5867, 7
        %v5869 = vsub.s32 %v5866, %v5868
        %v5870 = vrot.slane %v5862, %v5869
        %v5872 = vunpack.c.l.s4 1983009808
        %v5873 = vunpack.c.0.s8 %v5872
        %v5874 = vlaneseq
        %v5875 = vshrl.u32 %v5874, 7
        %v5876 = vsub.s32 %v5873, %v5875
        %v5877 = vrot.slane %v5863, %v5876
        %v5878 = vcombine.low %v5854, %v5870
        %v5879 = vcombine.high %v5854, %v5870
        %v5881 = vunpack.c.l.s4 1934713408
        %v5882 = vunpack.c.0.s8 %v5881
        %v5883 = vlaneseq
        %v5884 = vshrl.u32 %v5883, 7
        %v5885 = vsub.s32 %v5882, %v5884
        %v5886 = vrot.slane %v5878, %v5885
        %v5888 = vunpack.c.l.s4 1934713408
        %v5889 = vunpack.c.0.s8 %v5888
        %v5890 = vlaneseq
        %v5891 = vshrl.u32 %v5890, 7
        %v5892 = vsub.s32 %v5889, %v5891
        %v5893 = vrot.slane %v5879, %v5892
        %v5894 = vcombine.low %v5861, %v5877
        %v5895 = vcombine.high %v5861, %v5877
        %v5897 = vunpack.c.l.s4 1934713408
        %v5898 = vunpack.c.0.s8 %v5897
        %v5899 = vlaneseq
        %v5900 = vshrl.u32 %v5899, 7
        %v5901 = vsub.s32 %v5898, %v5900
        %v5902 = vrot.slane %v5894, %v5901
        %v5904 = vunpack.c.l.s4 1934713408
        %v5905 = vunpack.c.0.s8 %v5904
        %v5906 = vlaneseq
        %v5907 = vshrl.u32 %v5906, 7
        %v5908 = vsub.s32 %v5905, %v5907
        %v5909 = vrot.slane %v5895, %v5908
        %v5910 = vcombine.high %v5886, 0.0
        %v5911 = vcombine.high %v5893, 0.0
        %v5912 = vcombine.high %v5902, 0.0
        %v5913 = vcombine.high %v5909, 0.0
        %v5914 = vcombine.low %v5735, %v5751
        %v5915 = vcombine.high %v5735, %v5751
        %v5917 = vunpack.c.l.s4 1983009808
        %v5918 = vunpack.c.0.s8 %v5917
        %v5919 = vlaneseq
        %v5920 = vshrl.u32 %v5919, 7
        %v5921 = vsub.s32 %v5918, %v5920
        %v5922 = vrot.slane %v5914, %v5921
        %v5924 = vunpack.c.l.s4 1983009808
        %v5925 = vunpack.c.0.s8 %v5924
        %v5926 = vlaneseq
        %v5927 = vshrl.u32 %v5926, 7
        %v5928 = vsub.s32 %v5925, %v5927
        %v5929 = vrot.slane %v5915, %v5928
        %v5930 = vcombine.low %v5743, %v5759
        %v5931 = vcombine.high %v5743, %v5759
        %v5933 = vunpack.c.l.s4 1983009808
        %v5934 = vunpack.c.0.s8 %v5933
        %v5935 = vlaneseq
        %v5936 = vshrl.u32 %v5935, 7
        %v5937 = vsub.s32 %v5934, %v5936
        %v5938 = vrot.slane %v5930, %v5937
        %v5940 = vunpack.c.l.s4 1983009808
        %v5941 = vunpack.c.0.s8 %v5940
        %v5942 = vlaneseq
        %v5943 = vshrl.u32 %v5942, 7
        %v5944 = vsub.s32 %v5941, %v5943
        %v5945 = vrot.slane %v5931, %v5944
        %v5946 = vcombine.low %v5922, %v5938
        %v5947 = vcombine.high %v5922, %v5938
        %v5949 = vunpack.c.l.s4 1934713408
        %v5950 = vunpack.c.0.s8 %v5949
        %v5951 = vlaneseq
        %v5952 = vshrl.u32 %v5951, 7
        %v5953 = vsub.s32 %v5950, %v5952
        %v5954 = vrot.slane %v5946, %v5953
        %v5956 = vunpack.c.l.s4 1934713408
        %v5957 = vunpack.c.0.s8 %v5956
        %v5958 = vlaneseq
        %v5959 = vshrl.u32 %v5958, 7
        %v5960 = vsub.s32 %v5957, %v5959
        %v5961 = vrot.slane %v5947, %v5960
        %v5962 = vcombine.low %v5929, %v5945
        %v5963 = vcombine.high %v5929, %v5945
        %v5965 = vunpack.c.l.s4 1934713408
        %v5966 = vunpack.c.0.s8 %v5965
        %v5967 = vlaneseq
        %v5968 = vshrl.u32 %v5967, 7
        %v5969 = vsub.s32 %v5966, %v5968
        %v5970 = vrot.slane %v5962, %v5969
        %v5972 = vunpack.c.l.s4 1934713408
        %v5973 = vunpack.c.0.s8 %v5972
        %v5974 = vlaneseq
        %v5975 = vshrl.u32 %v5974, 7
        %v5976 = vsub.s32 %v5973, %v5975
        %v5977 = vrot.slane %v5963, %v5976
        %v5978 = vcombine.high %v5954, 0.0
        %v5979 = vcombine.high %v5961, 0.0
        %v5980 = vcombine.high %v5970, 0.0
        %v5981 = vcombine.high %v5977, 0.0
        %v5982 = vcombine.low %v5737, %v5753
        %v5983 = vcombine.high %v5737, %v5753
        %v5985 = vunpack.c.l.s4 1983009808
        %v5986 = vunpack.c.0.s8 %v5985
        %v5987 = vlaneseq
        %v5988 = vshrl.u32 %v5987, 7
        %v5989 = vsub.s32 %v5986, %v5988
        %v5990 = vrot.slane %v5982, %v5989
        %v5992 = vunpack.c.l.s4 1983009808
        %v5993 = vunpack.c.0.s8 %v5992
        %v5994 = vlaneseq
        %v5995 = vshrl.u32 %v5994, 7
        %v5996 = vsub.s32 %v5993, %v5995
        %v5997 = vrot.slane %v5983, %v5996
        %v5998 = vcombine.low %v5745, %v5761
        %v5999 = vcombine.high %v5745, %v5761
        %v6001 = vunpack.c.l.s4 1983009808
        %v6002 = vunpack.c.0.s8 %v6001
        %v6003 = vlaneseq
        %v6004 = vshrl.u32 %v6003, 7
        %v6005 = vsub.s32 %v6002, %v6004
        %v6006 = vrot.slane %v5998, %v6005
        %v6008 = vunpack.c.l.s4 1983009808
        %v6009 = vunpack.c.0.s8 %v6008
        %v6010 = vlaneseq
        %v6011 = vshrl.u32 %v6010, 7
        %v6012 = vsub.s32 %v6009, %v6011
        %v6013 = vrot.slane %v5999, %v6012
        %v6014 = vcombine.low %v5990, %v6006
        %v6015 = vcombine.high %v5990, %v6006
        %v6017 = vunpack.c.l.s4 1934713408
        %v6018 = vunpack.c.0.s8 %v6017
        %v6019 = vlaneseq
        %v6020 = vshrl.u32 %v6019, 7
        %v6021 = vsub.s32 %v6018, %v6020
        %v6022 = vrot.slane %v6014, %v6021
        %v6024 = vunpack.c.l.s4 1934713408
        %v6025 = vunpack.c.0.s8 %v6024
        %v6026 = vlaneseq
        %v6027 = vshrl.u32 %v6026, 7
        %v6028 = vsub.s32 %v6025, %v6027
        %v6029 = vrot.slane %v6015, %v6028
        %v6030 = vcombine.low %v5997, %v6013
        %v6031 = vcombine.high %v5997, %v6013
        %v6033 = vunpack.c.l.s4 1934713408
        %v6034 = vunpack.c.0.s8 %v6033
        %v6035 = vlaneseq
        %v6036 = vshrl.u32 %v6035, 7
        %v6037 = vsub.s32 %v6034, %v6036
        %v6038 = vrot.slane %v6030, %v6037
        %v6040 = vunpack.c.l.s4 1934713408
        %v6041 = vunpack.c.0.s8 %v6040
        %v6042 = vlaneseq
        %v6043 = vshrl.u32 %v6042, 7
        %v6044 = vsub.s32 %v6041, %v6043
        %v6045 = vrot.slane %v6031, %v6044
        %v6046 = vcombine.high %v6022, 0.0
        %v6047 = vcombine.high %v6029, 0.0
        %v6048 = vcombine.high %v6038, 0.0
        %v6049 = vcombine.high %v6045, 0.0
        %v6050 = vcombine.low %v5818, %v5825
        %v6052 = vunpack.c.l.s4 1983009808
        %v6053 = vunpack.c.0.s8 %v6052
        %v6054 = vlaneseq
        %v6055 = vshrl.u32 %v6054, 7
        %v6056 = vsub.s32 %v6053, %v6055
        %v6057 = vrot.slane %v6050, %v6056
        %v6058 = vcombine.low %v5842, %v5843
        %v6060 = vunpack.c.l.s4 1983009808
        %v6061 = vunpack.c.0.s8 %v6060
        %v6062 = vlaneseq
        %v6063 = vshrl.u32 %v6062, 7
        %v6064 = vsub.s32 %v6061, %v6063
        %v6065 = vrot.slane %v6058, %v6064
        %v6066 = vcombine.low %v5834, %v5841
        %v6068 = vunpack.c.l.s4 1983009808
        %v6069 = vunpack.c.0.s8 %v6068
        %v6070 = vlaneseq
        %v6071 = vshrl.u32 %v6070, 7
        %v6072 = vsub.s32 %v6069, %v6071
        %v6073 = vrot.slane %v6066, %v6072
        %v6074 = vcombine.low %v5844, %v5845
        %v6076 = vunpack.c.l.s4 1983009808
        %v6077 = vunpack.c.0.s8 %v6076
        %v6078 = vlaneseq
        %v6079 = vshrl.u32 %v6078, 7
        %v6080 = vsub.s32 %v6077, %v6079
        %v6081 = vrot.slane %v6074, %v6080
        %v6082 = vcombine.low %v6057, %v6065
        %v6083 = vcombine.high %v6057, %v6065
        %v6085 = vunpack.c.l.s4 1934713408
        %v6086 = vunpack.c.0.s8 %v6085
        %v6087 = vlaneseq
        %v6088 = vshrl.u32 %v6087, 7
        %v6089 = vsub.s32 %v6086, %v6088
        %v6090 = vrot.slane %v6082, %v6089
        %v6092 = vunpack.c.l.s4 1934713408
        %v6093 = vunpack.c.0.s8 %v6092
        %v6094 = vlaneseq
        %v6095 = vshrl.u32 %v6094, 7
        %v6096 = vsub.s32 %v6093, %v6095
        %v6097 = vrot.slane %v6083, %v6096
        %v6098 = vcombine.low %v6073, %v6081
        %v6099 = vcombine.high %v6073, %v6081
        %v6101 = vunpack.c.l.s4 1934713408
        %v6102 = vunpack.c.0.s8 %v6101
        %v6103 = vlaneseq
        %v6104 = vshrl.u32 %v6103, 7
        %v6105 = vsub.s32 %v6102, %v6104
        %v6106 = vrot.slane %v6098, %v6105
        %v6108 = vunpack.c.l.s4 1934713408
        %v6109 = vunpack.c.0.s8 %v6108
        %v6110 = vlaneseq
        %v6111 = vshrl.u32 %v6110, 7
        %v6112 = vsub.s32 %v6109, %v6111
        %v6113 = vrot.slane %v6099, %v6112
        %v6114 = vcombine.low %v6090, %v6106
        %v6115 = vcombine.high %v6090, %v6106
        %v6116 = vcombine.low %v6097, %v6113
        %v6117 = vcombine.high %v6097, %v6113
        %v6118 = vcombine.low %v5886, %v5893
        %v6120 = vunpack.c.l.s4 1983009808
        %v6121 = vunpack.c.0.s8 %v6120
        %v6122 = vlaneseq
        %v6123 = vshrl.u32 %v6122, 7
        %v6124 = vsub.s32 %v6121, %v6123
        %v6125 = vrot.slane %v6118, %v6124
        %v6126 = vcombine.low %v5910, %v5911
        %v6128 = vunpack.c.l.s4 1983009808
        %v6129 = vunpack.c.0.s8 %v6128
        %v6130 = vlaneseq
        %v6131 = vshrl.u32 %v6130, 7
        %v6132 = vsub.s32 %v6129, %v6131
        %v6133 = vrot.slane %v6126, %v6132
        %v6134 = vcombine.low %v5902, %v5909
        %v6136 = vunpack.c.l.s4 1983009808
        %v6137 = vunpack.c.0.s8 %v6136
        %v6138 = vlaneseq
        %v6139 = vshrl.u32 %v6138, 7
        %v6140 = vsub.s32 %v6137, %v6139
        %v6141 = vrot.slane %v6134, %v6140
        %v6142 = vcombine.low %v5912, %v5913
        %v6144 = vunpack.c.l.s4 1983009808
        %v6145 = vunpack.c.0.s8 %v6144
        %v6146 = vlaneseq
        %v6147 = vshrl.u32 %v6146, 7
        %v6148 = vsub.s32 %v6145, %v6147
        %v6149 = vrot.slane %v6142, %v6148
        %v6150 = vcombine.low %v6125, %v6133
        %v6151 = vcombine.high %v6125, %v6133
        %v6153 = vunpack.c.l.s4 1934713408
        %v6154 = vunpack.c.0.s8 %v6153
        %v6155 = vlaneseq
        %v6156 = vshrl.u32 %v6155, 7
        %v6157 = vsub.s32 %v6154, %v6156
        %v6158 = vrot.slane %v6150, %v6157
        %v6160 = vunpack.c.l.s4 1934713408
        %v6161 = vunpack.c.0.s8 %v6160
        %v6162 = vlaneseq
        %v6163 = vshrl.u32 %v6162, 7
        %v6164 = vsub.s32 %v6161, %v6163
        %v6165 = vrot.slane %v6151, %v6164
        %v6166 = vcombine.low %v6141, %v6149
        %v6167 = vcombine.high %v6141, %v6149
        %v6169 = vunpack.c.l.s4 1934713408
        %v6170 = vunpack.c.0.s8 %v6169
        %v6171 = vlaneseq
        %v6172 = vshrl.u32 %v6171, 7
        %v6173 = vsub.s32 %v6170, %v6172
        %v6174 = vrot.slane %v6166, %v6173
        %v6176 = vunpack.c.l.s4 1934713408
        %v6177 = vunpack.c.0.s8 %v6176
        %v6178 = vlaneseq
        %v6179 = vshrl.u32 %v6178, 7
        %v6180 = vsub.s32 %v6177, %v6179
        %v6181 = vrot.slane %v6167, %v6180
        %v6182 = vcombine.low %v6158, %v6174
        %v6183 = vcombine.high %v6158, %v6174
        %v6184 = vcombine.low %v6165, %v6181
        %v6185 = vcombine.high %v6165, %v6181
        %v6186 = vcombine.low %v5954, %v5961
        %v6188 = vunpack.c.l.s4 1983009808
        %v6189 = vunpack.c.0.s8 %v6188
        %v6190 = vlaneseq
        %v6191 = vshrl.u32 %v6190, 7
        %v6192 = vsub.s32 %v6189, %v6191
        %v6193 = vrot.slane %v6186, %v6192
        %v6194 = vcombine.low %v5978, %v5979
        %v6196 = vunpack.c.l.s4 1983009808
        %v6197 = vunpack.c.0.s8 %v6196
        %v6198 = vlaneseq
        %v6199 = vshrl.u32 %v6198, 7
        %v6200 = vsub.s32 %v6197, %v6199
        %v6201 = vrot.slane %v6194, %v6200
        %v6202 = vcombine.low %v5970, %v5977
        %v6204 = vunpack.c.l.s4 1983009808
        %v6205 = vunpack.c.0.s8 %v6204
        %v6206 = vlaneseq
        %v6207 = vshrl.u32 %v6206, 7
        %v6208 = vsub.s32 %v6205, %v6207
        %v6209 = vrot.slane %v6202, %v6208
        %v6210 = vcombine.low %v5980, %v5981
        %v6212 = vunpack.c.l.s4 1983009808
        %v6213 = vunpack.c.0.s8 %v6212
        %v6214 = vlaneseq
        %v6215 = vshrl.u32 %v6214, 7
        %v6216 = vsub.s32 %v6213, %v6215
        %v6217 = vrot.slane %v6210, %v6216
        %v6218 = vcombine.low %v6193, %v6201
        %v6219 = vcombine.high %v6193, %v6201
        %v6221 = vunpack.c.l.s4 1934713408
        %v6222 = vunpack.c.0.s8 %v6221
        %v6223 = vlaneseq
        %v6224 = vshrl.u32 %v6223, 7
        %v6225 = vsub.s32 %v6222, %v6224
        %v6226 = vrot.slane %v6218, %v6225
        %v6228 = vunpack.c.l.s4 1934713408
        %v6229 = vunpack.c.0.s8 %v6228
        %v6230 = vlaneseq
        %v6231 = vshrl.u32 %v6230, 7
        %v6232 = vsub.s32 %v6229, %v6231
        %v6233 = vrot.slane %v6219, %v6232
        %v6234 = vcombine.low %v6209, %v6217
        %v6235 = vcombine.high %v6209, %v6217
        %v6237 = vunpack.c.l.s4 1934713408
        %v6238 = vunpack.c.0.s8 %v6237
        %v6239 = vlaneseq
        %v6240 = vshrl.u32 %v6239, 7
        %v6241 = vsub.s32 %v6238, %v6240
        %v6242 = vrot.slane %v6234, %v6241
        %v6244 = vunpack.c.l.s4 1934713408
        %v6245 = vunpack.c.0.s8 %v6244
        %v6246 = vlaneseq
        %v6247 = vshrl.u32 %v6246, 7
        %v6248 = vsub.s32 %v6245, %v6247
        %v6249 = vrot.slane %v6235, %v6248
        %v6250 = vcombine.low %v6226, %v6242
        %v6251 = vcombine.high %v6226, %v6242
        %v6252 = vcombine.low %v6233, %v6249
        %v6253 = vcombine.high %v6233, %v6249
        %v6254 = vcombine.low %v6022, %v6029
        %v6256 = vunpack.c.l.s4 1983009808
        %v6257 = vunpack.c.0.s8 %v6256
        %v6258 = vlaneseq
        %v6259 = vshrl.u32 %v6258, 7
        %v6260 = vsub.s32 %v6257, %v6259
        %v6261 = vrot.slane %v6254, %v6260
        %v6262 = vcombine.low %v6046, %v6047
        %v6264 = vunpack.c.l.s4 1983009808
        %v6265 = vunpack.c.0.s8 %v6264
        %v6266 = vlaneseq
        %v6267 = vshrl.u32 %v6266, 7
        %v6268 = vsub.s32 %v6265, %v6267
        %v6269 = vrot.slane %v6262, %v6268
        %v6270 = vcombine.low %v6038, %v6045
        %v6272 = vunpack.c.l.s4 1983009808
        %v6273 = vunpack.c.0.s8 %v6272
        %v6274 = vlaneseq
        %v6275 = vshrl.u32 %v6274, 7
        %v6276 = vsub.s32 %v6273, %v6275
        %v6277 = vrot.slane %v6270, %v6276
        %v6278 = vcombine.low %v6048, %v6049
        %v6280 = vunpack.c.l.s4 1983009808
        %v6281 = vunpack.c.0.s8 %v6280
        %v6282 = vlaneseq
        %v6283 = vshrl.u32 %v6282, 7
        %v6284 = vsub.s32 %v6281, %v6283
        %v6285 = vrot.slane %v6278, %v6284
        %v6286 = vcombine.low %v6261, %v6269
        %v6287 = vcombine.high %v6261, %v6269
        %v6289 = vunpack.c.l.s4 1934713408
        %v6290 = vunpack.c.0.s8 %v6289
        %v6291 = vlaneseq
        %v6292 = vshrl.u32 %v6291, 7
        %v6293 = vsub.s32 %v6290, %v6292
        %v6294 = vrot.slane %v6286, %v6293
        %v6296 = vunpack.c.l.s4 1934713408
        %v6297 = vunpack.c.0.s8 %v6296
        %v6298 = vlaneseq
        %v6299 = vshrl.u32 %v6298, 7
        %v6300 = vsub.s32 %v6297, %v6299
        %v6301 = vrot.slane %v6287, %v6300
        %v6302 = vcombine.low %v6277, %v6285
        %v6303 = vcombine.high %v6277, %v6285
        %v6305 = vunpack.c.l.s4 1934713408
        %v6306 = vunpack.c.0.s8 %v6305
        %v6307 = vlaneseq
        %v6308 = vshrl.u32 %v6307, 7
        %v6309 = vsub.s32 %v6306, %v6308
        %v6310 = vrot.slane %v6302, %v6309
        %v6312 = vunpack.c.l.s4 1934713408
        %v6313 = vunpack.c.0.s8 %v6312
        %v6314 = vlaneseq
        %v6315 = vshrl.u32 %v6314, 7
        %v6316 = vsub.s32 %v6313, %v6315
        %v6317 = vrot.slane %v6303, %v6316
        %v6318 = vcombine.low %v6294, %v6310
        %v6319 = vcombine.high %v6294, %v6310
        %v6320 = vcombine.low %v6301, %v6317
        %v6321 = vcombine.high %v6301, %v6317
        %v6322 = vpack.c.bf16 %v6182, %v6114
        %v6323 = vpack.c.bf16 %v6183, %v6115
        %v6324 = vpack.c.bf16 %v6184, %v6116
        %v6325 = vpack.c.bf16 %v6185, %v6117
        %v6326 = vpack.c.bf16 %v6318, %v6250
        %v6327 = vpack.c.bf16 %v6319, %v6251
        %v6328 = vpack.c.bf16 %v6320, %v6252
        %v6329 = vpack.c.bf16 %v6321, %v6253
        %v6331 = vsel %vm2478, %v5094, 0
        %v6334 = vsel %vm2478, %v5722, 0
        %6336 = vmatprep.subr.bf16.mxu0 0
        %6337 = vmatpush1.bf16.xpose.msra.mxu0 %v6334
        %6338 = vmatprep.subr.bf16.mxu0 0
        %6339 = vmatpush1.bf16.xpose.msra.mxu0 0
        %6340 = vmatprep.subr.bf16.mxu0 0
        %6341 = vmatpush1.bf16.xpose.msra.mxu0 0
        %6342 = vmatprep.subr.bf16.mxu0 0
        %6343 = vmatpush1.bf16.xpose.msra.mxu0 0
        %6344 = vmatprep.subr.bf16.mxu0 0
        %6345 = vmatpush1.bf16.xpose.msra.mxu0 0
        %6346 = vmatprep.subr.bf16.mxu0 0
        %6347 = vmatpush1.bf16.xpose.msra.mxu0 0
        %6348 = vmatprep.subr.bf16.mxu0 0
        %6349 = vmatpush1.bf16.xpose.msra.mxu0 0
        %6350 = vmatprep.subr.bf16.mxu0 0
        %6351 = vmatpush1.bf16.xpose.msra.mxu0 0
        %6352 = vmatprep.subr.bf16.mxu0 0
        %6353 = vmatpush1.bf16.xpose.msra.mxu0 0
        %6354 = vmatprep.subr.bf16.mxu0 0
        %6355 = vmatpush1.bf16.xpose.msra.mxu0 0
        %6356 = vmatprep.subr.bf16.mxu0 0
        %6357 = vmatpush1.bf16.xpose.msra.mxu0 0
        %6358 = vmatprep.subr.bf16.mxu0 0
        %6359 = vmatpush1.bf16.xpose.msra.mxu0 0
        %6360 = vmatprep.subr.bf16.mxu0 0
        %6361 = vmatpush1.bf16.xpose.msra.mxu0 0
        %6362 = vmatprep.subr.bf16.mxu0 0
        %6363 = vmatpush1.bf16.xpose.msra.mxu0 0
        %6364 = vmatprep.subr.bf16.mxu0 0
        %6365 = vmatpush1.bf16.xpose.msra.mxu0 0
        %6366 = vmatprep.subr.bf16.mxu0 0
        %6367 = vmatpush1.bf16.xpose.msra.mxu0 0
        %6368 = vmatprep.mubr.bf16.mxu0 0
        %6369 = vmatmul.mubr.bf16.gmra.mrb[0].mxu0 %v6331
        %v6370 = vpop.f32.mrb[0].mxu0
        %v6371 = vadd.f32 0.0, %v6370
        %v6372 = vpop.f32.mrb[0].mxu0
        %v6373 = vpop.f32.mrb[0].mxu0
        %v6374 = vadd.f32 0.0, %v6373
        %v6375 = vpop.f32.mrb[0].mxu0
        %6376 = vdwg.mxu0
        %v6378 = vsel %vm2478, %v5095, 0
        %v6381 = vsel %vm2478, %v5723, 0
        %6383 = vmatprep.subr.bf16.mxu0 0
        %6384 = vmatpush1.bf16.xpose.msra.mxu0 %v6381
        %6385 = vmatprep.subr.bf16.mxu0 0
        %6386 = vmatpush1.bf16.xpose.msra.mxu0 0
        %6387 = vmatprep.subr.bf16.mxu0 0
        %6388 = vmatpush1.bf16.xpose.msra.mxu0 0
        %6389 = vmatprep.subr.bf16.mxu0 0
        %6390 = vmatpush1.bf16.xpose.msra.mxu0 0
        %6391 = vmatprep.subr.bf16.mxu0 0
        %6392 = vmatpush1.bf16.xpose.msra.mxu0 0
        %6393 = vmatprep.subr.bf16.mxu0 0
        %6394 = vmatpush1.bf16.xpose.msra.mxu0 0
        %6395 = vmatprep.subr.bf16.mxu0 0
        %6396 = vmatpush1.bf16.xpose.msra.mxu0 0
        %6397 = vmatprep.subr.bf16.mxu0 0
        %6398 = vmatpush1.bf16.xpose.msra.mxu0 0
        %6399 = vmatprep.subr.bf16.mxu0 0
        %6400 = vmatpush1.bf16.xpose.msra.mxu0 0
        %6401 = vmatprep.subr.bf16.mxu0 0
        %6402 = vmatpush1.bf16.xpose.msra.mxu0 0
        %6403 = vmatprep.subr.bf16.mxu0 0
        %6404 = vmatpush1.bf16.xpose.msra.mxu0 0
        %6405 = vmatprep.subr.bf16.mxu0 0
        %6406 = vmatpush1.bf16.xpose.msra.mxu0 0
        %6407 = vmatprep.subr.bf16.mxu0 0
        %6408 = vmatpush1.bf16.xpose.msra.mxu0 0
        %6409 = vmatprep.subr.bf16.mxu0 0
        %6410 = vmatpush1.bf16.xpose.msra.mxu0 0
        %6411 = vmatprep.subr.bf16.mxu0 0
        %6412 = vmatpush1.bf16.xpose.msra.mxu0 0
        %6413 = vmatprep.subr.bf16.mxu0 0
        %6414 = vmatpush1.bf16.xpose.msra.mxu0 0
        %6415 = vmatprep.mubr.bf16.mxu0 0
        %6416 = vmatmul.mubr.bf16.gmra.mrb[0].mxu0 %v6378
        %v6417 = vpop.f32.mrb[0].mxu0
        %v6418 = vadd.f32 0.0, %v6417
        %v6419 = vpop.f32.mrb[0].mxu0
        %v6420 = vpop.f32.mrb[0].mxu0
        %v6421 = vadd.f32 0.0, %v6420
        %v6422 = vpop.f32.mrb[0].mxu0
        %6423 = vdwg.mxu0
        %v6425 = vsel %vm2478, %v5096, 0
        %v6428 = vsel %vm2478, %v5724, 0
        %6430 = vmatprep.subr.bf16.mxu0 0
        %6431 = vmatpush1.bf16.xpose.msra.mxu0 %v6428
        %6432 = vmatprep.subr.bf16.mxu0 0
        %6433 = vmatpush1.bf16.xpose.msra.mxu0 0
        %6434 = vmatprep.subr.bf16.mxu0 0
        %6435 = vmatpush1.bf16.xpose.msra.mxu0 0
        %6436 = vmatprep.subr.bf16.mxu0 0
        %6437 = vmatpush1.bf16.xpose.msra.mxu0 0
        %6438 = vmatprep.subr.bf16.mxu0 0
        %6439 = vmatpush1.bf16.xpose.msra.mxu0 0
        %6440 = vmatprep.subr.bf16.mxu0 0
        %6441 = vmatpush1.bf16.xpose.msra.mxu0 0
        %6442 = vmatprep.subr.bf16.mxu0 0
        %6443 = vmatpush1.bf16.xpose.msra.mxu0 0
        %6444 = vmatprep.subr.bf16.mxu0 0
        %6445 = vmatpush1.bf16.xpose.msra.mxu0 0
        %6446 = vmatprep.subr.bf16.mxu0 0
        %6447 = vmatpush1.bf16.xpose.msra.mxu0 0
        %6448 = vmatprep.subr.bf16.mxu0 0
        %6449 = vmatpush1.bf16.xpose.msra.mxu0 0
        %6450 = vmatprep.subr.bf16.mxu0 0
        %6451 = vmatpush1.bf16.xpose.msra.mxu0 0
        %6452 = vmatprep.subr.bf16.mxu0 0
        %6453 = vmatpush1.bf16.xpose.msra.mxu0 0
        %6454 = vmatprep.subr.bf16.mxu0 0
        %6455 = vmatpush1.bf16.xpose.msra.mxu0 0
        %6456 = vmatprep.subr.bf16.mxu0 0
        %6457 = vmatpush1.bf16.xpose.msra.mxu0 0
        %6458 = vmatprep.subr.bf16.mxu0 0
        %6459 = vmatpush1.bf16.xpose.msra.mxu0 0
        %6460 = vmatprep.subr.bf16.mxu0 0
        %6461 = vmatpush1.bf16.xpose.msra.mxu0 0
        %6462 = vmatprep.mubr.bf16.mxu0 0
        %6463 = vmatmul.mubr.bf16.gmra.mrb[0].mxu0 %v6425
        %v6464 = vpop.f32.mrb[0].mxu0
        %v6465 = vadd.f32 0.0, %v6464
        %v6466 = vpop.f32.mrb[0].mxu0
        %v6467 = vpop.f32.mrb[0].mxu0
        %v6468 = vadd.f32 0.0, %v6467
        %v6469 = vpop.f32.mrb[0].mxu0
        %6470 = vdwg.mxu0
        %v6472 = vsel %vm2478, %v5097, 0
        %v6475 = vsel %vm2478, %v5725, 0
        %6477 = vmatprep.subr.bf16.mxu0 0
        %6478 = vmatpush1.bf16.xpose.msra.mxu0 %v6475
        %6479 = vmatprep.subr.bf16.mxu0 0
        %6480 = vmatpush1.bf16.xpose.msra.mxu0 0
        %6481 = vmatprep.subr.bf16.mxu0 0
        %6482 = vmatpush1.bf16.xpose.msra.mxu0 0
        %6483 = vmatprep.subr.bf16.mxu0 0
        %6484 = vmatpush1.bf16.xpose.msra.mxu0 0
        %6485 = vmatprep.subr.bf16.mxu0 0
        %6486 = vmatpush1.bf16.xpose.msra.mxu0 0
        %6487 = vmatprep.subr.bf16.mxu0 0
        %6488 = vmatpush1.bf16.xpose.msra.mxu0 0
        %6489 = vmatprep.subr.bf16.mxu0 0
        %6490 = vmatpush1.bf16.xpose.msra.mxu0 0
        %6491 = vmatprep.subr.bf16.mxu0 0
        %6492 = vmatpush1.bf16.xpose.msra.mxu0 0
        %6493 = vmatprep.subr.bf16.mxu0 0
        %6494 = vmatpush1.bf16.xpose.msra.mxu0 0
        %6495 = vmatprep.subr.bf16.mxu0 0
        %6496 = vmatpush1.bf16.xpose.msra.mxu0 0
        %6497 = vmatprep.subr.bf16.mxu0 0
        %6498 = vmatpush1.bf16.xpose.msra.mxu0 0
        %6499 = vmatprep.subr.bf16.mxu0 0
        %6500 = vmatpush1.bf16.xpose.msra.mxu0 0
        %6501 = vmatprep.subr.bf16.mxu0 0
        %6502 = vmatpush1.bf16.xpose.msra.mxu0 0
        %6503 = vmatprep.subr.bf16.mxu0 0
        %6504 = vmatpush1.bf16.xpose.msra.mxu0 0
        %6505 = vmatprep.subr.bf16.mxu0 0
        %6506 = vmatpush1.bf16.xpose.msra.mxu0 0
        %6507 = vmatprep.subr.bf16.mxu0 0
        %6508 = vmatpush1.bf16.xpose.msra.mxu0 0
        %6509 = vmatprep.mubr.bf16.mxu0 0
        %6510 = vmatmul.mubr.bf16.gmra.mrb[0].mxu0 %v6472
        %v6511 = vpop.f32.mrb[0].mxu0
        %v6512 = vadd.f32 0.0, %v6511
        %v6513 = vpop.f32.mrb[0].mxu0
        %v6514 = vpop.f32.mrb[0].mxu0
        %v6515 = vadd.f32 0.0, %v6514
        %v6516 = vpop.f32.mrb[0].mxu0
        %6517 = vdwg.mxu0
        %v6519 = vsel %vm2478, %v5098, 0
        %v6522 = vsel %vm2478, %v5726, 0
        %6524 = vmatprep.subr.bf16.mxu0 0
        %6525 = vmatpush1.bf16.xpose.msra.mxu0 %v6522
        %6526 = vmatprep.subr.bf16.mxu0 0
        %6527 = vmatpush1.bf16.xpose.msra.mxu0 0
        %6528 = vmatprep.subr.bf16.mxu0 0
        %6529 = vmatpush1.bf16.xpose.msra.mxu0 0
        %6530 = vmatprep.subr.bf16.mxu0 0
        %6531 = vmatpush1.bf16.xpose.msra.mxu0 0
        %6532 = vmatprep.subr.bf16.mxu0 0
        %6533 = vmatpush1.bf16.xpose.msra.mxu0 0
        %6534 = vmatprep.subr.bf16.mxu0 0
        %6535 = vmatpush1.bf16.xpose.msra.mxu0 0
        %6536 = vmatprep.subr.bf16.mxu0 0
        %6537 = vmatpush1.bf16.xpose.msra.mxu0 0
        %6538 = vmatprep.subr.bf16.mxu0 0
        %6539 = vmatpush1.bf16.xpose.msra.mxu0 0
        %6540 = vmatprep.subr.bf16.mxu0 0
        %6541 = vmatpush1.bf16.xpose.msra.mxu0 0
        %6542 = vmatprep.subr.bf16.mxu0 0
        %6543 = vmatpush1.bf16.xpose.msra.mxu0 0
        %6544 = vmatprep.subr.bf16.mxu0 0
        %6545 = vmatpush1.bf16.xpose.msra.mxu0 0
        %6546 = vmatprep.subr.bf16.mxu0 0
        %6547 = vmatpush1.bf16.xpose.msra.mxu0 0
        %6548 = vmatprep.subr.bf16.mxu0 0
        %6549 = vmatpush1.bf16.xpose.msra.mxu0 0
        %6550 = vmatprep.subr.bf16.mxu0 0
        %6551 = vmatpush1.bf16.xpose.msra.mxu0 0
        %6552 = vmatprep.subr.bf16.mxu0 0
        %6553 = vmatpush1.bf16.xpose.msra.mxu0 0
        %6554 = vmatprep.subr.bf16.mxu0 0
        %6555 = vmatpush1.bf16.xpose.msra.mxu0 0
        %6556 = vmatprep.mubr.bf16.mxu0 0
        %6557 = vmatmul.mubr.bf16.gmra.mrb[0].mxu0 %v6519
        %v6558 = vpop.f32.mrb[0].mxu0
        %v6559 = vadd.f32 0.0, %v6558
        %v6560 = vpop.f32.mrb[0].mxu0
        %v6561 = vpop.f32.mrb[0].mxu0
        %v6562 = vadd.f32 0.0, %v6561
        %v6563 = vpop.f32.mrb[0].mxu0
        %6564 = vdwg.mxu0
        %v6566 = vsel %vm2478, %v5099, 0
        %v6569 = vsel %vm2478, %v5727, 0
        %6571 = vmatprep.subr.bf16.mxu0 0
        %6572 = vmatpush1.bf16.xpose.msra.mxu0 %v6569
        %6573 = vmatprep.subr.bf16.mxu0 0
        %6574 = vmatpush1.bf16.xpose.msra.mxu0 0
        %6575 = vmatprep.subr.bf16.mxu0 0
        %6576 = vmatpush1.bf16.xpose.msra.mxu0 0
        %6577 = vmatprep.subr.bf16.mxu0 0
        %6578 = vmatpush1.bf16.xpose.msra.mxu0 0
        %6579 = vmatprep.subr.bf16.mxu0 0
        %6580 = vmatpush1.bf16.xpose.msra.mxu0 0
        %6581 = vmatprep.subr.bf16.mxu0 0
        %6582 = vmatpush1.bf16.xpose.msra.mxu0 0
        %6583 = vmatprep.subr.bf16.mxu0 0
        %6584 = vmatpush1.bf16.xpose.msra.mxu0 0
        %6585 = vmatprep.subr.bf16.mxu0 0
        %6586 = vmatpush1.bf16.xpose.msra.mxu0 0
        %6587 = vmatprep.subr.bf16.mxu0 0
        %6588 = vmatpush1.bf16.xpose.msra.mxu0 0
        %6589 = vmatprep.subr.bf16.mxu0 0
        %6590 = vmatpush1.bf16.xpose.msra.mxu0 0
        %6591 = vmatprep.subr.bf16.mxu0 0
        %6592 = vmatpush1.bf16.xpose.msra.mxu0 0
        %6593 = vmatprep.subr.bf16.mxu0 0
        %6594 = vmatpush1.bf16.xpose.msra.mxu0 0
        %6595 = vmatprep.subr.bf16.mxu0 0
        %6596 = vmatpush1.bf16.xpose.msra.mxu0 0
        %6597 = vmatprep.subr.bf16.mxu0 0
        %6598 = vmatpush1.bf16.xpose.msra.mxu0 0
        %6599 = vmatprep.subr.bf16.mxu0 0
        %6600 = vmatpush1.bf16.xpose.msra.mxu0 0
        %6601 = vmatprep.subr.bf16.mxu0 0
        %6602 = vmatpush1.bf16.xpose.msra.mxu0 0
        %6603 = vmatprep.mubr.bf16.mxu0 0
        %6604 = vmatmul.mubr.bf16.gmra.mrb[0].mxu0 %v6566
        %v6605 = vpop.f32.mrb[0].mxu0
        %v6606 = vadd.f32 0.0, %v6605
        %v6607 = vpop.f32.mrb[0].mxu0
        %v6608 = vpop.f32.mrb[0].mxu0
        %v6609 = vadd.f32 0.0, %v6608
        %v6610 = vpop.f32.mrb[0].mxu0
        %6611 = vdwg.mxu0
        %v6613 = vsel %vm2478, %v5100, 0
        %v6616 = vsel %vm2478, %v5728, 0
        %6618 = vmatprep.subr.bf16.mxu0 0
        %6619 = vmatpush1.bf16.xpose.msra.mxu0 %v6616
        %6620 = vmatprep.subr.bf16.mxu0 0
        %6621 = vmatpush1.bf16.xpose.msra.mxu0 0
        %6622 = vmatprep.subr.bf16.mxu0 0
        %6623 = vmatpush1.bf16.xpose.msra.mxu0 0
        %6624 = vmatprep.subr.bf16.mxu0 0
        %6625 = vmatpush1.bf16.xpose.msra.mxu0 0
        %6626 = vmatprep.subr.bf16.mxu0 0
        %6627 = vmatpush1.bf16.xpose.msra.mxu0 0
        %6628 = vmatprep.subr.bf16.mxu0 0
        %6629 = vmatpush1.bf16.xpose.msra.mxu0 0
        %6630 = vmatprep.subr.bf16.mxu0 0
        %6631 = vmatpush1.bf16.xpose.msra.mxu0 0
        %6632 = vmatprep.subr.bf16.mxu0 0
        %6633 = vmatpush1.bf16.xpose.msra.mxu0 0
        %6634 = vmatprep.subr.bf16.mxu0 0
        %6635 = vmatpush1.bf16.xpose.msra.mxu0 0
        %6636 = vmatprep.subr.bf16.mxu0 0
        %6637 = vmatpush1.bf16.xpose.msra.mxu0 0
        %6638 = vmatprep.subr.bf16.mxu0 0
        %6639 = vmatpush1.bf16.xpose.msra.mxu0 0
        %6640 = vmatprep.subr.bf16.mxu0 0
        %6641 = vmatpush1.bf16.xpose.msra.mxu0 0
        %6642 = vmatprep.subr.bf16.mxu0 0
        %6643 = vmatpush1.bf16.xpose.msra.mxu0 0
        %6644 = vmatprep.subr.bf16.mxu0 0
        %6645 = vmatpush1.bf16.xpose.msra.mxu0 0
        %6646 = vmatprep.subr.bf16.mxu0 0
        %6647 = vmatpush1.bf16.xpose.msra.mxu0 0
        %6648 = vmatprep.subr.bf16.mxu0 0
        %6649 = vmatpush1.bf16.xpose.msra.mxu0 0
        %6650 = vmatprep.mubr.bf16.mxu0 0
        %6651 = vmatmul.mubr.bf16.gmra.mrb[0].mxu0 %v6613
        %v6652 = vpop.f32.mrb[0].mxu0
        %v6653 = vadd.f32 0.0, %v6652
        %v6654 = vpop.f32.mrb[0].mxu0
        %v6655 = vpop.f32.mrb[0].mxu0
        %v6656 = vadd.f32 0.0, %v6655
        %v6657 = vpop.f32.mrb[0].mxu0
        %6658 = vdwg.mxu0
        %v6660 = vsel %vm2478, %v5101, 0
        %v6663 = vsel %vm2478, %v5729, 0
        %6665 = vmatprep.subr.bf16.mxu0 0
        %6666 = vmatpush1.bf16.xpose.msra.mxu0 %v6663
        %6667 = vmatprep.subr.bf16.mxu0 0
        %6668 = vmatpush1.bf16.xpose.msra.mxu0 0
        %6669 = vmatprep.subr.bf16.mxu0 0
        %6670 = vmatpush1.bf16.xpose.msra.mxu0 0
        %6671 = vmatprep.subr.bf16.mxu0 0
        %6672 = vmatpush1.bf16.xpose.msra.mxu0 0
        %6673 = vmatprep.subr.bf16.mxu0 0
        %6674 = vmatpush1.bf16.xpose.msra.mxu0 0
        %6675 = vmatprep.subr.bf16.mxu0 0
        %6676 = vmatpush1.bf16.xpose.msra.mxu0 0
        %6677 = vmatprep.subr.bf16.mxu0 0
        %6678 = vmatpush1.bf16.xpose.msra.mxu0 0
        %6679 = vmatprep.subr.bf16.mxu0 0
        %6680 = vmatpush1.bf16.xpose.msra.mxu0 0
        %6681 = vmatprep.subr.bf16.mxu0 0
        %6682 = vmatpush1.bf16.xpose.msra.mxu0 0
        %6683 = vmatprep.subr.bf16.mxu0 0
        %6684 = vmatpush1.bf16.xpose.msra.mxu0 0
        %6685 = vmatprep.subr.bf16.mxu0 0
        %6686 = vmatpush1.bf16.xpose.msra.mxu0 0
        %6687 = vmatprep.subr.bf16.mxu0 0
        %6688 = vmatpush1.bf16.xpose.msra.mxu0 0
        %6689 = vmatprep.subr.bf16.mxu0 0
        %6690 = vmatpush1.bf16.xpose.msra.mxu0 0
        %6691 = vmatprep.subr.bf16.mxu0 0
        %6692 = vmatpush1.bf16.xpose.msra.mxu0 0
        %6693 = vmatprep.subr.bf16.mxu0 0
        %6694 = vmatpush1.bf16.xpose.msra.mxu0 0
        %6695 = vmatprep.subr.bf16.mxu0 0
        %6696 = vmatpush1.bf16.xpose.msra.mxu0 0
        %6697 = vmatprep.mubr.bf16.mxu0 0
        %6698 = vmatmul.mubr.bf16.gmra.mrb[0].mxu0 %v6660
        %v6699 = vpop.f32.mrb[0].mxu0
        %v6700 = vadd.f32 0.0, %v6699
        %v6701 = vpop.f32.mrb[0].mxu0
        %v6702 = vpop.f32.mrb[0].mxu0
        %v6703 = vadd.f32 0.0, %v6702
        %v6704 = vpop.f32.mrb[0].mxu0
        %6705 = vdwg.mxu0
        %v6706 = vadd.f32 %v6371, %v2858
        %v6707 = vadd.f32 %v6374, %v2858
        %v6708 = vadd.f32 %v6418, %v2858
        %v6709 = vadd.f32 %v6421, %v2858
        %v6710 = vadd.f32 %v6465, %v2858
        %v6711 = vadd.f32 %v6468, %v2858
        %v6712 = vadd.f32 %v6512, %v2858
        %v6713 = vadd.f32 %v6515, %v2858
        %v6714 = vadd.f32 %v6559, %v2862
        %v6715 = vadd.f32 %v6562, %v2862
        %v6716 = vadd.f32 %v6606, %v2862
        %v6717 = vadd.f32 %v6609, %v2862
        %v6718 = vadd.f32 %v6653, %v2862
        %v6719 = vadd.f32 %v6656, %v2862
        %v6720 = vadd.f32 %v6700, %v2862
        %v6721 = vadd.f32 %v6703, %v2862
        %v6722 = vsel %vm2881, %v6706, -inf
        %6723 = vmax.xlane.f32.xlu0 %v6722
        %v6724 = vpop.xlane.xlu0 %6723
        %v6725 = vsel %vm2881, %v6707, -inf
        %6726 = vmax.xlane.f32.xlu0 %v6725
        %v6727 = vpop.xlane.xlu0 %6726
        %v6728 = vsel %vm2881, %v6708, -inf
        %6729 = vmax.xlane.f32.xlu0 %v6728
        %v6730 = vpop.xlane.xlu0 %6729
        %v6731 = vsel %vm2881, %v6709, -inf
        %6732 = vmax.xlane.f32.xlu0 %v6731
        %v6733 = vpop.xlane.xlu0 %6732
        %v6734 = vsel %vm2881, %v6710, -inf
        %6735 = vmax.xlane.f32.xlu0 %v6734
        %v6736 = vpop.xlane.xlu0 %6735
        %v6737 = vsel %vm2881, %v6711, -inf
        %6738 = vmax.xlane.f32.xlu0 %v6737
        %v6739 = vpop.xlane.xlu0 %6738
        %v6740 = vsel %vm2881, %v6712, -inf
        %6741 = vmax.xlane.f32.xlu0 %v6740
        %v6742 = vpop.xlane.xlu0 %6741
        %v6743 = vsel %vm2881, %v6713, -inf
        %6744 = vmax.xlane.f32.xlu0 %v6743
        %v6745 = vpop.xlane.xlu0 %6744
        %v6746 = vsel %vm2881, %v6714, -inf
        %6747 = vmax.xlane.f32.xlu0 %v6746
        %v6748 = vpop.xlane.xlu0 %6747
        %v6749 = vsel %vm2881, %v6715, -inf
        %6750 = vmax.xlane.f32.xlu0 %v6749
        %v6751 = vpop.xlane.xlu0 %6750
        %v6752 = vsel %vm2881, %v6716, -inf
        %6753 = vmax.xlane.f32.xlu0 %v6752
        %v6754 = vpop.xlane.xlu0 %6753
        %v6755 = vsel %vm2881, %v6717, -inf
        %6756 = vmax.xlane.f32.xlu0 %v6755
        %v6757 = vpop.xlane.xlu0 %6756
        %v6758 = vsel %vm2881, %v6718, -inf
        %6759 = vmax.xlane.f32.xlu0 %v6758
        %v6760 = vpop.xlane.xlu0 %6759
        %v6761 = vsel %vm2881, %v6719, -inf
        %6762 = vmax.xlane.f32.xlu0 %v6761
        %v6763 = vpop.xlane.xlu0 %6762
        %v6764 = vsel %vm2881, %v6720, -inf
        %6765 = vmax.xlane.f32.xlu0 %v6764
        %v6766 = vpop.xlane.xlu0 %6765
        %v6767 = vsel %vm2881, %v6721, -inf
        %6768 = vmax.xlane.f32.xlu0 %v6767
        %v6769 = vpop.xlane.xlu0 %6768
        %v6770 = vsub.f32 %v6706, %v6724
        %v6771 = vsub.f32 %v6707, %v6727
        %v6772 = vsub.f32 %v6708, %v6730
        %v6773 = vsub.f32 %v6709, %v6733
        %v6774 = vsub.f32 %v6710, %v6736
        %v6775 = vsub.f32 %v6711, %v6739
        %v6776 = vsub.f32 %v6712, %v6742
        %v6777 = vsub.f32 %v6713, %v6745
        %v6778 = vsub.f32 %v6714, %v6748
        %v6779 = vsub.f32 %v6715, %v6751
        %v6780 = vsub.f32 %v6716, %v6754
        %v6781 = vsub.f32 %v6717, %v6757
        %v6782 = vsub.f32 %v6718, %v6760
        %v6783 = vsub.f32 %v6719, %v6763
        %v6784 = vsub.f32 %v6720, %v6766
        %v6785 = vsub.f32 %v6721, %v6769
        %v6786 = vmul.f32 %v6770, 1.442695
        %v6787 = vpow.pop %v6786
        %v6788 = vmul.f32 %v6771, 1.442695
        %v6789 = vpow.pop %v6788
        %v6790 = vmul.f32 %v6772, 1.442695
        %v6791 = vpow.pop %v6790
        %v6792 = vmul.f32 %v6773, 1.442695
        %v6793 = vpow.pop %v6792
        %v6794 = vmul.f32 %v6774, 1.442695
        %v6795 = vpow.pop %v6794
        %v6796 = vmul.f32 %v6775, 1.442695
        %v6797 = vpow.pop %v6796
        %v6798 = vmul.f32 %v6776, 1.442695
        %v6799 = vpow.pop %v6798
        %v6800 = vmul.f32 %v6777, 1.442695
        %v6801 = vpow.pop %v6800
        %v6802 = vmul.f32 %v6778, 1.442695
        %v6803 = vpow.pop %v6802
        %v6804 = vmul.f32 %v6779, 1.442695
        %v6805 = vpow.pop %v6804
        %v6806 = vmul.f32 %v6780, 1.442695
        %v6807 = vpow.pop %v6806
        %v6808 = vmul.f32 %v6781, 1.442695
        %v6809 = vpow.pop %v6808
        %v6810 = vmul.f32 %v6782, 1.442695
        %v6811 = vpow.pop %v6810
        %v6812 = vmul.f32 %v6783, 1.442695
        %v6813 = vpow.pop %v6812
        %v6814 = vmul.f32 %v6784, 1.442695
        %v6815 = vpow.pop %v6814
        %v6816 = vmul.f32 %v6785, 1.442695
        %v6817 = vpow.pop %v6816
        %v6818 = vsel %vm2881, %v6787, 0.0
        %6819 = vadd.xlane.f32.xlu0 %v6818
        %v6820 = vpop.xlane.xlu0 %6819
        %v6821 = vsel %vm2881, %v6789, 0.0
        %6822 = vadd.xlane.f32.xlu0 %v6821
        %v6823 = vpop.xlane.xlu0 %6822
        %v6824 = vsel %vm2881, %v6791, 0.0
        %6825 = vadd.xlane.f32.xlu0 %v6824
        %v6826 = vpop.xlane.xlu0 %6825
        %v6827 = vsel %vm2881, %v6793, 0.0
        %6828 = vadd.xlane.f32.xlu0 %v6827
        %v6829 = vpop.xlane.xlu0 %6828
        %v6830 = vsel %vm2881, %v6795, 0.0
        %6831 = vadd.xlane.f32.xlu0 %v6830
        %v6832 = vpop.xlane.xlu0 %6831
        %v6833 = vsel %vm2881, %v6797, 0.0
        %6834 = vadd.xlane.f32.xlu0 %v6833
        %v6835 = vpop.xlane.xlu0 %6834
        %v6836 = vsel %vm2881, %v6799, 0.0
        %6837 = vadd.xlane.f32.xlu0 %v6836
        %v6838 = vpop.xlane.xlu0 %6837
        %v6839 = vsel %vm2881, %v6801, 0.0
        %6840 = vadd.xlane.f32.xlu0 %v6839
        %v6841 = vpop.xlane.xlu0 %6840
        %v6842 = vsel %vm2881, %v6803, 0.0
        %6843 = vadd.xlane.f32.xlu0 %v6842
        %v6844 = vpop.xlane.xlu0 %6843
        %v6845 = vsel %vm2881, %v6805, 0.0
        %6846 = vadd.xlane.f32.xlu0 %v6845
        %v6847 = vpop.xlane.xlu0 %6846
        %v6848 = vsel %vm2881, %v6807, 0.0
        %6849 = vadd.xlane.f32.xlu0 %v6848
        %v6850 = vpop.xlane.xlu0 %6849
        %v6851 = vsel %vm2881, %v6809, 0.0
        %6852 = vadd.xlane.f32.xlu0 %v6851
        %v6853 = vpop.xlane.xlu0 %6852
        %v6854 = vsel %vm2881, %v6811, 0.0
        %6855 = vadd.xlane.f32.xlu0 %v6854
        %v6856 = vpop.xlane.xlu0 %6855
        %v6857 = vsel %vm2881, %v6813, 0.0
        %6858 = vadd.xlane.f32.xlu0 %v6857
        %v6859 = vpop.xlane.xlu0 %6858
        %v6860 = vsel %vm2881, %v6815, 0.0
        %6861 = vadd.xlane.f32.xlu0 %v6860
        %v6862 = vpop.xlane.xlu0 %6861
        %v6863 = vsel %vm2881, %v6817, 0.0
        %6864 = vadd.xlane.f32.xlu0 %v6863
        %v6865 = vpop.xlane.xlu0 %6864
        %v6866 = vrcp.pop %v6820
        %v6867 = vrcp.pop %v6823
        %v6868 = vrcp.pop %v6826
        %v6869 = vrcp.pop %v6829
        %v6870 = vrcp.pop %v6832
        %v6871 = vrcp.pop %v6835
        %v6872 = vrcp.pop %v6838
        %v6873 = vrcp.pop %v6841
        %v6874 = vrcp.pop %v6844
        %v6875 = vrcp.pop %v6847
        %v6876 = vrcp.pop %v6850
        %v6877 = vrcp.pop %v6853
        %v6878 = vrcp.pop %v6856
        %v6879 = vrcp.pop %v6859
        %v6880 = vrcp.pop %v6862
        %v6881 = vrcp.pop %v6865
        %v6882 = vmul.f32 %v6787, %v6866
        %v6883 = vmul.f32 %v6789, %v6867
        %v6884 = vmul.f32 %v6791, %v6868
        %v6885 = vmul.f32 %v6793, %v6869
        %v6886 = vmul.f32 %v6795, %v6870
        %v6887 = vmul.f32 %v6797, %v6871
        %v6888 = vmul.f32 %v6799, %v6872
        %v6889 = vmul.f32 %v6801, %v6873
        %v6890 = vmul.f32 %v6803, %v6874
        %v6891 = vmul.f32 %v6805, %v6875
        %v6892 = vmul.f32 %v6807, %v6876
        %v6893 = vmul.f32 %v6809, %v6877
        %v6894 = vmul.f32 %v6811, %v6878
        %v6895 = vmul.f32 %v6813, %v6879
        %v6896 = vmul.f32 %v6815, %v6880
        %v6897 = vmul.f32 %v6817, %v6881
        %v6898 = vpack.c.bf16 %v6883, %v6882
        %v6899 = vpack.c.bf16 %v6885, %v6884
        %v6900 = vpack.c.bf16 %v6887, %v6886
        %v6901 = vpack.c.bf16 %v6889, %v6888
        %v6902 = vpack.c.bf16 %v6891, %v6890
        %v6903 = vpack.c.bf16 %v6893, %v6892
        %v6904 = vpack.c.bf16 %v6895, %v6894
        %v6905 = vpack.c.bf16 %v6897, %v6896
        %v6907 = vsel %vm2881, %v6898, 0
        %6909 = vmatprep.subr.bf16.mxu0 0
        %6910 = vmatpush1.bf16.msra.mxu0 %v6322
        %6911 = vmatprep.subr.bf16.mxu0 0
        %6912 = vmatpush1.bf16.msra.mxu0 0
        %6913 = vmatprep.subr.bf16.mxu0 0
        %6914 = vmatpush1.bf16.msra.mxu0 0
        %6915 = vmatprep.subr.bf16.mxu0 0
        %6916 = vmatpush1.bf16.msra.mxu0 0
        %6917 = vmatprep.subr.bf16.mxu0 0
        %6918 = vmatpush1.bf16.msra.mxu0 0
        %6919 = vmatprep.subr.bf16.mxu0 0
        %6920 = vmatpush1.bf16.msra.mxu0 0
        %6921 = vmatprep.subr.bf16.mxu0 0
        %6922 = vmatpush1.bf16.msra.mxu0 0
        %6923 = vmatprep.subr.bf16.mxu0 0
        %6924 = vmatpush1.bf16.msra.mxu0 0
        %6925 = vmatprep.subr.bf16.mxu0 0
        %6926 = vmatpush1.bf16.msra.mxu0 0
        %6927 = vmatprep.subr.bf16.mxu0 0
        %6928 = vmatpush1.bf16.msra.mxu0 0
        %6929 = vmatprep.subr.bf16.mxu0 0
        %6930 = vmatpush1.bf16.msra.mxu0 0
        %6931 = vmatprep.subr.bf16.mxu0 0
        %6932 = vmatpush1.bf16.msra.mxu0 0
        %6933 = vmatprep.subr.bf16.mxu0 0
        %6934 = vmatpush1.bf16.msra.mxu0 0
        %6935 = vmatprep.subr.bf16.mxu0 0
        %6936 = vmatpush1.bf16.msra.mxu0 0
        %6937 = vmatprep.subr.bf16.mxu0 0
        %6938 = vmatpush1.bf16.msra.mxu0 0
        %6939 = vmatprep.subr.bf16.mxu0 0
        %6940 = vmatpush1.bf16.msra.mxu0 0
        %6941 = vmatprep.mubr.bf16.mxu0 0
        %6942 = vmatmul.mubr.bf16.gmra.mrb[0].mxu0 %v6907
        %v6943 = vpop.f32.mrb[0].mxu0
        %v6944 = vadd.f32 0.0, %v6943
        %v6945 = vpop.f32.mrb[0].mxu0
        %v6946 = vpop.f32.mrb[0].mxu0
        %v6947 = vadd.f32 0.0, %v6946
        %v6948 = vpop.f32.mrb[0].mxu0
        %6949 = vdwg.mxu0
        %v6951 = vsel %vm2881, %v6899, 0
        %6953 = vmatprep.subr.bf16.mxu0 0
        %6954 = vmatpush1.bf16.msra.mxu0 %v6323
        %6955 = vmatprep.subr.bf16.mxu0 0
        %6956 = vmatpush1.bf16.msra.mxu0 0
        %6957 = vmatprep.subr.bf16.mxu0 0
        %6958 = vmatpush1.bf16.msra.mxu0 0
        %6959 = vmatprep.subr.bf16.mxu0 0
        %6960 = vmatpush1.bf16.msra.mxu0 0
        %6961 = vmatprep.subr.bf16.mxu0 0
        %6962 = vmatpush1.bf16.msra.mxu0 0
        %6963 = vmatprep.subr.bf16.mxu0 0
        %6964 = vmatpush1.bf16.msra.mxu0 0
        %6965 = vmatprep.subr.bf16.mxu0 0
        %6966 = vmatpush1.bf16.msra.mxu0 0
        %6967 = vmatprep.subr.bf16.mxu0 0
        %6968 = vmatpush1.bf16.msra.mxu0 0
        %6969 = vmatprep.subr.bf16.mxu0 0
        %6970 = vmatpush1.bf16.msra.mxu0 0
        %6971 = vmatprep.subr.bf16.mxu0 0
        %6972 = vmatpush1.bf16.msra.mxu0 0
        %6973 = vmatprep.subr.bf16.mxu0 0
        %6974 = vmatpush1.bf16.msra.mxu0 0
        %6975 = vmatprep.subr.bf16.mxu0 0
        %6976 = vmatpush1.bf16.msra.mxu0 0
        %6977 = vmatprep.subr.bf16.mxu0 0
        %6978 = vmatpush1.bf16.msra.mxu0 0
        %6979 = vmatprep.subr.bf16.mxu0 0
        %6980 = vmatpush1.bf16.msra.mxu0 0
        %6981 = vmatprep.subr.bf16.mxu0 0
        %6982 = vmatpush1.bf16.msra.mxu0 0
        %6983 = vmatprep.subr.bf16.mxu0 0
        %6984 = vmatpush1.bf16.msra.mxu0 0
        %6985 = vmatprep.mubr.bf16.mxu0 0
        %6986 = vmatmul.mubr.bf16.gmra.mrb[0].mxu0 %v6951
        %v6987 = vpop.f32.mrb[0].mxu0
        %v6988 = vadd.f32 0.0, %v6987
        %v6989 = vpop.f32.mrb[0].mxu0
        %v6990 = vpop.f32.mrb[0].mxu0
        %v6991 = vadd.f32 0.0, %v6990
        %v6992 = vpop.f32.mrb[0].mxu0
        %6993 = vdwg.mxu0
        %v6995 = vsel %vm2881, %v6900, 0
        %6997 = vmatprep.subr.bf16.mxu0 0
        %6998 = vmatpush1.bf16.msra.mxu0 %v6324
        %6999 = vmatprep.subr.bf16.mxu0 0
        %7000 = vmatpush1.bf16.msra.mxu0 0
        %7001 = vmatprep.subr.bf16.mxu0 0
        %7002 = vmatpush1.bf16.msra.mxu0 0
        %7003 = vmatprep.subr.bf16.mxu0 0
        %7004 = vmatpush1.bf16.msra.mxu0 0
        %7005 = vmatprep.subr.bf16.mxu0 0
        %7006 = vmatpush1.bf16.msra.mxu0 0
        %7007 = vmatprep.subr.bf16.mxu0 0
        %7008 = vmatpush1.bf16.msra.mxu0 0
        %7009 = vmatprep.subr.bf16.mxu0 0
        %7010 = vmatpush1.bf16.msra.mxu0 0
        %7011 = vmatprep.subr.bf16.mxu0 0
        %7012 = vmatpush1.bf16.msra.mxu0 0
        %7013 = vmatprep.subr.bf16.mxu0 0
        %7014 = vmatpush1.bf16.msra.mxu0 0
        %7015 = vmatprep.subr.bf16.mxu0 0
        %7016 = vmatpush1.bf16.msra.mxu0 0
        %7017 = vmatprep.subr.bf16.mxu0 0
        %7018 = vmatpush1.bf16.msra.mxu0 0
        %7019 = vmatprep.subr.bf16.mxu0 0
        %7020 = vmatpush1.bf16.msra.mxu0 0
        %7021 = vmatprep.subr.bf16.mxu0 0
        %7022 = vmatpush1.bf16.msra.mxu0 0
        %7023 = vmatprep.subr.bf16.mxu0 0
        %7024 = vmatpush1.bf16.msra.mxu0 0
        %7025 = vmatprep.subr.bf16.mxu0 0
        %7026 = vmatpush1.bf16.msra.mxu0 0
        %7027 = vmatprep.subr.bf16.mxu0 0
        %7028 = vmatpush1.bf16.msra.mxu0 0
        %7029 = vmatprep.mubr.bf16.mxu0 0
        %7030 = vmatmul.mubr.bf16.gmra.mrb[0].mxu0 %v6995
        %v7031 = vpop.f32.mrb[0].mxu0
        %v7032 = vadd.f32 0.0, %v7031
        %v7033 = vpop.f32.mrb[0].mxu0
        %v7034 = vpop.f32.mrb[0].mxu0
        %v7035 = vadd.f32 0.0, %v7034
        %v7036 = vpop.f32.mrb[0].mxu0
        %7037 = vdwg.mxu0
        %v7039 = vsel %vm2881, %v6901, 0
        %7041 = vmatprep.subr.bf16.mxu0 0
        %7042 = vmatpush1.bf16.msra.mxu0 %v6325
        %7043 = vmatprep.subr.bf16.mxu0 0
        %7044 = vmatpush1.bf16.msra.mxu0 0
        %7045 = vmatprep.subr.bf16.mxu0 0
        %7046 = vmatpush1.bf16.msra.mxu0 0
        %7047 = vmatprep.subr.bf16.mxu0 0
        %7048 = vmatpush1.bf16.msra.mxu0 0
        %7049 = vmatprep.subr.bf16.mxu0 0
        %7050 = vmatpush1.bf16.msra.mxu0 0
        %7051 = vmatprep.subr.bf16.mxu0 0
        %7052 = vmatpush1.bf16.msra.mxu0 0
        %7053 = vmatprep.subr.bf16.mxu0 0
        %7054 = vmatpush1.bf16.msra.mxu0 0
        %7055 = vmatprep.subr.bf16.mxu0 0
        %7056 = vmatpush1.bf16.msra.mxu0 0
        %7057 = vmatprep.subr.bf16.mxu0 0
        %7058 = vmatpush1.bf16.msra.mxu0 0
        %7059 = vmatprep.subr.bf16.mxu0 0
        %7060 = vmatpush1.bf16.msra.mxu0 0
        %7061 = vmatprep.subr.bf16.mxu0 0
        %7062 = vmatpush1.bf16.msra.mxu0 0
        %7063 = vmatprep.subr.bf16.mxu0 0
        %7064 = vmatpush1.bf16.msra.mxu0 0
        %7065 = vmatprep.subr.bf16.mxu0 0
        %7066 = vmatpush1.bf16.msra.mxu0 0
        %7067 = vmatprep.subr.bf16.mxu0 0
        %7068 = vmatpush1.bf16.msra.mxu0 0
        %7069 = vmatprep.subr.bf16.mxu0 0
        %7070 = vmatpush1.bf16.msra.mxu0 0
        %7071 = vmatprep.subr.bf16.mxu0 0
        %7072 = vmatpush1.bf16.msra.mxu0 0
        %7073 = vmatprep.mubr.bf16.mxu0 0
        %7074 = vmatmul.mubr.bf16.gmra.mrb[0].mxu0 %v7039
        %v7075 = vpop.f32.mrb[0].mxu0
        %v7076 = vadd.f32 0.0, %v7075
        %v7077 = vpop.f32.mrb[0].mxu0
        %v7078 = vpop.f32.mrb[0].mxu0
        %v7079 = vadd.f32 0.0, %v7078
        %v7080 = vpop.f32.mrb[0].mxu0
        %7081 = vdwg.mxu0
        %v7083 = vsel %vm2881, %v6902, 0
        %7085 = vmatprep.subr.bf16.mxu0 0
        %7086 = vmatpush1.bf16.msra.mxu0 %v6326
        %7087 = vmatprep.subr.bf16.mxu0 0
        %7088 = vmatpush1.bf16.msra.mxu0 0
        %7089 = vmatprep.subr.bf16.mxu0 0
        %7090 = vmatpush1.bf16.msra.mxu0 0
        %7091 = vmatprep.subr.bf16.mxu0 0
        %7092 = vmatpush1.bf16.msra.mxu0 0
        %7093 = vmatprep.subr.bf16.mxu0 0
        %7094 = vmatpush1.bf16.msra.mxu0 0
        %7095 = vmatprep.subr.bf16.mxu0 0
        %7096 = vmatpush1.bf16.msra.mxu0 0
        %7097 = vmatprep.subr.bf16.mxu0 0
        %7098 = vmatpush1.bf16.msra.mxu0 0
        %7099 = vmatprep.subr.bf16.mxu0 0
        %7100 = vmatpush1.bf16.msra.mxu0 0
        %7101 = vmatprep.subr.bf16.mxu0 0
        %7102 = vmatpush1.bf16.msra.mxu0 0
        %7103 = vmatprep.subr.bf16.mxu0 0
        %7104 = vmatpush1.bf16.msra.mxu0 0
        %7105 = vmatprep.subr.bf16.mxu0 0
        %7106 = vmatpush1.bf16.msra.mxu0 0
        %7107 = vmatprep.subr.bf16.mxu0 0
        %7108 = vmatpush1.bf16.msra.mxu0 0
        %7109 = vmatprep.subr.bf16.mxu0 0
        %7110 = vmatpush1.bf16.msra.mxu0 0
        %7111 = vmatprep.subr.bf16.mxu0 0
        %7112 = vmatpush1.bf16.msra.mxu0 0
        %7113 = vmatprep.subr.bf16.mxu0 0
        %7114 = vmatpush1.bf16.msra.mxu0 0
        %7115 = vmatprep.subr.bf16.mxu0 0
        %7116 = vmatpush1.bf16.msra.mxu0 0
        %7117 = vmatprep.mubr.bf16.mxu0 0
        %7118 = vmatmul.mubr.bf16.gmra.mrb[0].mxu0 %v7083
        %v7119 = vpop.f32.mrb[0].mxu0
        %v7120 = vadd.f32 0.0, %v7119
        %v7121 = vpop.f32.mrb[0].mxu0
        %v7122 = vpop.f32.mrb[0].mxu0
        %v7123 = vadd.f32 0.0, %v7122
        %v7124 = vpop.f32.mrb[0].mxu0
        %7125 = vdwg.mxu0
        %v7127 = vsel %vm2881, %v6903, 0
        %7129 = vmatprep.subr.bf16.mxu0 0
        %7130 = vmatpush1.bf16.msra.mxu0 %v6327
        %7131 = vmatprep.subr.bf16.mxu0 0
        %7132 = vmatpush1.bf16.msra.mxu0 0
        %7133 = vmatprep.subr.bf16.mxu0 0
        %7134 = vmatpush1.bf16.msra.mxu0 0
        %7135 = vmatprep.subr.bf16.mxu0 0
        %7136 = vmatpush1.bf16.msra.mxu0 0
        %7137 = vmatprep.subr.bf16.mxu0 0
        %7138 = vmatpush1.bf16.msra.mxu0 0
        %7139 = vmatprep.subr.bf16.mxu0 0
        %7140 = vmatpush1.bf16.msra.mxu0 0
        %7141 = vmatprep.subr.bf16.mxu0 0
        %7142 = vmatpush1.bf16.msra.mxu0 0
        %7143 = vmatprep.subr.bf16.mxu0 0
        %7144 = vmatpush1.bf16.msra.mxu0 0
        %7145 = vmatprep.subr.bf16.mxu0 0
        %7146 = vmatpush1.bf16.msra.mxu0 0
        %7147 = vmatprep.subr.bf16.mxu0 0
        %7148 = vmatpush1.bf16.msra.mxu0 0
        %7149 = vmatprep.subr.bf16.mxu0 0
        %7150 = vmatpush1.bf16.msra.mxu0 0
        %7151 = vmatprep.subr.bf16.mxu0 0
        %7152 = vmatpush1.bf16.msra.mxu0 0
        %7153 = vmatprep.subr.bf16.mxu0 0
        %7154 = vmatpush1.bf16.msra.mxu0 0
        %7155 = vmatprep.subr.bf16.mxu0 0
        %7156 = vmatpush1.bf16.msra.mxu0 0
        %7157 = vmatprep.subr.bf16.mxu0 0
        %7158 = vmatpush1.bf16.msra.mxu0 0
        %7159 = vmatprep.subr.bf16.mxu0 0
        %7160 = vmatpush1.bf16.msra.mxu0 0
        %7161 = vmatprep.mubr.bf16.mxu0 0
        %7162 = vmatmul.mubr.bf16.gmra.mrb[0].mxu0 %v7127
        %v7163 = vpop.f32.mrb[0].mxu0
        %v7164 = vadd.f32 0.0, %v7163
        %v7165 = vpop.f32.mrb[0].mxu0
        %v7166 = vpop.f32.mrb[0].mxu0
        %v7167 = vadd.f32 0.0, %v7166
        %v7168 = vpop.f32.mrb[0].mxu0
        %7169 = vdwg.mxu0
        %v7171 = vsel %vm2881, %v6904, 0
        %7173 = vmatprep.subr.bf16.mxu0 0
        %7174 = vmatpush1.bf16.msra.mxu0 %v6328
        %7175 = vmatprep.subr.bf16.mxu0 0
        %7176 = vmatpush1.bf16.msra.mxu0 0
        %7177 = vmatprep.subr.bf16.mxu0 0
        %7178 = vmatpush1.bf16.msra.mxu0 0
        %7179 = vmatprep.subr.bf16.mxu0 0
        %7180 = vmatpush1.bf16.msra.mxu0 0
        %7181 = vmatprep.subr.bf16.mxu0 0
        %7182 = vmatpush1.bf16.msra.mxu0 0
        %7183 = vmatprep.subr.bf16.mxu0 0
        %7184 = vmatpush1.bf16.msra.mxu0 0
        %7185 = vmatprep.subr.bf16.mxu0 0
        %7186 = vmatpush1.bf16.msra.mxu0 0
        %7187 = vmatprep.subr.bf16.mxu0 0
        %7188 = vmatpush1.bf16.msra.mxu0 0
        %7189 = vmatprep.subr.bf16.mxu0 0
        %7190 = vmatpush1.bf16.msra.mxu0 0
        %7191 = vmatprep.subr.bf16.mxu0 0
        %7192 = vmatpush1.bf16.msra.mxu0 0
        %7193 = vmatprep.subr.bf16.mxu0 0
        %7194 = vmatpush1.bf16.msra.mxu0 0
        %7195 = vmatprep.subr.bf16.mxu0 0
        %7196 = vmatpush1.bf16.msra.mxu0 0
        %7197 = vmatprep.subr.bf16.mxu0 0
        %7198 = vmatpush1.bf16.msra.mxu0 0
        %7199 = vmatprep.subr.bf16.mxu0 0
        %7200 = vmatpush1.bf16.msra.mxu0 0
        %7201 = vmatprep.subr.bf16.mxu0 0
        %7202 = vmatpush1.bf16.msra.mxu0 0
        %7203 = vmatprep.subr.bf16.mxu0 0
        %7204 = vmatpush1.bf16.msra.mxu0 0
        %7205 = vmatprep.mubr.bf16.mxu0 0
        %7206 = vmatmul.mubr.bf16.gmra.mrb[0].mxu0 %v7171
        %v7207 = vpop.f32.mrb[0].mxu0
        %v7208 = vadd.f32 0.0, %v7207
        %v7209 = vpop.f32.mrb[0].mxu0
        %v7210 = vpop.f32.mrb[0].mxu0
        %v7211 = vadd.f32 0.0, %v7210
        %v7212 = vpop.f32.mrb[0].mxu0
        %7213 = vdwg.mxu0
        %v7215 = vsel %vm2881, %v6905, 0
        %7217 = vmatprep.subr.bf16.mxu0 0
        %7218 = vmatpush1.bf16.msra.mxu0 %v6329
        %7219 = vmatprep.subr.bf16.mxu0 0
        %7220 = vmatpush1.bf16.msra.mxu0 0
        %7221 = vmatprep.subr.bf16.mxu0 0
        %7222 = vmatpush1.bf16.msra.mxu0 0
        %7223 = vmatprep.subr.bf16.mxu0 0
        %7224 = vmatpush1.bf16.msra.mxu0 0
        %7225 = vmatprep.subr.bf16.mxu0 0
        %7226 = vmatpush1.bf16.msra.mxu0 0
        %7227 = vmatprep.subr.bf16.mxu0 0
        %7228 = vmatpush1.bf16.msra.mxu0 0
        %7229 = vmatprep.subr.bf16.mxu0 0
        %7230 = vmatpush1.bf16.msra.mxu0 0
        %7231 = vmatprep.subr.bf16.mxu0 0
        %7232 = vmatpush1.bf16.msra.mxu0 0
        %7233 = vmatprep.subr.bf16.mxu0 0
        %7234 = vmatpush1.bf16.msra.mxu0 0
        %7235 = vmatprep.subr.bf16.mxu0 0
        %7236 = vmatpush1.bf16.msra.mxu0 0
        %7237 = vmatprep.subr.bf16.mxu0 0
        %7238 = vmatpush1.bf16.msra.mxu0 0
        %7239 = vmatprep.subr.bf16.mxu0 0
        %7240 = vmatpush1.bf16.msra.mxu0 0
        %7241 = vmatprep.subr.bf16.mxu0 0
        %7242 = vmatpush1.bf16.msra.mxu0 0
        %7243 = vmatprep.subr.bf16.mxu0 0
        %7244 = vmatpush1.bf16.msra.mxu0 0
        %7245 = vmatprep.subr.bf16.mxu0 0
        %7246 = vmatpush1.bf16.msra.mxu0 0
        %7247 = vmatprep.subr.bf16.mxu0 0
        %7248 = vmatpush1.bf16.msra.mxu0 0
        %7249 = vmatprep.mubr.bf16.mxu0 0
        %7250 = vmatmul.mubr.bf16.gmra.mrb[0].mxu0 %v7215
        %v7251 = vpop.f32.mrb[0].mxu0
        %v7252 = vadd.f32 0.0, %v7251
        %v7253 = vpop.f32.mrb[0].mxu0
        %v7254 = vpop.f32.mrb[0].mxu0
        %v7255 = vadd.f32 0.0, %v7254
        %v7256 = vpop.f32.mrb[0].mxu0
        %7257 = vdwg.mxu0
        %v7258 = vcombine.low %v6944, %v7032
        %v7259 = vcombine.high %v6944, %v7032
        %v7261 = vunpack.c.l.s4 1983009808
        %v7262 = vunpack.c.0.s8 %v7261
        %v7263 = vlaneseq
        %v7264 = vshrl.u32 %v7263, 7
        %v7265 = vsub.s32 %v7262, %v7264
        %v7266 = vrot.slane %v7258, %v7265
        %v7268 = vunpack.c.l.s4 1983009808
        %v7269 = vunpack.c.0.s8 %v7268
        %v7270 = vlaneseq
        %v7271 = vshrl.u32 %v7270, 7
        %v7272 = vsub.s32 %v7269, %v7271
        %v7273 = vrot.slane %v7259, %v7272
        %v7274 = vcombine.low %v6988, %v7076
        %v7275 = vcombine.high %v6988, %v7076
        %v7277 = vunpack.c.l.s4 1983009808
        %v7278 = vunpack.c.0.s8 %v7277
        %v7279 = vlaneseq
        %v7280 = vshrl.u32 %v7279, 7
        %v7281 = vsub.s32 %v7278, %v7280
        %v7282 = vrot.slane %v7274, %v7281
        %v7284 = vunpack.c.l.s4 1983009808
        %v7285 = vunpack.c.0.s8 %v7284
        %v7286 = vlaneseq
        %v7287 = vshrl.u32 %v7286, 7
        %v7288 = vsub.s32 %v7285, %v7287
        %v7289 = vrot.slane %v7275, %v7288
        %v7290 = vcombine.low %v7266, %v7282
        %v7291 = vcombine.high %v7266, %v7282
        %v7293 = vunpack.c.l.s4 1934713408
        %v7294 = vunpack.c.0.s8 %v7293
        %v7295 = vlaneseq
        %v7296 = vshrl.u32 %v7295, 7
        %v7297 = vsub.s32 %v7294, %v7296
        %v7298 = vrot.slane %v7290, %v7297
        %v7300 = vunpack.c.l.s4 1934713408
        %v7301 = vunpack.c.0.s8 %v7300
        %v7302 = vlaneseq
        %v7303 = vshrl.u32 %v7302, 7
        %v7304 = vsub.s32 %v7301, %v7303
        %v7305 = vrot.slane %v7291, %v7304
        %v7306 = vcombine.low %v7273, %v7289
        %v7307 = vcombine.high %v7273, %v7289
        %v7309 = vunpack.c.l.s4 1934713408
        %v7310 = vunpack.c.0.s8 %v7309
        %v7311 = vlaneseq
        %v7312 = vshrl.u32 %v7311, 7
        %v7313 = vsub.s32 %v7310, %v7312
        %v7314 = vrot.slane %v7306, %v7313
        %v7316 = vunpack.c.l.s4 1934713408
        %v7317 = vunpack.c.0.s8 %v7316
        %v7318 = vlaneseq
        %v7319 = vshrl.u32 %v7318, 7
        %v7320 = vsub.s32 %v7317, %v7319
        %v7321 = vrot.slane %v7307, %v7320
        %v7322 = vcombine.high %v7298, 0.0
        %v7323 = vcombine.high %v7305, 0.0
        %v7324 = vcombine.high %v7314, 0.0
        %v7325 = vcombine.high %v7321, 0.0
        %v7326 = vcombine.low %v6947, %v7035
        %v7327 = vcombine.high %v6947, %v7035
        %v7329 = vunpack.c.l.s4 1983009808
        %v7330 = vunpack.c.0.s8 %v7329
        %v7331 = vlaneseq
        %v7332 = vshrl.u32 %v7331, 7
        %v7333 = vsub.s32 %v7330, %v7332
        %v7334 = vrot.slane %v7326, %v7333
        %v7336 = vunpack.c.l.s4 1983009808
        %v7337 = vunpack.c.0.s8 %v7336
        %v7338 = vlaneseq
        %v7339 = vshrl.u32 %v7338, 7
        %v7340 = vsub.s32 %v7337, %v7339
        %v7341 = vrot.slane %v7327, %v7340
        %v7342 = vcombine.low %v6991, %v7079
        %v7343 = vcombine.high %v6991, %v7079
        %v7345 = vunpack.c.l.s4 1983009808
        %v7346 = vunpack.c.0.s8 %v7345
        %v7347 = vlaneseq
        %v7348 = vshrl.u32 %v7347, 7
        %v7349 = vsub.s32 %v7346, %v7348
        %v7350 = vrot.slane %v7342, %v7349
        %v7352 = vunpack.c.l.s4 1983009808
        %v7353 = vunpack.c.0.s8 %v7352
        %v7354 = vlaneseq
        %v7355 = vshrl.u32 %v7354, 7
        %v7356 = vsub.s32 %v7353, %v7355
        %v7357 = vrot.slane %v7343, %v7356
        %v7358 = vcombine.low %v7334, %v7350
        %v7359 = vcombine.high %v7334, %v7350
        %v7361 = vunpack.c.l.s4 1934713408
        %v7362 = vunpack.c.0.s8 %v7361
        %v7363 = vlaneseq
        %v7364 = vshrl.u32 %v7363, 7
        %v7365 = vsub.s32 %v7362, %v7364
        %v7366 = vrot.slane %v7358, %v7365
        %v7368 = vunpack.c.l.s4 1934713408
        %v7369 = vunpack.c.0.s8 %v7368
        %v7370 = vlaneseq
        %v7371 = vshrl.u32 %v7370, 7
        %v7372 = vsub.s32 %v7369, %v7371
        %v7373 = vrot.slane %v7359, %v7372
        %v7374 = vcombine.low %v7341, %v7357
        %v7375 = vcombine.high %v7341, %v7357
        %v7377 = vunpack.c.l.s4 1934713408
        %v7378 = vunpack.c.0.s8 %v7377
        %v7379 = vlaneseq
        %v7380 = vshrl.u32 %v7379, 7
        %v7381 = vsub.s32 %v7378, %v7380
        %v7382 = vrot.slane %v7374, %v7381
        %v7384 = vunpack.c.l.s4 1934713408
        %v7385 = vunpack.c.0.s8 %v7384
        %v7386 = vlaneseq
        %v7387 = vshrl.u32 %v7386, 7
        %v7388 = vsub.s32 %v7385, %v7387
        %v7389 = vrot.slane %v7375, %v7388
        %v7390 = vcombine.high %v7366, 0.0
        %v7391 = vcombine.high %v7373, 0.0
        %v7392 = vcombine.high %v7382, 0.0
        %v7393 = vcombine.high %v7389, 0.0
        %v7394 = vcombine.low %v7120, %v7208
        %v7395 = vcombine.high %v7120, %v7208
        %v7397 = vunpack.c.l.s4 1983009808
        %v7398 = vunpack.c.0.s8 %v7397
        %v7399 = vlaneseq
        %v7400 = vshrl.u32 %v7399, 7
        %v7401 = vsub.s32 %v7398, %v7400
        %v7402 = vrot.slane %v7394, %v7401
        %v7404 = vunpack.c.l.s4 1983009808
        %v7405 = vunpack.c.0.s8 %v7404
        %v7406 = vlaneseq
        %v7407 = vshrl.u32 %v7406, 7
        %v7408 = vsub.s32 %v7405, %v7407
        %v7409 = vrot.slane %v7395, %v7408
        %v7410 = vcombine.low %v7164, %v7252
        %v7411 = vcombine.high %v7164, %v7252
        %v7413 = vunpack.c.l.s4 1983009808
        %v7414 = vunpack.c.0.s8 %v7413
        %v7415 = vlaneseq
        %v7416 = vshrl.u32 %v7415, 7
        %v7417 = vsub.s32 %v7414, %v7416
        %v7418 = vrot.slane %v7410, %v7417
        %v7420 = vunpack.c.l.s4 1983009808
        %v7421 = vunpack.c.0.s8 %v7420
        %v7422 = vlaneseq
        %v7423 = vshrl.u32 %v7422, 7
        %v7424 = vsub.s32 %v7421, %v7423
        %v7425 = vrot.slane %v7411, %v7424
        %v7426 = vcombine.low %v7402, %v7418
        %v7427 = vcombine.high %v7402, %v7418
        %v7429 = vunpack.c.l.s4 1934713408
        %v7430 = vunpack.c.0.s8 %v7429
        %v7431 = vlaneseq
        %v7432 = vshrl.u32 %v7431, 7
        %v7433 = vsub.s32 %v7430, %v7432
        %v7434 = vrot.slane %v7426, %v7433
        %v7436 = vunpack.c.l.s4 1934713408
        %v7437 = vunpack.c.0.s8 %v7436
        %v7438 = vlaneseq
        %v7439 = vshrl.u32 %v7438, 7
        %v7440 = vsub.s32 %v7437, %v7439
        %v7441 = vrot.slane %v7427, %v7440
        %v7442 = vcombine.low %v7409, %v7425
        %v7443 = vcombine.high %v7409, %v7425
        %v7445 = vunpack.c.l.s4 1934713408
        %v7446 = vunpack.c.0.s8 %v7445
        %v7447 = vlaneseq
        %v7448 = vshrl.u32 %v7447, 7
        %v7449 = vsub.s32 %v7446, %v7448
        %v7450 = vrot.slane %v7442, %v7449
        %v7452 = vunpack.c.l.s4 1934713408
        %v7453 = vunpack.c.0.s8 %v7452
        %v7454 = vlaneseq
        %v7455 = vshrl.u32 %v7454, 7
        %v7456 = vsub.s32 %v7453, %v7455
        %v7457 = vrot.slane %v7443, %v7456
        %v7458 = vcombine.high %v7434, 0.0
        %v7459 = vcombine.high %v7441, 0.0
        %v7460 = vcombine.high %v7450, 0.0
        %v7461 = vcombine.high %v7457, 0.0
        %v7462 = vcombine.low %v7123, %v7211
        %v7463 = vcombine.high %v7123, %v7211
        %v7465 = vunpack.c.l.s4 1983009808
        %v7466 = vunpack.c.0.s8 %v7465
        %v7467 = vlaneseq
        %v7468 = vshrl.u32 %v7467, 7
        %v7469 = vsub.s32 %v7466, %v7468
        %v7470 = vrot.slane %v7462, %v7469
        %v7472 = vunpack.c.l.s4 1983009808
        %v7473 = vunpack.c.0.s8 %v7472
        %v7474 = vlaneseq
        %v7475 = vshrl.u32 %v7474, 7
        %v7476 = vsub.s32 %v7473, %v7475
        %v7477 = vrot.slane %v7463, %v7476
        %v7478 = vcombine.low %v7167, %v7255
        %v7479 = vcombine.high %v7167, %v7255
        %v7481 = vunpack.c.l.s4 1983009808
        %v7482 = vunpack.c.0.s8 %v7481
        %v7483 = vlaneseq
        %v7484 = vshrl.u32 %v7483, 7
        %v7485 = vsub.s32 %v7482, %v7484
        %v7486 = vrot.slane %v7478, %v7485
        %v7488 = vunpack.c.l.s4 1983009808
        %v7489 = vunpack.c.0.s8 %v7488
        %v7490 = vlaneseq
        %v7491 = vshrl.u32 %v7490, 7
        %v7492 = vsub.s32 %v7489, %v7491
        %v7493 = vrot.slane %v7479, %v7492
        %v7494 = vcombine.low %v7470, %v7486
        %v7495 = vcombine.high %v7470, %v7486
        %v7497 = vunpack.c.l.s4 1934713408
        %v7498 = vunpack.c.0.s8 %v7497
        %v7499 = vlaneseq
        %v7500 = vshrl.u32 %v7499, 7
        %v7501 = vsub.s32 %v7498, %v7500
        %v7502 = vrot.slane %v7494, %v7501
        %v7504 = vunpack.c.l.s4 1934713408
        %v7505 = vunpack.c.0.s8 %v7504
        %v7506 = vlaneseq
        %v7507 = vshrl.u32 %v7506, 7
        %v7508 = vsub.s32 %v7505, %v7507
        %v7509 = vrot.slane %v7495, %v7508
        %v7510 = vcombine.low %v7477, %v7493
        %v7511 = vcombine.high %v7477, %v7493
        %v7513 = vunpack.c.l.s4 1934713408
        %v7514 = vunpack.c.0.s8 %v7513
        %v7515 = vlaneseq
        %v7516 = vshrl.u32 %v7515, 7
        %v7517 = vsub.s32 %v7514, %v7516
        %v7518 = vrot.slane %v7510, %v7517
        %v7520 = vunpack.c.l.s4 1934713408
        %v7521 = vunpack.c.0.s8 %v7520
        %v7522 = vlaneseq
        %v7523 = vshrl.u32 %v7522, 7
        %v7524 = vsub.s32 %v7521, %v7523
        %v7525 = vrot.slane %v7511, %v7524
        %v7526 = vcombine.high %v7502, 0.0
        %v7527 = vcombine.high %v7509, 0.0
        %v7528 = vcombine.high %v7518, 0.0
        %v7529 = vcombine.high %v7525, 0.0
        %v7530 = vcombine.low %v7298, %v7305
        %v7532 = vunpack.c.l.s4 1983009808
        %v7533 = vunpack.c.0.s8 %v7532
        %v7534 = vlaneseq
        %v7535 = vshrl.u32 %v7534, 7
        %v7536 = vsub.s32 %v7533, %v7535
        %v7537 = vrot.slane %v7530, %v7536
        %v7538 = vcombine.low %v7322, %v7323
        %v7540 = vunpack.c.l.s4 1983009808
        %v7541 = vunpack.c.0.s8 %v7540
        %v7542 = vlaneseq
        %v7543 = vshrl.u32 %v7542, 7
        %v7544 = vsub.s32 %v7541, %v7543
        %v7545 = vrot.slane %v7538, %v7544
        %v7546 = vcombine.low %v7314, %v7321
        %v7548 = vunpack.c.l.s4 1983009808
        %v7549 = vunpack.c.0.s8 %v7548
        %v7550 = vlaneseq
        %v7551 = vshrl.u32 %v7550, 7
        %v7552 = vsub.s32 %v7549, %v7551
        %v7553 = vrot.slane %v7546, %v7552
        %v7554 = vcombine.low %v7324, %v7325
        %v7556 = vunpack.c.l.s4 1983009808
        %v7557 = vunpack.c.0.s8 %v7556
        %v7558 = vlaneseq
        %v7559 = vshrl.u32 %v7558, 7
        %v7560 = vsub.s32 %v7557, %v7559
        %v7561 = vrot.slane %v7554, %v7560
        %v7562 = vcombine.low %v7537, %v7545
        %v7563 = vcombine.high %v7537, %v7545
        %v7565 = vunpack.c.l.s4 1934713408
        %v7566 = vunpack.c.0.s8 %v7565
        %v7567 = vlaneseq
        %v7568 = vshrl.u32 %v7567, 7
        %v7569 = vsub.s32 %v7566, %v7568
        %v7570 = vrot.slane %v7562, %v7569
        %v7572 = vunpack.c.l.s4 1934713408
        %v7573 = vunpack.c.0.s8 %v7572
        %v7574 = vlaneseq
        %v7575 = vshrl.u32 %v7574, 7
        %v7576 = vsub.s32 %v7573, %v7575
        %v7577 = vrot.slane %v7563, %v7576
        %v7578 = vcombine.low %v7553, %v7561
        %v7579 = vcombine.high %v7553, %v7561
        %v7581 = vunpack.c.l.s4 1934713408
        %v7582 = vunpack.c.0.s8 %v7581
        %v7583 = vlaneseq
        %v7584 = vshrl.u32 %v7583, 7
        %v7585 = vsub.s32 %v7582, %v7584
        %v7586 = vrot.slane %v7578, %v7585
        %v7588 = vunpack.c.l.s4 1934713408
        %v7589 = vunpack.c.0.s8 %v7588
        %v7590 = vlaneseq
        %v7591 = vshrl.u32 %v7590, 7
        %v7592 = vsub.s32 %v7589, %v7591
        %v7593 = vrot.slane %v7579, %v7592
        %v7594 = vcombine.low %v7570, %v7586
        %v7595 = vcombine.high %v7570, %v7586
        %v7596 = vcombine.low %v7577, %v7593
        %v7597 = vcombine.high %v7577, %v7593
        %v7598 = vcombine.low %v7366, %v7373
        %v7600 = vunpack.c.l.s4 1983009808
        %v7601 = vunpack.c.0.s8 %v7600
        %v7602 = vlaneseq
        %v7603 = vshrl.u32 %v7602, 7
        %v7604 = vsub.s32 %v7601, %v7603
        %v7605 = vrot.slane %v7598, %v7604
        %v7606 = vcombine.low %v7390, %v7391
        %v7608 = vunpack.c.l.s4 1983009808
        %v7609 = vunpack.c.0.s8 %v7608
        %v7610 = vlaneseq
        %v7611 = vshrl.u32 %v7610, 7
        %v7612 = vsub.s32 %v7609, %v7611
        %v7613 = vrot.slane %v7606, %v7612
        %v7614 = vcombine.low %v7382, %v7389
        %v7616 = vunpack.c.l.s4 1983009808
        %v7617 = vunpack.c.0.s8 %v7616
        %v7618 = vlaneseq
        %v7619 = vshrl.u32 %v7618, 7
        %v7620 = vsub.s32 %v7617, %v7619
        %v7621 = vrot.slane %v7614, %v7620
        %v7622 = vcombine.low %v7392, %v7393
        %v7624 = vunpack.c.l.s4 1983009808
        %v7625 = vunpack.c.0.s8 %v7624
        %v7626 = vlaneseq
        %v7627 = vshrl.u32 %v7626, 7
        %v7628 = vsub.s32 %v7625, %v7627
        %v7629 = vrot.slane %v7622, %v7628
        %v7630 = vcombine.low %v7605, %v7613
        %v7631 = vcombine.high %v7605, %v7613
        %v7633 = vunpack.c.l.s4 1934713408
        %v7634 = vunpack.c.0.s8 %v7633
        %v7635 = vlaneseq
        %v7636 = vshrl.u32 %v7635, 7
        %v7637 = vsub.s32 %v7634, %v7636
        %v7638 = vrot.slane %v7630, %v7637
        %v7640 = vunpack.c.l.s4 1934713408
        %v7641 = vunpack.c.0.s8 %v7640
        %v7642 = vlaneseq
        %v7643 = vshrl.u32 %v7642, 7
        %v7644 = vsub.s32 %v7641, %v7643
        %v7645 = vrot.slane %v7631, %v7644
        %v7646 = vcombine.low %v7621, %v7629
        %v7647 = vcombine.high %v7621, %v7629
        %v7649 = vunpack.c.l.s4 1934713408
        %v7650 = vunpack.c.0.s8 %v7649
        %v7651 = vlaneseq
        %v7652 = vshrl.u32 %v7651, 7
        %v7653 = vsub.s32 %v7650, %v7652
        %v7654 = vrot.slane %v7646, %v7653
        %v7656 = vunpack.c.l.s4 1934713408
        %v7657 = vunpack.c.0.s8 %v7656
        %v7658 = vlaneseq
        %v7659 = vshrl.u32 %v7658, 7
        %v7660 = vsub.s32 %v7657, %v7659
        %v7661 = vrot.slane %v7647, %v7660
        %v7662 = vcombine.low %v7638, %v7654
        %v7663 = vcombine.high %v7638, %v7654
        %v7664 = vcombine.low %v7645, %v7661
        %v7665 = vcombine.high %v7645, %v7661
        %v7666 = vcombine.low %v7434, %v7441
        %v7668 = vunpack.c.l.s4 1983009808
        %v7669 = vunpack.c.0.s8 %v7668
        %v7670 = vlaneseq
        %v7671 = vshrl.u32 %v7670, 7
        %v7672 = vsub.s32 %v7669, %v7671
        %v7673 = vrot.slane %v7666, %v7672
        %v7674 = vcombine.low %v7458, %v7459
        %v7676 = vunpack.c.l.s4 1983009808
        %v7677 = vunpack.c.0.s8 %v7676
        %v7678 = vlaneseq
        %v7679 = vshrl.u32 %v7678, 7
        %v7680 = vsub.s32 %v7677, %v7679
        %v7681 = vrot.slane %v7674, %v7680
        %v7682 = vcombine.low %v7450, %v7457
        %v7684 = vunpack.c.l.s4 1983009808
        %v7685 = vunpack.c.0.s8 %v7684
        %v7686 = vlaneseq
        %v7687 = vshrl.u32 %v7686, 7
        %v7688 = vsub.s32 %v7685, %v7687
        %v7689 = vrot.slane %v7682, %v7688
        %v7690 = vcombine.low %v7460, %v7461
        %v7692 = vunpack.c.l.s4 1983009808
        %v7693 = vunpack.c.0.s8 %v7692
        %v7694 = vlaneseq
        %v7695 = vshrl.u32 %v7694, 7
        %v7696 = vsub.s32 %v7693, %v7695
        %v7697 = vrot.slane %v7690, %v7696
        %v7698 = vcombine.low %v7673, %v7681
        %v7699 = vcombine.high %v7673, %v7681
        %v7701 = vunpack.c.l.s4 1934713408
        %v7702 = vunpack.c.0.s8 %v7701
        %v7703 = vlaneseq
        %v7704 = vshrl.u32 %v7703, 7
        %v7705 = vsub.s32 %v7702, %v7704
        %v7706 = vrot.slane %v7698, %v7705
        %v7708 = vunpack.c.l.s4 1934713408
        %v7709 = vunpack.c.0.s8 %v7708
        %v7710 = vlaneseq
        %v7711 = vshrl.u32 %v7710, 7
        %v7712 = vsub.s32 %v7709, %v7711
        %v7713 = vrot.slane %v7699, %v7712
        %v7714 = vcombine.low %v7689, %v7697
        %v7715 = vcombine.high %v7689, %v7697
        %v7717 = vunpack.c.l.s4 1934713408
        %v7718 = vunpack.c.0.s8 %v7717
        %v7719 = vlaneseq
        %v7720 = vshrl.u32 %v7719, 7
        %v7721 = vsub.s32 %v7718, %v7720
        %v7722 = vrot.slane %v7714, %v7721
        %v7724 = vunpack.c.l.s4 1934713408
        %v7725 = vunpack.c.0.s8 %v7724
        %v7726 = vlaneseq
        %v7727 = vshrl.u32 %v7726, 7
        %v7728 = vsub.s32 %v7725, %v7727
        %v7729 = vrot.slane %v7715, %v7728
        %v7730 = vcombine.low %v7706, %v7722
        %v7731 = vcombine.high %v7706, %v7722
        %v7732 = vcombine.low %v7713, %v7729
        %v7733 = vcombine.high %v7713, %v7729
        %v7734 = vcombine.low %v7502, %v7509
        %v7736 = vunpack.c.l.s4 1983009808
        %v7737 = vunpack.c.0.s8 %v7736
        %v7738 = vlaneseq
        %v7739 = vshrl.u32 %v7738, 7
        %v7740 = vsub.s32 %v7737, %v7739
        %v7741 = vrot.slane %v7734, %v7740
        %v7742 = vcombine.low %v7526, %v7527
        %v7744 = vunpack.c.l.s4 1983009808
        %v7745 = vunpack.c.0.s8 %v7744
        %v7746 = vlaneseq
        %v7747 = vshrl.u32 %v7746, 7
        %v7748 = vsub.s32 %v7745, %v7747
        %v7749 = vrot.slane %v7742, %v7748
        %v7750 = vcombine.low %v7518, %v7525
        %v7752 = vunpack.c.l.s4 1983009808
        %v7753 = vunpack.c.0.s8 %v7752
        %v7754 = vlaneseq
        %v7755 = vshrl.u32 %v7754, 7
        %v7756 = vsub.s32 %v7753, %v7755
        %v7757 = vrot.slane %v7750, %v7756
        %v7758 = vcombine.low %v7528, %v7529
        %v7760 = vunpack.c.l.s4 1983009808
        %v7761 = vunpack.c.0.s8 %v7760
        %v7762 = vlaneseq
        %v7763 = vshrl.u32 %v7762, 7
        %v7764 = vsub.s32 %v7761, %v7763
        %v7765 = vrot.slane %v7758, %v7764
        %v7766 = vcombine.low %v7741, %v7749
        %v7767 = vcombine.high %v7741, %v7749
        %v7769 = vunpack.c.l.s4 1934713408
        %v7770 = vunpack.c.0.s8 %v7769
        %v7771 = vlaneseq
        %v7772 = vshrl.u32 %v7771, 7
        %v7773 = vsub.s32 %v7770, %v7772
        %v7774 = vrot.slane %v7766, %v7773
        %v7776 = vunpack.c.l.s4 1934713408
        %v7777 = vunpack.c.0.s8 %v7776
        %v7778 = vlaneseq
        %v7779 = vshrl.u32 %v7778, 7
        %v7780 = vsub.s32 %v7777, %v7779
        %v7781 = vrot.slane %v7767, %v7780
        %v7782 = vcombine.low %v7757, %v7765
        %v7783 = vcombine.high %v7757, %v7765
        %v7785 = vunpack.c.l.s4 1934713408
        %v7786 = vunpack.c.0.s8 %v7785
        %v7787 = vlaneseq
        %v7788 = vshrl.u32 %v7787, 7
        %v7789 = vsub.s32 %v7786, %v7788
        %v7790 = vrot.slane %v7782, %v7789
        %v7792 = vunpack.c.l.s4 1934713408
        %v7793 = vunpack.c.0.s8 %v7792
        %v7794 = vlaneseq
        %v7795 = vshrl.u32 %v7794, 7
        %v7796 = vsub.s32 %v7793, %v7795
        %v7797 = vrot.slane %v7783, %v7796
        %v7798 = vcombine.low %v7774, %v7790
        %v7799 = vcombine.high %v7774, %v7790
        %v7800 = vcombine.low %v7781, %v7797
        %v7801 = vcombine.high %v7781, %v7797
        %7806 = vrot.lane.b32.xlu0 %v7595, 8
        %v7807 = vpop.permute.xlu0 %7806
        %7808 = vrot.lane.b32.xlu0 %v7663, 8
        %v7809 = vpop.permute.xlu0 %7808
        %7810 = vrot.lane.b32.xlu0 %v7731, 8
        %v7811 = vpop.permute.xlu0 %7810
        %7812 = vrot.lane.b32.xlu0 %v7799, 8
        %v7813 = vpop.permute.xlu0 %7812
        %7822 = vrot.lane.b32.xlu0 %v7596, 16
        %v7823 = vpop.permute.xlu0 %7822
        %7824 = vrot.lane.b32.xlu0 %v7664, 16
        %v7825 = vpop.permute.xlu0 %7824
        %7826 = vrot.lane.b32.xlu0 %v7732, 16
        %v7827 = vpop.permute.xlu0 %7826
        %7828 = vrot.lane.b32.xlu0 %v7800, 16
        %v7829 = vpop.permute.xlu0 %7828
        %7838 = vrot.lane.b32.xlu0 %v7597, 24
        %v7839 = vpop.permute.xlu0 %7838
        %7840 = vrot.lane.b32.xlu0 %v7665, 24
        %v7841 = vpop.permute.xlu0 %7840
        %7842 = vrot.lane.b32.xlu0 %v7733, 24
        %v7843 = vpop.permute.xlu0 %7842
        %7844 = vrot.lane.b32.xlu0 %v7801, 24
        %v7845 = vpop.permute.xlu0 %7844
        %v7850 = vsel %vm2478, %v7594, %v7807
        %v7851 = vsel %vm2478, %v7662, %v7809
        %v7852 = vsel %vm2478, %v7730, %v7811
        %v7853 = vsel %vm2478, %v7798, %v7813
        %v7854 = vsel %vm2881, %v7850, %v7823
        %v7855 = vsel %vm2881, %v7851, %v7825
        %v7856 = vsel %vm2881, %v7852, %v7827
        %v7857 = vsel %vm2881, %v7853, %v7829
        %v7858 = vsel %vm4018, %v7854, %v7839
        %v7859 = vsel %vm4018, %v7855, %v7841
        %v7860 = vsel %vm4018, %v7856, %v7843
        %v7861 = vsel %vm4018, %v7857, %v7845
        %v7862 = vpack.c.bf16 %v7859, %v7858
        %v7863 = vpack.c.bf16 %v7861, %v7860
        %s7864 = scalar_lea.vmem [#allocation4], 16
        %v7865 = vld [vmem:[%s7864] sm:$0xf]
        %v7866 = vld [vmem:[%s7864 + $0x4] sm:$0xf]
        %v7867 = vld [vmem:[%s7864 + $0x8] sm:$0xf]
        %v7868 = vld [vmem:[%s7864 + $0xc] sm:$0xf]
        %v7869 = vld [vmem:[%s5 + $0x1] sm:$0x1]
        %v7870 = vlaneseq
        %v7871 = vshrl.u32 %v7870, 7
        %v7872 = vsub.s32 0, %v7871
        %v7873 = vrot.slane %v7869, %v7872
        %v7878 = vunpack.c.l.b16 %v7865
        %v7879 = vunpack.c.l.b16 %v7866
        %v7880 = vunpack.c.l.b16 %v7867
        %v7881 = vunpack.c.l.b16 %v7868
        %v7882 = vpack.c.b16 %v7879, %v7878
        %v7883 = vpack.c.b16 %v7881, %v7880
        %v7887 = vsel %vm598, %v7862, 0
        %v7890 = vsel %vm598, %v7863, 0
        %7892 = vmatprep.subr.bf16.mxu0 0
        %7893 = vmatpush1.bf16.msra.mxu0 %v7882
        %7894 = vmatprep.subr.bf16.mxu0 0
        %7895 = vmatpush1.bf16.msra.mxu0 %v7883
        %7896 = vmatprep.subr.bf16.mxu0 0
        %7897 = vmatpush1.bf16.msra.mxu0 0
        %7898 = vmatprep.subr.bf16.mxu0 0
        %7899 = vmatpush1.bf16.msra.mxu0 0
        %7900 = vmatprep.subr.bf16.mxu0 0
        %7901 = vmatpush1.bf16.msra.mxu0 0
        %7902 = vmatprep.subr.bf16.mxu0 0
        %7903 = vmatpush1.bf16.msra.mxu0 0
        %7904 = vmatprep.subr.bf16.mxu0 0
        %7905 = vmatpush1.bf16.msra.mxu0 0
        %7906 = vmatprep.subr.bf16.mxu0 0
        %7907 = vmatpush1.bf16.msra.mxu0 0
        %7908 = vmatprep.subr.bf16.mxu0 0
        %7909 = vmatpush1.bf16.msra.mxu0 0
        %7910 = vmatprep.subr.bf16.mxu0 0
        %7911 = vmatpush1.bf16.msra.mxu0 0
        %7912 = vmatprep.subr.bf16.mxu0 0
        %7913 = vmatpush1.bf16.msra.mxu0 0
        %7914 = vmatprep.subr.bf16.mxu0 0
        %7915 = vmatpush1.bf16.msra.mxu0 0
        %7916 = vmatprep.subr.bf16.mxu0 0
        %7917 = vmatpush1.bf16.msra.mxu0 0
        %7918 = vmatprep.subr.bf16.mxu0 0
        %7919 = vmatpush1.bf16.msra.mxu0 0
        %7920 = vmatprep.subr.bf16.mxu0 0
        %7921 = vmatpush1.bf16.msra.mxu0 0
        %7922 = vmatprep.subr.bf16.mxu0 0
        %7923 = vmatpush1.bf16.msra.mxu0 0
        %7924 = vmatprep.mubr.bf16.mxu0 0
        %7925 = vmatmul.mubr.bf16.gmra.mrb[0].mxu0 %v7887
        %v7926 = vpop.f32.mrb[0].mxu0
        %v7927 = vadd.f32 %v7873, %v7926
        %v7928 = vpop.f32.mrb[0].mxu0
        %v7929 = vpop.f32.mrb[0].mxu0
        %v7930 = vadd.f32 %v7873, %v7929
        %v7931 = vpop.f32.mrb[0].mxu0
        %7932 = vmatprep.mubr.bf16.mxu0 0
        %7933 = vmatmul.mubr.bf16.gmra.mrb[0].mxu0 %v7890
        %v7934 = vpop.f32.mrb[0].mxu0
        %v7935 = vadd.f32 %v7873, %v7934
        %v7936 = vpop.f32.mrb[0].mxu0
        %v7937 = vpop.f32.mrb[0].mxu0
        %v7938 = vadd.f32 %v7873, %v7937
        %v7939 = vpop.f32.mrb[0].mxu0
        %7940 = vdwg.mxu0
        %v7941 = vadd.f32 %v4423, %v7927
        %v7942 = vadd.f32 %v4424, %v7930
        %v7943 = vadd.f32 %v4425, %v7935
        %v7944 = vadd.f32 %v4426, %v7938
        %v7945 = vld [vmem:[%s6 + $0x1] sm:$0x1]
        %v7946 = vld [vmem:[%s7 + $0x1] sm:$0x1]
        %v7947 = vsel %vm598, %v7941, 0.0
        %7948 = vadd.xlane.f32.xlu0 %v7947
        %v7949 = vpop.xlane.xlu0 %7948
        %v7950 = vsel %vm598, %v7942, 0.0
        %7951 = vadd.xlane.f32.xlu0 %v7950
        %v7952 = vpop.xlane.xlu0 %7951
        %v7953 = vsel %vm598, %v7943, 0.0
        %7954 = vadd.xlane.f32.xlu0 %v7953
        %v7955 = vpop.xlane.xlu0 %7954
        %v7956 = vsel %vm598, %v7944, 0.0
        %7957 = vadd.xlane.f32.xlu0 %v7956
        %v7958 = vpop.xlane.xlu0 %7957
        %v7959 = vmul.f32 %v7949, %v4119
        %v7960 = vmul.f32 %v7952, %v4119
        %v7961 = vmul.f32 %v7955, %v4119
        %v7962 = vmul.f32 %v7958, %v4119
        %v7963 = vsub.f32 %v7941, %v7959
        %v7964 = vsub.f32 %v7942, %v7960
        %v7965 = vsub.f32 %v7943, %v7961
        %v7966 = vsub.f32 %v7944, %v7962
        %v7967 = vmul.f32 %v7963, %v7963
        %v7968 = vmul.f32 %v7964, %v7964
        %v7969 = vmul.f32 %v7965, %v7965
        %v7970 = vmul.f32 %v7966, %v7966
        %v7971 = vsel %vm598, %v7967, 0.0
        %7972 = vadd.xlane.f32.xlu0 %v7971
        %v7973 = vpop.xlane.xlu0 %7972
        %v7974 = vsel %vm598, %v7968, 0.0
        %7975 = vadd.xlane.f32.xlu0 %v7974
        %v7976 = vpop.xlane.xlu0 %7975
        %v7977 = vsel %vm598, %v7969, 0.0
        %7978 = vadd.xlane.f32.xlu0 %v7977
        %v7979 = vpop.xlane.xlu0 %7978
        %v7980 = vsel %vm598, %v7970, 0.0
        %7981 = vadd.xlane.f32.xlu0 %v7980
        %v7982 = vpop.xlane.xlu0 %7981
        %v7983 = vmul.f32 %v7973, %v4119
        %v7984 = vmul.f32 %v7976, %v4119
        %v7985 = vmul.f32 %v7979, %v4119
        %v7986 = vmul.f32 %v7982, %v4119
        %v7987 = vadd.f32 %v7983, 1e-05
        %v7988 = vadd.f32 %v7984, 1e-05
        %v7989 = vadd.f32 %v7985, 1e-05
        %v7990 = vadd.f32 %v7986, 1e-05
        %v7991 = vrsqrt.pop %v7987
        %v7992 = vrsqrt.pop %v7988
        %v7993 = vrsqrt.pop %v7989
        %v7994 = vrsqrt.pop %v7990
        %v7995 = vmul.f32 %v7963, %v7991
        %v7996 = vmul.f32 %v7964, %v7992
        %v7997 = vmul.f32 %v7965, %v7993
        %v7998 = vmul.f32 %v7966, %v7994
        %v7999 = vlaneseq
        %v8000 = vshrl.u32 %v7999, 7
        %v8001 = vsub.s32 0, %v8000
        %v8002 = vrot.slane %v7945, %v8001
        %v8003 = vmul.f32 %v7995, %v8002
        %v8004 = vmul.f32 %v7996, %v8002
        %v8005 = vmul.f32 %v7997, %v8002
        %v8006 = vmul.f32 %v7998, %v8002
        %v8007 = vlaneseq
        %v8008 = vshrl.u32 %v8007, 7
        %v8009 = vsub.s32 0, %v8008
        %v8010 = vrot.slane %v7946, %v8009
        %v8011 = vadd.f32 %v8003, %v8010
        %v8012 = vadd.f32 %v8004, %v8010
        %v8013 = vadd.f32 %v8005, %v8010
        %v8014 = vadd.f32 %v8006, %v8010
        %v8015 = vpack.c.bf16 %v8012, %v8011
        %v8016 = vpack.c.bf16 %v8014, %v8013
        %s8017 = scalar_lea.vmem [#allocation7], 16
        %v8018 = vld [vmem:[%s8017] sm:$0xf]
        %v8019 = vld [vmem:[%s8017 + $0x4] sm:$0xf]
        %v8020 = vld [vmem:[%s8017 + $0x8] sm:$0xf]
        %v8021 = vld [vmem:[%s8017 + $0xc] sm:$0xf]
        %v8022 = vld [vmem:[#allocation9 + $0x1] sm:$0x1]
        %v8023 = vlaneseq
        %v8024 = vshrl.u32 %v8023, 7
        %v8025 = vsub.s32 0, %v8024
        %v8026 = vrot.slane %v8022, %v8025
        %v8031 = vunpack.c.l.b16 %v8018
        %v8032 = vunpack.c.l.b16 %v8019
        %v8033 = vunpack.c.l.b16 %v8020
        %v8034 = vunpack.c.l.b16 %v8021
        %v8035 = vpack.c.b16 %v8032, %v8031
        %v8036 = vpack.c.b16 %v8034, %v8033
        %v8040 = vsel %vm598, %v8015, 0
        %v8043 = vsel %vm598, %v8016, 0
        %8045 = vmatprep.subr.bf16.mxu0 0
        %8046 = vmatpush1.bf16.msra.mxu0 %v8035
        %8047 = vmatprep.subr.bf16.mxu0 0
        %8048 = vmatpush1.bf16.msra.mxu0 %v8036
        %8049 = vmatprep.subr.bf16.mxu0 0
        %8050 = vmatpush1.bf16.msra.mxu0 0
        %8051 = vmatprep.subr.bf16.mxu0 0
        %8052 = vmatpush1.bf16.msra.mxu0 0
        %8053 = vmatprep.subr.bf16.mxu0 0
        %8054 = vmatpush1.bf16.msra.mxu0 0
        %8055 = vmatprep.subr.bf16.mxu0 0
        %8056 = vmatpush1.bf16.msra.mxu0 0
        %8057 = vmatprep.subr.bf16.mxu0 0
        %8058 = vmatpush1.bf16.msra.mxu0 0
        %8059 = vmatprep.subr.bf16.mxu0 0
        %8060 = vmatpush1.bf16.msra.mxu0 0
        %8061 = vmatprep.subr.bf16.mxu0 0
        %8062 = vmatpush1.bf16.msra.mxu0 0
        %8063 = vmatprep.subr.bf16.mxu0 0
        %8064 = vmatpush1.bf16.msra.mxu0 0
        %8065 = vmatprep.subr.bf16.mxu0 0
        %8066 = vmatpush1.bf16.msra.mxu0 0
        %8067 = vmatprep.subr.bf16.mxu0 0
        %8068 = vmatpush1.bf16.msra.mxu0 0
        %8069 = vmatprep.subr.bf16.mxu0 0
        %8070 = vmatpush1.bf16.msra.mxu0 0
        %8071 = vmatprep.subr.bf16.mxu0 0
        %8072 = vmatpush1.bf16.msra.mxu0 0
        %8073 = vmatprep.subr.bf16.mxu0 0
        %8074 = vmatpush1.bf16.msra.mxu0 0
        %8075 = vmatprep.subr.bf16.mxu0 0
        %8076 = vmatpush1.bf16.msra.mxu0 0
        %8077 = vmatprep.mubr.bf16.mxu0 0
        %8078 = vmatmul.mubr.bf16.gmra.mrb[0].mxu0 %v8040
        %v8079 = vpop.f32.mrb[0].mxu0
        %v8080 = vadd.f32 %v8026, %v8079
        %v8081 = vpop.f32.mrb[0].mxu0
        %v8082 = vpop.f32.mrb[0].mxu0
        %v8083 = vadd.f32 %v8026, %v8082
        %v8084 = vpop.f32.mrb[0].mxu0
        %8085 = vmatprep.mubr.bf16.mxu0 0
        %8086 = vmatmul.mubr.bf16.gmra.mrb[0].mxu0 %v8043
        %v8087 = vpop.f32.mrb[0].mxu0
        %v8088 = vadd.f32 %v8026, %v8087
        %v8089 = vpop.f32.mrb[0].mxu0
        %v8090 = vpop.f32.mrb[0].mxu0
        %v8091 = vadd.f32 %v8026, %v8090
        %v8092 = vpop.f32.mrb[0].mxu0
        %8093 = vdwg.mxu0
        %v8094 = vmax.f32 %v8080, 0.0
        %v8095 = vmax.f32 %v8083, 0.0
        %v8096 = vmax.f32 %v8088, 0.0
        %v8097 = vmax.f32 %v8091, 0.0
        %v8098 = vpack.c.bf16 %v8095, %v8094
        %v8099 = vpack.c.bf16 %v8097, %v8096
        %s8100 = scalar_lea.vmem %s10, 32
        %v8101 = vld [vmem:[%s8100] sm:$0xf]
        %v8102 = vld [vmem:[%s8100 + $0x4] sm:$0xf]
        %v8103 = vld [vmem:[%s8100 + $0x8] sm:$0xf]
        %v8104 = vld [vmem:[%s8100 + $0xc] sm:$0xf]
        %v8105 = vld [vmem:[%s8100 + $0x10] sm:$0xf]
        %v8106 = vld [vmem:[%s8100 + $0x14] sm:$0xf]
        %v8107 = vld [vmem:[%s8100 + $0x18] sm:$0xf]
        %v8108 = vld [vmem:[%s8100 + $0x1c] sm:$0xf]
        %v8109 = vld [vmem:[#allocation10 + $0x1] sm:$0x1]
        %v8110 = vlaneseq
        %v8111 = vshrl.u32 %v8110, 7
        %v8112 = vsub.s32 0, %v8111
        %v8113 = vrot.slane %v8109, %v8112
        %v8122 = vunpack.c.l.b16 %v8101
        %v8123 = vunpack.c.l.b16 %v8102
        %v8124 = vunpack.c.l.b16 %v8103
        %v8125 = vunpack.c.l.b16 %v8104
        %v8126 = vunpack.c.l.b16 %v8105
        %v8127 = vunpack.c.l.b16 %v8106
        %v8128 = vunpack.c.l.b16 %v8107
        %v8129 = vunpack.c.l.b16 %v8108
        %v8130 = vpack.c.b16 %v8123, %v8122
        %v8131 = vpack.c.b16 %v8125, %v8124
        %v8132 = vpack.c.b16 %v8127, %v8126
        %v8133 = vpack.c.b16 %v8129, %v8128
        %v8139 = vsel %vm4297, %v8098, 0
        %v8142 = vsel %vm4297, %v8099, 0
        %8144 = vmatprep.subr.bf16.mxu0 0
        %8145 = vmatpush1.bf16.msra.mxu0 %v8130
        %8146 = vmatprep.subr.bf16.mxu0 0
        %8147 = vmatpush1.bf16.msra.mxu0 %v8131
        %8148 = vmatprep.subr.bf16.mxu0 0
        %8149 = vmatpush1.bf16.msra.mxu0 %v8132
        %8150 = vmatprep.subr.bf16.mxu0 0
        %8151 = vmatpush1.bf16.msra.mxu0 %v8133
        %8152 = vmatprep.subr.bf16.mxu0 0
        %8153 = vmatpush1.bf16.msra.mxu0 0
        %8154 = vmatprep.subr.bf16.mxu0 0
        %8155 = vmatpush1.bf16.msra.mxu0 0
        %8156 = vmatprep.subr.bf16.mxu0 0
        %8157 = vmatpush1.bf16.msra.mxu0 0
        %8158 = vmatprep.subr.bf16.mxu0 0
        %8159 = vmatpush1.bf16.msra.mxu0 0
        %8160 = vmatprep.subr.bf16.mxu0 0
        %8161 = vmatpush1.bf16.msra.mxu0 0
        %8162 = vmatprep.subr.bf16.mxu0 0
        %8163 = vmatpush1.bf16.msra.mxu0 0
        %8164 = vmatprep.subr.bf16.mxu0 0
        %8165 = vmatpush1.bf16.msra.mxu0 0
        %8166 = vmatprep.subr.bf16.mxu0 0
        %8167 = vmatpush1.bf16.msra.mxu0 0
        %8168 = vmatprep.subr.bf16.mxu0 0
        %8169 = vmatpush1.bf16.msra.mxu0 0
        %8170 = vmatprep.subr.bf16.mxu0 0
        %8171 = vmatpush1.bf16.msra.mxu0 0
        %8172 = vmatprep.subr.bf16.mxu0 0
        %8173 = vmatpush1.bf16.msra.mxu0 0
        %8174 = vmatprep.subr.bf16.mxu0 0
        %8175 = vmatpush1.bf16.msra.mxu0 0
        %8176 = vmatprep.mubr.bf16.mxu0 0
        %8177 = vmatmul.mubr.bf16.gmra.mrb[0].mxu0 %v8139
        %v8178 = vpop.f32.mrb[0].mxu0
        %v8179 = vadd.f32 %v8113, %v8178
        %v8180 = vpop.f32.mrb[0].mxu0
        %v8181 = vpop.f32.mrb[0].mxu0
        %v8182 = vpop.f32.mrb[0].mxu0
        %8183 = vmatprep.mubr.bf16.mxu0 0
        %8184 = vmatmul.mubr.bf16.gmra.mrb[0].mxu0 %v8142
        %v8185 = vpop.f32.mrb[0].mxu0
        %v8186 = vadd.f32 %v8113, %v8185
        %v8187 = vpop.f32.mrb[0].mxu0
        %v8188 = vpop.f32.mrb[0].mxu0
        %v8189 = vpop.f32.mrb[0].mxu0
        %8190 = vdwg.mxu0
        %v8191 = vadd.f32 %v8011, %v8179
        %v8192 = vadd.f32 %v8013, %v8186
        %v8193 = vld [vmem:[#allocation12 + $0x1] sm:$0x1]
        %v8194 = vld [vmem:[#allocation13 + $0x1] sm:$0x1]
        %v8195 = vsel %vm598, %v8191, 0.0
        %8196 = vadd.xlane.f32.xlu0 %v8195
        %v8197 = vpop.xlane.xlu0 %8196
        %v8198 = vsel %vm598, %v8192, 0.0
        %8199 = vadd.xlane.f32.xlu0 %v8198
        %v8200 = vpop.xlane.xlu0 %8199
        %v8201 = vmul.f32 %v8197, %v4119
        %v8202 = vmul.f32 %v8200, %v4119
        %v8203 = vsub.f32 %v8191, %v8201
        %v8204 = vsub.f32 %v8192, %v8202
        %v8205 = vmul.f32 %v8203, %v8203
        %v8206 = vmul.f32 %v8204, %v8204
        %v8207 = vsel %vm598, %v8205, 0.0
        %8208 = vadd.xlane.f32.xlu0 %v8207
        %v8209 = vpop.xlane.xlu0 %8208
        %v8210 = vsel %vm598, %v8206, 0.0
        %8211 = vadd.xlane.f32.xlu0 %v8210
        %v8212 = vpop.xlane.xlu0 %8211
        %v8213 = vmul.f32 %v8209, %v4119
        %v8214 = vmul.f32 %v8212, %v4119
        %v8215 = vadd.f32 %v8213, 1e-05
        %v8216 = vadd.f32 %v8214, 1e-05
        %v8217 = vrsqrt.pop %v8215
        %v8218 = vrsqrt.pop %v8216
        %v8219 = vmul.f32 %v8203, %v8217
        %v8220 = vmul.f32 %v8204, %v8218
        %v8221 = vlaneseq
        %v8222 = vshrl.u32 %v8221, 7
        %v8223 = vsub.s32 0, %v8222
        %v8224 = vrot.slane %v8193, %v8223
        %v8225 = vmul.f32 %v8219, %v8224
        %v8226 = vmul.f32 %v8220, %v8224
        %v8227 = vlaneseq
        %v8228 = vshrl.u32 %v8227, 7
        %v8229 = vsub.s32 0, %v8228
        %v8230 = vrot.slane %v8194, %v8229
        %v8231 = vadd.f32 %v8225, %v8230
        %v8232 = vadd.f32 %v8226, %v8230
        %vm8233 = vcmask 253952
        %8234 = vst.msk [vmem:[%s523] sm:$0x1] %vm8233, %v8231
        %8235 = vst.msk [vmem:[%s523 + $0x1] sm:$0x1] %vm8233, %v8232
        %s8236 = sand.u32 %s324, 1
        %s8237 = scalar_lea.sflag [#allocation6], %s8236
        %s8238 = sand.u32 %s324, 1
        %s8239 = smul.addr %s8238, 2
        %s8240 = scalar_lea.vmem [#allocation15], %s8239
        // Predicated region
        $region97: #{aggregator_forward.1} parent=71 // pred_check
          %p8241 = pneg %p334
        $region98: #{aggregator_forward.1} parent=71 // pred_check_branch
          %8243 = sbr.rel (%p8241) target = $region100
        $region99: #{aggregator_forward.1} parent=71 // pred_region
          %s8244 = smul.u32 2, %s38
          %s8246 = ssub.s32 32, 32
          %8247 = vsyncadd %s8237, %s8246
          %s8248 = smul.addr %s8244, 16
          %s8249 = scalar_lea.hbm %s14, %s8248
          %s8250 = sshll.u32 %s8240, 4
          %s8251 = int_to_ptr.vmem [resolvable:$true] %s8250
          %8256 = dma.vmem_to_hbm [thread:$0]  %s8251, 32, %s8249, %s8237, 16, 16, 1
        $region100: #{aggregator_forward.1} parent=71 // pred_fallthru
          _
      $region72: #{aggregator_forward.1} parent=5 // pred_fallthru
        _
      %p8257 = scmp.le.s32.totalorder 2, %s33
      // Predicated region
      $region101: #{aggregator_forward.1} parent=5 // pred_check
        %p8258 = pneg %p8257
      $region102: #{aggregator_forward.1} parent=5 // pred_check_branch
        %8260 = sbr.rel (%p8258) target = $region104
      $region103: #{aggregator_forward.1} parent=5 // pred_region
        %s8261 = ssub.s32 %s33, 2
        // Predicated region
        $region105: #{aggregator_forward.1} parent=103 // pred_check
          %p8262 = pneg %p340
        $region106: #{aggregator_forward.1} parent=103 // pred_check_branch
          %8264 = sbr.rel (%p8262) target = $region108
        $region107: #{aggregator_forward.1} parent=103 // pred_region
          %s8265 = sand.u32 %s325, 1
          %s8266 = scalar_lea.sflag [#allocation6], %s8265
          %s8267 = sand.u32 %s325, 1
          %s8268 = smul.addr %s8267, 2
          %s8269 = scalar_lea.vmem [#allocation15], %s8268
          %8270 = dma.done %s8266, 32
        $region108: #{aggregator_forward.1} parent=103 // pred_fallthru
          _
      $region104: #{aggregator_forward.1} parent=5 // pred_fallthru
        _
    $region6: #{aggregator_forward.1} parent=1 // loop_footer
      %s37 = sadd.s32 1, %s33
    $region7: #{aggregator_forward.1} parent=1 // loop_footer_branch
      %32 = sbr.rel target = $region3
    $region8: #{aggregator_forward.1} parent=1 // loop_exit
      _
    %8271 = vsyncpa [#allocation5], 1
    %s8272 = scalar_lea.sflag [#allocation5], 1
    %8273 = vsyncpa %s8272, 1
    %8274 = vsyncpa [#allocation8], 1
    %8275 = vsyncpa [#allocation11], 1
    %8276 = vsyncpa [#allocation14], 1
    %8277 = vsyncpa [#allocation6], 1
    %s8278 = scalar_lea.sflag [#allocation6], 1
    %8279 = vsyncpa %s8278, 1

</llo_original>
